<compile_context>
chip_gen: v7x
topology: tpu7x:2x2x1
jax: 0.10.0
libtpu: 0.0.40
codegen_flags: <defaults>
</compile_context>

<pallas_src>
import jax
import jax.numpy as jnp
import numpy as np
from jax import lax
from jax.experimental import pallas as pl
from jax.experimental.pallas import tpu as pltpu


# ----------------------------- Pallas kernels ------------------------------ #

def conv_stack_kernel(x_ref, w1_ref, b1_ref, w2_ref, b2_ref, w3_ref, b3_ref,
                      o_ref, pad_a_ref, pad_b_ref):
    """Fused conv1->conv2->conv3 (3x3, stride 1, pad 1, BN folded, ReLU).

    Zero padding is done in VMEM scratch buffers of shape (N, H+2, W+9, C):
    the activation interior is stored at column offset 8 (sublane-tile aligned
    store), columns 7 and 8+W stay zero, so the nine shifted tap reads at
    column starts 7/8/9 see correct zero padding.

      x_ref : (N, H, W, C0)
      wK_ref: (3, 3, Cin, Cout) BN-folded HWIO weights,  bK_ref: (1, Cout)
      o_ref : (N, H, W, C3)
    """
    N, H, W, _ = x_ref.shape

    # Zero once; only the interior is ever (re)written, borders stay zero.
    pad_a_ref[...] = jnp.zeros(pad_a_ref.shape, pad_a_ref.dtype)
    pad_b_ref[...] = jnp.zeros(pad_b_ref.shape, pad_b_ref.dtype)

    def conv3x3_bn_relu(pad_ref, w_ref, b_ref):
        cin, cout = w_ref.shape[2], w_ref.shape[3]
        acc = jnp.zeros((N * H * W, cout), jnp.float32)
        # 9 shifted taps, each an (N*H*W, Cin) @ (Cin, Cout) MXU matmul.
        for dy in range(3):
            for dx in range(3):
                tap = pad_ref[:, dy:dy + H, 7 + dx:7 + dx + W, :]
                acc = acc + jnp.dot(tap.reshape(N * H * W, cin), w_ref[dy, dx],
                                    preferred_element_type=jnp.float32)
        return jnp.maximum(acc + b_ref[...], 0.0)          # (N*H*W, Cout)

    # block 1
    pad_a_ref[:, 1:H + 1, 8:8 + W, :] = x_ref[...]
    a1 = conv3x3_bn_relu(pad_a_ref, w1_ref, b1_ref)
    # block 2
    pad_b_ref[:, 1:H + 1, 8:8 + W, :] = a1.reshape(N, H, W, -1)
    a2 = conv3x3_bn_relu(pad_b_ref, w2_ref, b2_ref)
    # block 3 (reuses pad_b: same interior region overwritten, borders still 0)
    pad_b_ref[:, 1:H + 1, 8:8 + W, :] = a2.reshape(N, H, W, -1)
    a3 = conv3x3_bn_relu(pad_b_ref, w3_ref, b3_ref)

    o_ref[...] = a3.reshape(N, H, W, -1)


def mlp_kernel(x_ref, w1_ref, b1_ref, w2_ref, b2_ref, o_ref):
    """linear1 -> linear2 (no activation in between, matching the module).

    w1 rows are pre-permuted so x can be the NHWC-flattened conv output;
    w2/b2/output are zero-padded to 128 lanes for a lane-dense store.
    """
    h = jnp.dot(x_ref[...], w1_ref[...], preferred_element_type=jnp.float32)
    h = h + b1_ref[...]
    o = jnp.dot(h, w2_ref[...], preferred_element_type=jnp.float32)
    o_ref[...] = o + b2_ref[...]


# ------------------------------- wrappers ---------------------------------- #

def _full_spec(shape):
    return pl.BlockSpec(shape, lambda *_: (0,) * len(shape))


def conv_stack(x_nhwc, cw1, cb1, cw2, cb2, cw3, cb3):
    N, H, W, C0 = x_nhwc.shape
    C1, C2, C3 = cw1.shape[-1], cw2.shape[-1], cw3.shape[-1]
    return pl.pallas_call(
        conv_stack_kernel,
        out_shape=jax.ShapeDtypeStruct((N, H, W, C3), jnp.float32),
        grid=(1,),
        in_specs=[
            _full_spec((N, H, W, C0)),
            _full_spec((3, 3, C0, C1)), _full_spec((1, C1)),
            _full_spec((3, 3, C1, C2)), _full_spec((1, C2)),
            _full_spec((3, 3, C2, C3)), _full_spec((1, C3)),
        ],
        out_specs=_full_spec((N, H, W, C3)),
        scratch_shapes=[
            pltpu.VMEM((N, H + 2, W + 9, C0), jnp.float32),
            pltpu.VMEM((N, H + 2, W + 9, C1), jnp.float32),
        ],
        compiler_params=pltpu.CompilerParams(
            dimension_semantics=("arbitrary",)),
    )(x_nhwc, cw1, cb1, cw2, cb2, cw3, cb3)


def mlp(x_flat, w1, b1, w2, b2):
    N, F = x_flat.shape
    Hd, P = w1.shape[1], w2.shape[1]
    return pl.pallas_call(
        mlp_kernel,
        out_shape=jax.ShapeDtypeStruct((N, P), jnp.float32),
        grid=(1,),
        in_specs=[_full_spec((N, F)), _full_spec((F, Hd)), _full_spec((1, Hd)),
                  _full_spec((Hd, P)), _full_spec((1, P))],
        out_specs=_full_spec((N, P)),
        compiler_params=pltpu.CompilerParams(
            dimension_semantics=("arbitrary",)),
    )(x_flat, w1, b1, w2, b2)


def make_forward(num_class):
    @jax.jit
    def forward(x_nchw, prep):
        x = jnp.transpose(x_nchw, (0, 2, 3, 1))            # NCHW -> NHWC
        a3 = conv_stack(x, *prep["conv"])
        x_flat = a3.reshape(a3.shape[0], -1)               # NHWC flatten (order folded into w1)
        logits = mlp(x_flat, prep["w1"], prep["b1"], prep["w2"], prep["b2"])
        return logits[:, :num_class]
    return forward


# ----------------------- parameter construction ---------------------------- #

def make_params(key, in_channels, out_channels, L, resolution, num_class):
    plan = [(in_channels, out_channels), (16, 16), (16, 32)]
    keys = iter(jax.random.split(key, 6 * len(plan) + 4))
    convs = []
    for cin, cout in plan:
        convs.append(dict(
            w=jax.random.normal(next(keys), (3, 3, cin, cout), jnp.float32)
              * (1.0 / np.sqrt(9.0 * cin)),
            b=0.1 * jax.random.normal(next(keys), (cout,), jnp.float32),
            gamma=1.0 + 0.1 * jax.random.normal(next(keys), (cout,), jnp.float32),
            beta=0.1 * jax.random.normal(next(keys), (cout,), jnp.float32),
            mean=0.1 * jax.random.normal(next(keys), (cout,), jnp.float32),
            var=jnp.abs(jax.random.normal(next(keys), (cout,), jnp.float32)) + 0.5,
        ))
    F = L * resolution * 32
    w1 = 0.02 * jax.random.normal(next(keys), (F, 64), jnp.float32)
    b1 = 0.02 * jax.random.normal(next(keys), (64,), jnp.float32)
    w2 = 0.05 * jax.random.normal(next(keys), (64, num_class), jnp.float32)
    b2 = 0.05 * jax.random.normal(next(keys), (num_class,), jnp.float32)
    return {"convs": convs, "w1": w1, "b1": b1, "w2": w2, "b2": b2}


def prepare_params(params, H, W, eps=1e-5):
    """One-time prep: fold eval-mode BN, permute w1 rows, pad final projection."""
    conv_args = []
    for c in params["convs"]:
        s = c["gamma"] / jnp.sqrt(c["var"] + eps)
        wf = c["w"] * s[None, None, None, :]
        bf = c["beta"] + (c["b"] - c["mean"]) * s
        conv_args += [wf, bf.reshape(1, -1)]
    C3 = params["convs"][-1]["w"].shape[-1]
    hid = params["w1"].shape[1]
    num_class = params["w2"].shape[1]
    # fold torch.nn.Flatten's NCHW (c,h,w) row order into w1 so the kernel can
    # consume the NHWC-flattened conv output directly (no runtime transpose)
    w1p = (params["w1"].reshape(C3, H, W, hid)
           .transpose(1, 2, 0, 3).reshape(H * W * C3, hid))
    # pad the tiny final projection to 128 lanes for a lane-dense output store
    pad = 128
    w2p = jnp.zeros((hid, pad), jnp.float32).at[:, :num_class].set(params["w2"])
    b2p = jnp.zeros((1, pad), jnp.float32).at[:, :num_class].set(params["b2"])
    return {"conv": tuple(conv_args), "w1": w1p,
            "b1": params["b1"].reshape(1, hid), "w2": w2p, "b2": b2p}


# ----------------------------- pure-JAX reference --------------------------- #

def ref_forward(x_nchw, params, eps=1e-5):
    x = jnp.transpose(x_nchw, (0, 2, 3, 1))
    for c in params["convs"]:
        y = lax.conv_general_dilated(
            x, c["w"], window_strides=(1, 1), padding=((1, 1), (1, 1)),
            dimension_numbers=("NHWC", "HWIO", "NHWC")) + c["b"]
        y = (y - c["mean"]) * (c["gamma"] / jnp.sqrt(c["var"] + eps)) + c["beta"]
        x = jnp.maximum(y, 0.0)
    x = jnp.transpose(x, (0, 3, 1, 2)).reshape(x.shape[0], -1)   # torch Flatten order
    h = x @ params["w1"] + params["b1"]
    return h @ params["w2"] + params["b2"]


# ---------------------------------- main ------------------------------------ #

if __name__ == "__main__":
    # Classifier(L=8, resolution=8, in_channels=4, out_channels=16, num_class=4)
    N, in_channels, out_channels = 2, 4, 16
    L, resolution, num_class = 8, 8, 4
    H, W = L, resolution

    key = jax.random.PRNGKey(0)
    kx, kp = jax.random.split(key)
    x = jax.random.normal(kx, (N, in_channels, H, W), jnp.float32)  # NCHW, like PyTorch
    params = make_params(kp, in_channels, out_channels, L, resolution, num_class)
    prep = prepare_params(params, H, W)

    forward = make_forward(num_class)
    out = jax.block_until_ready(forward(x, prep))
    ref = jax.block_until_ready(ref_forward(x, params))

    np.testing.assert_allclose(np.asarray(out), np.asarray(ref),
                               rtol=1e-4, atol=1e-4)
    assert out.shape == (N, num_class)

    print("KERNEL_OK")
</pallas_src>

<mosaic_0001>
module attributes {stable_mosaic.version = 11 : i64} {
  func.func @conv_stack_kernel(%arg0: i32, %arg1: memref<2x8x8x4xf32, #tpu.memory_space<vmem>>, %arg2: memref<3x3x4x16xf32, #tpu.memory_space<vmem>>, %arg3: memref<1x16xf32, #tpu.memory_space<vmem>>, %arg4: memref<3x3x16x16xf32, #tpu.memory_space<vmem>>, %arg5: memref<1x16xf32, #tpu.memory_space<vmem>>, %arg6: memref<3x3x16x32xf32, #tpu.memory_space<vmem>>, %arg7: memref<1x32xf32, #tpu.memory_space<vmem>>, %arg8: memref<2x8x8x32xf32, #tpu.memory_space<vmem>>, %arg9: memref<2x10x17x4xf32, #tpu.memory_space<vmem>>, %arg10: memref<2x10x17x16xf32, #tpu.memory_space<vmem>>) attributes {dimension_semantics = [#tpu.dimension_semantics<arbitrary>], iteration_bounds = array<i64: 1>, scalar_prefetch = 0 : i64, scratch_operands = 2 : i64, tpu.core_type = #tpu.core_type<tc>, window_params = [{pipeline_mode = #tpu.pipeline_mode<synchronous>, transform_indices = @transform_0, window_bounds = array<i64: 2, 8, 8, 4>}, {pipeline_mode = #tpu.pipeline_mode<synchronous>, transform_indices = @transform_1, window_bounds = array<i64: 3, 3, 4, 16>}, {pipeline_mode = #tpu.pipeline_mode<synchronous>, transform_indices = @transform_2, window_bounds = array<i64: 1, 16>}, {pipeline_mode = #tpu.pipeline_mode<synchronous>, transform_indices = @transform_3, window_bounds = array<i64: 3, 3, 16, 16>}, {pipeline_mode = #tpu.pipeline_mode<synchronous>, transform_indices = @transform_4, window_bounds = array<i64: 1, 16>}, {pipeline_mode = #tpu.pipeline_mode<synchronous>, transform_indices = @transform_5, window_bounds = array<i64: 3, 3, 16, 32>}, {pipeline_mode = #tpu.pipeline_mode<synchronous>, transform_indices = @transform_6, window_bounds = array<i64: 1, 32>}, {pipeline_mode = #tpu.pipeline_mode<synchronous>, transform_indices = @transform_7, window_bounds = array<i64: 2, 8, 8, 32>}]} {
    %cst = arith.constant 0.000000e+00 : f32
    %0 = vector.broadcast %cst : f32 to vector<2x10x17x4xf32>
    %c0 = arith.constant 0 : index
    %c0_0 = arith.constant 0 : index
    %c0_1 = arith.constant 0 : index
    %c0_2 = arith.constant 0 : index
    %1 = vector.load %arg9[%c0, %c0_0, %c0_1, %c0_2] : memref<2x10x17x4xf32, #tpu.memory_space<vmem>>, vector<2x10x17x4xf32>
    tpu.vector_store %arg9[%c0, %c0_0, %c0_1, %c0_2], %0 {strides = array<i32>} : memref<2x10x17x4xf32, #tpu.memory_space<vmem>>, vector<2x10x17x4xf32>,
    %cst_3 = arith.constant 0.000000e+00 : f32
    %2 = vector.broadcast %cst_3 : f32 to vector<2x10x17x16xf32>
    %c0_4 = arith.constant 0 : index
    %c0_5 = arith.constant 0 : index
    %c0_6 = arith.constant 0 : index
    %c0_7 = arith.constant 0 : index
    %3 = vector.load %arg10[%c0_4, %c0_5, %c0_6, %c0_7] : memref<2x10x17x16xf32, #tpu.memory_space<vmem>>, vector<2x10x17x16xf32>
    tpu.vector_store %arg10[%c0_4, %c0_5, %c0_6, %c0_7], %2 {strides = array<i32>} : memref<2x10x17x16xf32, #tpu.memory_space<vmem>>, vector<2x10x17x16xf32>,
    %c0_8 = arith.constant 0 : index
    %c0_9 = arith.constant 0 : index
    %c0_10 = arith.constant 0 : index
    %c0_11 = arith.constant 0 : index
    %4 = vector.load %arg1[%c0_8, %c0_9, %c0_10, %c0_11] : memref<2x8x8x4xf32, #tpu.memory_space<vmem>>, vector<2x8x8x4xf32>
    %c0_12 = arith.constant 0 : index
    %c1 = arith.constant 1 : index
    %c8 = arith.constant 8 : index
    %c0_13 = arith.constant 0 : index
    %5 = vector.load %arg9[%c0_12, %c1, %c8, %c0_13] : memref<2x10x17x4xf32, #tpu.memory_space<vmem>>, vector<2x8x8x4xf32>
    tpu.vector_store %arg9[%c0_12, %c1, %c8, %c0_13], %4 {strides = array<i32>} : memref<2x10x17x4xf32, #tpu.memory_space<vmem>>, vector<2x8x8x4xf32>,
    %cst_14 = arith.constant 0.000000e+00 : f32
    %6 = vector.broadcast %cst_14 : f32 to vector<128x16xf32>
    %c0_15 = arith.constant 0 : index
    %c0_16 = arith.constant 0 : index
    %c7 = arith.constant 7 : index
    %c0_17 = arith.constant 0 : index
    %7 = vector.load %arg9[%c0_15, %c0_16, %c7, %c0_17] : memref<2x10x17x4xf32, #tpu.memory_space<vmem>>, vector<2x8x8x4xf32>
    %8 = vector.shape_cast %7 : vector<2x8x8x4xf32> to vector<128x4xf32>
    %c0_18 = arith.constant 0 : index
    %c0_19 = arith.constant 0 : index
    %c0_20 = arith.constant 0 : index
    %c0_21 = arith.constant 0 : index
    %9 = vector.load %arg2[%c0_18, %c0_19, %c0_20, %c0_21] : memref<3x3x4x16xf32, #tpu.memory_space<vmem>>, vector<1x1x4x16xf32>
    %10 = vector.shape_cast %9 : vector<1x1x4x16xf32> to vector<4x16xf32>
    %cst_22 = arith.constant dense<0.000000e+00> : vector<128x16xf32>
    %11 = tpu.matmul %8, %10, %cst_22 {dimension_numbers = #tpu.dot_dimension_numbers<[1], [0], [0], [1], [0, 0, 1, 1], [], []>} : vector<128x4xf32>, vector<4x16xf32>, vector<128x16xf32> -> vector<128x16xf32>
    %12 = arith.addf %6, %11 : vector<128x16xf32>
    %c0_23 = arith.constant 0 : index
    %c0_24 = arith.constant 0 : index
    %c8_25 = arith.constant 8 : index
    %c0_26 = arith.constant 0 : index
    %13 = vector.load %arg9[%c0_23, %c0_24, %c8_25, %c0_26] : memref<2x10x17x4xf32, #tpu.memory_space<vmem>>, vector<2x8x8x4xf32>
    %14 = vector.shape_cast %13 : vector<2x8x8x4xf32> to vector<128x4xf32>
    %c0_27 = arith.constant 0 : index
    %c1_28 = arith.constant 1 : index
    %c0_29 = arith.constant 0 : index
    %c0_30 = arith.constant 0 : index
    %15 = vector.load %arg2[%c0_27, %c1_28, %c0_29, %c0_30] : memref<3x3x4x16xf32, #tpu.memory_space<vmem>>, vector<1x1x4x16xf32>
    %16 = vector.shape_cast %15 : vector<1x1x4x16xf32> to vector<4x16xf32>
    %cst_31 = arith.constant dense<0.000000e+00> : vector<128x16xf32>
    %17 = tpu.matmul %14, %16, %cst_31 {dimension_numbers = #tpu.dot_dimension_numbers<[1], [0], [0], [1], [0, 0, 1, 1], [], []>} : vector<128x4xf32>, vector<4x16xf32>, vector<128x16xf32> -> vector<128x16xf32>
    %18 = arith.addf %12, %17 : vector<128x16xf32>
    %c0_32 = arith.constant 0 : index
    %c0_33 = arith.constant 0 : index
    %c9 = arith.constant 9 : index
    %c0_34 = arith.constant 0 : index
    %19 = vector.load %arg9[%c0_32, %c0_33, %c9, %c0_34] : memref<2x10x17x4xf32, #tpu.memory_space<vmem>>, vector<2x8x8x4xf32>
    %20 = vector.shape_cast %19 : vector<2x8x8x4xf32> to vector<128x4xf32>
    %c0_35 = arith.constant 0 : index
    %c2 = arith.constant 2 : index
    %c0_36 = arith.constant 0 : index
    %c0_37 = arith.constant 0 : index
    %21 = vector.load %arg2[%c0_35, %c2, %c0_36, %c0_37] : memref<3x3x4x16xf32, #tpu.memory_space<vmem>>, vector<1x1x4x16xf32>
    %22 = vector.shape_cast %21 : vector<1x1x4x16xf32> to vector<4x16xf32>
    %cst_38 = arith.constant dense<0.000000e+00> : vector<128x16xf32>
    %23 = tpu.matmul %20, %22, %cst_38 {dimension_numbers = #tpu.dot_dimension_numbers<[1], [0], [0], [1], [0, 0, 1, 1], [], []>} : vector<128x4xf32>, vector<4x16xf32>, vector<128x16xf32> -> vector<128x16xf32>
    %24 = arith.addf %18, %23 : vector<128x16xf32>
    %c0_39 = arith.constant 0 : index
    %c1_40 = arith.constant 1 : index
    %c7_41 = arith.constant 7 : index
    %c0_42 = arith.constant 0 : index
    %25 = vector.load %arg9[%c0_39, %c1_40, %c7_41, %c0_42] : memref<2x10x17x4xf32, #tpu.memory_space<vmem>>, vector<2x8x8x4xf32>
    %26 = vector.shape_cast %25 : vector<2x8x8x4xf32> to vector<128x4xf32>
    %c1_43 = arith.constant 1 : index
    %c0_44 = arith.constant 0 : index
    %c0_45 = arith.constant 0 : index
    %c0_46 = arith.constant 0 : index
    %27 = vector.load %arg2[%c1_43, %c0_44, %c0_45, %c0_46] : memref<3x3x4x16xf32, #tpu.memory_space<vmem>>, vector<1x1x4x16xf32>
    %28 = vector.shape_cast %27 : vector<1x1x4x16xf32> to vector<4x16xf32>
    %cst_47 = arith.constant dense<0.000000e+00> : vector<128x16xf32>
    %29 = tpu.matmul %26, %28, %cst_47 {dimension_numbers = #tpu.dot_dimension_numbers<[1], [0], [0], [1], [0, 0, 1, 1], [], []>} : vector<128x4xf32>, vector<4x16xf32>, vector<128x16xf32> -> vector<128x16xf32>
    %30 = arith.addf %24, %29 : vector<128x16xf32>
    %c0_48 = arith.constant 0 : index
    %c1_49 = arith.constant 1 : index
    %c8_50 = arith.constant 8 : index
    %c0_51 = arith.constant 0 : index
    %31 = vector.load %arg9[%c0_48, %c1_49, %c8_50, %c0_51] : memref<2x10x17x4xf32, #tpu.memory_space<vmem>>, vector<2x8x8x4xf32>
    %32 = vector.shape_cast %31 : vector<2x8x8x4xf32> to vector<128x4xf32>
    %c1_52 = arith.constant 1 : index
    %c1_53 = arith.constant 1 : index
    %c0_54 = arith.constant 0 : index
    %c0_55 = arith.constant 0 : index
    %33 = vector.load %arg2[%c1_52, %c1_53, %c0_54, %c0_55] : memref<3x3x4x16xf32, #tpu.memory_space<vmem>>, vector<1x1x4x16xf32>
    %34 = vector.shape_cast %33 : vector<1x1x4x16xf32> to vector<4x16xf32>
    %cst_56 = arith.constant dense<0.000000e+00> : vector<128x16xf32>
    %35 = tpu.matmul %32, %34, %cst_56 {dimension_numbers = #tpu.dot_dimension_numbers<[1], [0], [0], [1], [0, 0, 1, 1], [], []>} : vector<128x4xf32>, vector<4x16xf32>, vector<128x16xf32> -> vector<128x16xf32>
    %36 = arith.addf %30, %35 : vector<128x16xf32>
    %c0_57 = arith.constant 0 : index
    %c1_58 = arith.constant 1 : index
    %c9_59 = arith.constant 9 : index
    %c0_60 = arith.constant 0 : index
    %37 = vector.load %arg9[%c0_57, %c1_58, %c9_59, %c0_60] : memref<2x10x17x4xf32, #tpu.memory_space<vmem>>, vector<2x8x8x4xf32>
    %38 = vector.shape_cast %37 : vector<2x8x8x4xf32> to vector<128x4xf32>
    %c1_61 = arith.constant 1 : index
    %c2_62 = arith.constant 2 : index
    %c0_63 = arith.constant 0 : index
    %c0_64 = arith.constant 0 : index
    %39 = vector.load %arg2[%c1_61, %c2_62, %c0_63, %c0_64] : memref<3x3x4x16xf32, #tpu.memory_space<vmem>>, vector<1x1x4x16xf32>
    %40 = vector.shape_cast %39 : vector<1x1x4x16xf32> to vector<4x16xf32>
    %cst_65 = arith.constant dense<0.000000e+00> : vector<128x16xf32>
    %41 = tpu.matmul %38, %40, %cst_65 {dimension_numbers = #tpu.dot_dimension_numbers<[1], [0], [0], [1], [0, 0, 1, 1], [], []>} : vector<128x4xf32>, vector<4x16xf32>, vector<128x16xf32> -> vector<128x16xf32>
    %42 = arith.addf %36, %41 : vector<128x16xf32>
    %c0_66 = arith.constant 0 : index
    %c2_67 = arith.constant 2 : index
    %c7_68 = arith.constant 7 : index
    %c0_69 = arith.constant 0 : index
    %43 = vector.load %arg9[%c0_66, %c2_67, %c7_68, %c0_69] : memref<2x10x17x4xf32, #tpu.memory_space<vmem>>, vector<2x8x8x4xf32>
    %44 = vector.shape_cast %43 : vector<2x8x8x4xf32> to vector<128x4xf32>
    %c2_70 = arith.constant 2 : index
    %c0_71 = arith.constant 0 : index
    %c0_72 = arith.constant 0 : index
    %c0_73 = arith.constant 0 : index
    %45 = vector.load %arg2[%c2_70, %c0_71, %c0_72, %c0_73] : memref<3x3x4x16xf32, #tpu.memory_space<vmem>>, vector<1x1x4x16xf32>
    %46 = vector.shape_cast %45 : vector<1x1x4x16xf32> to vector<4x16xf32>
    %cst_74 = arith.constant dense<0.000000e+00> : vector<128x16xf32>
    %47 = tpu.matmul %44, %46, %cst_74 {dimension_numbers = #tpu.dot_dimension_numbers<[1], [0], [0], [1], [0, 0, 1, 1], [], []>} : vector<128x4xf32>, vector<4x16xf32>, vector<128x16xf32> -> vector<128x16xf32>
    %48 = arith.addf %42, %47 : vector<128x16xf32>
    %c0_75 = arith.constant 0 : index
    %c2_76 = arith.constant 2 : index
    %c8_77 = arith.constant 8 : index
    %c0_78 = arith.constant 0 : index
    %49 = vector.load %arg9[%c0_75, %c2_76, %c8_77, %c0_78] : memref<2x10x17x4xf32, #tpu.memory_space<vmem>>, vector<2x8x8x4xf32>
    %50 = vector.shape_cast %49 : vector<2x8x8x4xf32> to vector<128x4xf32>
    %c2_79 = arith.constant 2 : index
    %c1_80 = arith.constant 1 : index
    %c0_81 = arith.constant 0 : index
    %c0_82 = arith.constant 0 : index
    %51 = vector.load %arg2[%c2_79, %c1_80, %c0_81, %c0_82] : memref<3x3x4x16xf32, #tpu.memory_space<vmem>>, vector<1x1x4x16xf32>
    %52 = vector.shape_cast %51 : vector<1x1x4x16xf32> to vector<4x16xf32>
    %cst_83 = arith.constant dense<0.000000e+00> : vector<128x16xf32>
    %53 = tpu.matmul %50, %52, %cst_83 {dimension_numbers = #tpu.dot_dimension_numbers<[1], [0], [0], [1], [0, 0, 1, 1], [], []>} : vector<128x4xf32>, vector<4x16xf32>, vector<128x16xf32> -> vector<128x16xf32>
    %54 = arith.addf %48, %53 : vector<128x16xf32>
    %c0_84 = arith.constant 0 : index
    %c2_85 = arith.constant 2 : index
    %c9_86 = arith.constant 9 : index
    %c0_87 = arith.constant 0 : index
    %55 = vector.load %arg9[%c0_84, %c2_85, %c9_86, %c0_87] : memref<2x10x17x4xf32, #tpu.memory_space<vmem>>, vector<2x8x8x4xf32>
    %56 = vector.shape_cast %55 : vector<2x8x8x4xf32> to vector<128x4xf32>
    %c2_88 = arith.constant 2 : index
    %c2_89 = arith.constant 2 : index
    %c0_90 = arith.constant 0 : index
    %c0_91 = arith.constant 0 : index
    %57 = vector.load %arg2[%c2_88, %c2_89, %c0_90, %c0_91] : memref<3x3x4x16xf32, #tpu.memory_space<vmem>>, vector<1x1x4x16xf32>
    %58 = vector.shape_cast %57 : vector<1x1x4x16xf32> to vector<4x16xf32>
    %cst_92 = arith.constant dense<0.000000e+00> : vector<128x16xf32>
    %59 = tpu.matmul %56, %58, %cst_92 {dimension_numbers = #tpu.dot_dimension_numbers<[1], [0], [0], [1], [0, 0, 1, 1], [], []>} : vector<128x4xf32>, vector<4x16xf32>, vector<128x16xf32> -> vector<128x16xf32>
    %60 = arith.addf %54, %59 : vector<128x16xf32>
    %c0_93 = arith.constant 0 : index
    %c0_94 = arith.constant 0 : index
    %61 = vector.load %arg3[%c0_93, %c0_94] : memref<1x16xf32, #tpu.memory_space<vmem>>, vector<1x16xf32>
    %62 = vector.broadcast %61 : vector<1x16xf32> to vector<128x16xf32>
    %63 = arith.addf %60, %62 : vector<128x16xf32>
    %cst_95 = arith.constant 0.000000e+00 : f32
    %64 = vector.broadcast %cst_95 : f32 to vector<128x16xf32>
    %65 = arith.maximumf %63, %64 : vector<128x16xf32>
    %66 = vector.shape_cast %65 : vector<128x16xf32> to vector<2x8x8x16xf32>
    %c0_96 = arith.constant 0 : index
    %c1_97 = arith.constant 1 : index
    %c8_98 = arith.constant 8 : index
    %c0_99 = arith.constant 0 : index
    %67 = vector.load %arg10[%c0_96, %c1_97, %c8_98, %c0_99] : memref<2x10x17x16xf32, #tpu.memory_space<vmem>>, vector<2x8x8x16xf32>
    tpu.vector_store %arg10[%c0_96, %c1_97, %c8_98, %c0_99], %66 {strides = array<i32>} : memref<2x10x17x16xf32, #tpu.memory_space<vmem>>, vector<2x8x8x16xf32>,
    %cst_100 = arith.constant 0.000000e+00 : f32
    %68 = vector.broadcast %cst_100 : f32 to vector<128x16xf32>
    %c0_101 = arith.constant 0 : index
    %c0_102 = arith.constant 0 : index
    %c7_103 = arith.constant 7 : index
    %c0_104 = arith.constant 0 : index
    %69 = vector.load %arg10[%c0_101, %c0_102, %c7_103, %c0_104] : memref<2x10x17x16xf32, #tpu.memory_space<vmem>>, vector<2x8x8x16xf32>
    %70 = vector.shape_cast %69 : vector<2x8x8x16xf32> to vector<128x16xf32>
    %c0_105 = arith.constant 0 : index
    %c0_106 = arith.constant 0 : index
    %c0_107 = arith.constant 0 : index
    %c0_108 = arith.constant 0 : index
    %71 = vector.load %arg4[%c0_105, %c0_106, %c0_107, %c0_108] : memref<3x3x16x16xf32, #tpu.memory_space<vmem>>, vector<1x1x16x16xf32>
    %72 = vector.shape_cast %71 : vector<1x1x16x16xf32> to vector<16x16xf32>
    %cst_109 = arith.constant dense<0.000000e+00> : vector<128x16xf32>
    %73 = tpu.matmul %70, %72, %cst_109 {dimension_numbers = #tpu.dot_dimension_numbers<[1], [0], [0], [1], [0, 0, 1, 1], [], []>} : vector<128x16xf32>, vector<16x16xf32>, vector<128x16xf32> -> vector<128x16xf32>
    %74 = arith.addf %68, %73 : vector<128x16xf32>
    %c0_110 = arith.constant 0 : index
    %c0_111 = arith.constant 0 : index
    %c8_112 = arith.constant 8 : index
    %c0_113 = arith.constant 0 : index
    %75 = vector.load %arg10[%c0_110, %c0_111, %c8_112, %c0_113] : memref<2x10x17x16xf32, #tpu.memory_space<vmem>>, vector<2x8x8x16xf32>
    %76 = vector.shape_cast %75 : vector<2x8x8x16xf32> to vector<128x16xf32>
    %c0_114 = arith.constant 0 : index
    %c1_115 = arith.constant 1 : index
    %c0_116 = arith.constant 0 : index
    %c0_117 = arith.constant 0 : index
    %77 = vector.load %arg4[%c0_114, %c1_115, %c0_116, %c0_117] : memref<3x3x16x16xf32, #tpu.memory_space<vmem>>, vector<1x1x16x16xf32>
    %78 = vector.shape_cast %77 : vector<1x1x16x16xf32> to vector<16x16xf32>
    %cst_118 = arith.constant dense<0.000000e+00> : vector<128x16xf32>
    %79 = tpu.matmul %76, %78, %cst_118 {dimension_numbers = #tpu.dot_dimension_numbers<[1], [0], [0], [1], [0, 0, 1, 1], [], []>} : vector<128x16xf32>, vector<16x16xf32>, vector<128x16xf32> -> vector<128x16xf32>
    %80 = arith.addf %74, %79 : vector<128x16xf32>
    %c0_119 = arith.constant 0 : index
    %c0_120 = arith.constant 0 : index
    %c9_121 = arith.constant 9 : index
    %c0_122 = arith.constant 0 : index
    %81 = vector.load %arg10[%c0_119, %c0_120, %c9_121, %c0_122] : memref<2x10x17x16xf32, #tpu.memory_space<vmem>>, vector<2x8x8x16xf32>
    %82 = vector.shape_cast %81 : vector<2x8x8x16xf32> to vector<128x16xf32>
    %c0_123 = arith.constant 0 : index
    %c2_124 = arith.constant 2 : index
    %c0_125 = arith.constant 0 : index
    %c0_126 = arith.constant 0 : index
    %83 = vector.load %arg4[%c0_123, %c2_124, %c0_125, %c0_126] : memref<3x3x16x16xf32, #tpu.memory_space<vmem>>, vector<1x1x16x16xf32>
    %84 = vector.shape_cast %83 : vector<1x1x16x16xf32> to vector<16x16xf32>
    %cst_127 = arith.constant dense<0.000000e+00> : vector<128x16xf32>
    %85 = tpu.matmul %82, %84, %cst_127 {dimension_numbers = #tpu.dot_dimension_numbers<[1], [0], [0], [1], [0, 0, 1, 1], [], []>} : vector<128x16xf32>, vector<16x16xf32>, vector<128x16xf32> -> vector<128x16xf32>
    %86 = arith.addf %80, %85 : vector<128x16xf32>
    %c0_128 = arith.constant 0 : index
    %c1_129 = arith.constant 1 : index
    %c7_130 = arith.constant 7 : index
    %c0_131 = arith.constant 0 : index
    %87 = vector.load %arg10[%c0_128, %c1_129, %c7_130, %c0_131] : memref<2x10x17x16xf32, #tpu.memory_space<vmem>>, vector<2x8x8x16xf32>
    %88 = vector.shape_cast %87 : vector<2x8x8x16xf32> to vector<128x16xf32>
    %c1_132 = arith.constant 1 : index
    %c0_133 = arith.constant 0 : index
    %c0_134 = arith.constant 0 : index
    %c0_135 = arith.constant 0 : index
    %89 = vector.load %arg4[%c1_132, %c0_133, %c0_134, %c0_135] : memref<3x3x16x16xf32, #tpu.memory_space<vmem>>, vector<1x1x16x16xf32>
    %90 = vector.shape_cast %89 : vector<1x1x16x16xf32> to vector<16x16xf32>
    %cst_136 = arith.constant dense<0.000000e+00> : vector<128x16xf32>
    %91 = tpu.matmul %88, %90, %cst_136 {dimension_numbers = #tpu.dot_dimension_numbers<[1], [0], [0], [1], [0, 0, 1, 1], [], []>} : vector<128x16xf32>, vector<16x16xf32>, vector<128x16xf32> -> vector<128x16xf32>
    %92 = arith.addf %86, %91 : vector<128x16xf32>
    %c0_137 = arith.constant 0 : index
    %c1_138 = arith.constant 1 : index
    %c8_139 = arith.constant 8 : index
    %c0_140 = arith.constant 0 : index
    %93 = vector.load %arg10[%c0_137, %c1_138, %c8_139, %c0_140] : memref<2x10x17x16xf32, #tpu.memory_space<vmem>>, vector<2x8x8x16xf32>
    %94 = vector.shape_cast %93 : vector<2x8x8x16xf32> to vector<128x16xf32>
    %c1_141 = arith.constant 1 : index
    %c1_142 = arith.constant 1 : index
    %c0_143 = arith.constant 0 : index
    %c0_144 = arith.constant 0 : index
    %95 = vector.load %arg4[%c1_141, %c1_142, %c0_143, %c0_144] : memref<3x3x16x16xf32, #tpu.memory_space<vmem>>, vector<1x1x16x16xf32>
    %96 = vector.shape_cast %95 : vector<1x1x16x16xf32> to vector<16x16xf32>
    %cst_145 = arith.constant dense<0.000000e+00> : vector<128x16xf32>
    %97 = tpu.matmul %94, %96, %cst_145 {dimension_numbers = #tpu.dot_dimension_numbers<[1], [0], [0], [1], [0, 0, 1, 1], [], []>} : vector<128x16xf32>, vector<16x16xf32>, vector<128x16xf32> -> vector<128x16xf32>
    %98 = arith.addf %92, %97 : vector<128x16xf32>
    %c0_146 = arith.constant 0 : index
    %c1_147 = arith.constant 1 : index
    %c9_148 = arith.constant 9 : index
    %c0_149 = arith.constant 0 : index
    %99 = vector.load %arg10[%c0_146, %c1_147, %c9_148, %c0_149] : memref<2x10x17x16xf32, #tpu.memory_space<vmem>>, vector<2x8x8x16xf32>
    %100 = vector.shape_cast %99 : vector<2x8x8x16xf32> to vector<128x16xf32>
    %c1_150 = arith.constant 1 : index
    %c2_151 = arith.constant 2 : index
    %c0_152 = arith.constant 0 : index
    %c0_153 = arith.constant 0 : index
    %101 = vector.load %arg4[%c1_150, %c2_151, %c0_152, %c0_153] : memref<3x3x16x16xf32, #tpu.memory_space<vmem>>, vector<1x1x16x16xf32>
    %102 = vector.shape_cast %101 : vector<1x1x16x16xf32> to vector<16x16xf32>
    %cst_154 = arith.constant dense<0.000000e+00> : vector<128x16xf32>
    %103 = tpu.matmul %100, %102, %cst_154 {dimension_numbers = #tpu.dot_dimension_numbers<[1], [0], [0], [1], [0, 0, 1, 1], [], []>} : vector<128x16xf32>, vector<16x16xf32>, vector<128x16xf32> -> vector<128x16xf32>
    %104 = arith.addf %98, %103 : vector<128x16xf32>
    %c0_155 = arith.constant 0 : index
    %c2_156 = arith.constant 2 : index
    %c7_157 = arith.constant 7 : index
    %c0_158 = arith.constant 0 : index
    %105 = vector.load %arg10[%c0_155, %c2_156, %c7_157, %c0_158] : memref<2x10x17x16xf32, #tpu.memory_space<vmem>>, vector<2x8x8x16xf32>
    %106 = vector.shape_cast %105 : vector<2x8x8x16xf32> to vector<128x16xf32>
    %c2_159 = arith.constant 2 : index
    %c0_160 = arith.constant 0 : index
    %c0_161 = arith.constant 0 : index
    %c0_162 = arith.constant 0 : index
    %107 = vector.load %arg4[%c2_159, %c0_160, %c0_161, %c0_162] : memref<3x3x16x16xf32, #tpu.memory_space<vmem>>, vector<1x1x16x16xf32>
    %108 = vector.shape_cast %107 : vector<1x1x16x16xf32> to vector<16x16xf32>
    %cst_163 = arith.constant dense<0.000000e+00> : vector<128x16xf32>
    %109 = tpu.matmul %106, %108, %cst_163 {dimension_numbers = #tpu.dot_dimension_numbers<[1], [0], [0], [1], [0, 0, 1, 1], [], []>} : vector<128x16xf32>, vector<16x16xf32>, vector<128x16xf32> -> vector<128x16xf32>
    %110 = arith.addf %104, %109 : vector<128x16xf32>
    %c0_164 = arith.constant 0 : index
    %c2_165 = arith.constant 2 : index
    %c8_166 = arith.constant 8 : index
    %c0_167 = arith.constant 0 : index
    %111 = vector.load %arg10[%c0_164, %c2_165, %c8_166, %c0_167] : memref<2x10x17x16xf32, #tpu.memory_space<vmem>>, vector<2x8x8x16xf32>
    %112 = vector.shape_cast %111 : vector<2x8x8x16xf32> to vector<128x16xf32>
    %c2_168 = arith.constant 2 : index
    %c1_169 = arith.constant 1 : index
    %c0_170 = arith.constant 0 : index
    %c0_171 = arith.constant 0 : index
    %113 = vector.load %arg4[%c2_168, %c1_169, %c0_170, %c0_171] : memref<3x3x16x16xf32, #tpu.memory_space<vmem>>, vector<1x1x16x16xf32>
    %114 = vector.shape_cast %113 : vector<1x1x16x16xf32> to vector<16x16xf32>
    %cst_172 = arith.constant dense<0.000000e+00> : vector<128x16xf32>
    %115 = tpu.matmul %112, %114, %cst_172 {dimension_numbers = #tpu.dot_dimension_numbers<[1], [0], [0], [1], [0, 0, 1, 1], [], []>} : vector<128x16xf32>, vector<16x16xf32>, vector<128x16xf32> -> vector<128x16xf32>
    %116 = arith.addf %110, %115 : vector<128x16xf32>
    %c0_173 = arith.constant 0 : index
    %c2_174 = arith.constant 2 : index
    %c9_175 = arith.constant 9 : index
    %c0_176 = arith.constant 0 : index
    %117 = vector.load %arg10[%c0_173, %c2_174, %c9_175, %c0_176] : memref<2x10x17x16xf32, #tpu.memory_space<vmem>>, vector<2x8x8x16xf32>
    %118 = vector.shape_cast %117 : vector<2x8x8x16xf32> to vector<128x16xf32>
    %c2_177 = arith.constant 2 : index
    %c2_178 = arith.constant 2 : index
    %c0_179 = arith.constant 0 : index
    %c0_180 = arith.constant 0 : index
    %119 = vector.load %arg4[%c2_177, %c2_178, %c0_179, %c0_180] : memref<3x3x16x16xf32, #tpu.memory_space<vmem>>, vector<1x1x16x16xf32>
    %120 = vector.shape_cast %119 : vector<1x1x16x16xf32> to vector<16x16xf32>
    %cst_181 = arith.constant dense<0.000000e+00> : vector<128x16xf32>
    %121 = tpu.matmul %118, %120, %cst_181 {dimension_numbers = #tpu.dot_dimension_numbers<[1], [0], [0], [1], [0, 0, 1, 1], [], []>} : vector<128x16xf32>, vector<16x16xf32>, vector<128x16xf32> -> vector<128x16xf32>
    %122 = arith.addf %116, %121 : vector<128x16xf32>
    %c0_182 = arith.constant 0 : index
    %c0_183 = arith.constant 0 : index
    %123 = vector.load %arg5[%c0_182, %c0_183] : memref<1x16xf32, #tpu.memory_space<vmem>>, vector<1x16xf32>
    %124 = vector.broadcast %123 : vector<1x16xf32> to vector<128x16xf32>
    %125 = arith.addf %122, %124 : vector<128x16xf32>
    %cst_184 = arith.constant 0.000000e+00 : f32
    %126 = vector.broadcast %cst_184 : f32 to vector<128x16xf32>
    %127 = arith.maximumf %125, %126 : vector<128x16xf32>
    %128 = vector.shape_cast %127 : vector<128x16xf32> to vector<2x8x8x16xf32>
    %c0_185 = arith.constant 0 : index
    %c1_186 = arith.constant 1 : index
    %c8_187 = arith.constant 8 : index
    %c0_188 = arith.constant 0 : index
    %129 = vector.load %arg10[%c0_185, %c1_186, %c8_187, %c0_188] : memref<2x10x17x16xf32, #tpu.memory_space<vmem>>, vector<2x8x8x16xf32>
    tpu.vector_store %arg10[%c0_185, %c1_186, %c8_187, %c0_188], %128 {strides = array<i32>} : memref<2x10x17x16xf32, #tpu.memory_space<vmem>>, vector<2x8x8x16xf32>,
    %cst_189 = arith.constant 0.000000e+00 : f32
    %130 = vector.broadcast %cst_189 : f32 to vector<128x32xf32>
    %c0_190 = arith.constant 0 : index
    %c0_191 = arith.constant 0 : index
    %c7_192 = arith.constant 7 : index
    %c0_193 = arith.constant 0 : index
    %131 = vector.load %arg10[%c0_190, %c0_191, %c7_192, %c0_193] : memref<2x10x17x16xf32, #tpu.memory_space<vmem>>, vector<2x8x8x16xf32>
    %132 = vector.shape_cast %131 : vector<2x8x8x16xf32> to vector<128x16xf32>
    %c0_194 = arith.constant 0 : index
    %c0_195 = arith.constant 0 : index
    %c0_196 = arith.constant 0 : index
    %c0_197 = arith.constant 0 : index
    %133 = vector.load %arg6[%c0_194, %c0_195, %c0_196, %c0_197] : memref<3x3x16x32xf32, #tpu.memory_space<vmem>>, vector<1x1x16x32xf32>
    %134 = vector.shape_cast %133 : vector<1x1x16x32xf32> to vector<16x32xf32>
    %cst_198 = arith.constant dense<0.000000e+00> : vector<128x32xf32>
    %135 = tpu.matmul %132, %134, %cst_198 {dimension_numbers = #tpu.dot_dimension_numbers<[1], [0], [0], [1], [0, 0, 1, 1], [], []>} : vector<128x16xf32>, vector<16x32xf32>, vector<128x32xf32> -> vector<128x32xf32>
    %136 = arith.addf %130, %135 : vector<128x32xf32>
    %c0_199 = arith.constant 0 : index
    %c0_200 = arith.constant 0 : index
    %c8_201 = arith.constant 8 : index
    %c0_202 = arith.constant 0 : index
    %137 = vector.load %arg10[%c0_199, %c0_200, %c8_201, %c0_202] : memref<2x10x17x16xf32, #tpu.memory_space<vmem>>, vector<2x8x8x16xf32>
    %138 = vector.shape_cast %137 : vector<2x8x8x16xf32> to vector<128x16xf32>
    %c0_203 = arith.constant 0 : index
    %c1_204 = arith.constant 1 : index
    %c0_205 = arith.constant 0 : index
    %c0_206 = arith.constant 0 : index
    %139 = vector.load %arg6[%c0_203, %c1_204, %c0_205, %c0_206] : memref<3x3x16x32xf32, #tpu.memory_space<vmem>>, vector<1x1x16x32xf32>
    %140 = vector.shape_cast %139 : vector<1x1x16x32xf32> to vector<16x32xf32>
    %cst_207 = arith.constant dense<0.000000e+00> : vector<128x32xf32>
    %141 = tpu.matmul %138, %140, %cst_207 {dimension_numbers = #tpu.dot_dimension_numbers<[1], [0], [0], [1], [0, 0, 1, 1], [], []>} : vector<128x16xf32>, vector<16x32xf32>, vector<128x32xf32> -> vector<128x32xf32>
    %142 = arith.addf %136, %141 : vector<128x32xf32>
    %c0_208 = arith.constant 0 : index
    %c0_209 = arith.constant 0 : index
    %c9_210 = arith.constant 9 : index
    %c0_211 = arith.constant 0 : index
    %143 = vector.load %arg10[%c0_208, %c0_209, %c9_210, %c0_211] : memref<2x10x17x16xf32, #tpu.memory_space<vmem>>, vector<2x8x8x16xf32>
    %144 = vector.shape_cast %143 : vector<2x8x8x16xf32> to vector<128x16xf32>
    %c0_212 = arith.constant 0 : index
    %c2_213 = arith.constant 2 : index
    %c0_214 = arith.constant 0 : index
    %c0_215 = arith.constant 0 : index
    %145 = vector.load %arg6[%c0_212, %c2_213, %c0_214, %c0_215] : memref<3x3x16x32xf32, #tpu.memory_space<vmem>>, vector<1x1x16x32xf32>
    %146 = vector.shape_cast %145 : vector<1x1x16x32xf32> to vector<16x32xf32>
    %cst_216 = arith.constant dense<0.000000e+00> : vector<128x32xf32>
    %147 = tpu.matmul %144, %146, %cst_216 {dimension_numbers = #tpu.dot_dimension_numbers<[1], [0], [0], [1], [0, 0, 1, 1], [], []>} : vector<128x16xf32>, vector<16x32xf32>, vector<128x32xf32> -> vector<128x32xf32>
    %148 = arith.addf %142, %147 : vector<128x32xf32>
    %c0_217 = arith.constant 0 : index
    %c1_218 = arith.constant 1 : index
    %c7_219 = arith.constant 7 : index
    %c0_220 = arith.constant 0 : index
    %149 = vector.load %arg10[%c0_217, %c1_218, %c7_219, %c0_220] : memref<2x10x17x16xf32, #tpu.memory_space<vmem>>, vector<2x8x8x16xf32>
    %150 = vector.shape_cast %149 : vector<2x8x8x16xf32> to vector<128x16xf32>
    %c1_221 = arith.constant 1 : index
    %c0_222 = arith.constant 0 : index
    %c0_223 = arith.constant 0 : index
    %c0_224 = arith.constant 0 : index
    %151 = vector.load %arg6[%c1_221, %c0_222, %c0_223, %c0_224] : memref<3x3x16x32xf32, #tpu.memory_space<vmem>>, vector<1x1x16x32xf32>
    %152 = vector.shape_cast %151 : vector<1x1x16x32xf32> to vector<16x32xf32>
    %cst_225 = arith.constant dense<0.000000e+00> : vector<128x32xf32>
    %153 = tpu.matmul %150, %152, %cst_225 {dimension_numbers = #tpu.dot_dimension_numbers<[1], [0], [0], [1], [0, 0, 1, 1], [], []>} : vector<128x16xf32>, vector<16x32xf32>, vector<128x32xf32> -> vector<128x32xf32>
    %154 = arith.addf %148, %153 : vector<128x32xf32>
    %c0_226 = arith.constant 0 : index
    %c1_227 = arith.constant 1 : index
    %c8_228 = arith.constant 8 : index
    %c0_229 = arith.constant 0 : index
    %155 = vector.load %arg10[%c0_226, %c1_227, %c8_228, %c0_229] : memref<2x10x17x16xf32, #tpu.memory_space<vmem>>, vector<2x8x8x16xf32>
    %156 = vector.shape_cast %155 : vector<2x8x8x16xf32> to vector<128x16xf32>
    %c1_230 = arith.constant 1 : index
    %c1_231 = arith.constant 1 : index
    %c0_232 = arith.constant 0 : index
    %c0_233 = arith.constant 0 : index
    %157 = vector.load %arg6[%c1_230, %c1_231, %c0_232, %c0_233] : memref<3x3x16x32xf32, #tpu.memory_space<vmem>>, vector<1x1x16x32xf32>
    %158 = vector.shape_cast %157 : vector<1x1x16x32xf32> to vector<16x32xf32>
    %cst_234 = arith.constant dense<0.000000e+00> : vector<128x32xf32>
    %159 = tpu.matmul %156, %158, %cst_234 {dimension_numbers = #tpu.dot_dimension_numbers<[1], [0], [0], [1], [0, 0, 1, 1], [], []>} : vector<128x16xf32>, vector<16x32xf32>, vector<128x32xf32> -> vector<128x32xf32>
    %160 = arith.addf %154, %159 : vector<128x32xf32>
    %c0_235 = arith.constant 0 : index
    %c1_236 = arith.constant 1 : index
    %c9_237 = arith.constant 9 : index
    %c0_238 = arith.constant 0 : index
    %161 = vector.load %arg10[%c0_235, %c1_236, %c9_237, %c0_238] : memref<2x10x17x16xf32, #tpu.memory_space<vmem>>, vector<2x8x8x16xf32>
    %162 = vector.shape_cast %161 : vector<2x8x8x16xf32> to vector<128x16xf32>
    %c1_239 = arith.constant 1 : index
    %c2_240 = arith.constant 2 : index
    %c0_241 = arith.constant 0 : index
    %c0_242 = arith.constant 0 : index
    %163 = vector.load %arg6[%c1_239, %c2_240, %c0_241, %c0_242] : memref<3x3x16x32xf32, #tpu.memory_space<vmem>>, vector<1x1x16x32xf32>
    %164 = vector.shape_cast %163 : vector<1x1x16x32xf32> to vector<16x32xf32>
    %cst_243 = arith.constant dense<0.000000e+00> : vector<128x32xf32>
    %165 = tpu.matmul %162, %164, %cst_243 {dimension_numbers = #tpu.dot_dimension_numbers<[1], [0], [0], [1], [0, 0, 1, 1], [], []>} : vector<128x16xf32>, vector<16x32xf32>, vector<128x32xf32> -> vector<128x32xf32>
    %166 = arith.addf %160, %165 : vector<128x32xf32>
    %c0_244 = arith.constant 0 : index
    %c2_245 = arith.constant 2 : index
    %c7_246 = arith.constant 7 : index
    %c0_247 = arith.constant 0 : index
    %167 = vector.load %arg10[%c0_244, %c2_245, %c7_246, %c0_247] : memref<2x10x17x16xf32, #tpu.memory_space<vmem>>, vector<2x8x8x16xf32>
    %168 = vector.shape_cast %167 : vector<2x8x8x16xf32> to vector<128x16xf32>
    %c2_248 = arith.constant 2 : index
    %c0_249 = arith.constant 0 : index
    %c0_250 = arith.constant 0 : index
    %c0_251 = arith.constant 0 : index
    %169 = vector.load %arg6[%c2_248, %c0_249, %c0_250, %c0_251] : memref<3x3x16x32xf32, #tpu.memory_space<vmem>>, vector<1x1x16x32xf32>
    %170 = vector.shape_cast %169 : vector<1x1x16x32xf32> to vector<16x32xf32>
    %cst_252 = arith.constant dense<0.000000e+00> : vector<128x32xf32>
    %171 = tpu.matmul %168, %170, %cst_252 {dimension_numbers = #tpu.dot_dimension_numbers<[1], [0], [0], [1], [0, 0, 1, 1], [], []>} : vector<128x16xf32>, vector<16x32xf32>, vector<128x32xf32> -> vector<128x32xf32>
    %172 = arith.addf %166, %171 : vector<128x32xf32>
    %c0_253 = arith.constant 0 : index
    %c2_254 = arith.constant 2 : index
    %c8_255 = arith.constant 8 : index
    %c0_256 = arith.constant 0 : index
    %173 = vector.load %arg10[%c0_253, %c2_254, %c8_255, %c0_256] : memref<2x10x17x16xf32, #tpu.memory_space<vmem>>, vector<2x8x8x16xf32>
    %174 = vector.shape_cast %173 : vector<2x8x8x16xf32> to vector<128x16xf32>
    %c2_257 = arith.constant 2 : index
    %c1_258 = arith.constant 1 : index
    %c0_259 = arith.constant 0 : index
    %c0_260 = arith.constant 0 : index
    %175 = vector.load %arg6[%c2_257, %c1_258, %c0_259, %c0_260] : memref<3x3x16x32xf32, #tpu.memory_space<vmem>>, vector<1x1x16x32xf32>
    %176 = vector.shape_cast %175 : vector<1x1x16x32xf32> to vector<16x32xf32>
    %cst_261 = arith.constant dense<0.000000e+00> : vector<128x32xf32>
    %177 = tpu.matmul %174, %176, %cst_261 {dimension_numbers = #tpu.dot_dimension_numbers<[1], [0], [0], [1], [0, 0, 1, 1], [], []>} : vector<128x16xf32>, vector<16x32xf32>, vector<128x32xf32> -> vector<128x32xf32>
    %178 = arith.addf %172, %177 : vector<128x32xf32>
    %c0_262 = arith.constant 0 : index
    %c2_263 = arith.constant 2 : index
    %c9_264 = arith.constant 9 : index
    %c0_265 = arith.constant 0 : index
    %179 = vector.load %arg10[%c0_262, %c2_263, %c9_264, %c0_265] : memref<2x10x17x16xf32, #tpu.memory_space<vmem>>, vector<2x8x8x16xf32>
    %180 = vector.shape_cast %179 : vector<2x8x8x16xf32> to vector<128x16xf32>
    %c2_266 = arith.constant 2 : index
    %c2_267 = arith.constant 2 : index
    %c0_268 = arith.constant 0 : index
    %c0_269 = arith.constant 0 : index
    %181 = vector.load %arg6[%c2_266, %c2_267, %c0_268, %c0_269] : memref<3x3x16x32xf32, #tpu.memory_space<vmem>>, vector<1x1x16x32xf32>
    %182 = vector.shape_cast %181 : vector<1x1x16x32xf32> to vector<16x32xf32>
    %cst_270 = arith.constant dense<0.000000e+00> : vector<128x32xf32>
    %183 = tpu.matmul %180, %182, %cst_270 {dimension_numbers = #tpu.dot_dimension_numbers<[1], [0], [0], [1], [0, 0, 1, 1], [], []>} : vector<128x16xf32>, vector<16x32xf32>, vector<128x32xf32> -> vector<128x32xf32>
    %184 = arith.addf %178, %183 : vector<128x32xf32>
    %c0_271 = arith.constant 0 : index
    %c0_272 = arith.constant 0 : index
    %185 = vector.load %arg7[%c0_271, %c0_272] : memref<1x32xf32, #tpu.memory_space<vmem>>, vector<1x32xf32>
    %186 = vector.broadcast %185 : vector<1x32xf32> to vector<128x32xf32>
    %187 = arith.addf %184, %186 : vector<128x32xf32>
    %cst_273 = arith.constant 0.000000e+00 : f32
    %188 = vector.broadcast %cst_273 : f32 to vector<128x32xf32>
    %189 = arith.maximumf %187, %188 : vector<128x32xf32>
    %190 = vector.shape_cast %189 : vector<128x32xf32> to vector<2x8x8x32xf32>
    %c0_274 = arith.constant 0 : index
    %c0_275 = arith.constant 0 : index
    %c0_276 = arith.constant 0 : index
    %c0_277 = arith.constant 0 : index
    %191 = vector.load %arg8[%c0_274, %c0_275, %c0_276, %c0_277] : memref<2x8x8x32xf32, #tpu.memory_space<vmem>>, vector<2x8x8x32xf32>
    tpu.vector_store %arg8[%c0_274, %c0_275, %c0_276, %c0_277], %190 {strides = array<i32>} : memref<2x8x8x32xf32, #tpu.memory_space<vmem>>, vector<2x8x8x32xf32>,
    return
  }
  func.func @transform_0(%arg0: i32) -> (i32, i32, i32, i32) {
    %c0_i32 = arith.constant 0 : i32
    %c0_i32_0 = arith.constant 0 : i32
    %c0_i32_1 = arith.constant 0 : i32
    %c0_i32_2 = arith.constant 0 : i32
    %c0_i32_3 = arith.constant 0 : i32
    return %c0_i32, %c0_i32_0, %c0_i32_1, %c0_i32_2 : i32, i32, i32, i32
  }
  func.func @transform_1(%arg0: i32) -> (i32, i32, i32, i32) {
    %c0_i32 = arith.constant 0 : i32
    %c0_i32_0 = arith.constant 0 : i32
    %c0_i32_1 = arith.constant 0 : i32
    %c0_i32_2 = arith.constant 0 : i32
    %c0_i32_3 = arith.constant 0 : i32
    return %c0_i32, %c0_i32_0, %c0_i32_1, %c0_i32_2 : i32, i32, i32, i32
  }
  func.func @transform_2(%arg0: i32) -> (i32, i32) {
    %c0_i32 = arith.constant 0 : i32
    %c0_i32_0 = arith.constant 0 : i32
    %c0_i32_1 = arith.constant 0 : i32
    return %c0_i32, %c0_i32_0 : i32, i32
  }
  func.func @transform_3(%arg0: i32) -> (i32, i32, i32, i32) {
    %c0_i32 = arith.constant 0 : i32
    %c0_i32_0 = arith.constant 0 : i32
    %c0_i32_1 = arith.constant 0 : i32
    %c0_i32_2 = arith.constant 0 : i32
    %c0_i32_3 = arith.constant 0 : i32
    return %c0_i32, %c0_i32_0, %c0_i32_1, %c0_i32_2 : i32, i32, i32, i32
  }
  func.func @transform_4(%arg0: i32) -> (i32, i32) {
    %c0_i32 = arith.constant 0 : i32
    %c0_i32_0 = arith.constant 0 : i32
    %c0_i32_1 = arith.constant 0 : i32
    return %c0_i32, %c0_i32_0 : i32, i32
  }
  func.func @transform_5(%arg0: i32) -> (i32, i32, i32, i32) {
    %c0_i32 = arith.constant 0 : i32
    %c0_i32_0 = arith.constant 0 : i32
    %c0_i32_1 = arith.constant 0 : i32
    %c0_i32_2 = arith.constant 0 : i32
    %c0_i32_3 = arith.constant 0 : i32
    return %c0_i32, %c0_i32_0, %c0_i32_1, %c0_i32_2 : i32, i32, i32, i32
  }
  func.func @transform_6(%arg0: i32) -> (i32, i32) {
    %c0_i32 = arith.constant 0 : i32
    %c0_i32_0 = arith.constant 0 : i32
    %c0_i32_1 = arith.constant 0 : i32
    return %c0_i32, %c0_i32_0 : i32, i32
  }
  func.func @transform_7(%arg0: i32) -> (i32, i32, i32, i32) {
    %c0_i32 = arith.constant 0 : i32
    %c0_i32_0 = arith.constant 0 : i32
    %c0_i32_1 = arith.constant 0 : i32
    %c0_i32_2 = arith.constant 0 : i32
    %c0_i32_3 = arith.constant 0 : i32
    return %c0_i32, %c0_i32_0, %c0_i32_1, %c0_i32_2 : i32, i32, i32, i32
  }
}

module attributes {stable_mosaic.version = 11 : i64} {
  func.func @mlp_kernel(%arg0: i32, %arg1: memref<2x2048xf32, #tpu.memory_space<vmem>>, %arg2: memref<2048x64xf32, #tpu.memory_space<vmem>>, %arg3: memref<1x64xf32, #tpu.memory_space<vmem>>, %arg4: memref<64x128xf32, #tpu.memory_space<vmem>>, %arg5: memref<1x128xf32, #tpu.memory_space<vmem>>, %arg6: memref<2x128xf32, #tpu.memory_space<vmem>>) attributes {dimension_semantics = [#tpu.dimension_semantics<arbitrary>], iteration_bounds = array<i64: 1>, scalar_prefetch = 0 : i64, scratch_operands = 0 : i64, tpu.core_type = #tpu.core_type<tc>, window_params = [{pipeline_mode = #tpu.pipeline_mode<synchronous>, transform_indices = @transform_0, window_bounds = array<i64: 2, 2048>}, {pipeline_mode = #tpu.pipeline_mode<synchronous>, transform_indices = @transform_1, window_bounds = array<i64: 2048, 64>}, {pipeline_mode = #tpu.pipeline_mode<synchronous>, transform_indices = @transform_2, window_bounds = array<i64: 1, 64>}, {pipeline_mode = #tpu.pipeline_mode<synchronous>, transform_indices = @transform_3, window_bounds = array<i64: 64, 128>}, {pipeline_mode = #tpu.pipeline_mode<synchronous>, transform_indices = @transform_4, window_bounds = array<i64: 1, 128>}, {pipeline_mode = #tpu.pipeline_mode<synchronous>, transform_indices = @transform_5, window_bounds = array<i64: 2, 128>}]} {
    %c0 = arith.constant 0 : index
    %c0_0 = arith.constant 0 : index
    %0 = vector.load %arg1[%c0, %c0_0] : memref<2x2048xf32, #tpu.memory_space<vmem>>, vector<2x2048xf32>
    %c0_1 = arith.constant 0 : index
    %c0_2 = arith.constant 0 : index
    %1 = vector.load %arg2[%c0_1, %c0_2] : memref<2048x64xf32, #tpu.memory_space<vmem>>, vector<2048x64xf32>
    %cst = arith.constant dense<0.000000e+00> : vector<2x64xf32>
    %2 = tpu.matmul %0, %1, %cst {dimension_numbers = #tpu.dot_dimension_numbers<[1], [0], [0], [1], [0, 0, 1, 1], [], []>} : vector<2x2048xf32>, vector<2048x64xf32>, vector<2x64xf32> -> vector<2x64xf32>
    %c0_3 = arith.constant 0 : index
    %c0_4 = arith.constant 0 : index
    %3 = vector.load %arg3[%c0_3, %c0_4] : memref<1x64xf32, #tpu.memory_space<vmem>>, vector<1x64xf32>
    %4 = vector.broadcast %3 : vector<1x64xf32> to vector<2x64xf32>
    %5 = arith.addf %2, %4 : vector<2x64xf32>
    %c0_5 = arith.constant 0 : index
    %c0_6 = arith.constant 0 : index
    %6 = vector.load %arg4[%c0_5, %c0_6] : memref<64x128xf32, #tpu.memory_space<vmem>>, vector<64x128xf32>
    %cst_7 = arith.constant dense<0.000000e+00> : vector<2x128xf32>
    %7 = tpu.matmul %5, %6, %cst_7 {dimension_numbers = #tpu.dot_dimension_numbers<[1], [0], [0], [1], [0, 0, 1, 1], [], []>} : vector<2x64xf32>, vector<64x128xf32>, vector<2x128xf32> -> vector<2x128xf32>
    %c0_8 = arith.constant 0 : index
    %c0_9 = arith.constant 0 : index
    %8 = vector.load %arg5[%c0_8, %c0_9] : memref<1x128xf32, #tpu.memory_space<vmem>>, vector<1x128xf32>
    %9 = vector.broadcast %8 : vector<1x128xf32> to vector<2x128xf32>
    %10 = arith.addf %7, %9 : vector<2x128xf32>
    %c0_10 = arith.constant 0 : index
    %c0_11 = arith.constant 0 : index
    %11 = vector.load %arg6[%c0_10, %c0_11] : memref<2x128xf32, #tpu.memory_space<vmem>>, vector<2x128xf32>
    tpu.vector_store %arg6[%c0_10, %c0_11], %10 {strides = array<i32>} : memref<2x128xf32, #tpu.memory_space<vmem>>, vector<2x128xf32>,
    return
  }
  func.func @transform_0(%arg0: i32) -> (i32, i32) {
    %c0_i32 = arith.constant 0 : i32
    %c0_i32_0 = arith.constant 0 : i32
    %c0_i32_1 = arith.constant 0 : i32
    return %c0_i32, %c0_i32_0 : i32, i32
  }
  func.func @transform_1(%arg0: i32) -> (i32, i32) {
    %c0_i32 = arith.constant 0 : i32
    %c0_i32_0 = arith.constant 0 : i32
    %c0_i32_1 = arith.constant 0 : i32
    return %c0_i32, %c0_i32_0 : i32, i32
  }
  func.func @transform_2(%arg0: i32) -> (i32, i32) {
    %c0_i32 = arith.constant 0 : i32
    %c0_i32_0 = arith.constant 0 : i32
    %c0_i32_1 = arith.constant 0 : i32
    return %c0_i32, %c0_i32_0 : i32, i32
  }
  func.func @transform_3(%arg0: i32) -> (i32, i32) {
    %c0_i32 = arith.constant 0 : i32
    %c0_i32_0 = arith.constant 0 : i32
    %c0_i32_1 = arith.constant 0 : i32
    return %c0_i32, %c0_i32_0 : i32, i32
  }
  func.func @transform_4(%arg0: i32) -> (i32, i32) {
    %c0_i32 = arith.constant 0 : i32
    %c0_i32_0 = arith.constant 0 : i32
    %c0_i32_1 = arith.constant 0 : i32
    return %c0_i32, %c0_i32_0 : i32, i32
  }
  func.func @transform_5(%arg0: i32) -> (i32, i32) {
    %c0_i32 = arith.constant 0 : i32
    %c0_i32_0 = arith.constant 0 : i32
    %c0_i32_1 = arith.constant 0 : i32
    return %c0_i32, %c0_i32_0 : i32, i32
  }
}

</mosaic_0001>

<llo_original>
// kernel: forward.3
$region0: #{forward.3}
  #allocation0 [shape = 'u32[]', space=smem, size = 0x4, offset = 0x4, fixed_abs, tag = 'smem constant byte address 0x4 - core index']
  #allocation1 [shape = 'u32[144,128]{1,0:T(1,128)}', space=vmem, size = 0x12000, scoped, tag = 'internal scratch']
  %s0 = inlined_call_operand.vmem [shape: f32[2,2048], index: 0, kind: input, shape index: {}]
  %s1 = inlined_call_operand.vmem [shape: f32[2048,64], index: 1, kind: input, shape index: {}]
  %s2 = inlined_call_operand.vmem [shape: f32[1,64], index: 2, kind: input, shape index: {}]
  %s3 = inlined_call_operand.vmem [shape: f32[64,128], index: 3, kind: input, shape index: {}]
  %s4 = inlined_call_operand.vmem [shape: f32[1,128], index: 4, kind: input, shape index: {}]
  %s5 = inlined_call_operand.hbm [shape: f32[2,128], index: 5, kind: output, shape index: {}]
  %s6 = sld [smem:[#allocation0]]
  $region30: #{forward.3} parent=0
    _
  %s8 = ssub.s32 1, %s6
  %s9 = scalar_select 0, %s8, %s6
  $region1: #{forward.3} parent=0
    #allocation2 [shape = 'u8[1024]{0}', space=vmem, size = 0x400, scoped, tag = 'output window, operand 0, single buffered']
    #allocation3 [shape = 's32[1]{0}', space=sflag, size = 0x4, scoped, tag = 'scoped memory for forward.3']
    %10 = vsyncpa [#allocation3], 0
    // Predicated region
    $region2: #{forward.3} parent=1 // pred_check
      _
    $region3: #{forward.3} parent=1 // pred_check_branch
      %12 = sbr.rel (0) target = $region5
    $region4: #{forward.3} parent=1 // pred_region
      _
    $region5: #{forward.3} parent=1 // pred_fallthru
      _
    // Predicated region
    $region6: #{forward.3} parent=1 // pred_check
      _
    $region7: #{forward.3} parent=1 // pred_check_branch
      %14 = sbr.rel (0) target = $region9
    $region8: #{forward.3} parent=1 // pred_region
      _
    $region9: #{forward.3} parent=1 // pred_fallthru
      _
    // Predicated region
    $region10: #{forward.3} parent=1 // pred_check
      _
    $region11: #{forward.3} parent=1 // pred_check_branch
      %16 = sbr.rel (0) target = $region13
    $region12: #{forward.3} parent=1 // pred_region
      _
    $region13: #{forward.3} parent=1 // pred_fallthru
      _
    // Predicated region
    $region14: #{forward.3} parent=1 // pred_check
      _
    $region15: #{forward.3} parent=1 // pred_check_branch
      %18 = sbr.rel (0) target = $region17
    $region16: #{forward.3} parent=1 // pred_region
      _
    $region17: #{forward.3} parent=1 // pred_fallthru
      _
    // Predicated region
    $region18: #{forward.3} parent=1 // pred_check
      _
    $region19: #{forward.3} parent=1 // pred_check_branch
      %20 = sbr.rel (0) target = $region21
    $region20: #{forward.3} parent=1 // pred_region
      _
    $region21: #{forward.3} parent=1 // pred_fallthru
      _
    %v21 = vld [vmem:[%s0] sm:$0xff]
    %v22 = vld [vmem:[%s0 + $0x8] sm:$0xff]
    %v23 = vld [vmem:[%s0 + $0x10] sm:$0xff]
    %v24 = vld [vmem:[%s0 + $0x18] sm:$0xff]
    %v25 = vld [vmem:[%s1] sm:$0xff]
    %v26 = vld [vmem:[%s1 + $0x8] sm:$0xff]
    %v27 = vld [vmem:[%s1 + $0x10] sm:$0xff]
    %v28 = vld [vmem:[%s1 + $0x18] sm:$0xff]
    %v29 = vld [vmem:[%s1 + $0x20] sm:$0xff]
    %v30 = vld [vmem:[%s1 + $0x28] sm:$0xff]
    %v31 = vld [vmem:[%s1 + $0x30] sm:$0xff]
    %v32 = vld [vmem:[%s1 + $0x38] sm:$0xff]
    %v33 = vld [vmem:[%s1 + $0x40] sm:$0xff]
    %v34 = vld [vmem:[%s1 + $0x48] sm:$0xff]
    %v35 = vld [vmem:[%s1 + $0x50] sm:$0xff]
    %v36 = vld [vmem:[%s1 + $0x58] sm:$0xff]
    %v37 = vld [vmem:[%s1 + $0x60] sm:$0xff]
    %v38 = vld [vmem:[%s1 + $0x68] sm:$0xff]
    %v39 = vld [vmem:[%s1 + $0x70] sm:$0xff]
    %v40 = vld [vmem:[%s1 + $0x78] sm:$0xff]
    %v41 = vld [vmem:[%s1 + $0x80] sm:$0xff]
    %v42 = vld [vmem:[%s1 + $0x88] sm:$0xff]
    %v43 = vld [vmem:[%s1 + $0x90] sm:$0xff]
    %v44 = vld [vmem:[%s1 + $0x98] sm:$0xff]
    %v45 = vld [vmem:[%s1 + $0xa0] sm:$0xff]
    %v46 = vld [vmem:[%s1 + $0xa8] sm:$0xff]
    %v47 = vld [vmem:[%s1 + $0xb0] sm:$0xff]
    %v48 = vld [vmem:[%s1 + $0xb8] sm:$0xff]
    %v49 = vld [vmem:[%s1 + $0xc0] sm:$0xff]
    %v50 = vld [vmem:[%s1 + $0xc8] sm:$0xff]
    %v51 = vld [vmem:[%s1 + $0xd0] sm:$0xff]
    %v52 = vld [vmem:[%s1 + $0xd8] sm:$0xff]
    %v53 = vld [vmem:[%s1 + $0xe0] sm:$0xff]
    %v54 = vld [vmem:[%s1 + $0xe8] sm:$0xff]
    %v55 = vld [vmem:[%s1 + $0xf0] sm:$0xff]
    %v56 = vld [vmem:[%s1 + $0xf8] sm:$0xff]
    %v57 = vld [vmem:[%s1 + $0x100] sm:$0xff]
    %v58 = vld [vmem:[%s1 + $0x108] sm:$0xff]
    %v59 = vld [vmem:[%s1 + $0x110] sm:$0xff]
    %v60 = vld [vmem:[%s1 + $0x118] sm:$0xff]
    %v61 = vld [vmem:[%s1 + $0x120] sm:$0xff]
    %v62 = vld [vmem:[%s1 + $0x128] sm:$0xff]
    %v63 = vld [vmem:[%s1 + $0x130] sm:$0xff]
    %v64 = vld [vmem:[%s1 + $0x138] sm:$0xff]
    %v65 = vld [vmem:[%s1 + $0x140] sm:$0xff]
    %v66 = vld [vmem:[%s1 + $0x148] sm:$0xff]
    %v67 = vld [vmem:[%s1 + $0x150] sm:$0xff]
    %v68 = vld [vmem:[%s1 + $0x158] sm:$0xff]
    %v69 = vld [vmem:[%s1 + $0x160] sm:$0xff]
    %v70 = vld [vmem:[%s1 + $0x168] sm:$0xff]
    %v71 = vld [vmem:[%s1 + $0x170] sm:$0xff]
    %v72 = vld [vmem:[%s1 + $0x178] sm:$0xff]
    %v73 = vld [vmem:[%s1 + $0x180] sm:$0xff]
    %v74 = vld [vmem:[%s1 + $0x188] sm:$0xff]
    %v75 = vld [vmem:[%s1 + $0x190] sm:$0xff]
    %v76 = vld [vmem:[%s1 + $0x198] sm:$0xff]
    %v77 = vld [vmem:[%s1 + $0x1a0] sm:$0xff]
    %v78 = vld [vmem:[%s1 + $0x1a8] sm:$0xff]
    %v79 = vld [vmem:[%s1 + $0x1b0] sm:$0xff]
    %v80 = vld [vmem:[%s1 + $0x1b8] sm:$0xff]
    %v81 = vld [vmem:[%s1 + $0x1c0] sm:$0xff]
    %v82 = vld [vmem:[%s1 + $0x1c8] sm:$0xff]
    %v83 = vld [vmem:[%s1 + $0x1d0] sm:$0xff]
    %v84 = vld [vmem:[%s1 + $0x1d8] sm:$0xff]
    %v85 = vld [vmem:[%s1 + $0x1e0] sm:$0xff]
    %v86 = vld [vmem:[%s1 + $0x1e8] sm:$0xff]
    %v87 = vld [vmem:[%s1 + $0x1f0] sm:$0xff]
    %v88 = vld [vmem:[%s1 + $0x1f8] sm:$0xff]
    %v89 = vld [vmem:[%s1 + $0x200] sm:$0xff]
    %v90 = vld [vmem:[%s1 + $0x208] sm:$0xff]
    %v91 = vld [vmem:[%s1 + $0x210] sm:$0xff]
    %v92 = vld [vmem:[%s1 + $0x218] sm:$0xff]
    %v93 = vld [vmem:[%s1 + $0x220] sm:$0xff]
    %v94 = vld [vmem:[%s1 + $0x228] sm:$0xff]
    %v95 = vld [vmem:[%s1 + $0x230] sm:$0xff]
    %v96 = vld [vmem:[%s1 + $0x238] sm:$0xff]
    %v97 = vld [vmem:[%s1 + $0x240] sm:$0xff]
    %v98 = vld [vmem:[%s1 + $0x248] sm:$0xff]
    %v99 = vld [vmem:[%s1 + $0x250] sm:$0xff]
    %v100 = vld [vmem:[%s1 + $0x258] sm:$0xff]
    %v101 = vld [vmem:[%s1 + $0x260] sm:$0xff]
    %v102 = vld [vmem:[%s1 + $0x268] sm:$0xff]
    %v103 = vld [vmem:[%s1 + $0x270] sm:$0xff]
    %v104 = vld [vmem:[%s1 + $0x278] sm:$0xff]
    %v105 = vld [vmem:[%s1 + $0x280] sm:$0xff]
    %v106 = vld [vmem:[%s1 + $0x288] sm:$0xff]
    %v107 = vld [vmem:[%s1 + $0x290] sm:$0xff]
    %v108 = vld [vmem:[%s1 + $0x298] sm:$0xff]
    %v109 = vld [vmem:[%s1 + $0x2a0] sm:$0xff]
    %v110 = vld [vmem:[%s1 + $0x2a8] sm:$0xff]
    %v111 = vld [vmem:[%s1 + $0x2b0] sm:$0xff]
    %v112 = vld [vmem:[%s1 + $0x2b8] sm:$0xff]
    %v113 = vld [vmem:[%s1 + $0x2c0] sm:$0xff]
    %v114 = vld [vmem:[%s1 + $0x2c8] sm:$0xff]
    %v115 = vld [vmem:[%s1 + $0x2d0] sm:$0xff]
    %v116 = vld [vmem:[%s1 + $0x2d8] sm:$0xff]
    %v117 = vld [vmem:[%s1 + $0x2e0] sm:$0xff]
    %v118 = vld [vmem:[%s1 + $0x2e8] sm:$0xff]
    %v119 = vld [vmem:[%s1 + $0x2f0] sm:$0xff]
    %v120 = vld [vmem:[%s1 + $0x2f8] sm:$0xff]
    %v121 = vld [vmem:[%s1 + $0x300] sm:$0xff]
    %v122 = vld [vmem:[%s1 + $0x308] sm:$0xff]
    %v123 = vld [vmem:[%s1 + $0x310] sm:$0xff]
    %v124 = vld [vmem:[%s1 + $0x318] sm:$0xff]
    %v125 = vld [vmem:[%s1 + $0x320] sm:$0xff]
    %v126 = vld [vmem:[%s1 + $0x328] sm:$0xff]
    %v127 = vld [vmem:[%s1 + $0x330] sm:$0xff]
    %v128 = vld [vmem:[%s1 + $0x338] sm:$0xff]
    %v129 = vld [vmem:[%s1 + $0x340] sm:$0xff]
    %v130 = vld [vmem:[%s1 + $0x348] sm:$0xff]
    %v131 = vld [vmem:[%s1 + $0x350] sm:$0xff]
    %v132 = vld [vmem:[%s1 + $0x358] sm:$0xff]
    %v133 = vld [vmem:[%s1 + $0x360] sm:$0xff]
    %v134 = vld [vmem:[%s1 + $0x368] sm:$0xff]
    %v135 = vld [vmem:[%s1 + $0x370] sm:$0xff]
    %v136 = vld [vmem:[%s1 + $0x378] sm:$0xff]
    %v137 = vld [vmem:[%s1 + $0x380] sm:$0xff]
    %v138 = vld [vmem:[%s1 + $0x388] sm:$0xff]
    %v139 = vld [vmem:[%s1 + $0x390] sm:$0xff]
    %v140 = vld [vmem:[%s1 + $0x398] sm:$0xff]
    %v141 = vld [vmem:[%s1 + $0x3a0] sm:$0xff]
    %v142 = vld [vmem:[%s1 + $0x3a8] sm:$0xff]
    %v143 = vld [vmem:[%s1 + $0x3b0] sm:$0xff]
    %v144 = vld [vmem:[%s1 + $0x3b8] sm:$0xff]
    %v145 = vld [vmem:[%s1 + $0x3c0] sm:$0xff]
    %v146 = vld [vmem:[%s1 + $0x3c8] sm:$0xff]
    %v147 = vld [vmem:[%s1 + $0x3d0] sm:$0xff]
    %v148 = vld [vmem:[%s1 + $0x3d8] sm:$0xff]
    %v149 = vld [vmem:[%s1 + $0x3e0] sm:$0xff]
    %v150 = vld [vmem:[%s1 + $0x3e8] sm:$0xff]
    %v151 = vld [vmem:[%s1 + $0x3f0] sm:$0xff]
    %v152 = vld [vmem:[%s1 + $0x3f8] sm:$0xff]
    %v153 = vld [vmem:[%s1 + $0x400] sm:$0xff]
    %v154 = vld [vmem:[%s1 + $0x408] sm:$0xff]
    %v155 = vld [vmem:[%s1 + $0x410] sm:$0xff]
    %v156 = vld [vmem:[%s1 + $0x418] sm:$0xff]
    %v157 = vld [vmem:[%s1 + $0x420] sm:$0xff]
    %v158 = vld [vmem:[%s1 + $0x428] sm:$0xff]
    %v159 = vld [vmem:[%s1 + $0x430] sm:$0xff]
    %v160 = vld [vmem:[%s1 + $0x438] sm:$0xff]
    %v161 = vld [vmem:[%s1 + $0x440] sm:$0xff]
    %v162 = vld [vmem:[%s1 + $0x448] sm:$0xff]
    %v163 = vld [vmem:[%s1 + $0x450] sm:$0xff]
    %v164 = vld [vmem:[%s1 + $0x458] sm:$0xff]
    %v165 = vld [vmem:[%s1 + $0x460] sm:$0xff]
    %v166 = vld [vmem:[%s1 + $0x468] sm:$0xff]
    %v167 = vld [vmem:[%s1 + $0x470] sm:$0xff]
    %v168 = vld [vmem:[%s1 + $0x478] sm:$0xff]
    %v169 = vld [vmem:[%s1 + $0x480] sm:$0xff]
    %v170 = vld [vmem:[%s1 + $0x488] sm:$0xff]
    %v171 = vld [vmem:[%s1 + $0x490] sm:$0xff]
    %v172 = vld [vmem:[%s1 + $0x498] sm:$0xff]
    %v173 = vld [vmem:[%s1 + $0x4a0] sm:$0xff]
    %v174 = vld [vmem:[%s1 + $0x4a8] sm:$0xff]
    %v175 = vld [vmem:[%s1 + $0x4b0] sm:$0xff]
    %v176 = vld [vmem:[%s1 + $0x4b8] sm:$0xff]
    %v177 = vld [vmem:[%s1 + $0x4c0] sm:$0xff]
    %v178 = vld [vmem:[%s1 + $0x4c8] sm:$0xff]
    %v179 = vld [vmem:[%s1 + $0x4d0] sm:$0xff]
    %v180 = vld [vmem:[%s1 + $0x4d8] sm:$0xff]
    %v181 = vld [vmem:[%s1 + $0x4e0] sm:$0xff]
    %v182 = vld [vmem:[%s1 + $0x4e8] sm:$0xff]
    %v183 = vld [vmem:[%s1 + $0x4f0] sm:$0xff]
    %v184 = vld [vmem:[%s1 + $0x4f8] sm:$0xff]
    %v185 = vld [vmem:[%s1 + $0x500] sm:$0xff]
    %v186 = vld [vmem:[%s1 + $0x508] sm:$0xff]
    %v187 = vld [vmem:[%s1 + $0x510] sm:$0xff]
    %v188 = vld [vmem:[%s1 + $0x518] sm:$0xff]
    %v189 = vld [vmem:[%s1 + $0x520] sm:$0xff]
    %v190 = vld [vmem:[%s1 + $0x528] sm:$0xff]
    %v191 = vld [vmem:[%s1 + $0x530] sm:$0xff]
    %v192 = vld [vmem:[%s1 + $0x538] sm:$0xff]
    %v193 = vld [vmem:[%s1 + $0x540] sm:$0xff]
    %v194 = vld [vmem:[%s1 + $0x548] sm:$0xff]
    %v195 = vld [vmem:[%s1 + $0x550] sm:$0xff]
    %v196 = vld [vmem:[%s1 + $0x558] sm:$0xff]
    %v197 = vld [vmem:[%s1 + $0x560] sm:$0xff]
    %v198 = vld [vmem:[%s1 + $0x568] sm:$0xff]
    %v199 = vld [vmem:[%s1 + $0x570] sm:$0xff]
    %v200 = vld [vmem:[%s1 + $0x578] sm:$0xff]
    %v201 = vld [vmem:[%s1 + $0x580] sm:$0xff]
    %v202 = vld [vmem:[%s1 + $0x588] sm:$0xff]
    %v203 = vld [vmem:[%s1 + $0x590] sm:$0xff]
    %v204 = vld [vmem:[%s1 + $0x598] sm:$0xff]
    %v205 = vld [vmem:[%s1 + $0x5a0] sm:$0xff]
    %v206 = vld [vmem:[%s1 + $0x5a8] sm:$0xff]
    %v207 = vld [vmem:[%s1 + $0x5b0] sm:$0xff]
    %v208 = vld [vmem:[%s1 + $0x5b8] sm:$0xff]
    %v209 = vld [vmem:[%s1 + $0x5c0] sm:$0xff]
    %v210 = vld [vmem:[%s1 + $0x5c8] sm:$0xff]
    %v211 = vld [vmem:[%s1 + $0x5d0] sm:$0xff]
    %v212 = vld [vmem:[%s1 + $0x5d8] sm:$0xff]
    %v213 = vld [vmem:[%s1 + $0x5e0] sm:$0xff]
    %v214 = vld [vmem:[%s1 + $0x5e8] sm:$0xff]
    %v215 = vld [vmem:[%s1 + $0x5f0] sm:$0xff]
    %v216 = vld [vmem:[%s1 + $0x5f8] sm:$0xff]
    %v217 = vld [vmem:[%s1 + $0x600] sm:$0xff]
    %v218 = vld [vmem:[%s1 + $0x608] sm:$0xff]
    %v219 = vld [vmem:[%s1 + $0x610] sm:$0xff]
    %v220 = vld [vmem:[%s1 + $0x618] sm:$0xff]
    %v221 = vld [vmem:[%s1 + $0x620] sm:$0xff]
    %v222 = vld [vmem:[%s1 + $0x628] sm:$0xff]
    %v223 = vld [vmem:[%s1 + $0x630] sm:$0xff]
    %v224 = vld [vmem:[%s1 + $0x638] sm:$0xff]
    %v225 = vld [vmem:[%s1 + $0x640] sm:$0xff]
    %v226 = vld [vmem:[%s1 + $0x648] sm:$0xff]
    %v227 = vld [vmem:[%s1 + $0x650] sm:$0xff]
    %v228 = vld [vmem:[%s1 + $0x658] sm:$0xff]
    %v229 = vld [vmem:[%s1 + $0x660] sm:$0xff]
    %v230 = vld [vmem:[%s1 + $0x668] sm:$0xff]
    %v231 = vld [vmem:[%s1 + $0x670] sm:$0xff]
    %v232 = vld [vmem:[%s1 + $0x678] sm:$0xff]
    %v233 = vld [vmem:[%s1 + $0x680] sm:$0xff]
    %v234 = vld [vmem:[%s1 + $0x688] sm:$0xff]
    %v235 = vld [vmem:[%s1 + $0x690] sm:$0xff]
    %v236 = vld [vmem:[%s1 + $0x698] sm:$0xff]
    %v237 = vld [vmem:[%s1 + $0x6a0] sm:$0xff]
    %v238 = vld [vmem:[%s1 + $0x6a8] sm:$0xff]
    %v239 = vld [vmem:[%s1 + $0x6b0] sm:$0xff]
    %v240 = vld [vmem:[%s1 + $0x6b8] sm:$0xff]
    %v241 = vld [vmem:[%s1 + $0x6c0] sm:$0xff]
    %v242 = vld [vmem:[%s1 + $0x6c8] sm:$0xff]
    %v243 = vld [vmem:[%s1 + $0x6d0] sm:$0xff]
    %v244 = vld [vmem:[%s1 + $0x6d8] sm:$0xff]
    %v245 = vld [vmem:[%s1 + $0x6e0] sm:$0xff]
    %v246 = vld [vmem:[%s1 + $0x6e8] sm:$0xff]
    %v247 = vld [vmem:[%s1 + $0x6f0] sm:$0xff]
    %v248 = vld [vmem:[%s1 + $0x6f8] sm:$0xff]
    %v249 = vld [vmem:[%s1 + $0x700] sm:$0xff]
    %v250 = vld [vmem:[%s1 + $0x708] sm:$0xff]
    %v251 = vld [vmem:[%s1 + $0x710] sm:$0xff]
    %v252 = vld [vmem:[%s1 + $0x718] sm:$0xff]
    %v253 = vld [vmem:[%s1 + $0x720] sm:$0xff]
    %v254 = vld [vmem:[%s1 + $0x728] sm:$0xff]
    %v255 = vld [vmem:[%s1 + $0x730] sm:$0xff]
    %v256 = vld [vmem:[%s1 + $0x738] sm:$0xff]
    %v257 = vld [vmem:[%s1 + $0x740] sm:$0xff]
    %v258 = vld [vmem:[%s1 + $0x748] sm:$0xff]
    %v259 = vld [vmem:[%s1 + $0x750] sm:$0xff]
    %v260 = vld [vmem:[%s1 + $0x758] sm:$0xff]
    %v261 = vld [vmem:[%s1 + $0x760] sm:$0xff]
    %v262 = vld [vmem:[%s1 + $0x768] sm:$0xff]
    %v263 = vld [vmem:[%s1 + $0x770] sm:$0xff]
    %v264 = vld [vmem:[%s1 + $0x778] sm:$0xff]
    %v265 = vld [vmem:[%s1 + $0x780] sm:$0xff]
    %v266 = vld [vmem:[%s1 + $0x788] sm:$0xff]
    %v267 = vld [vmem:[%s1 + $0x790] sm:$0xff]
    %v268 = vld [vmem:[%s1 + $0x798] sm:$0xff]
    %v269 = vld [vmem:[%s1 + $0x7a0] sm:$0xff]
    %v270 = vld [vmem:[%s1 + $0x7a8] sm:$0xff]
    %v271 = vld [vmem:[%s1 + $0x7b0] sm:$0xff]
    %v272 = vld [vmem:[%s1 + $0x7b8] sm:$0xff]
    %v273 = vld [vmem:[%s1 + $0x7c0] sm:$0xff]
    %v274 = vld [vmem:[%s1 + $0x7c8] sm:$0xff]
    %v275 = vld [vmem:[%s1 + $0x7d0] sm:$0xff]
    %v276 = vld [vmem:[%s1 + $0x7d8] sm:$0xff]
    %v277 = vld [vmem:[%s1 + $0x7e0] sm:$0xff]
    %v278 = vld [vmem:[%s1 + $0x7e8] sm:$0xff]
    %v279 = vld [vmem:[%s1 + $0x7f0] sm:$0xff]
    %v280 = vld [vmem:[%s1 + $0x7f8] sm:$0xff]
    %v281 = vld [vmem:[%s2] sm:$0x1]
    %v283 = vlaneseq
    %v284 = vshrl.u32 %v283, 7
    %v285 = vsub.s32 0, %v284
    %v286 = vrot.slane %v281, %v285
    %v292 = vcombine.high %v21, %v21
    %v294 = vunpack.c.l.s4 1983009808
    %v295 = vunpack.c.0.s8 %v294
    %v296 = vlaneseq
    %v297 = vshrl.u32 %v296, 7
    %v298 = vsub.s32 %v295, %v297
    %v299 = vrot.slane %v21, %v298
    %v301 = vunpack.c.l.s4 1983009808
    %v302 = vunpack.c.0.s8 %v301
    %v303 = vlaneseq
    %v304 = vshrl.u32 %v303, 7
    %v305 = vsub.s32 %v302, %v304
    %v306 = vrot.slane %v292, %v305
    %v307 = vcombine.high %v299, %v299
    %v308 = vcombine.high %v306, %v306
    %v309 = vcombine.high %v22, %v22
    %v311 = vunpack.c.l.s4 1983009808
    %v312 = vunpack.c.0.s8 %v311
    %v313 = vlaneseq
    %v314 = vshrl.u32 %v313, 7
    %v315 = vsub.s32 %v312, %v314
    %v316 = vrot.slane %v22, %v315
    %v318 = vunpack.c.l.s4 1983009808
    %v319 = vunpack.c.0.s8 %v318
    %v320 = vlaneseq
    %v321 = vshrl.u32 %v320, 7
    %v322 = vsub.s32 %v319, %v321
    %v323 = vrot.slane %v309, %v322
    %v324 = vcombine.high %v316, %v316
    %v325 = vcombine.high %v323, %v323
    %v326 = vcombine.high %v23, %v23
    %v328 = vunpack.c.l.s4 1983009808
    %v329 = vunpack.c.0.s8 %v328
    %v330 = vlaneseq
    %v331 = vshrl.u32 %v330, 7
    %v332 = vsub.s32 %v329, %v331
    %v333 = vrot.slane %v23, %v332
    %v335 = vunpack.c.l.s4 1983009808
    %v336 = vunpack.c.0.s8 %v335
    %v337 = vlaneseq
    %v338 = vshrl.u32 %v337, 7
    %v339 = vsub.s32 %v336, %v338
    %v340 = vrot.slane %v326, %v339
    %v341 = vcombine.high %v333, %v333
    %v342 = vcombine.high %v340, %v340
    %v343 = vcombine.high %v24, %v24
    %v345 = vunpack.c.l.s4 1983009808
    %v346 = vunpack.c.0.s8 %v345
    %v347 = vlaneseq
    %v348 = vshrl.u32 %v347, 7
    %v349 = vsub.s32 %v346, %v348
    %v350 = vrot.slane %v24, %v349
    %v352 = vunpack.c.l.s4 1983009808
    %v353 = vunpack.c.0.s8 %v352
    %v354 = vlaneseq
    %v355 = vshrl.u32 %v354, 7
    %v356 = vsub.s32 %v353, %v355
    %v357 = vrot.slane %v343, %v356
    %v358 = vcombine.high %v350, %v350
    %v359 = vcombine.high %v357, %v357
    %376 = vmatprep.subr.mxu0 0.0
    %377 = vmatpush1.msra.mxu0 %v25
    %378 = vmatprep.subr.mxu0 0.0
    %379 = vmatpush1.msra.mxu0 %v26
    %380 = vmatprep.subr.mxu0 0.0
    %381 = vmatpush1.msra.mxu0 %v27
    %382 = vmatprep.subr.mxu0 0.0
    %383 = vmatpush1.msra.mxu0 %v28
    %384 = vmatprep.subr.mxu0 0.0
    %385 = vmatpush1.msra.mxu0 %v29
    %386 = vmatprep.subr.mxu0 0.0
    %387 = vmatpush1.msra.mxu0 %v30
    %388 = vmatprep.subr.mxu0 0.0
    %389 = vmatpush1.msra.mxu0 %v31
    %390 = vmatprep.subr.mxu0 0.0
    %391 = vmatpush1.msra.mxu0 %v32
    %392 = vmatprep.subr.mxu0 0.0
    %393 = vmatpush1.msra.mxu0 %v33
    %394 = vmatprep.subr.mxu0 0.0
    %395 = vmatpush1.msra.mxu0 %v34
    %396 = vmatprep.subr.mxu0 0.0
    %397 = vmatpush1.msra.mxu0 %v35
    %398 = vmatprep.subr.mxu0 0.0
    %399 = vmatpush1.msra.mxu0 %v36
    %400 = vmatprep.subr.mxu0 0.0
    %401 = vmatpush1.msra.mxu0 %v37
    %402 = vmatprep.subr.mxu0 0.0
    %403 = vmatpush1.msra.mxu0 %v38
    %404 = vmatprep.subr.mxu0 0.0
    %405 = vmatpush1.msra.mxu0 %v39
    %406 = vmatprep.subr.mxu0 0.0
    %407 = vmatpush1.msra.mxu0 %v40
    %408 = vmatprep.subr.mxu0 0.0
    %409 = vmatpush1.msra.mxu0 %v41
    %410 = vmatprep.subr.mxu0 0.0
    %411 = vmatpush1.msra.mxu0 %v42
    %412 = vmatprep.subr.mxu0 0.0
    %413 = vmatpush1.msra.mxu0 %v43
    %414 = vmatprep.subr.mxu0 0.0
    %415 = vmatpush1.msra.mxu0 %v44
    %416 = vmatprep.subr.mxu0 0.0
    %417 = vmatpush1.msra.mxu0 %v45
    %418 = vmatprep.subr.mxu0 0.0
    %419 = vmatpush1.msra.mxu0 %v46
    %420 = vmatprep.subr.mxu0 0.0
    %421 = vmatpush1.msra.mxu0 %v47
    %422 = vmatprep.subr.mxu0 0.0
    %423 = vmatpush1.msra.mxu0 %v48
    %424 = vmatprep.subr.mxu0 0.0
    %425 = vmatpush1.msra.mxu0 %v49
    %426 = vmatprep.subr.mxu0 0.0
    %427 = vmatpush1.msra.mxu0 %v50
    %428 = vmatprep.subr.mxu0 0.0
    %429 = vmatpush1.msra.mxu0 %v51
    %430 = vmatprep.subr.mxu0 0.0
    %431 = vmatpush1.msra.mxu0 %v52
    %432 = vmatprep.subr.mxu0 0.0
    %433 = vmatpush1.msra.mxu0 %v53
    %434 = vmatprep.subr.mxu0 0.0
    %435 = vmatpush1.msra.mxu0 %v54
    %436 = vmatprep.subr.mxu0 0.0
    %437 = vmatpush1.msra.mxu0 %v55
    %438 = vmatprep.subr.mxu0 0.0
    %439 = vmatpush1.msra.mxu0 %v56
    %440 = vmatprep.mubr.f32.mxu0 %v307
    %441 = vmatmul.mubr.f32.gmra.mrb[0].mxu0 %v299
    %v442 = vpop.f32.mrb[0].mxu0
    %v443 = vadd.f32 %v286, %v442
    %v444 = vpop.f32.mrb[0].mxu0
    %445 = vdwg.mxu0
    %446 = vmatprep.subr.mxu0 0.0
    %447 = vmatpush1.msra.mxu0 %v57
    %448 = vmatprep.subr.mxu0 0.0
    %449 = vmatpush1.msra.mxu0 %v58
    %450 = vmatprep.subr.mxu0 0.0
    %451 = vmatpush1.msra.mxu0 %v59
    %452 = vmatprep.subr.mxu0 0.0
    %453 = vmatpush1.msra.mxu0 %v60
    %454 = vmatprep.subr.mxu0 0.0
    %455 = vmatpush1.msra.mxu0 %v61
    %456 = vmatprep.subr.mxu0 0.0
    %457 = vmatpush1.msra.mxu0 %v62
    %458 = vmatprep.subr.mxu0 0.0
    %459 = vmatpush1.msra.mxu0 %v63
    %460 = vmatprep.subr.mxu0 0.0
    %461 = vmatpush1.msra.mxu0 %v64
    %462 = vmatprep.subr.mxu0 0.0
    %463 = vmatpush1.msra.mxu0 %v65
    %464 = vmatprep.subr.mxu0 0.0
    %465 = vmatpush1.msra.mxu0 %v66
    %466 = vmatprep.subr.mxu0 0.0
    %467 = vmatpush1.msra.mxu0 %v67
    %468 = vmatprep.subr.mxu0 0.0
    %469 = vmatpush1.msra.mxu0 %v68
    %470 = vmatprep.subr.mxu0 0.0
    %471 = vmatpush1.msra.mxu0 %v69
    %472 = vmatprep.subr.mxu0 0.0
    %473 = vmatpush1.msra.mxu0 %v70
    %474 = vmatprep.subr.mxu0 0.0
    %475 = vmatpush1.msra.mxu0 %v71
    %476 = vmatprep.subr.mxu0 0.0
    %477 = vmatpush1.msra.mxu0 %v72
    %478 = vmatprep.subr.mxu0 0.0
    %479 = vmatpush1.msra.mxu0 %v73
    %480 = vmatprep.subr.mxu0 0.0
    %481 = vmatpush1.msra.mxu0 %v74
    %482 = vmatprep.subr.mxu0 0.0
    %483 = vmatpush1.msra.mxu0 %v75
    %484 = vmatprep.subr.mxu0 0.0
    %485 = vmatpush1.msra.mxu0 %v76
    %486 = vmatprep.subr.mxu0 0.0
    %487 = vmatpush1.msra.mxu0 %v77
    %488 = vmatprep.subr.mxu0 0.0
    %489 = vmatpush1.msra.mxu0 %v78
    %490 = vmatprep.subr.mxu0 0.0
    %491 = vmatpush1.msra.mxu0 %v79
    %492 = vmatprep.subr.mxu0 0.0
    %493 = vmatpush1.msra.mxu0 %v80
    %494 = vmatprep.subr.mxu0 0.0
    %495 = vmatpush1.msra.mxu0 %v81
    %496 = vmatprep.subr.mxu0 0.0
    %497 = vmatpush1.msra.mxu0 %v82
    %498 = vmatprep.subr.mxu0 0.0
    %499 = vmatpush1.msra.mxu0 %v83
    %500 = vmatprep.subr.mxu0 0.0
    %501 = vmatpush1.msra.mxu0 %v84
    %502 = vmatprep.subr.mxu0 0.0
    %503 = vmatpush1.msra.mxu0 %v85
    %504 = vmatprep.subr.mxu0 0.0
    %505 = vmatpush1.msra.mxu0 %v86
    %506 = vmatprep.subr.mxu0 0.0
    %507 = vmatpush1.msra.mxu0 %v87
    %508 = vmatprep.subr.mxu0 0.0
    %509 = vmatpush1.msra.mxu0 %v88
    %510 = vmatprep.mubr.f32.mxu0 %v308
    %511 = vmatmul.mubr.f32.gmra.mrb[0].mxu0 %v306
    %v512 = vpop.f32.mrb[0].mxu0
    %v513 = vadd.f32 %v443, %v512
    %v514 = vpop.f32.mrb[0].mxu0
    %515 = vdwg.mxu0
    %516 = vmatprep.subr.mxu0 0.0
    %517 = vmatpush1.msra.mxu0 %v89
    %518 = vmatprep.subr.mxu0 0.0
    %519 = vmatpush1.msra.mxu0 %v90
    %520 = vmatprep.subr.mxu0 0.0
    %521 = vmatpush1.msra.mxu0 %v91
    %522 = vmatprep.subr.mxu0 0.0
    %523 = vmatpush1.msra.mxu0 %v92
    %524 = vmatprep.subr.mxu0 0.0
    %525 = vmatpush1.msra.mxu0 %v93
    %526 = vmatprep.subr.mxu0 0.0
    %527 = vmatpush1.msra.mxu0 %v94
    %528 = vmatprep.subr.mxu0 0.0
    %529 = vmatpush1.msra.mxu0 %v95
    %530 = vmatprep.subr.mxu0 0.0
    %531 = vmatpush1.msra.mxu0 %v96
    %532 = vmatprep.subr.mxu0 0.0
    %533 = vmatpush1.msra.mxu0 %v97
    %534 = vmatprep.subr.mxu0 0.0
    %535 = vmatpush1.msra.mxu0 %v98
    %536 = vmatprep.subr.mxu0 0.0
    %537 = vmatpush1.msra.mxu0 %v99
    %538 = vmatprep.subr.mxu0 0.0
    %539 = vmatpush1.msra.mxu0 %v100
    %540 = vmatprep.subr.mxu0 0.0
    %541 = vmatpush1.msra.mxu0 %v101
    %542 = vmatprep.subr.mxu0 0.0
    %543 = vmatpush1.msra.mxu0 %v102
    %544 = vmatprep.subr.mxu0 0.0
    %545 = vmatpush1.msra.mxu0 %v103
    %546 = vmatprep.subr.mxu0 0.0
    %547 = vmatpush1.msra.mxu0 %v104
    %548 = vmatprep.subr.mxu0 0.0
    %549 = vmatpush1.msra.mxu0 %v105
    %550 = vmatprep.subr.mxu0 0.0
    %551 = vmatpush1.msra.mxu0 %v106
    %552 = vmatprep.subr.mxu0 0.0
    %553 = vmatpush1.msra.mxu0 %v107
    %554 = vmatprep.subr.mxu0 0.0
    %555 = vmatpush1.msra.mxu0 %v108
    %556 = vmatprep.subr.mxu0 0.0
    %557 = vmatpush1.msra.mxu0 %v109
    %558 = vmatprep.subr.mxu0 0.0
    %559 = vmatpush1.msra.mxu0 %v110
    %560 = vmatprep.subr.mxu0 0.0
    %561 = vmatpush1.msra.mxu0 %v111
    %562 = vmatprep.subr.mxu0 0.0
    %563 = vmatpush1.msra.mxu0 %v112
    %564 = vmatprep.subr.mxu0 0.0
    %565 = vmatpush1.msra.mxu0 %v113
    %566 = vmatprep.subr.mxu0 0.0
    %567 = vmatpush1.msra.mxu0 %v114
    %568 = vmatprep.subr.mxu0 0.0
    %569 = vmatpush1.msra.mxu0 %v115
    %570 = vmatprep.subr.mxu0 0.0
    %571 = vmatpush1.msra.mxu0 %v116
    %572 = vmatprep.subr.mxu0 0.0
    %573 = vmatpush1.msra.mxu0 %v117
    %574 = vmatprep.subr.mxu0 0.0
    %575 = vmatpush1.msra.mxu0 %v118
    %576 = vmatprep.subr.mxu0 0.0
    %577 = vmatpush1.msra.mxu0 %v119
    %578 = vmatprep.subr.mxu0 0.0
    %579 = vmatpush1.msra.mxu0 %v120
    %580 = vmatprep.mubr.f32.mxu0 %v324
    %581 = vmatmul.mubr.f32.gmra.mrb[0].mxu0 %v316
    %v582 = vpop.f32.mrb[0].mxu0
    %v583 = vadd.f32 %v513, %v582
    %v584 = vpop.f32.mrb[0].mxu0
    %585 = vdwg.mxu0
    %586 = vmatprep.subr.mxu0 0.0
    %587 = vmatpush1.msra.mxu0 %v121
    %588 = vmatprep.subr.mxu0 0.0
    %589 = vmatpush1.msra.mxu0 %v122
    %590 = vmatprep.subr.mxu0 0.0
    %591 = vmatpush1.msra.mxu0 %v123
    %592 = vmatprep.subr.mxu0 0.0
    %593 = vmatpush1.msra.mxu0 %v124
    %594 = vmatprep.subr.mxu0 0.0
    %595 = vmatpush1.msra.mxu0 %v125
    %596 = vmatprep.subr.mxu0 0.0
    %597 = vmatpush1.msra.mxu0 %v126
    %598 = vmatprep.subr.mxu0 0.0
    %599 = vmatpush1.msra.mxu0 %v127
    %600 = vmatprep.subr.mxu0 0.0
    %601 = vmatpush1.msra.mxu0 %v128
    %602 = vmatprep.subr.mxu0 0.0
    %603 = vmatpush1.msra.mxu0 %v129
    %604 = vmatprep.subr.mxu0 0.0
    %605 = vmatpush1.msra.mxu0 %v130
    %606 = vmatprep.subr.mxu0 0.0
    %607 = vmatpush1.msra.mxu0 %v131
    %608 = vmatprep.subr.mxu0 0.0
    %609 = vmatpush1.msra.mxu0 %v132
    %610 = vmatprep.subr.mxu0 0.0
    %611 = vmatpush1.msra.mxu0 %v133
    %612 = vmatprep.subr.mxu0 0.0
    %613 = vmatpush1.msra.mxu0 %v134
    %614 = vmatprep.subr.mxu0 0.0
    %615 = vmatpush1.msra.mxu0 %v135
    %616 = vmatprep.subr.mxu0 0.0
    %617 = vmatpush1.msra.mxu0 %v136
    %618 = vmatprep.subr.mxu0 0.0
    %619 = vmatpush1.msra.mxu0 %v137
    %620 = vmatprep.subr.mxu0 0.0
    %621 = vmatpush1.msra.mxu0 %v138
    %622 = vmatprep.subr.mxu0 0.0
    %623 = vmatpush1.msra.mxu0 %v139
    %624 = vmatprep.subr.mxu0 0.0
    %625 = vmatpush1.msra.mxu0 %v140
    %626 = vmatprep.subr.mxu0 0.0
    %627 = vmatpush1.msra.mxu0 %v141
    %628 = vmatprep.subr.mxu0 0.0
    %629 = vmatpush1.msra.mxu0 %v142
    %630 = vmatprep.subr.mxu0 0.0
    %631 = vmatpush1.msra.mxu0 %v143
    %632 = vmatprep.subr.mxu0 0.0
    %633 = vmatpush1.msra.mxu0 %v144
    %634 = vmatprep.subr.mxu0 0.0
    %635 = vmatpush1.msra.mxu0 %v145
    %636 = vmatprep.subr.mxu0 0.0
    %637 = vmatpush1.msra.mxu0 %v146
    %638 = vmatprep.subr.mxu0 0.0
    %639 = vmatpush1.msra.mxu0 %v147
    %640 = vmatprep.subr.mxu0 0.0
    %641 = vmatpush1.msra.mxu0 %v148
    %642 = vmatprep.subr.mxu0 0.0
    %643 = vmatpush1.msra.mxu0 %v149
    %644 = vmatprep.subr.mxu0 0.0
    %645 = vmatpush1.msra.mxu0 %v150
    %646 = vmatprep.subr.mxu0 0.0
    %647 = vmatpush1.msra.mxu0 %v151
    %648 = vmatprep.subr.mxu0 0.0
    %649 = vmatpush1.msra.mxu0 %v152
    %650 = vmatprep.mubr.f32.mxu0 %v325
    %651 = vmatmul.mubr.f32.gmra.mrb[0].mxu0 %v323
    %v652 = vpop.f32.mrb[0].mxu0
    %v653 = vadd.f32 %v583, %v652
    %v654 = vpop.f32.mrb[0].mxu0
    %655 = vdwg.mxu0
    %656 = vmatprep.subr.mxu0 0.0
    %657 = vmatpush1.msra.mxu0 %v153
    %658 = vmatprep.subr.mxu0 0.0
    %659 = vmatpush1.msra.mxu0 %v154
    %660 = vmatprep.subr.mxu0 0.0
    %661 = vmatpush1.msra.mxu0 %v155
    %662 = vmatprep.subr.mxu0 0.0
    %663 = vmatpush1.msra.mxu0 %v156
    %664 = vmatprep.subr.mxu0 0.0
    %665 = vmatpush1.msra.mxu0 %v157
    %666 = vmatprep.subr.mxu0 0.0
    %667 = vmatpush1.msra.mxu0 %v158
    %668 = vmatprep.subr.mxu0 0.0
    %669 = vmatpush1.msra.mxu0 %v159
    %670 = vmatprep.subr.mxu0 0.0
    %671 = vmatpush1.msra.mxu0 %v160
    %672 = vmatprep.subr.mxu0 0.0
    %673 = vmatpush1.msra.mxu0 %v161
    %674 = vmatprep.subr.mxu0 0.0
    %675 = vmatpush1.msra.mxu0 %v162
    %676 = vmatprep.subr.mxu0 0.0
    %677 = vmatpush1.msra.mxu0 %v163
    %678 = vmatprep.subr.mxu0 0.0
    %679 = vmatpush1.msra.mxu0 %v164
    %680 = vmatprep.subr.mxu0 0.0
    %681 = vmatpush1.msra.mxu0 %v165
    %682 = vmatprep.subr.mxu0 0.0
    %683 = vmatpush1.msra.mxu0 %v166
    %684 = vmatprep.subr.mxu0 0.0
    %685 = vmatpush1.msra.mxu0 %v167
    %686 = vmatprep.subr.mxu0 0.0
    %687 = vmatpush1.msra.mxu0 %v168
    %688 = vmatprep.subr.mxu0 0.0
    %689 = vmatpush1.msra.mxu0 %v169
    %690 = vmatprep.subr.mxu0 0.0
    %691 = vmatpush1.msra.mxu0 %v170
    %692 = vmatprep.subr.mxu0 0.0
    %693 = vmatpush1.msra.mxu0 %v171
    %694 = vmatprep.subr.mxu0 0.0
    %695 = vmatpush1.msra.mxu0 %v172
    %696 = vmatprep.subr.mxu0 0.0
    %697 = vmatpush1.msra.mxu0 %v173
    %698 = vmatprep.subr.mxu0 0.0
    %699 = vmatpush1.msra.mxu0 %v174
    %700 = vmatprep.subr.mxu0 0.0
    %701 = vmatpush1.msra.mxu0 %v175
    %702 = vmatprep.subr.mxu0 0.0
    %703 = vmatpush1.msra.mxu0 %v176
    %704 = vmatprep.subr.mxu0 0.0
    %705 = vmatpush1.msra.mxu0 %v177
    %706 = vmatprep.subr.mxu0 0.0
    %707 = vmatpush1.msra.mxu0 %v178
    %708 = vmatprep.subr.mxu0 0.0
    %709 = vmatpush1.msra.mxu0 %v179
    %710 = vmatprep.subr.mxu0 0.0
    %711 = vmatpush1.msra.mxu0 %v180
    %712 = vmatprep.subr.mxu0 0.0
    %713 = vmatpush1.msra.mxu0 %v181
    %714 = vmatprep.subr.mxu0 0.0
    %715 = vmatpush1.msra.mxu0 %v182
    %716 = vmatprep.subr.mxu0 0.0
    %717 = vmatpush1.msra.mxu0 %v183
    %718 = vmatprep.subr.mxu0 0.0
    %719 = vmatpush1.msra.mxu0 %v184
    %720 = vmatprep.mubr.f32.mxu0 %v341
    %721 = vmatmul.mubr.f32.gmra.mrb[0].mxu0 %v333
    %v722 = vpop.f32.mrb[0].mxu0
    %v723 = vadd.f32 %v653, %v722
    %v724 = vpop.f32.mrb[0].mxu0
    %725 = vdwg.mxu0
    %726 = vmatprep.subr.mxu0 0.0
    %727 = vmatpush1.msra.mxu0 %v185
    %728 = vmatprep.subr.mxu0 0.0
    %729 = vmatpush1.msra.mxu0 %v186
    %730 = vmatprep.subr.mxu0 0.0
    %731 = vmatpush1.msra.mxu0 %v187
    %732 = vmatprep.subr.mxu0 0.0
    %733 = vmatpush1.msra.mxu0 %v188
    %734 = vmatprep.subr.mxu0 0.0
    %735 = vmatpush1.msra.mxu0 %v189
    %736 = vmatprep.subr.mxu0 0.0
    %737 = vmatpush1.msra.mxu0 %v190
    %738 = vmatprep.subr.mxu0 0.0
    %739 = vmatpush1.msra.mxu0 %v191
    %740 = vmatprep.subr.mxu0 0.0
    %741 = vmatpush1.msra.mxu0 %v192
    %742 = vmatprep.subr.mxu0 0.0
    %743 = vmatpush1.msra.mxu0 %v193
    %744 = vmatprep.subr.mxu0 0.0
    %745 = vmatpush1.msra.mxu0 %v194
    %746 = vmatprep.subr.mxu0 0.0
    %747 = vmatpush1.msra.mxu0 %v195
    %748 = vmatprep.subr.mxu0 0.0
    %749 = vmatpush1.msra.mxu0 %v196
    %750 = vmatprep.subr.mxu0 0.0
    %751 = vmatpush1.msra.mxu0 %v197
    %752 = vmatprep.subr.mxu0 0.0
    %753 = vmatpush1.msra.mxu0 %v198
    %754 = vmatprep.subr.mxu0 0.0
    %755 = vmatpush1.msra.mxu0 %v199
    %756 = vmatprep.subr.mxu0 0.0
    %757 = vmatpush1.msra.mxu0 %v200
    %758 = vmatprep.subr.mxu0 0.0
    %759 = vmatpush1.msra.mxu0 %v201
    %760 = vmatprep.subr.mxu0 0.0
    %761 = vmatpush1.msra.mxu0 %v202
    %762 = vmatprep.subr.mxu0 0.0
    %763 = vmatpush1.msra.mxu0 %v203
    %764 = vmatprep.subr.mxu0 0.0
    %765 = vmatpush1.msra.mxu0 %v204
    %766 = vmatprep.subr.mxu0 0.0
    %767 = vmatpush1.msra.mxu0 %v205
    %768 = vmatprep.subr.mxu0 0.0
    %769 = vmatpush1.msra.mxu0 %v206
    %770 = vmatprep.subr.mxu0 0.0
    %771 = vmatpush1.msra.mxu0 %v207
    %772 = vmatprep.subr.mxu0 0.0
    %773 = vmatpush1.msra.mxu0 %v208
    %774 = vmatprep.subr.mxu0 0.0
    %775 = vmatpush1.msra.mxu0 %v209
    %776 = vmatprep.subr.mxu0 0.0
    %777 = vmatpush1.msra.mxu0 %v210
    %778 = vmatprep.subr.mxu0 0.0
    %779 = vmatpush1.msra.mxu0 %v211
    %780 = vmatprep.subr.mxu0 0.0
    %781 = vmatpush1.msra.mxu0 %v212
    %782 = vmatprep.subr.mxu0 0.0
    %783 = vmatpush1.msra.mxu0 %v213
    %784 = vmatprep.subr.mxu0 0.0
    %785 = vmatpush1.msra.mxu0 %v214
    %786 = vmatprep.subr.mxu0 0.0
    %787 = vmatpush1.msra.mxu0 %v215
    %788 = vmatprep.subr.mxu0 0.0
    %789 = vmatpush1.msra.mxu0 %v216
    %790 = vmatprep.mubr.f32.mxu0 %v342
    %791 = vmatmul.mubr.f32.gmra.mrb[0].mxu0 %v340
    %v792 = vpop.f32.mrb[0].mxu0
    %v793 = vadd.f32 %v723, %v792
    %v794 = vpop.f32.mrb[0].mxu0
    %795 = vdwg.mxu0
    %796 = vmatprep.subr.mxu0 0.0
    %797 = vmatpush1.msra.mxu0 %v217
    %798 = vmatprep.subr.mxu0 0.0
    %799 = vmatpush1.msra.mxu0 %v218
    %800 = vmatprep.subr.mxu0 0.0
    %801 = vmatpush1.msra.mxu0 %v219
    %802 = vmatprep.subr.mxu0 0.0
    %803 = vmatpush1.msra.mxu0 %v220
    %804 = vmatprep.subr.mxu0 0.0
    %805 = vmatpush1.msra.mxu0 %v221
    %806 = vmatprep.subr.mxu0 0.0
    %807 = vmatpush1.msra.mxu0 %v222
    %808 = vmatprep.subr.mxu0 0.0
    %809 = vmatpush1.msra.mxu0 %v223
    %810 = vmatprep.subr.mxu0 0.0
    %811 = vmatpush1.msra.mxu0 %v224
    %812 = vmatprep.subr.mxu0 0.0
    %813 = vmatpush1.msra.mxu0 %v225
    %814 = vmatprep.subr.mxu0 0.0
    %815 = vmatpush1.msra.mxu0 %v226
    %816 = vmatprep.subr.mxu0 0.0
    %817 = vmatpush1.msra.mxu0 %v227
    %818 = vmatprep.subr.mxu0 0.0
    %819 = vmatpush1.msra.mxu0 %v228
    %820 = vmatprep.subr.mxu0 0.0
    %821 = vmatpush1.msra.mxu0 %v229
    %822 = vmatprep.subr.mxu0 0.0
    %823 = vmatpush1.msra.mxu0 %v230
    %824 = vmatprep.subr.mxu0 0.0
    %825 = vmatpush1.msra.mxu0 %v231
    %826 = vmatprep.subr.mxu0 0.0
    %827 = vmatpush1.msra.mxu0 %v232
    %828 = vmatprep.subr.mxu0 0.0
    %829 = vmatpush1.msra.mxu0 %v233
    %830 = vmatprep.subr.mxu0 0.0
    %831 = vmatpush1.msra.mxu0 %v234
    %832 = vmatprep.subr.mxu0 0.0
    %833 = vmatpush1.msra.mxu0 %v235
    %834 = vmatprep.subr.mxu0 0.0
    %835 = vmatpush1.msra.mxu0 %v236
    %836 = vmatprep.subr.mxu0 0.0
    %837 = vmatpush1.msra.mxu0 %v237
    %838 = vmatprep.subr.mxu0 0.0
    %839 = vmatpush1.msra.mxu0 %v238
    %840 = vmatprep.subr.mxu0 0.0
    %841 = vmatpush1.msra.mxu0 %v239
    %842 = vmatprep.subr.mxu0 0.0
    %843 = vmatpush1.msra.mxu0 %v240
    %844 = vmatprep.subr.mxu0 0.0
    %845 = vmatpush1.msra.mxu0 %v241
    %846 = vmatprep.subr.mxu0 0.0
    %847 = vmatpush1.msra.mxu0 %v242
    %848 = vmatprep.subr.mxu0 0.0
    %849 = vmatpush1.msra.mxu0 %v243
    %850 = vmatprep.subr.mxu0 0.0
    %851 = vmatpush1.msra.mxu0 %v244
    %852 = vmatprep.subr.mxu0 0.0
    %853 = vmatpush1.msra.mxu0 %v245
    %854 = vmatprep.subr.mxu0 0.0
    %855 = vmatpush1.msra.mxu0 %v246
    %856 = vmatprep.subr.mxu0 0.0
    %857 = vmatpush1.msra.mxu0 %v247
    %858 = vmatprep.subr.mxu0 0.0
    %859 = vmatpush1.msra.mxu0 %v248
    %860 = vmatprep.mubr.f32.mxu0 %v358
    %861 = vmatmul.mubr.f32.gmra.mrb[0].mxu0 %v350
    %v862 = vpop.f32.mrb[0].mxu0
    %v863 = vadd.f32 %v793, %v862
    %v864 = vpop.f32.mrb[0].mxu0
    %865 = vdwg.mxu0
    %866 = vmatprep.subr.mxu0 0.0
    %867 = vmatpush1.msra.mxu0 %v249
    %868 = vmatprep.subr.mxu0 0.0
    %869 = vmatpush1.msra.mxu0 %v250
    %870 = vmatprep.subr.mxu0 0.0
    %871 = vmatpush1.msra.mxu0 %v251
    %872 = vmatprep.subr.mxu0 0.0
    %873 = vmatpush1.msra.mxu0 %v252
    %874 = vmatprep.subr.mxu0 0.0
    %875 = vmatpush1.msra.mxu0 %v253
    %876 = vmatprep.subr.mxu0 0.0
    %877 = vmatpush1.msra.mxu0 %v254
    %878 = vmatprep.subr.mxu0 0.0
    %879 = vmatpush1.msra.mxu0 %v255
    %880 = vmatprep.subr.mxu0 0.0
    %881 = vmatpush1.msra.mxu0 %v256
    %882 = vmatprep.subr.mxu0 0.0
    %883 = vmatpush1.msra.mxu0 %v257
    %884 = vmatprep.subr.mxu0 0.0
    %885 = vmatpush1.msra.mxu0 %v258
    %886 = vmatprep.subr.mxu0 0.0
    %887 = vmatpush1.msra.mxu0 %v259
    %888 = vmatprep.subr.mxu0 0.0
    %889 = vmatpush1.msra.mxu0 %v260
    %890 = vmatprep.subr.mxu0 0.0
    %891 = vmatpush1.msra.mxu0 %v261
    %892 = vmatprep.subr.mxu0 0.0
    %893 = vmatpush1.msra.mxu0 %v262
    %894 = vmatprep.subr.mxu0 0.0
    %895 = vmatpush1.msra.mxu0 %v263
    %896 = vmatprep.subr.mxu0 0.0
    %897 = vmatpush1.msra.mxu0 %v264
    %898 = vmatprep.subr.mxu0 0.0
    %899 = vmatpush1.msra.mxu0 %v265
    %900 = vmatprep.subr.mxu0 0.0
    %901 = vmatpush1.msra.mxu0 %v266
    %902 = vmatprep.subr.mxu0 0.0
    %903 = vmatpush1.msra.mxu0 %v267
    %904 = vmatprep.subr.mxu0 0.0
    %905 = vmatpush1.msra.mxu0 %v268
    %906 = vmatprep.subr.mxu0 0.0
    %907 = vmatpush1.msra.mxu0 %v269
    %908 = vmatprep.subr.mxu0 0.0
    %909 = vmatpush1.msra.mxu0 %v270
    %910 = vmatprep.subr.mxu0 0.0
    %911 = vmatpush1.msra.mxu0 %v271
    %912 = vmatprep.subr.mxu0 0.0
    %913 = vmatpush1.msra.mxu0 %v272
    %914 = vmatprep.subr.mxu0 0.0
    %915 = vmatpush1.msra.mxu0 %v273
    %916 = vmatprep.subr.mxu0 0.0
    %917 = vmatpush1.msra.mxu0 %v274
    %918 = vmatprep.subr.mxu0 0.0
    %919 = vmatpush1.msra.mxu0 %v275
    %920 = vmatprep.subr.mxu0 0.0
    %921 = vmatpush1.msra.mxu0 %v276
    %922 = vmatprep.subr.mxu0 0.0
    %923 = vmatpush1.msra.mxu0 %v277
    %924 = vmatprep.subr.mxu0 0.0
    %925 = vmatpush1.msra.mxu0 %v278
    %926 = vmatprep.subr.mxu0 0.0
    %927 = vmatpush1.msra.mxu0 %v279
    %928 = vmatprep.subr.mxu0 0.0
    %929 = vmatpush1.msra.mxu0 %v280
    %930 = vmatprep.mubr.f32.mxu0 %v359
    %931 = vmatmul.mubr.f32.gmra.mrb[0].mxu0 %v357
    %v932 = vpop.f32.mrb[0].mxu0
    %v933 = vadd.f32 %v863, %v932
    %v934 = vpop.f32.mrb[0].mxu0
    %935 = vdwg.mxu0
    %v936 = vld [vmem:[%s3] sm:$0xff]
    %v937 = vld [vmem:[%s3 + $0x8] sm:$0xff]
    %v938 = vld [vmem:[%s3 + $0x10] sm:$0xff]
    %v939 = vld [vmem:[%s3 + $0x18] sm:$0xff]
    %v940 = vld [vmem:[%s3 + $0x20] sm:$0xff]
    %v941 = vld [vmem:[%s3 + $0x28] sm:$0xff]
    %v942 = vld [vmem:[%s3 + $0x30] sm:$0xff]
    %v943 = vld [vmem:[%s3 + $0x38] sm:$0xff]
    %v944 = vld [vmem:[%s4] sm:$0x1]
    %v946 = vlaneseq
    %v947 = vshrl.u32 %v946, 7
    %v948 = vsub.s32 0, %v947
    %v949 = vrot.slane %v944, %v948
    %vm951 = vcmask 523264
    %v953 = vsel %vm951, %v933, 0
    %955 = vmatprep.subr.mxu0 0.0
    %956 = vmatpush1.msra.mxu0 %v936
    %957 = vmatprep.subr.mxu0 0.0
    %958 = vmatpush1.msra.mxu0 %v937
    %959 = vmatprep.subr.mxu0 0.0
    %960 = vmatpush1.msra.mxu0 %v938
    %961 = vmatprep.subr.mxu0 0.0
    %962 = vmatpush1.msra.mxu0 %v939
    %963 = vmatprep.subr.mxu0 0.0
    %964 = vmatpush1.msra.mxu0 %v940
    %965 = vmatprep.subr.mxu0 0.0
    %966 = vmatpush1.msra.mxu0 %v941
    %967 = vmatprep.subr.mxu0 0.0
    %968 = vmatpush1.msra.mxu0 %v942
    %969 = vmatprep.subr.mxu0 0.0
    %970 = vmatpush1.msra.mxu0 %v943
    %971 = vmatprep.subr.mxu0 0.0
    %972 = vmatpush1.msra.mxu0 0.0
    %973 = vmatprep.subr.mxu0 0.0
    %974 = vmatpush1.msra.mxu0 0.0
    %975 = vmatprep.subr.mxu0 0.0
    %976 = vmatpush1.msra.mxu0 0.0
    %977 = vmatprep.subr.mxu0 0.0
    %978 = vmatpush1.msra.mxu0 0.0
    %979 = vmatprep.subr.mxu0 0.0
    %980 = vmatpush1.msra.mxu0 0.0
    %981 = vmatprep.subr.mxu0 0.0
    %982 = vmatpush1.msra.mxu0 0.0
    %983 = vmatprep.subr.mxu0 0.0
    %984 = vmatpush1.msra.mxu0 0.0
    %985 = vmatprep.subr.mxu0 0.0
    %986 = vmatpush1.msra.mxu0 0.0
    %987 = vmatprep.subr.mxu0 0.0
    %988 = vmatpush1.msra.mxu0 0.0
    %989 = vmatprep.subr.mxu0 0.0
    %990 = vmatpush1.msra.mxu0 0.0
    %991 = vmatprep.subr.mxu0 0.0
    %992 = vmatpush1.msra.mxu0 0.0
    %993 = vmatprep.subr.mxu0 0.0
    %994 = vmatpush1.msra.mxu0 0.0
    %995 = vmatprep.subr.mxu0 0.0
    %996 = vmatpush1.msra.mxu0 0.0
    %997 = vmatprep.subr.mxu0 0.0
    %998 = vmatpush1.msra.mxu0 0.0
    %999 = vmatprep.subr.mxu0 0.0
    %1000 = vmatpush1.msra.mxu0 0.0
    %1001 = vmatprep.subr.mxu0 0.0
    %1002 = vmatpush1.msra.mxu0 0.0
    %1003 = vmatprep.subr.mxu0 0.0
    %1004 = vmatpush1.msra.mxu0 0.0
    %1005 = vmatprep.subr.mxu0 0.0
    %1006 = vmatpush1.msra.mxu0 0.0
    %1007 = vmatprep.subr.mxu0 0.0
    %1008 = vmatpush1.msra.mxu0 0.0
    %1009 = vmatprep.subr.mxu0 0.0
    %1010 = vmatpush1.msra.mxu0 0.0
    %1011 = vmatprep.subr.mxu0 0.0
    %1012 = vmatpush1.msra.mxu0 0.0
    %1013 = vmatprep.subr.mxu0 0.0
    %1014 = vmatpush1.msra.mxu0 0.0
    %1015 = vmatprep.subr.mxu0 0.0
    %1016 = vmatpush1.msra.mxu0 0.0
    %1017 = vmatprep.subr.mxu0 0.0
    %1018 = vmatpush1.msra.mxu0 0.0
    %1019 = vmatprep.mubr.f32.mxu0 0.0
    %1020 = vmatmul.mubr.f32.gmra.mrb[0].mxu0 %v953
    %v1021 = vpop.f32.mrb[0].mxu0
    %v1022 = vadd.f32 %v949, %v1021
    %v1023 = vpop.f32.mrb[0].mxu0
    %1024 = vdwg.mxu0
    %1025 = vst [vmem:[#allocation2] sm:$0x3] %v1022
    // Predicated region
    $region22: #{forward.3} parent=1 // pred_check
      _
    $region23: #{forward.3} parent=1 // pred_check_branch
      %1027 = sbr.rel (0) target = $region25
    $region24: #{forward.3} parent=1 // pred_region
      %s1029 = ssub.s32 32, 32
      %1030 = vsyncadd [#allocation3], %s1029
      %s1032 = sshll.u32 [#allocation2], 4
      %s1033 = int_to_ptr.vmem [resolvable:$true] %s1032
      %1035 = dma.vmem_to_hbm [thread:$0]  %s1033, 32, %s5, [#allocation3]
    $region25: #{forward.3} parent=1 // pred_fallthru
      _
    // Predicated region
    $region26: #{forward.3} parent=1 // pred_check
      _
    $region27: #{forward.3} parent=1 // pred_check_branch
      %1037 = sbr.rel (0) target = $region29
    $region28: #{forward.3} parent=1 // pred_region
      %1038 = dma.done [#allocation3], 32
    $region29: #{forward.3} parent=1 // pred_fallthru
      _
    %1039 = vsyncpa [#allocation3], 1

// kernel: forward.2
$region0: #{forward.2}
  #allocation0 [shape = 'u32[]', space=smem, size = 0x4, offset = 0x4, fixed_abs, tag = 'smem constant byte address 0x4 - core index']
  #allocation1 [shape = 'u32[144,128]{1,0:T(1,128)}', space=vmem, size = 0x12000, scoped, tag = 'internal scratch']
  #allocation2 [shape = 'f32[2,10,17,4]{3,2,1,0:T(8,128)}', space=vmem, size = 0x3c000, scoped, tag = 'scratch operand']
  #allocation3 [shape = 'f32[2,10,17,16]{3,2,1,0:T(8,128)}', space=vmem, size = 0x3c000, scoped, tag = 'scratch operand']
  %s0 = inlined_call_operand.vmem [shape: f32[2,8,8,4], index: 0, kind: input, shape index: {}]
  %s1 = inlined_call_operand.vmem [shape: f32[3,3,4,16], index: 1, kind: input, shape index: {}]
  %s2 = inlined_call_operand.vmem [shape: f32[1,16], index: 2, kind: input, shape index: {}]
  %s3 = inlined_call_operand.vmem [shape: f32[3,3,16,16], index: 3, kind: input, shape index: {}]
  %s4 = inlined_call_operand.vmem [shape: f32[1,16], index: 4, kind: input, shape index: {}]
  %s5 = inlined_call_operand.hbm [shape: f32[3,3,16,32], index: 5, kind: input, shape index: {}]
  %s6 = inlined_call_operand.vmem [shape: f32[1,32], index: 6, kind: input, shape index: {}]
  %s7 = inlined_call_operand.vmem [shape: f32[2,8,8,32], index: 7, kind: output, shape index: {}]
  %s8 = sld [smem:[#allocation0]]
  $region42: #{forward.2} parent=0
    _
  %s10 = ssub.s32 1, %s8
  %s11 = scalar_select 0, %s10, %s8
  $region1: #{forward.2} parent=0
    #allocation4 [shape = 'u8[73728]{0}', space=vmem, size = 0x12000, scoped, tag = 'input window, operand 5, single buffered']
    #allocation5 [shape = 's32[1]{0}', space=sflag, size = 0x4, scoped, tag = 'scoped memory for forward.2']
    %12 = vsyncpa [#allocation5], 0
    // Predicated region
    $region2: #{forward.2} parent=1 // pred_check
      _
    $region3: #{forward.2} parent=1 // pred_check_branch
      %14 = sbr.rel (0) target = $region5
    $region4: #{forward.2} parent=1 // pred_region
      _
    $region5: #{forward.2} parent=1 // pred_fallthru
      _
    // Predicated region
    $region6: #{forward.2} parent=1 // pred_check
      _
    $region7: #{forward.2} parent=1 // pred_check_branch
      %16 = sbr.rel (0) target = $region9
    $region8: #{forward.2} parent=1 // pred_region
      _
    $region9: #{forward.2} parent=1 // pred_fallthru
      _
    // Predicated region
    $region10: #{forward.2} parent=1 // pred_check
      _
    $region11: #{forward.2} parent=1 // pred_check_branch
      %18 = sbr.rel (0) target = $region13
    $region12: #{forward.2} parent=1 // pred_region
      _
    $region13: #{forward.2} parent=1 // pred_fallthru
      _
    // Predicated region
    $region14: #{forward.2} parent=1 // pred_check
      _
    $region15: #{forward.2} parent=1 // pred_check_branch
      %20 = sbr.rel (0) target = $region17
    $region16: #{forward.2} parent=1 // pred_region
      _
    $region17: #{forward.2} parent=1 // pred_fallthru
      _
    // Predicated region
    $region18: #{forward.2} parent=1 // pred_check
      _
    $region19: #{forward.2} parent=1 // pred_check_branch
      %22 = sbr.rel (0) target = $region21
    $region20: #{forward.2} parent=1 // pred_region
      _
    $region21: #{forward.2} parent=1 // pred_fallthru
      _
    // Predicated region
    $region22: #{forward.2} parent=1 // pred_check
      _
    $region23: #{forward.2} parent=1 // pred_check_branch
      %24 = sbr.rel (0) target = $region25
    $region24: #{forward.2} parent=1 // pred_region
      %s26 = ssub.s32 2304, 2304
      %27 = vsyncadd [#allocation5], %s26
      %s28 = sshll.u32 [#allocation4], 4
      %s29 = int_to_ptr.vmem [resolvable:$true] %s28
      %34 = dma.hbm_to_vmem [thread:$0]  %s5, 2304, %s29, [#allocation5], 128, 128, 8
    $region25: #{forward.2} parent=1 // pred_fallthru
      _
    // Predicated region
    $region26: #{forward.2} parent=1 // pred_check
      _
    $region27: #{forward.2} parent=1 // pred_check_branch
      %36 = sbr.rel (0) target = $region29
    $region28: #{forward.2} parent=1 // pred_region
      _
    $region29: #{forward.2} parent=1 // pred_fallthru
      _
    // Predicated region
    $region30: #{forward.2} parent=1 // pred_check
      _
    $region31: #{forward.2} parent=1 // pred_check_branch
      %38 = sbr.rel (0) target = $region33
    $region32: #{forward.2} parent=1 // pred_region
      %39 = dma.done [#allocation5], 2304
    $region33: #{forward.2} parent=1 // pred_fallthru
      _
    %vm40 = vcmask 31744
    %41 = vst.msk [vmem:[#allocation2] sm:$0xff] %vm40, 0.0
    %42 = vst.msk [vmem:[#allocation2 + $0x8] sm:$0xff] %vm40, 0.0
    %vm43 = vcmask 24576
    %44 = vst.msk [vmem:[#allocation2 + $0x10] sm:$0x1] %vm43, 0.0
    %45 = vst.msk [vmem:[#allocation2 + $0x18] sm:$0xff] %vm40, 0.0
    %46 = vst.msk [vmem:[#allocation2 + $0x20] sm:$0xff] %vm40, 0.0
    %47 = vst.msk [vmem:[#allocation2 + $0x28] sm:$0x1] %vm43, 0.0
    %48 = vst.msk [vmem:[#allocation2 + $0x30] sm:$0xff] %vm40, 0.0
    %49 = vst.msk [vmem:[#allocation2 + $0x38] sm:$0xff] %vm40, 0.0
    %50 = vst.msk [vmem:[#allocation2 + $0x40] sm:$0x1] %vm43, 0.0
    %51 = vst.msk [vmem:[#allocation2 + $0x48] sm:$0xff] %vm40, 0.0
    %52 = vst.msk [vmem:[#allocation2 + $0x50] sm:$0xff] %vm40, 0.0
    %53 = vst.msk [vmem:[#allocation2 + $0x58] sm:$0x1] %vm43, 0.0
    %54 = vst.msk [vmem:[#allocation2 + $0x60] sm:$0xff] %vm40, 0.0
    %55 = vst.msk [vmem:[#allocation2 + $0x68] sm:$0xff] %vm40, 0.0
    %56 = vst.msk [vmem:[#allocation2 + $0x70] sm:$0x1] %vm43, 0.0
    %57 = vst.msk [vmem:[#allocation2 + $0x78] sm:$0xff] %vm40, 0.0
    %58 = vst.msk [vmem:[#allocation2 + $0x80] sm:$0xff] %vm40, 0.0
    %59 = vst.msk [vmem:[#allocation2 + $0x88] sm:$0x1] %vm43, 0.0
    %60 = vst.msk [vmem:[#allocation2 + $0x90] sm:$0xff] %vm40, 0.0
    %61 = vst.msk [vmem:[#allocation2 + $0x98] sm:$0xff] %vm40, 0.0
    %62 = vst.msk [vmem:[#allocation2 + $0xa0] sm:$0x1] %vm43, 0.0
    %63 = vst.msk [vmem:[#allocation2 + $0xa8] sm:$0xff] %vm40, 0.0
    %64 = vst.msk [vmem:[#allocation2 + $0xb0] sm:$0xff] %vm40, 0.0
    %65 = vst.msk [vmem:[#allocation2 + $0xb8] sm:$0x1] %vm43, 0.0
    %66 = vst.msk [vmem:[#allocation2 + $0xc0] sm:$0xff] %vm40, 0.0
    %67 = vst.msk [vmem:[#allocation2 + $0xc8] sm:$0xff] %vm40, 0.0
    %68 = vst.msk [vmem:[#allocation2 + $0xd0] sm:$0x1] %vm43, 0.0
    %69 = vst.msk [vmem:[#allocation2 + $0xd8] sm:$0xff] %vm40, 0.0
    %70 = vst.msk [vmem:[#allocation2 + $0xe0] sm:$0xff] %vm40, 0.0
    %71 = vst.msk [vmem:[#allocation2 + $0xe8] sm:$0x1] %vm43, 0.0
    %72 = vst.msk [vmem:[#allocation2 + $0xf0] sm:$0xff] %vm40, 0.0
    %73 = vst.msk [vmem:[#allocation2 + $0xf8] sm:$0xff] %vm40, 0.0
    %74 = vst.msk [vmem:[#allocation2 + $0x100] sm:$0x1] %vm43, 0.0
    %75 = vst.msk [vmem:[#allocation2 + $0x108] sm:$0xff] %vm40, 0.0
    %76 = vst.msk [vmem:[#allocation2 + $0x110] sm:$0xff] %vm40, 0.0
    %77 = vst.msk [vmem:[#allocation2 + $0x118] sm:$0x1] %vm43, 0.0
    %78 = vst.msk [vmem:[#allocation2 + $0x120] sm:$0xff] %vm40, 0.0
    %79 = vst.msk [vmem:[#allocation2 + $0x128] sm:$0xff] %vm40, 0.0
    %80 = vst.msk [vmem:[#allocation2 + $0x130] sm:$0x1] %vm43, 0.0
    %81 = vst.msk [vmem:[#allocation2 + $0x138] sm:$0xff] %vm40, 0.0
    %82 = vst.msk [vmem:[#allocation2 + $0x140] sm:$0xff] %vm40, 0.0
    %83 = vst.msk [vmem:[#allocation2 + $0x148] sm:$0x1] %vm43, 0.0
    %84 = vst.msk [vmem:[#allocation2 + $0x150] sm:$0xff] %vm40, 0.0
    %85 = vst.msk [vmem:[#allocation2 + $0x158] sm:$0xff] %vm40, 0.0
    %86 = vst.msk [vmem:[#allocation2 + $0x160] sm:$0x1] %vm43, 0.0
    %87 = vst.msk [vmem:[#allocation2 + $0x168] sm:$0xff] %vm40, 0.0
    %88 = vst.msk [vmem:[#allocation2 + $0x170] sm:$0xff] %vm40, 0.0
    %89 = vst.msk [vmem:[#allocation2 + $0x178] sm:$0x1] %vm43, 0.0
    %90 = vst.msk [vmem:[#allocation2 + $0x180] sm:$0xff] %vm40, 0.0
    %91 = vst.msk [vmem:[#allocation2 + $0x188] sm:$0xff] %vm40, 0.0
    %92 = vst.msk [vmem:[#allocation2 + $0x190] sm:$0x1] %vm43, 0.0
    %93 = vst.msk [vmem:[#allocation2 + $0x198] sm:$0xff] %vm40, 0.0
    %94 = vst.msk [vmem:[#allocation2 + $0x1a0] sm:$0xff] %vm40, 0.0
    %95 = vst.msk [vmem:[#allocation2 + $0x1a8] sm:$0x1] %vm43, 0.0
    %96 = vst.msk [vmem:[#allocation2 + $0x1b0] sm:$0xff] %vm40, 0.0
    %97 = vst.msk [vmem:[#allocation2 + $0x1b8] sm:$0xff] %vm40, 0.0
    %98 = vst.msk [vmem:[#allocation2 + $0x1c0] sm:$0x1] %vm43, 0.0
    %99 = vst.msk [vmem:[#allocation2 + $0x1c8] sm:$0xff] %vm40, 0.0
    %100 = vst.msk [vmem:[#allocation2 + $0x1d0] sm:$0xff] %vm40, 0.0
    %101 = vst.msk [vmem:[#allocation2 + $0x1d8] sm:$0x1] %vm43, 0.0
    %vm102 = vcmask 130048
    %103 = vst.msk [vmem:[#allocation3] sm:$0xff] %vm102, 0.0
    %104 = vst.msk [vmem:[#allocation3 + $0x8] sm:$0xff] %vm102, 0.0
    %vm105 = vcmask 122880
    %106 = vst.msk [vmem:[#allocation3 + $0x10] sm:$0x1] %vm105, 0.0
    %107 = vst.msk [vmem:[#allocation3 + $0x18] sm:$0xff] %vm102, 0.0
    %108 = vst.msk [vmem:[#allocation3 + $0x20] sm:$0xff] %vm102, 0.0
    %109 = vst.msk [vmem:[#allocation3 + $0x28] sm:$0x1] %vm105, 0.0
    %110 = vst.msk [vmem:[#allocation3 + $0x30] sm:$0xff] %vm102, 0.0
    %111 = vst.msk [vmem:[#allocation3 + $0x38] sm:$0xff] %vm102, 0.0
    %112 = vst.msk [vmem:[#allocation3 + $0x40] sm:$0x1] %vm105, 0.0
    %113 = vst.msk [vmem:[#allocation3 + $0x48] sm:$0xff] %vm102, 0.0
    %114 = vst.msk [vmem:[#allocation3 + $0x50] sm:$0xff] %vm102, 0.0
    %115 = vst.msk [vmem:[#allocation3 + $0x58] sm:$0x1] %vm105, 0.0
    %116 = vst.msk [vmem:[#allocation3 + $0x60] sm:$0xff] %vm102, 0.0
    %117 = vst.msk [vmem:[#allocation3 + $0x68] sm:$0xff] %vm102, 0.0
    %118 = vst.msk [vmem:[#allocation3 + $0x70] sm:$0x1] %vm105, 0.0
    %119 = vst.msk [vmem:[#allocation3 + $0x78] sm:$0xff] %vm102, 0.0
    %120 = vst.msk [vmem:[#allocation3 + $0x80] sm:$0xff] %vm102, 0.0
    %121 = vst.msk [vmem:[#allocation3 + $0x88] sm:$0x1] %vm105, 0.0
    %122 = vst.msk [vmem:[#allocation3 + $0x90] sm:$0xff] %vm102, 0.0
    %123 = vst.msk [vmem:[#allocation3 + $0x98] sm:$0xff] %vm102, 0.0
    %124 = vst.msk [vmem:[#allocation3 + $0xa0] sm:$0x1] %vm105, 0.0
    %125 = vst.msk [vmem:[#allocation3 + $0xa8] sm:$0xff] %vm102, 0.0
    %126 = vst.msk [vmem:[#allocation3 + $0xb0] sm:$0xff] %vm102, 0.0
    %127 = vst.msk [vmem:[#allocation3 + $0xb8] sm:$0x1] %vm105, 0.0
    %128 = vst.msk [vmem:[#allocation3 + $0xc0] sm:$0xff] %vm102, 0.0
    %129 = vst.msk [vmem:[#allocation3 + $0xc8] sm:$0xff] %vm102, 0.0
    %130 = vst.msk [vmem:[#allocation3 + $0xd0] sm:$0x1] %vm105, 0.0
    %131 = vst.msk [vmem:[#allocation3 + $0xd8] sm:$0xff] %vm102, 0.0
    %132 = vst.msk [vmem:[#allocation3 + $0xe0] sm:$0xff] %vm102, 0.0
    %133 = vst.msk [vmem:[#allocation3 + $0xe8] sm:$0x1] %vm105, 0.0
    %134 = vst.msk [vmem:[#allocation3 + $0xf0] sm:$0xff] %vm102, 0.0
    %135 = vst.msk [vmem:[#allocation3 + $0xf8] sm:$0xff] %vm102, 0.0
    %136 = vst.msk [vmem:[#allocation3 + $0x100] sm:$0x1] %vm105, 0.0
    %137 = vst.msk [vmem:[#allocation3 + $0x108] sm:$0xff] %vm102, 0.0
    %138 = vst.msk [vmem:[#allocation3 + $0x110] sm:$0xff] %vm102, 0.0
    %139 = vst.msk [vmem:[#allocation3 + $0x118] sm:$0x1] %vm105, 0.0
    %140 = vst.msk [vmem:[#allocation3 + $0x120] sm:$0xff] %vm102, 0.0
    %141 = vst.msk [vmem:[#allocation3 + $0x128] sm:$0xff] %vm102, 0.0
    %142 = vst.msk [vmem:[#allocation3 + $0x130] sm:$0x1] %vm105, 0.0
    %143 = vst.msk [vmem:[#allocation3 + $0x138] sm:$0xff] %vm102, 0.0
    %144 = vst.msk [vmem:[#allocation3 + $0x140] sm:$0xff] %vm102, 0.0
    %145 = vst.msk [vmem:[#allocation3 + $0x148] sm:$0x1] %vm105, 0.0
    %146 = vst.msk [vmem:[#allocation3 + $0x150] sm:$0xff] %vm102, 0.0
    %147 = vst.msk [vmem:[#allocation3 + $0x158] sm:$0xff] %vm102, 0.0
    %148 = vst.msk [vmem:[#allocation3 + $0x160] sm:$0x1] %vm105, 0.0
    %149 = vst.msk [vmem:[#allocation3 + $0x168] sm:$0xff] %vm102, 0.0
    %150 = vst.msk [vmem:[#allocation3 + $0x170] sm:$0xff] %vm102, 0.0
    %151 = vst.msk [vmem:[#allocation3 + $0x178] sm:$0x1] %vm105, 0.0
    %152 = vst.msk [vmem:[#allocation3 + $0x180] sm:$0xff] %vm102, 0.0
    %153 = vst.msk [vmem:[#allocation3 + $0x188] sm:$0xff] %vm102, 0.0
    %154 = vst.msk [vmem:[#allocation3 + $0x190] sm:$0x1] %vm105, 0.0
    %155 = vst.msk [vmem:[#allocation3 + $0x198] sm:$0xff] %vm102, 0.0
    %156 = vst.msk [vmem:[#allocation3 + $0x1a0] sm:$0xff] %vm102, 0.0
    %157 = vst.msk [vmem:[#allocation3 + $0x1a8] sm:$0x1] %vm105, 0.0
    %158 = vst.msk [vmem:[#allocation3 + $0x1b0] sm:$0xff] %vm102, 0.0
    %159 = vst.msk [vmem:[#allocation3 + $0x1b8] sm:$0xff] %vm102, 0.0
    %160 = vst.msk [vmem:[#allocation3 + $0x1c0] sm:$0x1] %vm105, 0.0
    %161 = vst.msk [vmem:[#allocation3 + $0x1c8] sm:$0xff] %vm102, 0.0
    %162 = vst.msk [vmem:[#allocation3 + $0x1d0] sm:$0xff] %vm102, 0.0
    %163 = vst.msk [vmem:[#allocation3 + $0x1d8] sm:$0x1] %vm105, 0.0
    %v164 = vld [vmem:[%s0] sm:$0xff]
    %v165 = vld [vmem:[%s0 + $0x8] sm:$0xff]
    %v166 = vld [vmem:[%s0 + $0x10] sm:$0xff]
    %v167 = vld [vmem:[%s0 + $0x18] sm:$0xff]
    %v168 = vld [vmem:[%s0 + $0x20] sm:$0xff]
    %v169 = vld [vmem:[%s0 + $0x28] sm:$0xff]
    %v170 = vld [vmem:[%s0 + $0x30] sm:$0xff]
    %v171 = vld [vmem:[%s0 + $0x38] sm:$0xff]
    %v172 = vld [vmem:[%s0 + $0x40] sm:$0xff]
    %v173 = vld [vmem:[%s0 + $0x48] sm:$0xff]
    %v174 = vld [vmem:[%s0 + $0x50] sm:$0xff]
    %v175 = vld [vmem:[%s0 + $0x58] sm:$0xff]
    %v176 = vld [vmem:[%s0 + $0x60] sm:$0xff]
    %v177 = vld [vmem:[%s0 + $0x68] sm:$0xff]
    %v178 = vld [vmem:[%s0 + $0x70] sm:$0xff]
    %v179 = vld [vmem:[%s0 + $0x78] sm:$0xff]
    %s180 = scalar_lea.vmem [#allocation2], 24
    %181 = vst.msk [vmem:[%s180 + $0x8] sm:$0xff] %vm40, %v164
    %182 = vst.msk [vmem:[%s180 + $0x20] sm:$0xff] %vm40, %v165
    %183 = vst.msk [vmem:[%s180 + $0x38] sm:$0xff] %vm40, %v166
    %184 = vst.msk [vmem:[%s180 + $0x50] sm:$0xff] %vm40, %v167
    %185 = vst.msk [vmem:[%s180 + $0x68] sm:$0xff] %vm40, %v168
    %186 = vst.msk [vmem:[%s180 + $0x80] sm:$0xff] %vm40, %v169
    %187 = vst.msk [vmem:[%s180 + $0x98] sm:$0xff] %vm40, %v170
    %188 = vst.msk [vmem:[%s180 + $0xb0] sm:$0xff] %vm40, %v171
    %189 = vst.msk [vmem:[%s180 + $0xf8] sm:$0xff] %vm40, %v172
    %190 = vst.msk [vmem:[%s180 + $0x110] sm:$0xff] %vm40, %v173
    %191 = vst.msk [vmem:[%s180 + $0x128] sm:$0xff] %vm40, %v174
    %192 = vst.msk [vmem:[%s180 + $0x140] sm:$0xff] %vm40, %v175
    %193 = vst.msk [vmem:[%s180 + $0x158] sm:$0xff] %vm40, %v176
    %194 = vst.msk [vmem:[%s180 + $0x170] sm:$0xff] %vm40, %v177
    %195 = vst.msk [vmem:[%s180 + $0x188] sm:$0xff] %vm40, %v178
    %196 = vst.msk [vmem:[%s180 + $0x1a0] sm:$0xff] %vm40, %v179
    %v197 = vld [vmem:[#allocation2 + $0x7] sm:$0xff]
    %v198 = vld [vmem:[#allocation2 + $0x1f] sm:$0xff]
    %v199 = vld [vmem:[#allocation2 + $0x37] sm:$0xff]
    %v200 = vld [vmem:[#allocation2 + $0x4f] sm:$0xff]
    %v201 = vld [vmem:[#allocation2 + $0x67] sm:$0xff]
    %v202 = vld [vmem:[#allocation2 + $0x7f] sm:$0xff]
    %v203 = vld [vmem:[#allocation2 + $0x97] sm:$0xff]
    %v204 = vld [vmem:[#allocation2 + $0xaf] sm:$0xff]
    %v205 = vld [vmem:[#allocation2 + $0xf7] sm:$0xff]
    %v206 = vld [vmem:[#allocation2 + $0x10f] sm:$0xff]
    %v207 = vld [vmem:[#allocation2 + $0x127] sm:$0xff]
    %v208 = vld [vmem:[#allocation2 + $0x13f] sm:$0xff]
    %v209 = vld [vmem:[#allocation2 + $0x157] sm:$0xff]
    %v210 = vld [vmem:[#allocation2 + $0x16f] sm:$0xff]
    %v211 = vld [vmem:[#allocation2 + $0x187] sm:$0xff]
    %v212 = vld [vmem:[#allocation2 + $0x19f] sm:$0xff]
    %v213 = vld [vmem:[%s1] sm:$0xf]
    %v214 = vld [vmem:[#allocation2 + $0x8] sm:$0xff]
    %v215 = vld [vmem:[#allocation2 + $0x20] sm:$0xff]
    %v216 = vld [vmem:[#allocation2 + $0x38] sm:$0xff]
    %v217 = vld [vmem:[#allocation2 + $0x50] sm:$0xff]
    %v218 = vld [vmem:[#allocation2 + $0x68] sm:$0xff]
    %v219 = vld [vmem:[#allocation2 + $0x80] sm:$0xff]
    %v220 = vld [vmem:[#allocation2 + $0x98] sm:$0xff]
    %v221 = vld [vmem:[#allocation2 + $0xb0] sm:$0xff]
    %v222 = vld [vmem:[#allocation2 + $0xf8] sm:$0xff]
    %v223 = vld [vmem:[#allocation2 + $0x110] sm:$0xff]
    %v224 = vld [vmem:[#allocation2 + $0x128] sm:$0xff]
    %v225 = vld [vmem:[#allocation2 + $0x140] sm:$0xff]
    %v226 = vld [vmem:[#allocation2 + $0x158] sm:$0xff]
    %v227 = vld [vmem:[#allocation2 + $0x170] sm:$0xff]
    %v228 = vld [vmem:[#allocation2 + $0x188] sm:$0xff]
    %v229 = vld [vmem:[#allocation2 + $0x1a0] sm:$0xff]
    %s230 = scalar_lea.vmem %s1, 4
    %v231 = vld [vmem:[%s230] sm:$0xf]
    %v233 = vsel %vm40, %v214, 0
    %v236 = vsel %vm40, %v215, 0
    %v239 = vsel %vm40, %v216, 0
    %v242 = vsel %vm40, %v217, 0
    %v245 = vsel %vm40, %v218, 0
    %v248 = vsel %vm40, %v219, 0
    %v251 = vsel %vm40, %v220, 0
    %v254 = vsel %vm40, %v221, 0
    %v257 = vsel %vm40, %v222, 0
    %v260 = vsel %vm40, %v223, 0
    %v263 = vsel %vm40, %v224, 0
    %v266 = vsel %vm40, %v225, 0
    %v269 = vsel %vm40, %v226, 0
    %v272 = vsel %vm40, %v227, 0
    %v275 = vsel %vm40, %v228, 0
    %v278 = vsel %vm40, %v229, 0
    %vm280 = vcmask 1043456
    %v282 = vsel %vm280, %v231, 0
    %284 = vmatprep.subr.mxu0 0.0
    %285 = vmatpush1.msra.mxu0 %v282
    %286 = vmatprep.subr.mxu0 0.0
    %287 = vmatpush1.msra.mxu0 0.0
    %288 = vmatprep.subr.mxu0 0.0
    %289 = vmatpush1.msra.mxu0 0.0
    %290 = vmatprep.subr.mxu0 0.0
    %291 = vmatpush1.msra.mxu0 0.0
    %292 = vmatprep.subr.mxu0 0.0
    %293 = vmatpush1.msra.mxu0 0.0
    %294 = vmatprep.subr.mxu0 0.0
    %295 = vmatpush1.msra.mxu0 0.0
    %296 = vmatprep.subr.mxu0 0.0
    %297 = vmatpush1.msra.mxu0 0.0
    %298 = vmatprep.subr.mxu0 0.0
    %299 = vmatpush1.msra.mxu0 0.0
    %300 = vmatprep.subr.mxu0 0.0
    %301 = vmatpush1.msra.mxu0 0.0
    %302 = vmatprep.subr.mxu0 0.0
    %303 = vmatpush1.msra.mxu0 0.0
    %304 = vmatprep.subr.mxu0 0.0
    %305 = vmatpush1.msra.mxu0 0.0
    %306 = vmatprep.subr.mxu0 0.0
    %307 = vmatpush1.msra.mxu0 0.0
    %308 = vmatprep.subr.mxu0 0.0
    %309 = vmatpush1.msra.mxu0 0.0
    %310 = vmatprep.subr.mxu0 0.0
    %311 = vmatpush1.msra.mxu0 0.0
    %312 = vmatprep.subr.mxu0 0.0
    %313 = vmatpush1.msra.mxu0 0.0
    %314 = vmatprep.subr.mxu0 0.0
    %315 = vmatpush1.msra.mxu0 0.0
    %316 = vmatprep.subr.mxu0 0.0
    %317 = vmatpush1.msra.mxu0 0.0
    %318 = vmatprep.subr.mxu0 0.0
    %319 = vmatpush1.msra.mxu0 0.0
    %320 = vmatprep.subr.mxu0 0.0
    %321 = vmatpush1.msra.mxu0 0.0
    %322 = vmatprep.subr.mxu0 0.0
    %323 = vmatpush1.msra.mxu0 0.0
    %324 = vmatprep.subr.mxu0 0.0
    %325 = vmatpush1.msra.mxu0 0.0
    %326 = vmatprep.subr.mxu0 0.0
    %327 = vmatpush1.msra.mxu0 0.0
    %328 = vmatprep.subr.mxu0 0.0
    %329 = vmatpush1.msra.mxu0 0.0
    %330 = vmatprep.subr.mxu0 0.0
    %331 = vmatpush1.msra.mxu0 0.0
    %332 = vmatprep.subr.mxu0 0.0
    %333 = vmatpush1.msra.mxu0 0.0
    %334 = vmatprep.subr.mxu0 0.0
    %335 = vmatpush1.msra.mxu0 0.0
    %336 = vmatprep.subr.mxu0 0.0
    %337 = vmatpush1.msra.mxu0 0.0
    %338 = vmatprep.subr.mxu0 0.0
    %339 = vmatpush1.msra.mxu0 0.0
    %340 = vmatprep.subr.mxu0 0.0
    %341 = vmatpush1.msra.mxu0 0.0
    %342 = vmatprep.subr.mxu0 0.0
    %343 = vmatpush1.msra.mxu0 0.0
    %344 = vmatprep.subr.mxu0 0.0
    %345 = vmatpush1.msra.mxu0 0.0
    %346 = vmatprep.subr.mxu0 0.0
    %347 = vmatpush1.msra.mxu0 0.0
    %348 = vmatprep.mubr.f32.mxu0 0.0
    %349 = vmatmul.mubr.f32.gmra.mrb[0].mxu0 %v233
    %v350 = vpop.f32.mrb[0].mxu0
    %v351 = vadd.f32 0.0, %v350
    %v352 = vpop.f32.mrb[0].mxu0
    %353 = vmatprep.mubr.f32.mxu0 0.0
    %354 = vmatmul.mubr.f32.gmra.mrb[0].mxu0 %v236
    %v355 = vpop.f32.mrb[0].mxu0
    %v356 = vadd.f32 0.0, %v355
    %v357 = vpop.f32.mrb[0].mxu0
    %358 = vmatprep.mubr.f32.mxu0 0.0
    %359 = vmatmul.mubr.f32.gmra.mrb[0].mxu0 %v239
    %v360 = vpop.f32.mrb[0].mxu0
    %v361 = vadd.f32 0.0, %v360
    %v362 = vpop.f32.mrb[0].mxu0
    %363 = vmatprep.mubr.f32.mxu0 0.0
    %364 = vmatmul.mubr.f32.gmra.mrb[0].mxu0 %v242
    %v365 = vpop.f32.mrb[0].mxu0
    %v366 = vadd.f32 0.0, %v365
    %v367 = vpop.f32.mrb[0].mxu0
    %368 = vmatprep.mubr.f32.mxu0 0.0
    %369 = vmatmul.mubr.f32.gmra.mrb[0].mxu0 %v245
    %v370 = vpop.f32.mrb[0].mxu0
    %v371 = vadd.f32 0.0, %v370
    %v372 = vpop.f32.mrb[0].mxu0
    %373 = vmatprep.mubr.f32.mxu0 0.0
    %374 = vmatmul.mubr.f32.gmra.mrb[0].mxu0 %v248
    %v375 = vpop.f32.mrb[0].mxu0
    %v376 = vadd.f32 0.0, %v375
    %v377 = vpop.f32.mrb[0].mxu0
    %378 = vmatprep.mubr.f32.mxu0 0.0
    %379 = vmatmul.mubr.f32.gmra.mrb[0].mxu0 %v251
    %v380 = vpop.f32.mrb[0].mxu0
    %v381 = vadd.f32 0.0, %v380
    %v382 = vpop.f32.mrb[0].mxu0
    %383 = vmatprep.mubr.f32.mxu0 0.0
    %384 = vmatmul.mubr.f32.gmra.mrb[0].mxu0 %v254
    %v385 = vpop.f32.mrb[0].mxu0
    %v386 = vadd.f32 0.0, %v385
    %v387 = vpop.f32.mrb[0].mxu0
    %388 = vmatprep.mubr.f32.mxu0 0.0
    %389 = vmatmul.mubr.f32.gmra.mrb[0].mxu0 %v257
    %v390 = vpop.f32.mrb[0].mxu0
    %v391 = vadd.f32 0.0, %v390
    %v392 = vpop.f32.mrb[0].mxu0
    %393 = vmatprep.mubr.f32.mxu0 0.0
    %394 = vmatmul.mubr.f32.gmra.mrb[0].mxu0 %v260
    %v395 = vpop.f32.mrb[0].mxu0
    %v396 = vadd.f32 0.0, %v395
    %v397 = vpop.f32.mrb[0].mxu0
    %398 = vmatprep.mubr.f32.mxu0 0.0
    %399 = vmatmul.mubr.f32.gmra.mrb[0].mxu0 %v263
    %v400 = vpop.f32.mrb[0].mxu0
    %v401 = vadd.f32 0.0, %v400
    %v402 = vpop.f32.mrb[0].mxu0
    %403 = vmatprep.mubr.f32.mxu0 0.0
    %404 = vmatmul.mubr.f32.gmra.mrb[0].mxu0 %v266
    %v405 = vpop.f32.mrb[0].mxu0
    %v406 = vadd.f32 0.0, %v405
    %v407 = vpop.f32.mrb[0].mxu0
    %408 = vmatprep.mubr.f32.mxu0 0.0
    %409 = vmatmul.mubr.f32.gmra.mrb[0].mxu0 %v269
    %v410 = vpop.f32.mrb[0].mxu0
    %v411 = vadd.f32 0.0, %v410
    %v412 = vpop.f32.mrb[0].mxu0
    %413 = vmatprep.mubr.f32.mxu0 0.0
    %414 = vmatmul.mubr.f32.gmra.mrb[0].mxu0 %v272
    %v415 = vpop.f32.mrb[0].mxu0
    %v416 = vadd.f32 0.0, %v415
    %v417 = vpop.f32.mrb[0].mxu0
    %418 = vmatprep.mubr.f32.mxu0 0.0
    %419 = vmatmul.mubr.f32.gmra.mrb[0].mxu0 %v275
    %v420 = vpop.f32.mrb[0].mxu0
    %v421 = vadd.f32 0.0, %v420
    %v422 = vpop.f32.mrb[0].mxu0
    %423 = vmatprep.mubr.f32.mxu0 0.0
    %424 = vmatmul.mubr.f32.gmra.mrb[0].mxu0 %v278
    %v425 = vpop.f32.mrb[0].mxu0
    %v426 = vadd.f32 0.0, %v425
    %v427 = vpop.f32.mrb[0].mxu0
    %428 = vdwg.mxu0
    %v430 = vsel %vm40, %v197, 0
    %v433 = vsel %vm40, %v198, 0
    %v436 = vsel %vm40, %v199, 0
    %v439 = vsel %vm40, %v200, 0
    %v442 = vsel %vm40, %v201, 0
    %v445 = vsel %vm40, %v202, 0
    %v448 = vsel %vm40, %v203, 0
    %v451 = vsel %vm40, %v204, 0
    %v454 = vsel %vm40, %v205, 0
    %v457 = vsel %vm40, %v206, 0
    %v460 = vsel %vm40, %v207, 0
    %v463 = vsel %vm40, %v208, 0
    %v466 = vsel %vm40, %v209, 0
    %v469 = vsel %vm40, %v210, 0
    %v472 = vsel %vm40, %v211, 0
    %v475 = vsel %vm40, %v212, 0
    %v478 = vsel %vm280, %v213, 0
    %480 = vmatprep.subr.mxu0 0.0
    %481 = vmatpush1.msra.mxu0 %v478
    %482 = vmatprep.subr.mxu0 0.0
    %483 = vmatpush1.msra.mxu0 0.0
    %484 = vmatprep.subr.mxu0 0.0
    %485 = vmatpush1.msra.mxu0 0.0
    %486 = vmatprep.subr.mxu0 0.0
    %487 = vmatpush1.msra.mxu0 0.0
    %488 = vmatprep.subr.mxu0 0.0
    %489 = vmatpush1.msra.mxu0 0.0
    %490 = vmatprep.subr.mxu0 0.0
    %491 = vmatpush1.msra.mxu0 0.0
    %492 = vmatprep.subr.mxu0 0.0
    %493 = vmatpush1.msra.mxu0 0.0
    %494 = vmatprep.subr.mxu0 0.0
    %495 = vmatpush1.msra.mxu0 0.0
    %496 = vmatprep.subr.mxu0 0.0
    %497 = vmatpush1.msra.mxu0 0.0
    %498 = vmatprep.subr.mxu0 0.0
    %499 = vmatpush1.msra.mxu0 0.0
    %500 = vmatprep.subr.mxu0 0.0
    %501 = vmatpush1.msra.mxu0 0.0
    %502 = vmatprep.subr.mxu0 0.0
    %503 = vmatpush1.msra.mxu0 0.0
    %504 = vmatprep.subr.mxu0 0.0
    %505 = vmatpush1.msra.mxu0 0.0
    %506 = vmatprep.subr.mxu0 0.0
    %507 = vmatpush1.msra.mxu0 0.0
    %508 = vmatprep.subr.mxu0 0.0
    %509 = vmatpush1.msra.mxu0 0.0
    %510 = vmatprep.subr.mxu0 0.0
    %511 = vmatpush1.msra.mxu0 0.0
    %512 = vmatprep.subr.mxu0 0.0
    %513 = vmatpush1.msra.mxu0 0.0
    %514 = vmatprep.subr.mxu0 0.0
    %515 = vmatpush1.msra.mxu0 0.0
    %516 = vmatprep.subr.mxu0 0.0
    %517 = vmatpush1.msra.mxu0 0.0
    %518 = vmatprep.subr.mxu0 0.0
    %519 = vmatpush1.msra.mxu0 0.0
    %520 = vmatprep.subr.mxu0 0.0
    %521 = vmatpush1.msra.mxu0 0.0
    %522 = vmatprep.subr.mxu0 0.0
    %523 = vmatpush1.msra.mxu0 0.0
    %524 = vmatprep.subr.mxu0 0.0
    %525 = vmatpush1.msra.mxu0 0.0
    %526 = vmatprep.subr.mxu0 0.0
    %527 = vmatpush1.msra.mxu0 0.0
    %528 = vmatprep.subr.mxu0 0.0
    %529 = vmatpush1.msra.mxu0 0.0
    %530 = vmatprep.subr.mxu0 0.0
    %531 = vmatpush1.msra.mxu0 0.0
    %532 = vmatprep.subr.mxu0 0.0
    %533 = vmatpush1.msra.mxu0 0.0
    %534 = vmatprep.subr.mxu0 0.0
    %535 = vmatpush1.msra.mxu0 0.0
    %536 = vmatprep.subr.mxu0 0.0
    %537 = vmatpush1.msra.mxu0 0.0
    %538 = vmatprep.subr.mxu0 0.0
    %539 = vmatpush1.msra.mxu0 0.0
    %540 = vmatprep.subr.mxu0 0.0
    %541 = vmatpush1.msra.mxu0 0.0
    %542 = vmatprep.subr.mxu0 0.0
    %543 = vmatpush1.msra.mxu0 0.0
    %544 = vmatprep.mubr.f32.mxu0 0.0
    %545 = vmatmul.mubr.f32.gmra.mrb[0].mxu0 %v430
    %v546 = vpop.f32.mrb[0].mxu0
    %v547 = vadd.f32 %v351, %v546
    %v548 = vpop.f32.mrb[0].mxu0
    %549 = vmatprep.mubr.f32.mxu0 0.0
    %550 = vmatmul.mubr.f32.gmra.mrb[0].mxu0 %v433
    %v551 = vpop.f32.mrb[0].mxu0
    %v552 = vadd.f32 %v356, %v551
    %v553 = vpop.f32.mrb[0].mxu0
    %554 = vmatprep.mubr.f32.mxu0 0.0
    %555 = vmatmul.mubr.f32.gmra.mrb[0].mxu0 %v436
    %v556 = vpop.f32.mrb[0].mxu0
    %v557 = vadd.f32 %v361, %v556
    %v558 = vpop.f32.mrb[0].mxu0
    %559 = vmatprep.mubr.f32.mxu0 0.0
    %560 = vmatmul.mubr.f32.gmra.mrb[0].mxu0 %v439
    %v561 = vpop.f32.mrb[0].mxu0
    %v562 = vadd.f32 %v366, %v561
    %v563 = vpop.f32.mrb[0].mxu0
    %564 = vmatprep.mubr.f32.mxu0 0.0
    %565 = vmatmul.mubr.f32.gmra.mrb[0].mxu0 %v442
    %v566 = vpop.f32.mrb[0].mxu0
    %v567 = vadd.f32 %v371, %v566
    %v568 = vpop.f32.mrb[0].mxu0
    %569 = vmatprep.mubr.f32.mxu0 0.0
    %570 = vmatmul.mubr.f32.gmra.mrb[0].mxu0 %v445
    %v571 = vpop.f32.mrb[0].mxu0
    %v572 = vadd.f32 %v376, %v571
    %v573 = vpop.f32.mrb[0].mxu0
    %574 = vmatprep.mubr.f32.mxu0 0.0
    %575 = vmatmul.mubr.f32.gmra.mrb[0].mxu0 %v448
    %v576 = vpop.f32.mrb[0].mxu0
    %v577 = vadd.f32 %v381, %v576
    %v578 = vpop.f32.mrb[0].mxu0
    %579 = vmatprep.mubr.f32.mxu0 0.0
    %580 = vmatmul.mubr.f32.gmra.mrb[0].mxu0 %v451
    %v581 = vpop.f32.mrb[0].mxu0
    %v582 = vadd.f32 %v386, %v581
    %v583 = vpop.f32.mrb[0].mxu0
    %584 = vmatprep.mubr.f32.mxu0 0.0
    %585 = vmatmul.mubr.f32.gmra.mrb[0].mxu0 %v454
    %v586 = vpop.f32.mrb[0].mxu0
    %v587 = vadd.f32 %v391, %v586
    %v588 = vpop.f32.mrb[0].mxu0
    %589 = vmatprep.mubr.f32.mxu0 0.0
    %590 = vmatmul.mubr.f32.gmra.mrb[0].mxu0 %v457
    %v591 = vpop.f32.mrb[0].mxu0
    %v592 = vadd.f32 %v396, %v591
    %v593 = vpop.f32.mrb[0].mxu0
    %594 = vmatprep.mubr.f32.mxu0 0.0
    %595 = vmatmul.mubr.f32.gmra.mrb[0].mxu0 %v460
    %v596 = vpop.f32.mrb[0].mxu0
    %v597 = vadd.f32 %v401, %v596
    %v598 = vpop.f32.mrb[0].mxu0
    %599 = vmatprep.mubr.f32.mxu0 0.0
    %600 = vmatmul.mubr.f32.gmra.mrb[0].mxu0 %v463
    %v601 = vpop.f32.mrb[0].mxu0
    %v602 = vadd.f32 %v406, %v601
    %v603 = vpop.f32.mrb[0].mxu0
    %604 = vmatprep.mubr.f32.mxu0 0.0
    %605 = vmatmul.mubr.f32.gmra.mrb[0].mxu0 %v466
    %v606 = vpop.f32.mrb[0].mxu0
    %v607 = vadd.f32 %v411, %v606
    %v608 = vpop.f32.mrb[0].mxu0
    %609 = vmatprep.mubr.f32.mxu0 0.0
    %610 = vmatmul.mubr.f32.gmra.mrb[0].mxu0 %v469
    %v611 = vpop.f32.mrb[0].mxu0
    %v612 = vadd.f32 %v416, %v611
    %v613 = vpop.f32.mrb[0].mxu0
    %614 = vmatprep.mubr.f32.mxu0 0.0
    %615 = vmatmul.mubr.f32.gmra.mrb[0].mxu0 %v472
    %v616 = vpop.f32.mrb[0].mxu0
    %v617 = vadd.f32 %v421, %v616
    %v618 = vpop.f32.mrb[0].mxu0
    %619 = vmatprep.mubr.f32.mxu0 0.0
    %620 = vmatmul.mubr.f32.gmra.mrb[0].mxu0 %v475
    %v621 = vpop.f32.mrb[0].mxu0
    %v622 = vadd.f32 %v426, %v621
    %v623 = vpop.f32.mrb[0].mxu0
    %624 = vdwg.mxu0
    %v625 = vld [vmem:[#allocation2 + $0x9] sm:$0xff]
    %v626 = vld [vmem:[#allocation2 + $0x21] sm:$0xff]
    %v627 = vld [vmem:[#allocation2 + $0x39] sm:$0xff]
    %v628 = vld [vmem:[#allocation2 + $0x51] sm:$0xff]
    %v629 = vld [vmem:[#allocation2 + $0x69] sm:$0xff]
    %v630 = vld [vmem:[#allocation2 + $0x81] sm:$0xff]
    %v631 = vld [vmem:[#allocation2 + $0x99] sm:$0xff]
    %v632 = vld [vmem:[#allocation2 + $0xb1] sm:$0xff]
    %v633 = vld [vmem:[#allocation2 + $0xf9] sm:$0xff]
    %v634 = vld [vmem:[#allocation2 + $0x111] sm:$0xff]
    %v635 = vld [vmem:[#allocation2 + $0x129] sm:$0xff]
    %v636 = vld [vmem:[#allocation2 + $0x141] sm:$0xff]
    %v637 = vld [vmem:[#allocation2 + $0x159] sm:$0xff]
    %v638 = vld [vmem:[#allocation2 + $0x171] sm:$0xff]
    %v639 = vld [vmem:[#allocation2 + $0x189] sm:$0xff]
    %v640 = vld [vmem:[#allocation2 + $0x1a1] sm:$0xff]
    %s641 = scalar_lea.vmem %s1, 8
    %v642 = vld [vmem:[%s641] sm:$0xf]
    %v644 = vsel %vm40, %v625, 0
    %v647 = vsel %vm40, %v626, 0
    %v650 = vsel %vm40, %v627, 0
    %v653 = vsel %vm40, %v628, 0
    %v656 = vsel %vm40, %v629, 0
    %v659 = vsel %vm40, %v630, 0
    %v662 = vsel %vm40, %v631, 0
    %v665 = vsel %vm40, %v632, 0
    %v668 = vsel %vm40, %v633, 0
    %v671 = vsel %vm40, %v634, 0
    %v674 = vsel %vm40, %v635, 0
    %v677 = vsel %vm40, %v636, 0
    %v680 = vsel %vm40, %v637, 0
    %v683 = vsel %vm40, %v638, 0
    %v686 = vsel %vm40, %v639, 0
    %v689 = vsel %vm40, %v640, 0
    %v692 = vsel %vm280, %v642, 0
    %694 = vmatprep.subr.mxu0 0.0
    %695 = vmatpush1.msra.mxu0 %v692
    %696 = vmatprep.subr.mxu0 0.0
    %697 = vmatpush1.msra.mxu0 0.0
    %698 = vmatprep.subr.mxu0 0.0
    %699 = vmatpush1.msra.mxu0 0.0
    %700 = vmatprep.subr.mxu0 0.0
    %701 = vmatpush1.msra.mxu0 0.0
    %702 = vmatprep.subr.mxu0 0.0
    %703 = vmatpush1.msra.mxu0 0.0
    %704 = vmatprep.subr.mxu0 0.0
    %705 = vmatpush1.msra.mxu0 0.0
    %706 = vmatprep.subr.mxu0 0.0
    %707 = vmatpush1.msra.mxu0 0.0
    %708 = vmatprep.subr.mxu0 0.0
    %709 = vmatpush1.msra.mxu0 0.0
    %710 = vmatprep.subr.mxu0 0.0
    %711 = vmatpush1.msra.mxu0 0.0
    %712 = vmatprep.subr.mxu0 0.0
    %713 = vmatpush1.msra.mxu0 0.0
    %714 = vmatprep.subr.mxu0 0.0
    %715 = vmatpush1.msra.mxu0 0.0
    %716 = vmatprep.subr.mxu0 0.0
    %717 = vmatpush1.msra.mxu0 0.0
    %718 = vmatprep.subr.mxu0 0.0
    %719 = vmatpush1.msra.mxu0 0.0
    %720 = vmatprep.subr.mxu0 0.0
    %721 = vmatpush1.msra.mxu0 0.0
    %722 = vmatprep.subr.mxu0 0.0
    %723 = vmatpush1.msra.mxu0 0.0
    %724 = vmatprep.subr.mxu0 0.0
    %725 = vmatpush1.msra.mxu0 0.0
    %726 = vmatprep.subr.mxu0 0.0
    %727 = vmatpush1.msra.mxu0 0.0
    %728 = vmatprep.subr.mxu0 0.0
    %729 = vmatpush1.msra.mxu0 0.0
    %730 = vmatprep.subr.mxu0 0.0
    %731 = vmatpush1.msra.mxu0 0.0
    %732 = vmatprep.subr.mxu0 0.0
    %733 = vmatpush1.msra.mxu0 0.0
    %734 = vmatprep.subr.mxu0 0.0
    %735 = vmatpush1.msra.mxu0 0.0
    %736 = vmatprep.subr.mxu0 0.0
    %737 = vmatpush1.msra.mxu0 0.0
    %738 = vmatprep.subr.mxu0 0.0
    %739 = vmatpush1.msra.mxu0 0.0
    %740 = vmatprep.subr.mxu0 0.0
    %741 = vmatpush1.msra.mxu0 0.0
    %742 = vmatprep.subr.mxu0 0.0
    %743 = vmatpush1.msra.mxu0 0.0
    %744 = vmatprep.subr.mxu0 0.0
    %745 = vmatpush1.msra.mxu0 0.0
    %746 = vmatprep.subr.mxu0 0.0
    %747 = vmatpush1.msra.mxu0 0.0
    %748 = vmatprep.subr.mxu0 0.0
    %749 = vmatpush1.msra.mxu0 0.0
    %750 = vmatprep.subr.mxu0 0.0
    %751 = vmatpush1.msra.mxu0 0.0
    %752 = vmatprep.subr.mxu0 0.0
    %753 = vmatpush1.msra.mxu0 0.0
    %754 = vmatprep.subr.mxu0 0.0
    %755 = vmatpush1.msra.mxu0 0.0
    %756 = vmatprep.subr.mxu0 0.0
    %757 = vmatpush1.msra.mxu0 0.0
    %758 = vmatprep.mubr.f32.mxu0 0.0
    %759 = vmatmul.mubr.f32.gmra.mrb[0].mxu0 %v644
    %v760 = vpop.f32.mrb[0].mxu0
    %v761 = vadd.f32 0.0, %v760
    %v762 = vpop.f32.mrb[0].mxu0
    %763 = vmatprep.mubr.f32.mxu0 0.0
    %764 = vmatmul.mubr.f32.gmra.mrb[0].mxu0 %v647
    %v765 = vpop.f32.mrb[0].mxu0
    %v766 = vadd.f32 0.0, %v765
    %v767 = vpop.f32.mrb[0].mxu0
    %768 = vmatprep.mubr.f32.mxu0 0.0
    %769 = vmatmul.mubr.f32.gmra.mrb[0].mxu0 %v650
    %v770 = vpop.f32.mrb[0].mxu0
    %v771 = vadd.f32 0.0, %v770
    %v772 = vpop.f32.mrb[0].mxu0
    %773 = vmatprep.mubr.f32.mxu0 0.0
    %774 = vmatmul.mubr.f32.gmra.mrb[0].mxu0 %v653
    %v775 = vpop.f32.mrb[0].mxu0
    %v776 = vadd.f32 0.0, %v775
    %v777 = vpop.f32.mrb[0].mxu0
    %778 = vmatprep.mubr.f32.mxu0 0.0
    %779 = vmatmul.mubr.f32.gmra.mrb[0].mxu0 %v656
    %v780 = vpop.f32.mrb[0].mxu0
    %v781 = vadd.f32 0.0, %v780
    %v782 = vpop.f32.mrb[0].mxu0
    %783 = vmatprep.mubr.f32.mxu0 0.0
    %784 = vmatmul.mubr.f32.gmra.mrb[0].mxu0 %v659
    %v785 = vpop.f32.mrb[0].mxu0
    %v786 = vadd.f32 0.0, %v785
    %v787 = vpop.f32.mrb[0].mxu0
    %788 = vmatprep.mubr.f32.mxu0 0.0
    %789 = vmatmul.mubr.f32.gmra.mrb[0].mxu0 %v662
    %v790 = vpop.f32.mrb[0].mxu0
    %v791 = vadd.f32 0.0, %v790
    %v792 = vpop.f32.mrb[0].mxu0
    %793 = vmatprep.mubr.f32.mxu0 0.0
    %794 = vmatmul.mubr.f32.gmra.mrb[0].mxu0 %v665
    %v795 = vpop.f32.mrb[0].mxu0
    %v796 = vadd.f32 0.0, %v795
    %v797 = vpop.f32.mrb[0].mxu0
    %798 = vmatprep.mubr.f32.mxu0 0.0
    %799 = vmatmul.mubr.f32.gmra.mrb[0].mxu0 %v668
    %v800 = vpop.f32.mrb[0].mxu0
    %v801 = vadd.f32 0.0, %v800
    %v802 = vpop.f32.mrb[0].mxu0
    %803 = vmatprep.mubr.f32.mxu0 0.0
    %804 = vmatmul.mubr.f32.gmra.mrb[0].mxu0 %v671
    %v805 = vpop.f32.mrb[0].mxu0
    %v806 = vadd.f32 0.0, %v805
    %v807 = vpop.f32.mrb[0].mxu0
    %808 = vmatprep.mubr.f32.mxu0 0.0
    %809 = vmatmul.mubr.f32.gmra.mrb[0].mxu0 %v674
    %v810 = vpop.f32.mrb[0].mxu0
    %v811 = vadd.f32 0.0, %v810
    %v812 = vpop.f32.mrb[0].mxu0
    %813 = vmatprep.mubr.f32.mxu0 0.0
    %814 = vmatmul.mubr.f32.gmra.mrb[0].mxu0 %v677
    %v815 = vpop.f32.mrb[0].mxu0
    %v816 = vadd.f32 0.0, %v815
    %v817 = vpop.f32.mrb[0].mxu0
    %818 = vmatprep.mubr.f32.mxu0 0.0
    %819 = vmatmul.mubr.f32.gmra.mrb[0].mxu0 %v680
    %v820 = vpop.f32.mrb[0].mxu0
    %v821 = vadd.f32 0.0, %v820
    %v822 = vpop.f32.mrb[0].mxu0
    %823 = vmatprep.mubr.f32.mxu0 0.0
    %824 = vmatmul.mubr.f32.gmra.mrb[0].mxu0 %v683
    %v825 = vpop.f32.mrb[0].mxu0
    %v826 = vadd.f32 0.0, %v825
    %v827 = vpop.f32.mrb[0].mxu0
    %828 = vmatprep.mubr.f32.mxu0 0.0
    %829 = vmatmul.mubr.f32.gmra.mrb[0].mxu0 %v686
    %v830 = vpop.f32.mrb[0].mxu0
    %v831 = vadd.f32 0.0, %v830
    %v832 = vpop.f32.mrb[0].mxu0
    %833 = vmatprep.mubr.f32.mxu0 0.0
    %834 = vmatmul.mubr.f32.gmra.mrb[0].mxu0 %v689
    %v835 = vpop.f32.mrb[0].mxu0
    %v836 = vadd.f32 0.0, %v835
    %v837 = vpop.f32.mrb[0].mxu0
    %838 = vdwg.mxu0
    %v839 = vadd.f32 %v547, %v761
    %v840 = vadd.f32 %v552, %v766
    %v841 = vadd.f32 %v557, %v771
    %v842 = vadd.f32 %v562, %v776
    %v843 = vadd.f32 %v567, %v781
    %v844 = vadd.f32 %v572, %v786
    %v845 = vadd.f32 %v577, %v791
    %v846 = vadd.f32 %v582, %v796
    %v847 = vadd.f32 %v587, %v801
    %v848 = vadd.f32 %v592, %v806
    %v849 = vadd.f32 %v597, %v811
    %v850 = vadd.f32 %v602, %v816
    %v851 = vadd.f32 %v607, %v821
    %v852 = vadd.f32 %v612, %v826
    %v853 = vadd.f32 %v617, %v831
    %v854 = vadd.f32 %v622, %v836
    %v855 = vld [vmem:[%s180 + $0x7] sm:$0xff]
    %v856 = vld [vmem:[%s180 + $0x1f] sm:$0xff]
    %v857 = vld [vmem:[%s180 + $0x37] sm:$0xff]
    %v858 = vld [vmem:[%s180 + $0x4f] sm:$0xff]
    %v859 = vld [vmem:[%s180 + $0x67] sm:$0xff]
    %v860 = vld [vmem:[%s180 + $0x7f] sm:$0xff]
    %v861 = vld [vmem:[%s180 + $0x97] sm:$0xff]
    %v862 = vld [vmem:[%s180 + $0xaf] sm:$0xff]
    %v863 = vld [vmem:[%s180 + $0xf7] sm:$0xff]
    %v864 = vld [vmem:[%s180 + $0x10f] sm:$0xff]
    %v865 = vld [vmem:[%s180 + $0x127] sm:$0xff]
    %v866 = vld [vmem:[%s180 + $0x13f] sm:$0xff]
    %v867 = vld [vmem:[%s180 + $0x157] sm:$0xff]
    %v868 = vld [vmem:[%s180 + $0x16f] sm:$0xff]
    %v869 = vld [vmem:[%s180 + $0x187] sm:$0xff]
    %v870 = vld [vmem:[%s180 + $0x19f] sm:$0xff]
    %s871 = scalar_lea.vmem %s1, 12
    %v872 = vld [vmem:[%s871] sm:$0xf]
    %v874 = vsel %vm40, %v855, 0
    %v877 = vsel %vm40, %v856, 0
    %v880 = vsel %vm40, %v857, 0
    %v883 = vsel %vm40, %v858, 0
    %v886 = vsel %vm40, %v859, 0
    %v889 = vsel %vm40, %v860, 0
    %v892 = vsel %vm40, %v861, 0
    %v895 = vsel %vm40, %v862, 0
    %v898 = vsel %vm40, %v863, 0
    %v901 = vsel %vm40, %v864, 0
    %v904 = vsel %vm40, %v865, 0
    %v907 = vsel %vm40, %v866, 0
    %v910 = vsel %vm40, %v867, 0
    %v913 = vsel %vm40, %v868, 0
    %v916 = vsel %vm40, %v869, 0
    %v919 = vsel %vm40, %v870, 0
    %v922 = vsel %vm280, %v872, 0
    %924 = vmatprep.subr.mxu0 0.0
    %925 = vmatpush1.msra.mxu0 %v922
    %926 = vmatprep.subr.mxu0 0.0
    %927 = vmatpush1.msra.mxu0 0.0
    %928 = vmatprep.subr.mxu0 0.0
    %929 = vmatpush1.msra.mxu0 0.0
    %930 = vmatprep.subr.mxu0 0.0
    %931 = vmatpush1.msra.mxu0 0.0
    %932 = vmatprep.subr.mxu0 0.0
    %933 = vmatpush1.msra.mxu0 0.0
    %934 = vmatprep.subr.mxu0 0.0
    %935 = vmatpush1.msra.mxu0 0.0
    %936 = vmatprep.subr.mxu0 0.0
    %937 = vmatpush1.msra.mxu0 0.0
    %938 = vmatprep.subr.mxu0 0.0
    %939 = vmatpush1.msra.mxu0 0.0
    %940 = vmatprep.subr.mxu0 0.0
    %941 = vmatpush1.msra.mxu0 0.0
    %942 = vmatprep.subr.mxu0 0.0
    %943 = vmatpush1.msra.mxu0 0.0
    %944 = vmatprep.subr.mxu0 0.0
    %945 = vmatpush1.msra.mxu0 0.0
    %946 = vmatprep.subr.mxu0 0.0
    %947 = vmatpush1.msra.mxu0 0.0
    %948 = vmatprep.subr.mxu0 0.0
    %949 = vmatpush1.msra.mxu0 0.0
    %950 = vmatprep.subr.mxu0 0.0
    %951 = vmatpush1.msra.mxu0 0.0
    %952 = vmatprep.subr.mxu0 0.0
    %953 = vmatpush1.msra.mxu0 0.0
    %954 = vmatprep.subr.mxu0 0.0
    %955 = vmatpush1.msra.mxu0 0.0
    %956 = vmatprep.subr.mxu0 0.0
    %957 = vmatpush1.msra.mxu0 0.0
    %958 = vmatprep.subr.mxu0 0.0
    %959 = vmatpush1.msra.mxu0 0.0
    %960 = vmatprep.subr.mxu0 0.0
    %961 = vmatpush1.msra.mxu0 0.0
    %962 = vmatprep.subr.mxu0 0.0
    %963 = vmatpush1.msra.mxu0 0.0
    %964 = vmatprep.subr.mxu0 0.0
    %965 = vmatpush1.msra.mxu0 0.0
    %966 = vmatprep.subr.mxu0 0.0
    %967 = vmatpush1.msra.mxu0 0.0
    %968 = vmatprep.subr.mxu0 0.0
    %969 = vmatpush1.msra.mxu0 0.0
    %970 = vmatprep.subr.mxu0 0.0
    %971 = vmatpush1.msra.mxu0 0.0
    %972 = vmatprep.subr.mxu0 0.0
    %973 = vmatpush1.msra.mxu0 0.0
    %974 = vmatprep.subr.mxu0 0.0
    %975 = vmatpush1.msra.mxu0 0.0
    %976 = vmatprep.subr.mxu0 0.0
    %977 = vmatpush1.msra.mxu0 0.0
    %978 = vmatprep.subr.mxu0 0.0
    %979 = vmatpush1.msra.mxu0 0.0
    %980 = vmatprep.subr.mxu0 0.0
    %981 = vmatpush1.msra.mxu0 0.0
    %982 = vmatprep.subr.mxu0 0.0
    %983 = vmatpush1.msra.mxu0 0.0
    %984 = vmatprep.subr.mxu0 0.0
    %985 = vmatpush1.msra.mxu0 0.0
    %986 = vmatprep.subr.mxu0 0.0
    %987 = vmatpush1.msra.mxu0 0.0
    %988 = vmatprep.mubr.f32.mxu0 0.0
    %989 = vmatmul.mubr.f32.gmra.mrb[0].mxu0 %v874
    %v990 = vpop.f32.mrb[0].mxu0
    %v991 = vadd.f32 0.0, %v990
    %v992 = vpop.f32.mrb[0].mxu0
    %993 = vmatprep.mubr.f32.mxu0 0.0
    %994 = vmatmul.mubr.f32.gmra.mrb[0].mxu0 %v877
    %v995 = vpop.f32.mrb[0].mxu0
    %v996 = vadd.f32 0.0, %v995
    %v997 = vpop.f32.mrb[0].mxu0
    %998 = vmatprep.mubr.f32.mxu0 0.0
    %999 = vmatmul.mubr.f32.gmra.mrb[0].mxu0 %v880
    %v1000 = vpop.f32.mrb[0].mxu0
    %v1001 = vadd.f32 0.0, %v1000
    %v1002 = vpop.f32.mrb[0].mxu0
    %1003 = vmatprep.mubr.f32.mxu0 0.0
    %1004 = vmatmul.mubr.f32.gmra.mrb[0].mxu0 %v883
    %v1005 = vpop.f32.mrb[0].mxu0
    %v1006 = vadd.f32 0.0, %v1005
    %v1007 = vpop.f32.mrb[0].mxu0
    %1008 = vmatprep.mubr.f32.mxu0 0.0
    %1009 = vmatmul.mubr.f32.gmra.mrb[0].mxu0 %v886
    %v1010 = vpop.f32.mrb[0].mxu0
    %v1011 = vadd.f32 0.0, %v1010
    %v1012 = vpop.f32.mrb[0].mxu0
    %1013 = vmatprep.mubr.f32.mxu0 0.0
    %1014 = vmatmul.mubr.f32.gmra.mrb[0].mxu0 %v889
    %v1015 = vpop.f32.mrb[0].mxu0
    %v1016 = vadd.f32 0.0, %v1015
    %v1017 = vpop.f32.mrb[0].mxu0
    %1018 = vmatprep.mubr.f32.mxu0 0.0
    %1019 = vmatmul.mubr.f32.gmra.mrb[0].mxu0 %v892
    %v1020 = vpop.f32.mrb[0].mxu0
    %v1021 = vadd.f32 0.0, %v1020
    %v1022 = vpop.f32.mrb[0].mxu0
    %1023 = vmatprep.mubr.f32.mxu0 0.0
    %1024 = vmatmul.mubr.f32.gmra.mrb[0].mxu0 %v895
    %v1025 = vpop.f32.mrb[0].mxu0
    %v1026 = vadd.f32 0.0, %v1025
    %v1027 = vpop.f32.mrb[0].mxu0
    %1028 = vmatprep.mubr.f32.mxu0 0.0
    %1029 = vmatmul.mubr.f32.gmra.mrb[0].mxu0 %v898
    %v1030 = vpop.f32.mrb[0].mxu0
    %v1031 = vadd.f32 0.0, %v1030
    %v1032 = vpop.f32.mrb[0].mxu0
    %1033 = vmatprep.mubr.f32.mxu0 0.0
    %1034 = vmatmul.mubr.f32.gmra.mrb[0].mxu0 %v901
    %v1035 = vpop.f32.mrb[0].mxu0
    %v1036 = vadd.f32 0.0, %v1035
    %v1037 = vpop.f32.mrb[0].mxu0
    %1038 = vmatprep.mubr.f32.mxu0 0.0
    %1039 = vmatmul.mubr.f32.gmra.mrb[0].mxu0 %v904
    %v1040 = vpop.f32.mrb[0].mxu0
    %v1041 = vadd.f32 0.0, %v1040
    %v1042 = vpop.f32.mrb[0].mxu0
    %1043 = vmatprep.mubr.f32.mxu0 0.0
    %1044 = vmatmul.mubr.f32.gmra.mrb[0].mxu0 %v907
    %v1045 = vpop.f32.mrb[0].mxu0
    %v1046 = vadd.f32 0.0, %v1045
    %v1047 = vpop.f32.mrb[0].mxu0
    %1048 = vmatprep.mubr.f32.mxu0 0.0
    %1049 = vmatmul.mubr.f32.gmra.mrb[0].mxu0 %v910
    %v1050 = vpop.f32.mrb[0].mxu0
    %v1051 = vadd.f32 0.0, %v1050
    %v1052 = vpop.f32.mrb[0].mxu0
    %1053 = vmatprep.mubr.f32.mxu0 0.0
    %1054 = vmatmul.mubr.f32.gmra.mrb[0].mxu0 %v913
    %v1055 = vpop.f32.mrb[0].mxu0
    %v1056 = vadd.f32 0.0, %v1055
    %v1057 = vpop.f32.mrb[0].mxu0
    %1058 = vmatprep.mubr.f32.mxu0 0.0
    %1059 = vmatmul.mubr.f32.gmra.mrb[0].mxu0 %v916
    %v1060 = vpop.f32.mrb[0].mxu0
    %v1061 = vadd.f32 0.0, %v1060
    %v1062 = vpop.f32.mrb[0].mxu0
    %1063 = vmatprep.mubr.f32.mxu0 0.0
    %1064 = vmatmul.mubr.f32.gmra.mrb[0].mxu0 %v919
    %v1065 = vpop.f32.mrb[0].mxu0
    %v1066 = vadd.f32 0.0, %v1065
    %v1067 = vpop.f32.mrb[0].mxu0
    %1068 = vdwg.mxu0
    %v1069 = vadd.f32 %v839, %v991
    %v1070 = vadd.f32 %v840, %v996
    %v1071 = vadd.f32 %v841, %v1001
    %v1072 = vadd.f32 %v842, %v1006
    %v1073 = vadd.f32 %v843, %v1011
    %v1074 = vadd.f32 %v844, %v1016
    %v1075 = vadd.f32 %v845, %v1021
    %v1076 = vadd.f32 %v846, %v1026
    %v1077 = vadd.f32 %v847, %v1031
    %v1078 = vadd.f32 %v848, %v1036
    %v1079 = vadd.f32 %v849, %v1041
    %v1080 = vadd.f32 %v850, %v1046
    %v1081 = vadd.f32 %v851, %v1051
    %v1082 = vadd.f32 %v852, %v1056
    %v1083 = vadd.f32 %v853, %v1061
    %v1084 = vadd.f32 %v854, %v1066
    %v1085 = vld [vmem:[%s180 + $0x8] sm:$0xff]
    %v1086 = vld [vmem:[%s180 + $0x20] sm:$0xff]
    %v1087 = vld [vmem:[%s180 + $0x38] sm:$0xff]
    %v1088 = vld [vmem:[%s180 + $0x50] sm:$0xff]
    %v1089 = vld [vmem:[%s180 + $0x68] sm:$0xff]
    %v1090 = vld [vmem:[%s180 + $0x80] sm:$0xff]
    %v1091 = vld [vmem:[%s180 + $0x98] sm:$0xff]
    %v1092 = vld [vmem:[%s180 + $0xb0] sm:$0xff]
    %v1093 = vld [vmem:[%s180 + $0xf8] sm:$0xff]
    %v1094 = vld [vmem:[%s180 + $0x110] sm:$0xff]
    %v1095 = vld [vmem:[%s180 + $0x128] sm:$0xff]
    %v1096 = vld [vmem:[%s180 + $0x140] sm:$0xff]
    %v1097 = vld [vmem:[%s180 + $0x158] sm:$0xff]
    %v1098 = vld [vmem:[%s180 + $0x170] sm:$0xff]
    %v1099 = vld [vmem:[%s180 + $0x188] sm:$0xff]
    %v1100 = vld [vmem:[%s180 + $0x1a0] sm:$0xff]
    %s1101 = scalar_lea.vmem %s1, 16
    %v1102 = vld [vmem:[%s1101] sm:$0xf]
    %v1104 = vsel %vm40, %v1085, 0
    %v1107 = vsel %vm40, %v1086, 0
    %v1110 = vsel %vm40, %v1087, 0
    %v1113 = vsel %vm40, %v1088, 0
    %v1116 = vsel %vm40, %v1089, 0
    %v1119 = vsel %vm40, %v1090, 0
    %v1122 = vsel %vm40, %v1091, 0
    %v1125 = vsel %vm40, %v1092, 0
    %v1128 = vsel %vm40, %v1093, 0
    %v1131 = vsel %vm40, %v1094, 0
    %v1134 = vsel %vm40, %v1095, 0
    %v1137 = vsel %vm40, %v1096, 0
    %v1140 = vsel %vm40, %v1097, 0
    %v1143 = vsel %vm40, %v1098, 0
    %v1146 = vsel %vm40, %v1099, 0
    %v1149 = vsel %vm40, %v1100, 0
    %v1152 = vsel %vm280, %v1102, 0
    %1154 = vmatprep.subr.mxu0 0.0
    %1155 = vmatpush1.msra.mxu0 %v1152
    %1156 = vmatprep.subr.mxu0 0.0
    %1157 = vmatpush1.msra.mxu0 0.0
    %1158 = vmatprep.subr.mxu0 0.0
    %1159 = vmatpush1.msra.mxu0 0.0
    %1160 = vmatprep.subr.mxu0 0.0
    %1161 = vmatpush1.msra.mxu0 0.0
    %1162 = vmatprep.subr.mxu0 0.0
    %1163 = vmatpush1.msra.mxu0 0.0
    %1164 = vmatprep.subr.mxu0 0.0
    %1165 = vmatpush1.msra.mxu0 0.0
    %1166 = vmatprep.subr.mxu0 0.0
    %1167 = vmatpush1.msra.mxu0 0.0
    %1168 = vmatprep.subr.mxu0 0.0
    %1169 = vmatpush1.msra.mxu0 0.0
    %1170 = vmatprep.subr.mxu0 0.0
    %1171 = vmatpush1.msra.mxu0 0.0
    %1172 = vmatprep.subr.mxu0 0.0
    %1173 = vmatpush1.msra.mxu0 0.0
    %1174 = vmatprep.subr.mxu0 0.0
    %1175 = vmatpush1.msra.mxu0 0.0
    %1176 = vmatprep.subr.mxu0 0.0
    %1177 = vmatpush1.msra.mxu0 0.0
    %1178 = vmatprep.subr.mxu0 0.0
    %1179 = vmatpush1.msra.mxu0 0.0
    %1180 = vmatprep.subr.mxu0 0.0
    %1181 = vmatpush1.msra.mxu0 0.0
    %1182 = vmatprep.subr.mxu0 0.0
    %1183 = vmatpush1.msra.mxu0 0.0
    %1184 = vmatprep.subr.mxu0 0.0
    %1185 = vmatpush1.msra.mxu0 0.0
    %1186 = vmatprep.subr.mxu0 0.0
    %1187 = vmatpush1.msra.mxu0 0.0
    %1188 = vmatprep.subr.mxu0 0.0
    %1189 = vmatpush1.msra.mxu0 0.0
    %1190 = vmatprep.subr.mxu0 0.0
    %1191 = vmatpush1.msra.mxu0 0.0
    %1192 = vmatprep.subr.mxu0 0.0
    %1193 = vmatpush1.msra.mxu0 0.0
    %1194 = vmatprep.subr.mxu0 0.0
    %1195 = vmatpush1.msra.mxu0 0.0
    %1196 = vmatprep.subr.mxu0 0.0
    %1197 = vmatpush1.msra.mxu0 0.0
    %1198 = vmatprep.subr.mxu0 0.0
    %1199 = vmatpush1.msra.mxu0 0.0
    %1200 = vmatprep.subr.mxu0 0.0
    %1201 = vmatpush1.msra.mxu0 0.0
    %1202 = vmatprep.subr.mxu0 0.0
    %1203 = vmatpush1.msra.mxu0 0.0
    %1204 = vmatprep.subr.mxu0 0.0
    %1205 = vmatpush1.msra.mxu0 0.0
    %1206 = vmatprep.subr.mxu0 0.0
    %1207 = vmatpush1.msra.mxu0 0.0
    %1208 = vmatprep.subr.mxu0 0.0
    %1209 = vmatpush1.msra.mxu0 0.0
    %1210 = vmatprep.subr.mxu0 0.0
    %1211 = vmatpush1.msra.mxu0 0.0
    %1212 = vmatprep.subr.mxu0 0.0
    %1213 = vmatpush1.msra.mxu0 0.0
    %1214 = vmatprep.subr.mxu0 0.0
    %1215 = vmatpush1.msra.mxu0 0.0
    %1216 = vmatprep.subr.mxu0 0.0
    %1217 = vmatpush1.msra.mxu0 0.0
    %1218 = vmatprep.mubr.f32.mxu0 0.0
    %1219 = vmatmul.mubr.f32.gmra.mrb[0].mxu0 %v1104
    %v1220 = vpop.f32.mrb[0].mxu0
    %v1221 = vadd.f32 0.0, %v1220
    %v1222 = vpop.f32.mrb[0].mxu0
    %1223 = vmatprep.mubr.f32.mxu0 0.0
    %1224 = vmatmul.mubr.f32.gmra.mrb[0].mxu0 %v1107
    %v1225 = vpop.f32.mrb[0].mxu0
    %v1226 = vadd.f32 0.0, %v1225
    %v1227 = vpop.f32.mrb[0].mxu0
    %1228 = vmatprep.mubr.f32.mxu0 0.0
    %1229 = vmatmul.mubr.f32.gmra.mrb[0].mxu0 %v1110
    %v1230 = vpop.f32.mrb[0].mxu0
    %v1231 = vadd.f32 0.0, %v1230
    %v1232 = vpop.f32.mrb[0].mxu0
    %1233 = vmatprep.mubr.f32.mxu0 0.0
    %1234 = vmatmul.mubr.f32.gmra.mrb[0].mxu0 %v1113
    %v1235 = vpop.f32.mrb[0].mxu0
    %v1236 = vadd.f32 0.0, %v1235
    %v1237 = vpop.f32.mrb[0].mxu0
    %1238 = vmatprep.mubr.f32.mxu0 0.0
    %1239 = vmatmul.mubr.f32.gmra.mrb[0].mxu0 %v1116
    %v1240 = vpop.f32.mrb[0].mxu0
    %v1241 = vadd.f32 0.0, %v1240
    %v1242 = vpop.f32.mrb[0].mxu0
    %1243 = vmatprep.mubr.f32.mxu0 0.0
    %1244 = vmatmul.mubr.f32.gmra.mrb[0].mxu0 %v1119
    %v1245 = vpop.f32.mrb[0].mxu0
    %v1246 = vadd.f32 0.0, %v1245
    %v1247 = vpop.f32.mrb[0].mxu0
    %1248 = vmatprep.mubr.f32.mxu0 0.0
    %1249 = vmatmul.mubr.f32.gmra.mrb[0].mxu0 %v1122
    %v1250 = vpop.f32.mrb[0].mxu0
    %v1251 = vadd.f32 0.0, %v1250
    %v1252 = vpop.f32.mrb[0].mxu0
    %1253 = vmatprep.mubr.f32.mxu0 0.0
    %1254 = vmatmul.mubr.f32.gmra.mrb[0].mxu0 %v1125
    %v1255 = vpop.f32.mrb[0].mxu0
    %v1256 = vadd.f32 0.0, %v1255
    %v1257 = vpop.f32.mrb[0].mxu0
    %1258 = vmatprep.mubr.f32.mxu0 0.0
    %1259 = vmatmul.mubr.f32.gmra.mrb[0].mxu0 %v1128
    %v1260 = vpop.f32.mrb[0].mxu0
    %v1261 = vadd.f32 0.0, %v1260
    %v1262 = vpop.f32.mrb[0].mxu0
    %1263 = vmatprep.mubr.f32.mxu0 0.0
    %1264 = vmatmul.mubr.f32.gmra.mrb[0].mxu0 %v1131
    %v1265 = vpop.f32.mrb[0].mxu0
    %v1266 = vadd.f32 0.0, %v1265
    %v1267 = vpop.f32.mrb[0].mxu0
    %1268 = vmatprep.mubr.f32.mxu0 0.0
    %1269 = vmatmul.mubr.f32.gmra.mrb[0].mxu0 %v1134
    %v1270 = vpop.f32.mrb[0].mxu0
    %v1271 = vadd.f32 0.0, %v1270
    %v1272 = vpop.f32.mrb[0].mxu0
    %1273 = vmatprep.mubr.f32.mxu0 0.0
    %1274 = vmatmul.mubr.f32.gmra.mrb[0].mxu0 %v1137
    %v1275 = vpop.f32.mrb[0].mxu0
    %v1276 = vadd.f32 0.0, %v1275
    %v1277 = vpop.f32.mrb[0].mxu0
    %1278 = vmatprep.mubr.f32.mxu0 0.0
    %1279 = vmatmul.mubr.f32.gmra.mrb[0].mxu0 %v1140
    %v1280 = vpop.f32.mrb[0].mxu0
    %v1281 = vadd.f32 0.0, %v1280
    %v1282 = vpop.f32.mrb[0].mxu0
    %1283 = vmatprep.mubr.f32.mxu0 0.0
    %1284 = vmatmul.mubr.f32.gmra.mrb[0].mxu0 %v1143
    %v1285 = vpop.f32.mrb[0].mxu0
    %v1286 = vadd.f32 0.0, %v1285
    %v1287 = vpop.f32.mrb[0].mxu0
    %1288 = vmatprep.mubr.f32.mxu0 0.0
    %1289 = vmatmul.mubr.f32.gmra.mrb[0].mxu0 %v1146
    %v1290 = vpop.f32.mrb[0].mxu0
    %v1291 = vadd.f32 0.0, %v1290
    %v1292 = vpop.f32.mrb[0].mxu0
    %1293 = vmatprep.mubr.f32.mxu0 0.0
    %1294 = vmatmul.mubr.f32.gmra.mrb[0].mxu0 %v1149
    %v1295 = vpop.f32.mrb[0].mxu0
    %v1296 = vadd.f32 0.0, %v1295
    %v1297 = vpop.f32.mrb[0].mxu0
    %1298 = vdwg.mxu0
    %v1299 = vadd.f32 %v1069, %v1221
    %v1300 = vadd.f32 %v1070, %v1226
    %v1301 = vadd.f32 %v1071, %v1231
    %v1302 = vadd.f32 %v1072, %v1236
    %v1303 = vadd.f32 %v1073, %v1241
    %v1304 = vadd.f32 %v1074, %v1246
    %v1305 = vadd.f32 %v1075, %v1251
    %v1306 = vadd.f32 %v1076, %v1256
    %v1307 = vadd.f32 %v1077, %v1261
    %v1308 = vadd.f32 %v1078, %v1266
    %v1309 = vadd.f32 %v1079, %v1271
    %v1310 = vadd.f32 %v1080, %v1276
    %v1311 = vadd.f32 %v1081, %v1281
    %v1312 = vadd.f32 %v1082, %v1286
    %v1313 = vadd.f32 %v1083, %v1291
    %v1314 = vadd.f32 %v1084, %v1296
    %v1315 = vld [vmem:[%s180 + $0x9] sm:$0xff]
    %v1316 = vld [vmem:[%s180 + $0x21] sm:$0xff]
    %v1317 = vld [vmem:[%s180 + $0x39] sm:$0xff]
    %v1318 = vld [vmem:[%s180 + $0x51] sm:$0xff]
    %v1319 = vld [vmem:[%s180 + $0x69] sm:$0xff]
    %v1320 = vld [vmem:[%s180 + $0x81] sm:$0xff]
    %v1321 = vld [vmem:[%s180 + $0x99] sm:$0xff]
    %v1322 = vld [vmem:[%s180 + $0xb1] sm:$0xff]
    %v1323 = vld [vmem:[%s180 + $0xf9] sm:$0xff]
    %v1324 = vld [vmem:[%s180 + $0x111] sm:$0xff]
    %v1325 = vld [vmem:[%s180 + $0x129] sm:$0xff]
    %v1326 = vld [vmem:[%s180 + $0x141] sm:$0xff]
    %v1327 = vld [vmem:[%s180 + $0x159] sm:$0xff]
    %v1328 = vld [vmem:[%s180 + $0x171] sm:$0xff]
    %v1329 = vld [vmem:[%s180 + $0x189] sm:$0xff]
    %v1330 = vld [vmem:[%s180 + $0x1a1] sm:$0xff]
    %s1331 = scalar_lea.vmem %s1, 20
    %v1332 = vld [vmem:[%s1331] sm:$0xf]
    %v1334 = vsel %vm40, %v1315, 0
    %v1337 = vsel %vm40, %v1316, 0
    %v1340 = vsel %vm40, %v1317, 0
    %v1343 = vsel %vm40, %v1318, 0
    %v1346 = vsel %vm40, %v1319, 0
    %v1349 = vsel %vm40, %v1320, 0
    %v1352 = vsel %vm40, %v1321, 0
    %v1355 = vsel %vm40, %v1322, 0
    %v1358 = vsel %vm40, %v1323, 0
    %v1361 = vsel %vm40, %v1324, 0
    %v1364 = vsel %vm40, %v1325, 0
    %v1367 = vsel %vm40, %v1326, 0
    %v1370 = vsel %vm40, %v1327, 0
    %v1373 = vsel %vm40, %v1328, 0
    %v1376 = vsel %vm40, %v1329, 0
    %v1379 = vsel %vm40, %v1330, 0
    %v1382 = vsel %vm280, %v1332, 0
    %1384 = vmatprep.subr.mxu0 0.0
    %1385 = vmatpush1.msra.mxu0 %v1382
    %1386 = vmatprep.subr.mxu0 0.0
    %1387 = vmatpush1.msra.mxu0 0.0
    %1388 = vmatprep.subr.mxu0 0.0
    %1389 = vmatpush1.msra.mxu0 0.0
    %1390 = vmatprep.subr.mxu0 0.0
    %1391 = vmatpush1.msra.mxu0 0.0
    %1392 = vmatprep.subr.mxu0 0.0
    %1393 = vmatpush1.msra.mxu0 0.0
    %1394 = vmatprep.subr.mxu0 0.0
    %1395 = vmatpush1.msra.mxu0 0.0
    %1396 = vmatprep.subr.mxu0 0.0
    %1397 = vmatpush1.msra.mxu0 0.0
    %1398 = vmatprep.subr.mxu0 0.0
    %1399 = vmatpush1.msra.mxu0 0.0
    %1400 = vmatprep.subr.mxu0 0.0
    %1401 = vmatpush1.msra.mxu0 0.0
    %1402 = vmatprep.subr.mxu0 0.0
    %1403 = vmatpush1.msra.mxu0 0.0
    %1404 = vmatprep.subr.mxu0 0.0
    %1405 = vmatpush1.msra.mxu0 0.0
    %1406 = vmatprep.subr.mxu0 0.0
    %1407 = vmatpush1.msra.mxu0 0.0
    %1408 = vmatprep.subr.mxu0 0.0
    %1409 = vmatpush1.msra.mxu0 0.0
    %1410 = vmatprep.subr.mxu0 0.0
    %1411 = vmatpush1.msra.mxu0 0.0
    %1412 = vmatprep.subr.mxu0 0.0
    %1413 = vmatpush1.msra.mxu0 0.0
    %1414 = vmatprep.subr.mxu0 0.0
    %1415 = vmatpush1.msra.mxu0 0.0
    %1416 = vmatprep.subr.mxu0 0.0
    %1417 = vmatpush1.msra.mxu0 0.0
    %1418 = vmatprep.subr.mxu0 0.0
    %1419 = vmatpush1.msra.mxu0 0.0
    %1420 = vmatprep.subr.mxu0 0.0
    %1421 = vmatpush1.msra.mxu0 0.0
    %1422 = vmatprep.subr.mxu0 0.0
    %1423 = vmatpush1.msra.mxu0 0.0
    %1424 = vmatprep.subr.mxu0 0.0
    %1425 = vmatpush1.msra.mxu0 0.0
    %1426 = vmatprep.subr.mxu0 0.0
    %1427 = vmatpush1.msra.mxu0 0.0
    %1428 = vmatprep.subr.mxu0 0.0
    %1429 = vmatpush1.msra.mxu0 0.0
    %1430 = vmatprep.subr.mxu0 0.0
    %1431 = vmatpush1.msra.mxu0 0.0
    %1432 = vmatprep.subr.mxu0 0.0
    %1433 = vmatpush1.msra.mxu0 0.0
    %1434 = vmatprep.subr.mxu0 0.0
    %1435 = vmatpush1.msra.mxu0 0.0
    %1436 = vmatprep.subr.mxu0 0.0
    %1437 = vmatpush1.msra.mxu0 0.0
    %1438 = vmatprep.subr.mxu0 0.0
    %1439 = vmatpush1.msra.mxu0 0.0
    %1440 = vmatprep.subr.mxu0 0.0
    %1441 = vmatpush1.msra.mxu0 0.0
    %1442 = vmatprep.subr.mxu0 0.0
    %1443 = vmatpush1.msra.mxu0 0.0
    %1444 = vmatprep.subr.mxu0 0.0
    %1445 = vmatpush1.msra.mxu0 0.0
    %1446 = vmatprep.subr.mxu0 0.0
    %1447 = vmatpush1.msra.mxu0 0.0
    %1448 = vmatprep.mubr.f32.mxu0 0.0
    %1449 = vmatmul.mubr.f32.gmra.mrb[0].mxu0 %v1334
    %v1450 = vpop.f32.mrb[0].mxu0
    %v1451 = vadd.f32 0.0, %v1450
    %v1452 = vpop.f32.mrb[0].mxu0
    %1453 = vmatprep.mubr.f32.mxu0 0.0
    %1454 = vmatmul.mubr.f32.gmra.mrb[0].mxu0 %v1337
    %v1455 = vpop.f32.mrb[0].mxu0
    %v1456 = vadd.f32 0.0, %v1455
    %v1457 = vpop.f32.mrb[0].mxu0
    %1458 = vmatprep.mubr.f32.mxu0 0.0
    %1459 = vmatmul.mubr.f32.gmra.mrb[0].mxu0 %v1340
    %v1460 = vpop.f32.mrb[0].mxu0
    %v1461 = vadd.f32 0.0, %v1460
    %v1462 = vpop.f32.mrb[0].mxu0
    %1463 = vmatprep.mubr.f32.mxu0 0.0
    %1464 = vmatmul.mubr.f32.gmra.mrb[0].mxu0 %v1343
    %v1465 = vpop.f32.mrb[0].mxu0
    %v1466 = vadd.f32 0.0, %v1465
    %v1467 = vpop.f32.mrb[0].mxu0
    %1468 = vmatprep.mubr.f32.mxu0 0.0
    %1469 = vmatmul.mubr.f32.gmra.mrb[0].mxu0 %v1346
    %v1470 = vpop.f32.mrb[0].mxu0
    %v1471 = vadd.f32 0.0, %v1470
    %v1472 = vpop.f32.mrb[0].mxu0
    %1473 = vmatprep.mubr.f32.mxu0 0.0
    %1474 = vmatmul.mubr.f32.gmra.mrb[0].mxu0 %v1349
    %v1475 = vpop.f32.mrb[0].mxu0
    %v1476 = vadd.f32 0.0, %v1475
    %v1477 = vpop.f32.mrb[0].mxu0
    %1478 = vmatprep.mubr.f32.mxu0 0.0
    %1479 = vmatmul.mubr.f32.gmra.mrb[0].mxu0 %v1352
    %v1480 = vpop.f32.mrb[0].mxu0
    %v1481 = vadd.f32 0.0, %v1480
    %v1482 = vpop.f32.mrb[0].mxu0
    %1483 = vmatprep.mubr.f32.mxu0 0.0
    %1484 = vmatmul.mubr.f32.gmra.mrb[0].mxu0 %v1355
    %v1485 = vpop.f32.mrb[0].mxu0
    %v1486 = vadd.f32 0.0, %v1485
    %v1487 = vpop.f32.mrb[0].mxu0
    %1488 = vmatprep.mubr.f32.mxu0 0.0
    %1489 = vmatmul.mubr.f32.gmra.mrb[0].mxu0 %v1358
    %v1490 = vpop.f32.mrb[0].mxu0
    %v1491 = vadd.f32 0.0, %v1490
    %v1492 = vpop.f32.mrb[0].mxu0
    %1493 = vmatprep.mubr.f32.mxu0 0.0
    %1494 = vmatmul.mubr.f32.gmra.mrb[0].mxu0 %v1361
    %v1495 = vpop.f32.mrb[0].mxu0
    %v1496 = vadd.f32 0.0, %v1495
    %v1497 = vpop.f32.mrb[0].mxu0
    %1498 = vmatprep.mubr.f32.mxu0 0.0
    %1499 = vmatmul.mubr.f32.gmra.mrb[0].mxu0 %v1364
    %v1500 = vpop.f32.mrb[0].mxu0
    %v1501 = vadd.f32 0.0, %v1500
    %v1502 = vpop.f32.mrb[0].mxu0
    %1503 = vmatprep.mubr.f32.mxu0 0.0
    %1504 = vmatmul.mubr.f32.gmra.mrb[0].mxu0 %v1367
    %v1505 = vpop.f32.mrb[0].mxu0
    %v1506 = vadd.f32 0.0, %v1505
    %v1507 = vpop.f32.mrb[0].mxu0
    %1508 = vmatprep.mubr.f32.mxu0 0.0
    %1509 = vmatmul.mubr.f32.gmra.mrb[0].mxu0 %v1370
    %v1510 = vpop.f32.mrb[0].mxu0
    %v1511 = vadd.f32 0.0, %v1510
    %v1512 = vpop.f32.mrb[0].mxu0
    %1513 = vmatprep.mubr.f32.mxu0 0.0
    %1514 = vmatmul.mubr.f32.gmra.mrb[0].mxu0 %v1373
    %v1515 = vpop.f32.mrb[0].mxu0
    %v1516 = vadd.f32 0.0, %v1515
    %v1517 = vpop.f32.mrb[0].mxu0
    %1518 = vmatprep.mubr.f32.mxu0 0.0
    %1519 = vmatmul.mubr.f32.gmra.mrb[0].mxu0 %v1376
    %v1520 = vpop.f32.mrb[0].mxu0
    %v1521 = vadd.f32 0.0, %v1520
    %v1522 = vpop.f32.mrb[0].mxu0
    %1523 = vmatprep.mubr.f32.mxu0 0.0
    %1524 = vmatmul.mubr.f32.gmra.mrb[0].mxu0 %v1379
    %v1525 = vpop.f32.mrb[0].mxu0
    %v1526 = vadd.f32 0.0, %v1525
    %v1527 = vpop.f32.mrb[0].mxu0
    %1528 = vdwg.mxu0
    %v1529 = vadd.f32 %v1299, %v1451
    %v1530 = vadd.f32 %v1300, %v1456
    %v1531 = vadd.f32 %v1301, %v1461
    %v1532 = vadd.f32 %v1302, %v1466
    %v1533 = vadd.f32 %v1303, %v1471
    %v1534 = vadd.f32 %v1304, %v1476
    %v1535 = vadd.f32 %v1305, %v1481
    %v1536 = vadd.f32 %v1306, %v1486
    %v1537 = vadd.f32 %v1307, %v1491
    %v1538 = vadd.f32 %v1308, %v1496
    %v1539 = vadd.f32 %v1309, %v1501
    %v1540 = vadd.f32 %v1310, %v1506
    %v1541 = vadd.f32 %v1311, %v1511
    %v1542 = vadd.f32 %v1312, %v1516
    %v1543 = vadd.f32 %v1313, %v1521
    %v1544 = vadd.f32 %v1314, %v1526
    %s1545 = scalar_lea.vmem [#allocation2], 48
    %v1546 = vld [vmem:[%s1545 + $0x7] sm:$0xff]
    %v1547 = vld [vmem:[%s1545 + $0x1f] sm:$0xff]
    %v1548 = vld [vmem:[%s1545 + $0x37] sm:$0xff]
    %v1549 = vld [vmem:[%s1545 + $0x4f] sm:$0xff]
    %v1550 = vld [vmem:[%s1545 + $0x67] sm:$0xff]
    %v1551 = vld [vmem:[%s1545 + $0x7f] sm:$0xff]
    %v1552 = vld [vmem:[%s1545 + $0x97] sm:$0xff]
    %v1553 = vld [vmem:[%s1545 + $0xaf] sm:$0xff]
    %v1554 = vld [vmem:[%s1545 + $0xf7] sm:$0xff]
    %v1555 = vld [vmem:[%s1545 + $0x10f] sm:$0xff]
    %v1556 = vld [vmem:[%s1545 + $0x127] sm:$0xff]
    %v1557 = vld [vmem:[%s1545 + $0x13f] sm:$0xff]
    %v1558 = vld [vmem:[%s1545 + $0x157] sm:$0xff]
    %v1559 = vld [vmem:[%s1545 + $0x16f] sm:$0xff]
    %v1560 = vld [vmem:[%s1545 + $0x187] sm:$0xff]
    %v1561 = vld [vmem:[%s1545 + $0x19f] sm:$0xff]
    %s1562 = scalar_lea.vmem %s1, 24
    %v1563 = vld [vmem:[%s1562] sm:$0xf]
    %v1565 = vsel %vm40, %v1546, 0
    %v1568 = vsel %vm40, %v1547, 0
    %v1571 = vsel %vm40, %v1548, 0
    %v1574 = vsel %vm40, %v1549, 0
    %v1577 = vsel %vm40, %v1550, 0
    %v1580 = vsel %vm40, %v1551, 0
    %v1583 = vsel %vm40, %v1552, 0
    %v1586 = vsel %vm40, %v1553, 0
    %v1589 = vsel %vm40, %v1554, 0
    %v1592 = vsel %vm40, %v1555, 0
    %v1595 = vsel %vm40, %v1556, 0
    %v1598 = vsel %vm40, %v1557, 0
    %v1601 = vsel %vm40, %v1558, 0
    %v1604 = vsel %vm40, %v1559, 0
    %v1607 = vsel %vm40, %v1560, 0
    %v1610 = vsel %vm40, %v1561, 0
    %v1613 = vsel %vm280, %v1563, 0
    %1615 = vmatprep.subr.mxu0 0.0
    %1616 = vmatpush1.msra.mxu0 %v1613
    %1617 = vmatprep.subr.mxu0 0.0
    %1618 = vmatpush1.msra.mxu0 0.0
    %1619 = vmatprep.subr.mxu0 0.0
    %1620 = vmatpush1.msra.mxu0 0.0
    %1621 = vmatprep.subr.mxu0 0.0
    %1622 = vmatpush1.msra.mxu0 0.0
    %1623 = vmatprep.subr.mxu0 0.0
    %1624 = vmatpush1.msra.mxu0 0.0
    %1625 = vmatprep.subr.mxu0 0.0
    %1626 = vmatpush1.msra.mxu0 0.0
    %1627 = vmatprep.subr.mxu0 0.0
    %1628 = vmatpush1.msra.mxu0 0.0
    %1629 = vmatprep.subr.mxu0 0.0
    %1630 = vmatpush1.msra.mxu0 0.0
    %1631 = vmatprep.subr.mxu0 0.0
    %1632 = vmatpush1.msra.mxu0 0.0
    %1633 = vmatprep.subr.mxu0 0.0
    %1634 = vmatpush1.msra.mxu0 0.0
    %1635 = vmatprep.subr.mxu0 0.0
    %1636 = vmatpush1.msra.mxu0 0.0
    %1637 = vmatprep.subr.mxu0 0.0
    %1638 = vmatpush1.msra.mxu0 0.0
    %1639 = vmatprep.subr.mxu0 0.0
    %1640 = vmatpush1.msra.mxu0 0.0
    %1641 = vmatprep.subr.mxu0 0.0
    %1642 = vmatpush1.msra.mxu0 0.0
    %1643 = vmatprep.subr.mxu0 0.0
    %1644 = vmatpush1.msra.mxu0 0.0
    %1645 = vmatprep.subr.mxu0 0.0
    %1646 = vmatpush1.msra.mxu0 0.0
    %1647 = vmatprep.subr.mxu0 0.0
    %1648 = vmatpush1.msra.mxu0 0.0
    %1649 = vmatprep.subr.mxu0 0.0
    %1650 = vmatpush1.msra.mxu0 0.0
    %1651 = vmatprep.subr.mxu0 0.0
    %1652 = vmatpush1.msra.mxu0 0.0
    %1653 = vmatprep.subr.mxu0 0.0
    %1654 = vmatpush1.msra.mxu0 0.0
    %1655 = vmatprep.subr.mxu0 0.0
    %1656 = vmatpush1.msra.mxu0 0.0
    %1657 = vmatprep.subr.mxu0 0.0
    %1658 = vmatpush1.msra.mxu0 0.0
    %1659 = vmatprep.subr.mxu0 0.0
    %1660 = vmatpush1.msra.mxu0 0.0
    %1661 = vmatprep.subr.mxu0 0.0
    %1662 = vmatpush1.msra.mxu0 0.0
    %1663 = vmatprep.subr.mxu0 0.0
    %1664 = vmatpush1.msra.mxu0 0.0
    %1665 = vmatprep.subr.mxu0 0.0
    %1666 = vmatpush1.msra.mxu0 0.0
    %1667 = vmatprep.subr.mxu0 0.0
    %1668 = vmatpush1.msra.mxu0 0.0
    %1669 = vmatprep.subr.mxu0 0.0
    %1670 = vmatpush1.msra.mxu0 0.0
    %1671 = vmatprep.subr.mxu0 0.0
    %1672 = vmatpush1.msra.mxu0 0.0
    %1673 = vmatprep.subr.mxu0 0.0
    %1674 = vmatpush1.msra.mxu0 0.0
    %1675 = vmatprep.subr.mxu0 0.0
    %1676 = vmatpush1.msra.mxu0 0.0
    %1677 = vmatprep.subr.mxu0 0.0
    %1678 = vmatpush1.msra.mxu0 0.0
    %1679 = vmatprep.mubr.f32.mxu0 0.0
    %1680 = vmatmul.mubr.f32.gmra.mrb[0].mxu0 %v1565
    %v1681 = vpop.f32.mrb[0].mxu0
    %v1682 = vadd.f32 0.0, %v1681
    %v1683 = vpop.f32.mrb[0].mxu0
    %1684 = vmatprep.mubr.f32.mxu0 0.0
    %1685 = vmatmul.mubr.f32.gmra.mrb[0].mxu0 %v1568
    %v1686 = vpop.f32.mrb[0].mxu0
    %v1687 = vadd.f32 0.0, %v1686
    %v1688 = vpop.f32.mrb[0].mxu0
    %1689 = vmatprep.mubr.f32.mxu0 0.0
    %1690 = vmatmul.mubr.f32.gmra.mrb[0].mxu0 %v1571
    %v1691 = vpop.f32.mrb[0].mxu0
    %v1692 = vadd.f32 0.0, %v1691
    %v1693 = vpop.f32.mrb[0].mxu0
    %1694 = vmatprep.mubr.f32.mxu0 0.0
    %1695 = vmatmul.mubr.f32.gmra.mrb[0].mxu0 %v1574
    %v1696 = vpop.f32.mrb[0].mxu0
    %v1697 = vadd.f32 0.0, %v1696
    %v1698 = vpop.f32.mrb[0].mxu0
    %1699 = vmatprep.mubr.f32.mxu0 0.0
    %1700 = vmatmul.mubr.f32.gmra.mrb[0].mxu0 %v1577
    %v1701 = vpop.f32.mrb[0].mxu0
    %v1702 = vadd.f32 0.0, %v1701
    %v1703 = vpop.f32.mrb[0].mxu0
    %1704 = vmatprep.mubr.f32.mxu0 0.0
    %1705 = vmatmul.mubr.f32.gmra.mrb[0].mxu0 %v1580
    %v1706 = vpop.f32.mrb[0].mxu0
    %v1707 = vadd.f32 0.0, %v1706
    %v1708 = vpop.f32.mrb[0].mxu0
    %1709 = vmatprep.mubr.f32.mxu0 0.0
    %1710 = vmatmul.mubr.f32.gmra.mrb[0].mxu0 %v1583
    %v1711 = vpop.f32.mrb[0].mxu0
    %v1712 = vadd.f32 0.0, %v1711
    %v1713 = vpop.f32.mrb[0].mxu0
    %1714 = vmatprep.mubr.f32.mxu0 0.0
    %1715 = vmatmul.mubr.f32.gmra.mrb[0].mxu0 %v1586
    %v1716 = vpop.f32.mrb[0].mxu0
    %v1717 = vadd.f32 0.0, %v1716
    %v1718 = vpop.f32.mrb[0].mxu0
    %1719 = vmatprep.mubr.f32.mxu0 0.0
    %1720 = vmatmul.mubr.f32.gmra.mrb[0].mxu0 %v1589
    %v1721 = vpop.f32.mrb[0].mxu0
    %v1722 = vadd.f32 0.0, %v1721
    %v1723 = vpop.f32.mrb[0].mxu0
    %1724 = vmatprep.mubr.f32.mxu0 0.0
    %1725 = vmatmul.mubr.f32.gmra.mrb[0].mxu0 %v1592
    %v1726 = vpop.f32.mrb[0].mxu0
    %v1727 = vadd.f32 0.0, %v1726
    %v1728 = vpop.f32.mrb[0].mxu0
    %1729 = vmatprep.mubr.f32.mxu0 0.0
    %1730 = vmatmul.mubr.f32.gmra.mrb[0].mxu0 %v1595
    %v1731 = vpop.f32.mrb[0].mxu0
    %v1732 = vadd.f32 0.0, %v1731
    %v1733 = vpop.f32.mrb[0].mxu0
    %1734 = vmatprep.mubr.f32.mxu0 0.0
    %1735 = vmatmul.mubr.f32.gmra.mrb[0].mxu0 %v1598
    %v1736 = vpop.f32.mrb[0].mxu0
    %v1737 = vadd.f32 0.0, %v1736
    %v1738 = vpop.f32.mrb[0].mxu0
    %1739 = vmatprep.mubr.f32.mxu0 0.0
    %1740 = vmatmul.mubr.f32.gmra.mrb[0].mxu0 %v1601
    %v1741 = vpop.f32.mrb[0].mxu0
    %v1742 = vadd.f32 0.0, %v1741
    %v1743 = vpop.f32.mrb[0].mxu0
    %1744 = vmatprep.mubr.f32.mxu0 0.0
    %1745 = vmatmul.mubr.f32.gmra.mrb[0].mxu0 %v1604
    %v1746 = vpop.f32.mrb[0].mxu0
    %v1747 = vadd.f32 0.0, %v1746
    %v1748 = vpop.f32.mrb[0].mxu0
    %1749 = vmatprep.mubr.f32.mxu0 0.0
    %1750 = vmatmul.mubr.f32.gmra.mrb[0].mxu0 %v1607
    %v1751 = vpop.f32.mrb[0].mxu0
    %v1752 = vadd.f32 0.0, %v1751
    %v1753 = vpop.f32.mrb[0].mxu0
    %1754 = vmatprep.mubr.f32.mxu0 0.0
    %1755 = vmatmul.mubr.f32.gmra.mrb[0].mxu0 %v1610
    %v1756 = vpop.f32.mrb[0].mxu0
    %v1757 = vadd.f32 0.0, %v1756
    %v1758 = vpop.f32.mrb[0].mxu0
    %1759 = vdwg.mxu0
    %v1760 = vadd.f32 %v1529, %v1682
    %v1761 = vadd.f32 %v1530, %v1687
    %v1762 = vadd.f32 %v1531, %v1692
    %v1763 = vadd.f32 %v1532, %v1697
    %v1764 = vadd.f32 %v1533, %v1702
    %v1765 = vadd.f32 %v1534, %v1707
    %v1766 = vadd.f32 %v1535, %v1712
    %v1767 = vadd.f32 %v1536, %v1717
    %v1768 = vadd.f32 %v1537, %v1722
    %v1769 = vadd.f32 %v1538, %v1727
    %v1770 = vadd.f32 %v1539, %v1732
    %v1771 = vadd.f32 %v1540, %v1737
    %v1772 = vadd.f32 %v1541, %v1742
    %v1773 = vadd.f32 %v1542, %v1747
    %v1774 = vadd.f32 %v1543, %v1752
    %v1775 = vadd.f32 %v1544, %v1757
    %v1776 = vld [vmem:[%s1545 + $0x8] sm:$0xff]
    %v1777 = vld [vmem:[%s1545 + $0x20] sm:$0xff]
    %v1778 = vld [vmem:[%s1545 + $0x38] sm:$0xff]
    %v1779 = vld [vmem:[%s1545 + $0x50] sm:$0xff]
    %v1780 = vld [vmem:[%s1545 + $0x68] sm:$0xff]
    %v1781 = vld [vmem:[%s1545 + $0x80] sm:$0xff]
    %v1782 = vld [vmem:[%s1545 + $0x98] sm:$0xff]
    %v1783 = vld [vmem:[%s1545 + $0xb0] sm:$0xff]
    %v1784 = vld [vmem:[%s1545 + $0xf8] sm:$0xff]
    %v1785 = vld [vmem:[%s1545 + $0x110] sm:$0xff]
    %v1786 = vld [vmem:[%s1545 + $0x128] sm:$0xff]
    %v1787 = vld [vmem:[%s1545 + $0x140] sm:$0xff]
    %v1788 = vld [vmem:[%s1545 + $0x158] sm:$0xff]
    %v1789 = vld [vmem:[%s1545 + $0x170] sm:$0xff]
    %v1790 = vld [vmem:[%s1545 + $0x188] sm:$0xff]
    %v1791 = vld [vmem:[%s1545 + $0x1a0] sm:$0xff]
    %s1792 = scalar_lea.vmem %s1, 28
    %v1793 = vld [vmem:[%s1792] sm:$0xf]
    %v1795 = vsel %vm40, %v1776, 0
    %v1798 = vsel %vm40, %v1777, 0
    %v1801 = vsel %vm40, %v1778, 0
    %v1804 = vsel %vm40, %v1779, 0
    %v1807 = vsel %vm40, %v1780, 0
    %v1810 = vsel %vm40, %v1781, 0
    %v1813 = vsel %vm40, %v1782, 0
    %v1816 = vsel %vm40, %v1783, 0
    %v1819 = vsel %vm40, %v1784, 0
    %v1822 = vsel %vm40, %v1785, 0
    %v1825 = vsel %vm40, %v1786, 0
    %v1828 = vsel %vm40, %v1787, 0
    %v1831 = vsel %vm40, %v1788, 0
    %v1834 = vsel %vm40, %v1789, 0
    %v1837 = vsel %vm40, %v1790, 0
    %v1840 = vsel %vm40, %v1791, 0
    %v1843 = vsel %vm280, %v1793, 0
    %1845 = vmatprep.subr.mxu0 0.0
    %1846 = vmatpush1.msra.mxu0 %v1843
    %1847 = vmatprep.subr.mxu0 0.0
    %1848 = vmatpush1.msra.mxu0 0.0
    %1849 = vmatprep.subr.mxu0 0.0
    %1850 = vmatpush1.msra.mxu0 0.0
    %1851 = vmatprep.subr.mxu0 0.0
    %1852 = vmatpush1.msra.mxu0 0.0
    %1853 = vmatprep.subr.mxu0 0.0
    %1854 = vmatpush1.msra.mxu0 0.0
    %1855 = vmatprep.subr.mxu0 0.0
    %1856 = vmatpush1.msra.mxu0 0.0
    %1857 = vmatprep.subr.mxu0 0.0
    %1858 = vmatpush1.msra.mxu0 0.0
    %1859 = vmatprep.subr.mxu0 0.0
    %1860 = vmatpush1.msra.mxu0 0.0
    %1861 = vmatprep.subr.mxu0 0.0
    %1862 = vmatpush1.msra.mxu0 0.0
    %1863 = vmatprep.subr.mxu0 0.0
    %1864 = vmatpush1.msra.mxu0 0.0
    %1865 = vmatprep.subr.mxu0 0.0
    %1866 = vmatpush1.msra.mxu0 0.0
    %1867 = vmatprep.subr.mxu0 0.0
    %1868 = vmatpush1.msra.mxu0 0.0
    %1869 = vmatprep.subr.mxu0 0.0
    %1870 = vmatpush1.msra.mxu0 0.0
    %1871 = vmatprep.subr.mxu0 0.0
    %1872 = vmatpush1.msra.mxu0 0.0
    %1873 = vmatprep.subr.mxu0 0.0
    %1874 = vmatpush1.msra.mxu0 0.0
    %1875 = vmatprep.subr.mxu0 0.0
    %1876 = vmatpush1.msra.mxu0 0.0
    %1877 = vmatprep.subr.mxu0 0.0
    %1878 = vmatpush1.msra.mxu0 0.0
    %1879 = vmatprep.subr.mxu0 0.0
    %1880 = vmatpush1.msra.mxu0 0.0
    %1881 = vmatprep.subr.mxu0 0.0
    %1882 = vmatpush1.msra.mxu0 0.0
    %1883 = vmatprep.subr.mxu0 0.0
    %1884 = vmatpush1.msra.mxu0 0.0
    %1885 = vmatprep.subr.mxu0 0.0
    %1886 = vmatpush1.msra.mxu0 0.0
    %1887 = vmatprep.subr.mxu0 0.0
    %1888 = vmatpush1.msra.mxu0 0.0
    %1889 = vmatprep.subr.mxu0 0.0
    %1890 = vmatpush1.msra.mxu0 0.0
    %1891 = vmatprep.subr.mxu0 0.0
    %1892 = vmatpush1.msra.mxu0 0.0
    %1893 = vmatprep.subr.mxu0 0.0
    %1894 = vmatpush1.msra.mxu0 0.0
    %1895 = vmatprep.subr.mxu0 0.0
    %1896 = vmatpush1.msra.mxu0 0.0
    %1897 = vmatprep.subr.mxu0 0.0
    %1898 = vmatpush1.msra.mxu0 0.0
    %1899 = vmatprep.subr.mxu0 0.0
    %1900 = vmatpush1.msra.mxu0 0.0
    %1901 = vmatprep.subr.mxu0 0.0
    %1902 = vmatpush1.msra.mxu0 0.0
    %1903 = vmatprep.subr.mxu0 0.0
    %1904 = vmatpush1.msra.mxu0 0.0
    %1905 = vmatprep.subr.mxu0 0.0
    %1906 = vmatpush1.msra.mxu0 0.0
    %1907 = vmatprep.subr.mxu0 0.0
    %1908 = vmatpush1.msra.mxu0 0.0
    %1909 = vmatprep.mubr.f32.mxu0 0.0
    %1910 = vmatmul.mubr.f32.gmra.mrb[0].mxu0 %v1795
    %v1911 = vpop.f32.mrb[0].mxu0
    %v1912 = vadd.f32 0.0, %v1911
    %v1913 = vpop.f32.mrb[0].mxu0
    %1914 = vmatprep.mubr.f32.mxu0 0.0
    %1915 = vmatmul.mubr.f32.gmra.mrb[0].mxu0 %v1798
    %v1916 = vpop.f32.mrb[0].mxu0
    %v1917 = vadd.f32 0.0, %v1916
    %v1918 = vpop.f32.mrb[0].mxu0
    %1919 = vmatprep.mubr.f32.mxu0 0.0
    %1920 = vmatmul.mubr.f32.gmra.mrb[0].mxu0 %v1801
    %v1921 = vpop.f32.mrb[0].mxu0
    %v1922 = vadd.f32 0.0, %v1921
    %v1923 = vpop.f32.mrb[0].mxu0
    %1924 = vmatprep.mubr.f32.mxu0 0.0
    %1925 = vmatmul.mubr.f32.gmra.mrb[0].mxu0 %v1804
    %v1926 = vpop.f32.mrb[0].mxu0
    %v1927 = vadd.f32 0.0, %v1926
    %v1928 = vpop.f32.mrb[0].mxu0
    %1929 = vmatprep.mubr.f32.mxu0 0.0
    %1930 = vmatmul.mubr.f32.gmra.mrb[0].mxu0 %v1807
    %v1931 = vpop.f32.mrb[0].mxu0
    %v1932 = vadd.f32 0.0, %v1931
    %v1933 = vpop.f32.mrb[0].mxu0
    %1934 = vmatprep.mubr.f32.mxu0 0.0
    %1935 = vmatmul.mubr.f32.gmra.mrb[0].mxu0 %v1810
    %v1936 = vpop.f32.mrb[0].mxu0
    %v1937 = vadd.f32 0.0, %v1936
    %v1938 = vpop.f32.mrb[0].mxu0
    %1939 = vmatprep.mubr.f32.mxu0 0.0
    %1940 = vmatmul.mubr.f32.gmra.mrb[0].mxu0 %v1813
    %v1941 = vpop.f32.mrb[0].mxu0
    %v1942 = vadd.f32 0.0, %v1941
    %v1943 = vpop.f32.mrb[0].mxu0
    %1944 = vmatprep.mubr.f32.mxu0 0.0
    %1945 = vmatmul.mubr.f32.gmra.mrb[0].mxu0 %v1816
    %v1946 = vpop.f32.mrb[0].mxu0
    %v1947 = vadd.f32 0.0, %v1946
    %v1948 = vpop.f32.mrb[0].mxu0
    %1949 = vmatprep.mubr.f32.mxu0 0.0
    %1950 = vmatmul.mubr.f32.gmra.mrb[0].mxu0 %v1819
    %v1951 = vpop.f32.mrb[0].mxu0
    %v1952 = vadd.f32 0.0, %v1951
    %v1953 = vpop.f32.mrb[0].mxu0
    %1954 = vmatprep.mubr.f32.mxu0 0.0
    %1955 = vmatmul.mubr.f32.gmra.mrb[0].mxu0 %v1822
    %v1956 = vpop.f32.mrb[0].mxu0
    %v1957 = vadd.f32 0.0, %v1956
    %v1958 = vpop.f32.mrb[0].mxu0
    %1959 = vmatprep.mubr.f32.mxu0 0.0
    %1960 = vmatmul.mubr.f32.gmra.mrb[0].mxu0 %v1825
    %v1961 = vpop.f32.mrb[0].mxu0
    %v1962 = vadd.f32 0.0, %v1961
    %v1963 = vpop.f32.mrb[0].mxu0
    %1964 = vmatprep.mubr.f32.mxu0 0.0
    %1965 = vmatmul.mubr.f32.gmra.mrb[0].mxu0 %v1828
    %v1966 = vpop.f32.mrb[0].mxu0
    %v1967 = vadd.f32 0.0, %v1966
    %v1968 = vpop.f32.mrb[0].mxu0
    %1969 = vmatprep.mubr.f32.mxu0 0.0
    %1970 = vmatmul.mubr.f32.gmra.mrb[0].mxu0 %v1831
    %v1971 = vpop.f32.mrb[0].mxu0
    %v1972 = vadd.f32 0.0, %v1971
    %v1973 = vpop.f32.mrb[0].mxu0
    %1974 = vmatprep.mubr.f32.mxu0 0.0
    %1975 = vmatmul.mubr.f32.gmra.mrb[0].mxu0 %v1834
    %v1976 = vpop.f32.mrb[0].mxu0
    %v1977 = vadd.f32 0.0, %v1976
    %v1978 = vpop.f32.mrb[0].mxu0
    %1979 = vmatprep.mubr.f32.mxu0 0.0
    %1980 = vmatmul.mubr.f32.gmra.mrb[0].mxu0 %v1837
    %v1981 = vpop.f32.mrb[0].mxu0
    %v1982 = vadd.f32 0.0, %v1981
    %v1983 = vpop.f32.mrb[0].mxu0
    %1984 = vmatprep.mubr.f32.mxu0 0.0
    %1985 = vmatmul.mubr.f32.gmra.mrb[0].mxu0 %v1840
    %v1986 = vpop.f32.mrb[0].mxu0
    %v1987 = vadd.f32 0.0, %v1986
    %v1988 = vpop.f32.mrb[0].mxu0
    %1989 = vdwg.mxu0
    %v1990 = vadd.f32 %v1760, %v1912
    %v1991 = vadd.f32 %v1761, %v1917
    %v1992 = vadd.f32 %v1762, %v1922
    %v1993 = vadd.f32 %v1763, %v1927
    %v1994 = vadd.f32 %v1764, %v1932
    %v1995 = vadd.f32 %v1765, %v1937
    %v1996 = vadd.f32 %v1766, %v1942
    %v1997 = vadd.f32 %v1767, %v1947
    %v1998 = vadd.f32 %v1768, %v1952
    %v1999 = vadd.f32 %v1769, %v1957
    %v2000 = vadd.f32 %v1770, %v1962
    %v2001 = vadd.f32 %v1771, %v1967
    %v2002 = vadd.f32 %v1772, %v1972
    %v2003 = vadd.f32 %v1773, %v1977
    %v2004 = vadd.f32 %v1774, %v1982
    %v2005 = vadd.f32 %v1775, %v1987
    %v2006 = vld [vmem:[%s1545 + $0x9] sm:$0xff]
    %v2007 = vld [vmem:[%s1545 + $0x21] sm:$0xff]
    %v2008 = vld [vmem:[%s1545 + $0x39] sm:$0xff]
    %v2009 = vld [vmem:[%s1545 + $0x51] sm:$0xff]
    %v2010 = vld [vmem:[%s1545 + $0x69] sm:$0xff]
    %v2011 = vld [vmem:[%s1545 + $0x81] sm:$0xff]
    %v2012 = vld [vmem:[%s1545 + $0x99] sm:$0xff]
    %v2013 = vld [vmem:[%s1545 + $0xb1] sm:$0xff]
    %v2014 = vld [vmem:[%s1545 + $0xf9] sm:$0xff]
    %v2015 = vld [vmem:[%s1545 + $0x111] sm:$0xff]
    %v2016 = vld [vmem:[%s1545 + $0x129] sm:$0xff]
    %v2017 = vld [vmem:[%s1545 + $0x141] sm:$0xff]
    %v2018 = vld [vmem:[%s1545 + $0x159] sm:$0xff]
    %v2019 = vld [vmem:[%s1545 + $0x171] sm:$0xff]
    %v2020 = vld [vmem:[%s1545 + $0x189] sm:$0xff]
    %v2021 = vld [vmem:[%s1545 + $0x1a1] sm:$0xff]
    %s2022 = scalar_lea.vmem %s1, 32
    %v2023 = vld [vmem:[%s2022] sm:$0xf]
    %v2025 = vsel %vm40, %v2006, 0
    %v2028 = vsel %vm40, %v2007, 0
    %v2031 = vsel %vm40, %v2008, 0
    %v2034 = vsel %vm40, %v2009, 0
    %v2037 = vsel %vm40, %v2010, 0
    %v2040 = vsel %vm40, %v2011, 0
    %v2043 = vsel %vm40, %v2012, 0
    %v2046 = vsel %vm40, %v2013, 0
    %v2049 = vsel %vm40, %v2014, 0
    %v2052 = vsel %vm40, %v2015, 0
    %v2055 = vsel %vm40, %v2016, 0
    %v2058 = vsel %vm40, %v2017, 0
    %v2061 = vsel %vm40, %v2018, 0
    %v2064 = vsel %vm40, %v2019, 0
    %v2067 = vsel %vm40, %v2020, 0
    %v2070 = vsel %vm40, %v2021, 0
    %v2073 = vsel %vm280, %v2023, 0
    %2075 = vmatprep.subr.mxu0 0.0
    %2076 = vmatpush1.msra.mxu0 %v2073
    %2077 = vmatprep.subr.mxu0 0.0
    %2078 = vmatpush1.msra.mxu0 0.0
    %2079 = vmatprep.subr.mxu0 0.0
    %2080 = vmatpush1.msra.mxu0 0.0
    %2081 = vmatprep.subr.mxu0 0.0
    %2082 = vmatpush1.msra.mxu0 0.0
    %2083 = vmatprep.subr.mxu0 0.0
    %2084 = vmatpush1.msra.mxu0 0.0
    %2085 = vmatprep.subr.mxu0 0.0
    %2086 = vmatpush1.msra.mxu0 0.0
    %2087 = vmatprep.subr.mxu0 0.0
    %2088 = vmatpush1.msra.mxu0 0.0
    %2089 = vmatprep.subr.mxu0 0.0
    %2090 = vmatpush1.msra.mxu0 0.0
    %2091 = vmatprep.subr.mxu0 0.0
    %2092 = vmatpush1.msra.mxu0 0.0
    %2093 = vmatprep.subr.mxu0 0.0
    %2094 = vmatpush1.msra.mxu0 0.0
    %2095 = vmatprep.subr.mxu0 0.0
    %2096 = vmatpush1.msra.mxu0 0.0
    %2097 = vmatprep.subr.mxu0 0.0
    %2098 = vmatpush1.msra.mxu0 0.0
    %2099 = vmatprep.subr.mxu0 0.0
    %2100 = vmatpush1.msra.mxu0 0.0
    %2101 = vmatprep.subr.mxu0 0.0
    %2102 = vmatpush1.msra.mxu0 0.0
    %2103 = vmatprep.subr.mxu0 0.0
    %2104 = vmatpush1.msra.mxu0 0.0
    %2105 = vmatprep.subr.mxu0 0.0
    %2106 = vmatpush1.msra.mxu0 0.0
    %2107 = vmatprep.subr.mxu0 0.0
    %2108 = vmatpush1.msra.mxu0 0.0
    %2109 = vmatprep.subr.mxu0 0.0
    %2110 = vmatpush1.msra.mxu0 0.0
    %2111 = vmatprep.subr.mxu0 0.0
    %2112 = vmatpush1.msra.mxu0 0.0
    %2113 = vmatprep.subr.mxu0 0.0
    %2114 = vmatpush1.msra.mxu0 0.0
    %2115 = vmatprep.subr.mxu0 0.0
    %2116 = vmatpush1.msra.mxu0 0.0
    %2117 = vmatprep.subr.mxu0 0.0
    %2118 = vmatpush1.msra.mxu0 0.0
    %2119 = vmatprep.subr.mxu0 0.0
    %2120 = vmatpush1.msra.mxu0 0.0
    %2121 = vmatprep.subr.mxu0 0.0
    %2122 = vmatpush1.msra.mxu0 0.0
    %2123 = vmatprep.subr.mxu0 0.0
    %2124 = vmatpush1.msra.mxu0 0.0
    %2125 = vmatprep.subr.mxu0 0.0
    %2126 = vmatpush1.msra.mxu0 0.0
    %2127 = vmatprep.subr.mxu0 0.0
    %2128 = vmatpush1.msra.mxu0 0.0
    %2129 = vmatprep.subr.mxu0 0.0
    %2130 = vmatpush1.msra.mxu0 0.0
    %2131 = vmatprep.subr.mxu0 0.0
    %2132 = vmatpush1.msra.mxu0 0.0
    %2133 = vmatprep.subr.mxu0 0.0
    %2134 = vmatpush1.msra.mxu0 0.0
    %2135 = vmatprep.subr.mxu0 0.0
    %2136 = vmatpush1.msra.mxu0 0.0
    %2137 = vmatprep.subr.mxu0 0.0
    %2138 = vmatpush1.msra.mxu0 0.0
    %2139 = vmatprep.mubr.f32.mxu0 0.0
    %2140 = vmatmul.mubr.f32.gmra.mrb[0].mxu0 %v2025
    %v2141 = vpop.f32.mrb[0].mxu0
    %v2142 = vadd.f32 0.0, %v2141
    %v2143 = vpop.f32.mrb[0].mxu0
    %2144 = vmatprep.mubr.f32.mxu0 0.0
    %2145 = vmatmul.mubr.f32.gmra.mrb[0].mxu0 %v2028
    %v2146 = vpop.f32.mrb[0].mxu0
    %v2147 = vadd.f32 0.0, %v2146
    %v2148 = vpop.f32.mrb[0].mxu0
    %2149 = vmatprep.mubr.f32.mxu0 0.0
    %2150 = vmatmul.mubr.f32.gmra.mrb[0].mxu0 %v2031
    %v2151 = vpop.f32.mrb[0].mxu0
    %v2152 = vadd.f32 0.0, %v2151
    %v2153 = vpop.f32.mrb[0].mxu0
    %2154 = vmatprep.mubr.f32.mxu0 0.0
    %2155 = vmatmul.mubr.f32.gmra.mrb[0].mxu0 %v2034
    %v2156 = vpop.f32.mrb[0].mxu0
    %v2157 = vadd.f32 0.0, %v2156
    %v2158 = vpop.f32.mrb[0].mxu0
    %2159 = vmatprep.mubr.f32.mxu0 0.0
    %2160 = vmatmul.mubr.f32.gmra.mrb[0].mxu0 %v2037
    %v2161 = vpop.f32.mrb[0].mxu0
    %v2162 = vadd.f32 0.0, %v2161
    %v2163 = vpop.f32.mrb[0].mxu0
    %2164 = vmatprep.mubr.f32.mxu0 0.0
    %2165 = vmatmul.mubr.f32.gmra.mrb[0].mxu0 %v2040
    %v2166 = vpop.f32.mrb[0].mxu0
    %v2167 = vadd.f32 0.0, %v2166
    %v2168 = vpop.f32.mrb[0].mxu0
    %2169 = vmatprep.mubr.f32.mxu0 0.0
    %2170 = vmatmul.mubr.f32.gmra.mrb[0].mxu0 %v2043
    %v2171 = vpop.f32.mrb[0].mxu0
    %v2172 = vadd.f32 0.0, %v2171
    %v2173 = vpop.f32.mrb[0].mxu0
    %2174 = vmatprep.mubr.f32.mxu0 0.0
    %2175 = vmatmul.mubr.f32.gmra.mrb[0].mxu0 %v2046
    %v2176 = vpop.f32.mrb[0].mxu0
    %v2177 = vadd.f32 0.0, %v2176
    %v2178 = vpop.f32.mrb[0].mxu0
    %2179 = vmatprep.mubr.f32.mxu0 0.0
    %2180 = vmatmul.mubr.f32.gmra.mrb[0].mxu0 %v2049
    %v2181 = vpop.f32.mrb[0].mxu0
    %v2182 = vadd.f32 0.0, %v2181
    %v2183 = vpop.f32.mrb[0].mxu0
    %2184 = vmatprep.mubr.f32.mxu0 0.0
    %2185 = vmatmul.mubr.f32.gmra.mrb[0].mxu0 %v2052
    %v2186 = vpop.f32.mrb[0].mxu0
    %v2187 = vadd.f32 0.0, %v2186
    %v2188 = vpop.f32.mrb[0].mxu0
    %2189 = vmatprep.mubr.f32.mxu0 0.0
    %2190 = vmatmul.mubr.f32.gmra.mrb[0].mxu0 %v2055
    %v2191 = vpop.f32.mrb[0].mxu0
    %v2192 = vadd.f32 0.0, %v2191
    %v2193 = vpop.f32.mrb[0].mxu0
    %2194 = vmatprep.mubr.f32.mxu0 0.0
    %2195 = vmatmul.mubr.f32.gmra.mrb[0].mxu0 %v2058
    %v2196 = vpop.f32.mrb[0].mxu0
    %v2197 = vadd.f32 0.0, %v2196
    %v2198 = vpop.f32.mrb[0].mxu0
    %2199 = vmatprep.mubr.f32.mxu0 0.0
    %2200 = vmatmul.mubr.f32.gmra.mrb[0].mxu0 %v2061
    %v2201 = vpop.f32.mrb[0].mxu0
    %v2202 = vadd.f32 0.0, %v2201
    %v2203 = vpop.f32.mrb[0].mxu0
    %2204 = vmatprep.mubr.f32.mxu0 0.0
    %2205 = vmatmul.mubr.f32.gmra.mrb[0].mxu0 %v2064
    %v2206 = vpop.f32.mrb[0].mxu0
    %v2207 = vadd.f32 0.0, %v2206
    %v2208 = vpop.f32.mrb[0].mxu0
    %2209 = vmatprep.mubr.f32.mxu0 0.0
    %2210 = vmatmul.mubr.f32.gmra.mrb[0].mxu0 %v2067
    %v2211 = vpop.f32.mrb[0].mxu0
    %v2212 = vadd.f32 0.0, %v2211
    %v2213 = vpop.f32.mrb[0].mxu0
    %2214 = vmatprep.mubr.f32.mxu0 0.0
    %2215 = vmatmul.mubr.f32.gmra.mrb[0].mxu0 %v2070
    %v2216 = vpop.f32.mrb[0].mxu0
    %v2217 = vadd.f32 0.0, %v2216
    %v2218 = vpop.f32.mrb[0].mxu0
    %2219 = vdwg.mxu0
    %v2220 = vadd.f32 %v1990, %v2142
    %v2221 = vadd.f32 %v1991, %v2147
    %v2222 = vadd.f32 %v1992, %v2152
    %v2223 = vadd.f32 %v1993, %v2157
    %v2224 = vadd.f32 %v1994, %v2162
    %v2225 = vadd.f32 %v1995, %v2167
    %v2226 = vadd.f32 %v1996, %v2172
    %v2227 = vadd.f32 %v1997, %v2177
    %v2228 = vadd.f32 %v1998, %v2182
    %v2229 = vadd.f32 %v1999, %v2187
    %v2230 = vadd.f32 %v2000, %v2192
    %v2231 = vadd.f32 %v2001, %v2197
    %v2232 = vadd.f32 %v2002, %v2202
    %v2233 = vadd.f32 %v2003, %v2207
    %v2234 = vadd.f32 %v2004, %v2212
    %v2235 = vadd.f32 %v2005, %v2217
    %v2236 = vld [vmem:[%s2] sm:$0x1]
    %v2238 = vlaneseq
    %v2239 = vshrl.u32 %v2238, 7
    %v2240 = vsub.s32 0, %v2239
    %v2241 = vrot.slane %v2236, %v2240
    %v2243 = vadd.f32 %v2220, %v2241
    %v2244 = vadd.f32 %v2221, %v2241
    %v2245 = vadd.f32 %v2222, %v2241
    %v2246 = vadd.f32 %v2223, %v2241
    %v2247 = vadd.f32 %v2224, %v2241
    %v2248 = vadd.f32 %v2225, %v2241
    %v2249 = vadd.f32 %v2226, %v2241
    %v2250 = vadd.f32 %v2227, %v2241
    %v2251 = vadd.f32 %v2228, %v2241
    %v2252 = vadd.f32 %v2229, %v2241
    %v2253 = vadd.f32 %v2230, %v2241
    %v2254 = vadd.f32 %v2231, %v2241
    %v2255 = vadd.f32 %v2232, %v2241
    %v2256 = vadd.f32 %v2233, %v2241
    %v2257 = vadd.f32 %v2234, %v2241
    %v2258 = vadd.f32 %v2235, %v2241
    %v2259 = vmax.f32 %v2243, 0.0
    %v2260 = vmax.f32 %v2244, 0.0
    %v2261 = vmax.f32 %v2245, 0.0
    %v2262 = vmax.f32 %v2246, 0.0
    %v2263 = vmax.f32 %v2247, 0.0
    %v2264 = vmax.f32 %v2248, 0.0
    %v2265 = vmax.f32 %v2249, 0.0
    %v2266 = vmax.f32 %v2250, 0.0
    %v2267 = vmax.f32 %v2251, 0.0
    %v2268 = vmax.f32 %v2252, 0.0
    %v2269 = vmax.f32 %v2253, 0.0
    %v2270 = vmax.f32 %v2254, 0.0
    %v2271 = vmax.f32 %v2255, 0.0
    %v2272 = vmax.f32 %v2256, 0.0
    %v2273 = vmax.f32 %v2257, 0.0
    %v2274 = vmax.f32 %v2258, 0.0
    %s2275 = scalar_lea.vmem [#allocation3], 24
    %2276 = vst.msk [vmem:[%s2275 + $0x8] sm:$0xff] %vm102, %v2259
    %2277 = vst.msk [vmem:[%s2275 + $0x20] sm:$0xff] %vm102, %v2260
    %2278 = vst.msk [vmem:[%s2275 + $0x38] sm:$0xff] %vm102, %v2261
    %2279 = vst.msk [vmem:[%s2275 + $0x50] sm:$0xff] %vm102, %v2262
    %2280 = vst.msk [vmem:[%s2275 + $0x68] sm:$0xff] %vm102, %v2263
    %2281 = vst.msk [vmem:[%s2275 + $0x80] sm:$0xff] %vm102, %v2264
    %2282 = vst.msk [vmem:[%s2275 + $0x98] sm:$0xff] %vm102, %v2265
    %2283 = vst.msk [vmem:[%s2275 + $0xb0] sm:$0xff] %vm102, %v2266
    %2284 = vst.msk [vmem:[%s2275 + $0xf8] sm:$0xff] %vm102, %v2267
    %2285 = vst.msk [vmem:[%s2275 + $0x110] sm:$0xff] %vm102, %v2268
    %2286 = vst.msk [vmem:[%s2275 + $0x128] sm:$0xff] %vm102, %v2269
    %2287 = vst.msk [vmem:[%s2275 + $0x140] sm:$0xff] %vm102, %v2270
    %2288 = vst.msk [vmem:[%s2275 + $0x158] sm:$0xff] %vm102, %v2271
    %2289 = vst.msk [vmem:[%s2275 + $0x170] sm:$0xff] %vm102, %v2272
    %2290 = vst.msk [vmem:[%s2275 + $0x188] sm:$0xff] %vm102, %v2273
    %2291 = vst.msk [vmem:[%s2275 + $0x1a0] sm:$0xff] %vm102, %v2274
    %v2292 = vld [vmem:[#allocation3 + $0x7] sm:$0xff]
    %v2293 = vld [vmem:[#allocation3 + $0x1f] sm:$0xff]
    %v2294 = vld [vmem:[#allocation3 + $0x37] sm:$0xff]
    %v2295 = vld [vmem:[#allocation3 + $0x4f] sm:$0xff]
    %v2296 = vld [vmem:[#allocation3 + $0x67] sm:$0xff]
    %v2297 = vld [vmem:[#allocation3 + $0x7f] sm:$0xff]
    %v2298 = vld [vmem:[#allocation3 + $0x97] sm:$0xff]
    %v2299 = vld [vmem:[#allocation3 + $0xaf] sm:$0xff]
    %v2300 = vld [vmem:[#allocation3 + $0xf7] sm:$0xff]
    %v2301 = vld [vmem:[#allocation3 + $0x10f] sm:$0xff]
    %v2302 = vld [vmem:[#allocation3 + $0x127] sm:$0xff]
    %v2303 = vld [vmem:[#allocation3 + $0x13f] sm:$0xff]
    %v2304 = vld [vmem:[#allocation3 + $0x157] sm:$0xff]
    %v2305 = vld [vmem:[#allocation3 + $0x16f] sm:$0xff]
    %v2306 = vld [vmem:[#allocation3 + $0x187] sm:$0xff]
    %v2307 = vld [vmem:[#allocation3 + $0x19f] sm:$0xff]
    %v2308 = vld [vmem:[%s3] sm:$0xff]
    %v2309 = vld [vmem:[%s3 + $0x8] sm:$0xff]
    %v2310 = vld [vmem:[#allocation3 + $0x8] sm:$0xff]
    %v2311 = vld [vmem:[#allocation3 + $0x20] sm:$0xff]
    %v2312 = vld [vmem:[#allocation3 + $0x38] sm:$0xff]
    %v2313 = vld [vmem:[#allocation3 + $0x50] sm:$0xff]
    %v2314 = vld [vmem:[#allocation3 + $0x68] sm:$0xff]
    %v2315 = vld [vmem:[#allocation3 + $0x80] sm:$0xff]
    %v2316 = vld [vmem:[#allocation3 + $0x98] sm:$0xff]
    %v2317 = vld [vmem:[#allocation3 + $0xb0] sm:$0xff]
    %v2318 = vld [vmem:[#allocation3 + $0xf8] sm:$0xff]
    %v2319 = vld [vmem:[#allocation3 + $0x110] sm:$0xff]
    %v2320 = vld [vmem:[#allocation3 + $0x128] sm:$0xff]
    %v2321 = vld [vmem:[#allocation3 + $0x140] sm:$0xff]
    %v2322 = vld [vmem:[#allocation3 + $0x158] sm:$0xff]
    %v2323 = vld [vmem:[#allocation3 + $0x170] sm:$0xff]
    %v2324 = vld [vmem:[#allocation3 + $0x188] sm:$0xff]
    %v2325 = vld [vmem:[#allocation3 + $0x1a0] sm:$0xff]
    %s2326 = scalar_lea.vmem %s3, 16
    %v2327 = vld [vmem:[%s2326] sm:$0xff]
    %v2328 = vld [vmem:[%s2326 + $0x8] sm:$0xff]
    %v2330 = vsel %vm102, %v2310, 0
    %v2333 = vsel %vm102, %v2311, 0
    %v2336 = vsel %vm102, %v2312, 0
    %v2339 = vsel %vm102, %v2313, 0
    %v2342 = vsel %vm102, %v2314, 0
    %v2345 = vsel %vm102, %v2315, 0
    %v2348 = vsel %vm102, %v2316, 0
    %v2351 = vsel %vm102, %v2317, 0
    %v2354 = vsel %vm102, %v2318, 0
    %v2357 = vsel %vm102, %v2319, 0
    %v2360 = vsel %vm102, %v2320, 0
    %v2363 = vsel %vm102, %v2321, 0
    %v2366 = vsel %vm102, %v2322, 0
    %v2369 = vsel %vm102, %v2323, 0
    %v2372 = vsel %vm102, %v2324, 0
    %v2375 = vsel %vm102, %v2325, 0
    %2377 = vmatprep.subr.mxu0 0.0
    %2378 = vmatpush1.msra.mxu0 %v2327
    %2379 = vmatprep.subr.mxu0 0.0
    %2380 = vmatpush1.msra.mxu0 %v2328
    %2381 = vmatprep.subr.mxu0 0.0
    %2382 = vmatpush1.msra.mxu0 0.0
    %2383 = vmatprep.subr.mxu0 0.0
    %2384 = vmatpush1.msra.mxu0 0.0
    %2385 = vmatprep.subr.mxu0 0.0
    %2386 = vmatpush1.msra.mxu0 0.0
    %2387 = vmatprep.subr.mxu0 0.0
    %2388 = vmatpush1.msra.mxu0 0.0
    %2389 = vmatprep.subr.mxu0 0.0
    %2390 = vmatpush1.msra.mxu0 0.0
    %2391 = vmatprep.subr.mxu0 0.0
    %2392 = vmatpush1.msra.mxu0 0.0
    %2393 = vmatprep.subr.mxu0 0.0
    %2394 = vmatpush1.msra.mxu0 0.0
    %2395 = vmatprep.subr.mxu0 0.0
    %2396 = vmatpush1.msra.mxu0 0.0
    %2397 = vmatprep.subr.mxu0 0.0
    %2398 = vmatpush1.msra.mxu0 0.0
    %2399 = vmatprep.subr.mxu0 0.0
    %2400 = vmatpush1.msra.mxu0 0.0
    %2401 = vmatprep.subr.mxu0 0.0
    %2402 = vmatpush1.msra.mxu0 0.0
    %2403 = vmatprep.subr.mxu0 0.0
    %2404 = vmatpush1.msra.mxu0 0.0
    %2405 = vmatprep.subr.mxu0 0.0
    %2406 = vmatpush1.msra.mxu0 0.0
    %2407 = vmatprep.subr.mxu0 0.0
    %2408 = vmatpush1.msra.mxu0 0.0
    %2409 = vmatprep.subr.mxu0 0.0
    %2410 = vmatpush1.msra.mxu0 0.0
    %2411 = vmatprep.subr.mxu0 0.0
    %2412 = vmatpush1.msra.mxu0 0.0
    %2413 = vmatprep.subr.mxu0 0.0
    %2414 = vmatpush1.msra.mxu0 0.0
    %2415 = vmatprep.subr.mxu0 0.0
    %2416 = vmatpush1.msra.mxu0 0.0
    %2417 = vmatprep.subr.mxu0 0.0
    %2418 = vmatpush1.msra.mxu0 0.0
    %2419 = vmatprep.subr.mxu0 0.0
    %2420 = vmatpush1.msra.mxu0 0.0
    %2421 = vmatprep.subr.mxu0 0.0
    %2422 = vmatpush1.msra.mxu0 0.0
    %2423 = vmatprep.subr.mxu0 0.0
    %2424 = vmatpush1.msra.mxu0 0.0
    %2425 = vmatprep.subr.mxu0 0.0
    %2426 = vmatpush1.msra.mxu0 0.0
    %2427 = vmatprep.subr.mxu0 0.0
    %2428 = vmatpush1.msra.mxu0 0.0
    %2429 = vmatprep.subr.mxu0 0.0
    %2430 = vmatpush1.msra.mxu0 0.0
    %2431 = vmatprep.subr.mxu0 0.0
    %2432 = vmatpush1.msra.mxu0 0.0
    %2433 = vmatprep.subr.mxu0 0.0
    %2434 = vmatpush1.msra.mxu0 0.0
    %2435 = vmatprep.subr.mxu0 0.0
    %2436 = vmatpush1.msra.mxu0 0.0
    %2437 = vmatprep.subr.mxu0 0.0
    %2438 = vmatpush1.msra.mxu0 0.0
    %2439 = vmatprep.subr.mxu0 0.0
    %2440 = vmatpush1.msra.mxu0 0.0
    %2441 = vmatprep.mubr.f32.mxu0 0.0
    %2442 = vmatmul.mubr.f32.gmra.mrb[0].mxu0 %v2330
    %v2443 = vpop.f32.mrb[0].mxu0
    %v2444 = vadd.f32 0.0, %v2443
    %v2445 = vpop.f32.mrb[0].mxu0
    %2446 = vmatprep.mubr.f32.mxu0 0.0
    %2447 = vmatmul.mubr.f32.gmra.mrb[0].mxu0 %v2333
    %v2448 = vpop.f32.mrb[0].mxu0
    %v2449 = vadd.f32 0.0, %v2448
    %v2450 = vpop.f32.mrb[0].mxu0
    %2451 = vmatprep.mubr.f32.mxu0 0.0
    %2452 = vmatmul.mubr.f32.gmra.mrb[0].mxu0 %v2336
    %v2453 = vpop.f32.mrb[0].mxu0
    %v2454 = vadd.f32 0.0, %v2453
    %v2455 = vpop.f32.mrb[0].mxu0
    %2456 = vmatprep.mubr.f32.mxu0 0.0
    %2457 = vmatmul.mubr.f32.gmra.mrb[0].mxu0 %v2339
    %v2458 = vpop.f32.mrb[0].mxu0
    %v2459 = vadd.f32 0.0, %v2458
    %v2460 = vpop.f32.mrb[0].mxu0
    %2461 = vmatprep.mubr.f32.mxu0 0.0
    %2462 = vmatmul.mubr.f32.gmra.mrb[0].mxu0 %v2342
    %v2463 = vpop.f32.mrb[0].mxu0
    %v2464 = vadd.f32 0.0, %v2463
    %v2465 = vpop.f32.mrb[0].mxu0
    %2466 = vmatprep.mubr.f32.mxu0 0.0
    %2467 = vmatmul.mubr.f32.gmra.mrb[0].mxu0 %v2345
    %v2468 = vpop.f32.mrb[0].mxu0
    %v2469 = vadd.f32 0.0, %v2468
    %v2470 = vpop.f32.mrb[0].mxu0
    %2471 = vmatprep.mubr.f32.mxu0 0.0
    %2472 = vmatmul.mubr.f32.gmra.mrb[0].mxu0 %v2348
    %v2473 = vpop.f32.mrb[0].mxu0
    %v2474 = vadd.f32 0.0, %v2473
    %v2475 = vpop.f32.mrb[0].mxu0
    %2476 = vmatprep.mubr.f32.mxu0 0.0
    %2477 = vmatmul.mubr.f32.gmra.mrb[0].mxu0 %v2351
    %v2478 = vpop.f32.mrb[0].mxu0
    %v2479 = vadd.f32 0.0, %v2478
    %v2480 = vpop.f32.mrb[0].mxu0
    %2481 = vmatprep.mubr.f32.mxu0 0.0
    %2482 = vmatmul.mubr.f32.gmra.mrb[0].mxu0 %v2354
    %v2483 = vpop.f32.mrb[0].mxu0
    %v2484 = vadd.f32 0.0, %v2483
    %v2485 = vpop.f32.mrb[0].mxu0
    %2486 = vmatprep.mubr.f32.mxu0 0.0
    %2487 = vmatmul.mubr.f32.gmra.mrb[0].mxu0 %v2357
    %v2488 = vpop.f32.mrb[0].mxu0
    %v2489 = vadd.f32 0.0, %v2488
    %v2490 = vpop.f32.mrb[0].mxu0
    %2491 = vmatprep.mubr.f32.mxu0 0.0
    %2492 = vmatmul.mubr.f32.gmra.mrb[0].mxu0 %v2360
    %v2493 = vpop.f32.mrb[0].mxu0
    %v2494 = vadd.f32 0.0, %v2493
    %v2495 = vpop.f32.mrb[0].mxu0
    %2496 = vmatprep.mubr.f32.mxu0 0.0
    %2497 = vmatmul.mubr.f32.gmra.mrb[0].mxu0 %v2363
    %v2498 = vpop.f32.mrb[0].mxu0
    %v2499 = vadd.f32 0.0, %v2498
    %v2500 = vpop.f32.mrb[0].mxu0
    %2501 = vmatprep.mubr.f32.mxu0 0.0
    %2502 = vmatmul.mubr.f32.gmra.mrb[0].mxu0 %v2366
    %v2503 = vpop.f32.mrb[0].mxu0
    %v2504 = vadd.f32 0.0, %v2503
    %v2505 = vpop.f32.mrb[0].mxu0
    %2506 = vmatprep.mubr.f32.mxu0 0.0
    %2507 = vmatmul.mubr.f32.gmra.mrb[0].mxu0 %v2369
    %v2508 = vpop.f32.mrb[0].mxu0
    %v2509 = vadd.f32 0.0, %v2508
    %v2510 = vpop.f32.mrb[0].mxu0
    %2511 = vmatprep.mubr.f32.mxu0 0.0
    %2512 = vmatmul.mubr.f32.gmra.mrb[0].mxu0 %v2372
    %v2513 = vpop.f32.mrb[0].mxu0
    %v2514 = vadd.f32 0.0, %v2513
    %v2515 = vpop.f32.mrb[0].mxu0
    %2516 = vmatprep.mubr.f32.mxu0 0.0
    %2517 = vmatmul.mubr.f32.gmra.mrb[0].mxu0 %v2375
    %v2518 = vpop.f32.mrb[0].mxu0
    %v2519 = vadd.f32 0.0, %v2518
    %v2520 = vpop.f32.mrb[0].mxu0
    %2521 = vdwg.mxu0
    %v2523 = vsel %vm102, %v2292, 0
    %v2526 = vsel %vm102, %v2293, 0
    %v2529 = vsel %vm102, %v2294, 0
    %v2532 = vsel %vm102, %v2295, 0
    %v2535 = vsel %vm102, %v2296, 0
    %v2538 = vsel %vm102, %v2297, 0
    %v2541 = vsel %vm102, %v2298, 0
    %v2544 = vsel %vm102, %v2299, 0
    %v2547 = vsel %vm102, %v2300, 0
    %v2550 = vsel %vm102, %v2301, 0
    %v2553 = vsel %vm102, %v2302, 0
    %v2556 = vsel %vm102, %v2303, 0
    %v2559 = vsel %vm102, %v2304, 0
    %v2562 = vsel %vm102, %v2305, 0
    %v2565 = vsel %vm102, %v2306, 0
    %v2568 = vsel %vm102, %v2307, 0
    %2570 = vmatprep.subr.mxu0 0.0
    %2571 = vmatpush1.msra.mxu0 %v2308
    %2572 = vmatprep.subr.mxu0 0.0
    %2573 = vmatpush1.msra.mxu0 %v2309
    %2574 = vmatprep.subr.mxu0 0.0
    %2575 = vmatpush1.msra.mxu0 0.0
    %2576 = vmatprep.subr.mxu0 0.0
    %2577 = vmatpush1.msra.mxu0 0.0
    %2578 = vmatprep.subr.mxu0 0.0
    %2579 = vmatpush1.msra.mxu0 0.0
    %2580 = vmatprep.subr.mxu0 0.0
    %2581 = vmatpush1.msra.mxu0 0.0
    %2582 = vmatprep.subr.mxu0 0.0
    %2583 = vmatpush1.msra.mxu0 0.0
    %2584 = vmatprep.subr.mxu0 0.0
    %2585 = vmatpush1.msra.mxu0 0.0
    %2586 = vmatprep.subr.mxu0 0.0
    %2587 = vmatpush1.msra.mxu0 0.0
    %2588 = vmatprep.subr.mxu0 0.0
    %2589 = vmatpush1.msra.mxu0 0.0
    %2590 = vmatprep.subr.mxu0 0.0
    %2591 = vmatpush1.msra.mxu0 0.0
    %2592 = vmatprep.subr.mxu0 0.0
    %2593 = vmatpush1.msra.mxu0 0.0
    %2594 = vmatprep.subr.mxu0 0.0
    %2595 = vmatpush1.msra.mxu0 0.0
    %2596 = vmatprep.subr.mxu0 0.0
    %2597 = vmatpush1.msra.mxu0 0.0
    %2598 = vmatprep.subr.mxu0 0.0
    %2599 = vmatpush1.msra.mxu0 0.0
    %2600 = vmatprep.subr.mxu0 0.0
    %2601 = vmatpush1.msra.mxu0 0.0
    %2602 = vmatprep.subr.mxu0 0.0
    %2603 = vmatpush1.msra.mxu0 0.0
    %2604 = vmatprep.subr.mxu0 0.0
    %2605 = vmatpush1.msra.mxu0 0.0
    %2606 = vmatprep.subr.mxu0 0.0
    %2607 = vmatpush1.msra.mxu0 0.0
    %2608 = vmatprep.subr.mxu0 0.0
    %2609 = vmatpush1.msra.mxu0 0.0
    %2610 = vmatprep.subr.mxu0 0.0
    %2611 = vmatpush1.msra.mxu0 0.0
    %2612 = vmatprep.subr.mxu0 0.0
    %2613 = vmatpush1.msra.mxu0 0.0
    %2614 = vmatprep.subr.mxu0 0.0
    %2615 = vmatpush1.msra.mxu0 0.0
    %2616 = vmatprep.subr.mxu0 0.0
    %2617 = vmatpush1.msra.mxu0 0.0
    %2618 = vmatprep.subr.mxu0 0.0
    %2619 = vmatpush1.msra.mxu0 0.0
    %2620 = vmatprep.subr.mxu0 0.0
    %2621 = vmatpush1.msra.mxu0 0.0
    %2622 = vmatprep.subr.mxu0 0.0
    %2623 = vmatpush1.msra.mxu0 0.0
    %2624 = vmatprep.subr.mxu0 0.0
    %2625 = vmatpush1.msra.mxu0 0.0
    %2626 = vmatprep.subr.mxu0 0.0
    %2627 = vmatpush1.msra.mxu0 0.0
    %2628 = vmatprep.subr.mxu0 0.0
    %2629 = vmatpush1.msra.mxu0 0.0
    %2630 = vmatprep.subr.mxu0 0.0
    %2631 = vmatpush1.msra.mxu0 0.0
    %2632 = vmatprep.subr.mxu0 0.0
    %2633 = vmatpush1.msra.mxu0 0.0
    %2634 = vmatprep.mubr.f32.mxu0 0.0
    %2635 = vmatmul.mubr.f32.gmra.mrb[0].mxu0 %v2523
    %v2636 = vpop.f32.mrb[0].mxu0
    %v2637 = vadd.f32 %v2444, %v2636
    %v2638 = vpop.f32.mrb[0].mxu0
    %2639 = vmatprep.mubr.f32.mxu0 0.0
    %2640 = vmatmul.mubr.f32.gmra.mrb[0].mxu0 %v2526
    %v2641 = vpop.f32.mrb[0].mxu0
    %v2642 = vadd.f32 %v2449, %v2641
    %v2643 = vpop.f32.mrb[0].mxu0
    %2644 = vmatprep.mubr.f32.mxu0 0.0
    %2645 = vmatmul.mubr.f32.gmra.mrb[0].mxu0 %v2529
    %v2646 = vpop.f32.mrb[0].mxu0
    %v2647 = vadd.f32 %v2454, %v2646
    %v2648 = vpop.f32.mrb[0].mxu0
    %2649 = vmatprep.mubr.f32.mxu0 0.0
    %2650 = vmatmul.mubr.f32.gmra.mrb[0].mxu0 %v2532
    %v2651 = vpop.f32.mrb[0].mxu0
    %v2652 = vadd.f32 %v2459, %v2651
    %v2653 = vpop.f32.mrb[0].mxu0
    %2654 = vmatprep.mubr.f32.mxu0 0.0
    %2655 = vmatmul.mubr.f32.gmra.mrb[0].mxu0 %v2535
    %v2656 = vpop.f32.mrb[0].mxu0
    %v2657 = vadd.f32 %v2464, %v2656
    %v2658 = vpop.f32.mrb[0].mxu0
    %2659 = vmatprep.mubr.f32.mxu0 0.0
    %2660 = vmatmul.mubr.f32.gmra.mrb[0].mxu0 %v2538
    %v2661 = vpop.f32.mrb[0].mxu0
    %v2662 = vadd.f32 %v2469, %v2661
    %v2663 = vpop.f32.mrb[0].mxu0
    %2664 = vmatprep.mubr.f32.mxu0 0.0
    %2665 = vmatmul.mubr.f32.gmra.mrb[0].mxu0 %v2541
    %v2666 = vpop.f32.mrb[0].mxu0
    %v2667 = vadd.f32 %v2474, %v2666
    %v2668 = vpop.f32.mrb[0].mxu0
    %2669 = vmatprep.mubr.f32.mxu0 0.0
    %2670 = vmatmul.mubr.f32.gmra.mrb[0].mxu0 %v2544
    %v2671 = vpop.f32.mrb[0].mxu0
    %v2672 = vadd.f32 %v2479, %v2671
    %v2673 = vpop.f32.mrb[0].mxu0
    %2674 = vmatprep.mubr.f32.mxu0 0.0
    %2675 = vmatmul.mubr.f32.gmra.mrb[0].mxu0 %v2547
    %v2676 = vpop.f32.mrb[0].mxu0
    %v2677 = vadd.f32 %v2484, %v2676
    %v2678 = vpop.f32.mrb[0].mxu0
    %2679 = vmatprep.mubr.f32.mxu0 0.0
    %2680 = vmatmul.mubr.f32.gmra.mrb[0].mxu0 %v2550
    %v2681 = vpop.f32.mrb[0].mxu0
    %v2682 = vadd.f32 %v2489, %v2681
    %v2683 = vpop.f32.mrb[0].mxu0
    %2684 = vmatprep.mubr.f32.mxu0 0.0
    %2685 = vmatmul.mubr.f32.gmra.mrb[0].mxu0 %v2553
    %v2686 = vpop.f32.mrb[0].mxu0
    %v2687 = vadd.f32 %v2494, %v2686
    %v2688 = vpop.f32.mrb[0].mxu0
    %2689 = vmatprep.mubr.f32.mxu0 0.0
    %2690 = vmatmul.mubr.f32.gmra.mrb[0].mxu0 %v2556
    %v2691 = vpop.f32.mrb[0].mxu0
    %v2692 = vadd.f32 %v2499, %v2691
    %v2693 = vpop.f32.mrb[0].mxu0
    %2694 = vmatprep.mubr.f32.mxu0 0.0
    %2695 = vmatmul.mubr.f32.gmra.mrb[0].mxu0 %v2559
    %v2696 = vpop.f32.mrb[0].mxu0
    %v2697 = vadd.f32 %v2504, %v2696
    %v2698 = vpop.f32.mrb[0].mxu0
    %2699 = vmatprep.mubr.f32.mxu0 0.0
    %2700 = vmatmul.mubr.f32.gmra.mrb[0].mxu0 %v2562
    %v2701 = vpop.f32.mrb[0].mxu0
    %v2702 = vadd.f32 %v2509, %v2701
    %v2703 = vpop.f32.mrb[0].mxu0
    %2704 = vmatprep.mubr.f32.mxu0 0.0
    %2705 = vmatmul.mubr.f32.gmra.mrb[0].mxu0 %v2565
    %v2706 = vpop.f32.mrb[0].mxu0
    %v2707 = vadd.f32 %v2514, %v2706
    %v2708 = vpop.f32.mrb[0].mxu0
    %2709 = vmatprep.mubr.f32.mxu0 0.0
    %2710 = vmatmul.mubr.f32.gmra.mrb[0].mxu0 %v2568
    %v2711 = vpop.f32.mrb[0].mxu0
    %v2712 = vadd.f32 %v2519, %v2711
    %v2713 = vpop.f32.mrb[0].mxu0
    %2714 = vdwg.mxu0
    %v2715 = vld [vmem:[#allocation3 + $0x9] sm:$0xff]
    %v2716 = vld [vmem:[#allocation3 + $0x21] sm:$0xff]
    %v2717 = vld [vmem:[#allocation3 + $0x39] sm:$0xff]
    %v2718 = vld [vmem:[#allocation3 + $0x51] sm:$0xff]
    %v2719 = vld [vmem:[#allocation3 + $0x69] sm:$0xff]
    %v2720 = vld [vmem:[#allocation3 + $0x81] sm:$0xff]
    %v2721 = vld [vmem:[#allocation3 + $0x99] sm:$0xff]
    %v2722 = vld [vmem:[#allocation3 + $0xb1] sm:$0xff]
    %v2723 = vld [vmem:[#allocation3 + $0xf9] sm:$0xff]
    %v2724 = vld [vmem:[#allocation3 + $0x111] sm:$0xff]
    %v2725 = vld [vmem:[#allocation3 + $0x129] sm:$0xff]
    %v2726 = vld [vmem:[#allocation3 + $0x141] sm:$0xff]
    %v2727 = vld [vmem:[#allocation3 + $0x159] sm:$0xff]
    %v2728 = vld [vmem:[#allocation3 + $0x171] sm:$0xff]
    %v2729 = vld [vmem:[#allocation3 + $0x189] sm:$0xff]
    %v2730 = vld [vmem:[#allocation3 + $0x1a1] sm:$0xff]
    %s2731 = scalar_lea.vmem %s3, 32
    %v2732 = vld [vmem:[%s2731] sm:$0xff]
    %v2733 = vld [vmem:[%s2731 + $0x8] sm:$0xff]
    %v2735 = vsel %vm102, %v2715, 0
    %v2738 = vsel %vm102, %v2716, 0
    %v2741 = vsel %vm102, %v2717, 0
    %v2744 = vsel %vm102, %v2718, 0
    %v2747 = vsel %vm102, %v2719, 0
    %v2750 = vsel %vm102, %v2720, 0
    %v2753 = vsel %vm102, %v2721, 0
    %v2756 = vsel %vm102, %v2722, 0
    %v2759 = vsel %vm102, %v2723, 0
    %v2762 = vsel %vm102, %v2724, 0
    %v2765 = vsel %vm102, %v2725, 0
    %v2768 = vsel %vm102, %v2726, 0
    %v2771 = vsel %vm102, %v2727, 0
    %v2774 = vsel %vm102, %v2728, 0
    %v2777 = vsel %vm102, %v2729, 0
    %v2780 = vsel %vm102, %v2730, 0
    %2782 = vmatprep.subr.mxu0 0.0
    %2783 = vmatpush1.msra.mxu0 %v2732
    %2784 = vmatprep.subr.mxu0 0.0
    %2785 = vmatpush1.msra.mxu0 %v2733
    %2786 = vmatprep.subr.mxu0 0.0
    %2787 = vmatpush1.msra.mxu0 0.0
    %2788 = vmatprep.subr.mxu0 0.0
    %2789 = vmatpush1.msra.mxu0 0.0
    %2790 = vmatprep.subr.mxu0 0.0
    %2791 = vmatpush1.msra.mxu0 0.0
    %2792 = vmatprep.subr.mxu0 0.0
    %2793 = vmatpush1.msra.mxu0 0.0
    %2794 = vmatprep.subr.mxu0 0.0
    %2795 = vmatpush1.msra.mxu0 0.0
    %2796 = vmatprep.subr.mxu0 0.0
    %2797 = vmatpush1.msra.mxu0 0.0
    %2798 = vmatprep.subr.mxu0 0.0
    %2799 = vmatpush1.msra.mxu0 0.0
    %2800 = vmatprep.subr.mxu0 0.0
    %2801 = vmatpush1.msra.mxu0 0.0
    %2802 = vmatprep.subr.mxu0 0.0
    %2803 = vmatpush1.msra.mxu0 0.0
    %2804 = vmatprep.subr.mxu0 0.0
    %2805 = vmatpush1.msra.mxu0 0.0
    %2806 = vmatprep.subr.mxu0 0.0
    %2807 = vmatpush1.msra.mxu0 0.0
    %2808 = vmatprep.subr.mxu0 0.0
    %2809 = vmatpush1.msra.mxu0 0.0
    %2810 = vmatprep.subr.mxu0 0.0
    %2811 = vmatpush1.msra.mxu0 0.0
    %2812 = vmatprep.subr.mxu0 0.0
    %2813 = vmatpush1.msra.mxu0 0.0
    %2814 = vmatprep.subr.mxu0 0.0
    %2815 = vmatpush1.msra.mxu0 0.0
    %2816 = vmatprep.subr.mxu0 0.0
    %2817 = vmatpush1.msra.mxu0 0.0
    %2818 = vmatprep.subr.mxu0 0.0
    %2819 = vmatpush1.msra.mxu0 0.0
    %2820 = vmatprep.subr.mxu0 0.0
    %2821 = vmatpush1.msra.mxu0 0.0
    %2822 = vmatprep.subr.mxu0 0.0
    %2823 = vmatpush1.msra.mxu0 0.0
    %2824 = vmatprep.subr.mxu0 0.0
    %2825 = vmatpush1.msra.mxu0 0.0
    %2826 = vmatprep.subr.mxu0 0.0
    %2827 = vmatpush1.msra.mxu0 0.0
    %2828 = vmatprep.subr.mxu0 0.0
    %2829 = vmatpush1.msra.mxu0 0.0
    %2830 = vmatprep.subr.mxu0 0.0
    %2831 = vmatpush1.msra.mxu0 0.0
    %2832 = vmatprep.subr.mxu0 0.0
    %2833 = vmatpush1.msra.mxu0 0.0
    %2834 = vmatprep.subr.mxu0 0.0
    %2835 = vmatpush1.msra.mxu0 0.0
    %2836 = vmatprep.subr.mxu0 0.0
    %2837 = vmatpush1.msra.mxu0 0.0
    %2838 = vmatprep.subr.mxu0 0.0
    %2839 = vmatpush1.msra.mxu0 0.0
    %2840 = vmatprep.subr.mxu0 0.0
    %2841 = vmatpush1.msra.mxu0 0.0
    %2842 = vmatprep.subr.mxu0 0.0
    %2843 = vmatpush1.msra.mxu0 0.0
    %2844 = vmatprep.subr.mxu0 0.0
    %2845 = vmatpush1.msra.mxu0 0.0
    %2846 = vmatprep.mubr.f32.mxu0 0.0
    %2847 = vmatmul.mubr.f32.gmra.mrb[0].mxu0 %v2735
    %v2848 = vpop.f32.mrb[0].mxu0
    %v2849 = vadd.f32 0.0, %v2848
    %v2850 = vpop.f32.mrb[0].mxu0
    %2851 = vmatprep.mubr.f32.mxu0 0.0
    %2852 = vmatmul.mubr.f32.gmra.mrb[0].mxu0 %v2738
    %v2853 = vpop.f32.mrb[0].mxu0
    %v2854 = vadd.f32 0.0, %v2853
    %v2855 = vpop.f32.mrb[0].mxu0
    %2856 = vmatprep.mubr.f32.mxu0 0.0
    %2857 = vmatmul.mubr.f32.gmra.mrb[0].mxu0 %v2741
    %v2858 = vpop.f32.mrb[0].mxu0
    %v2859 = vadd.f32 0.0, %v2858
    %v2860 = vpop.f32.mrb[0].mxu0
    %2861 = vmatprep.mubr.f32.mxu0 0.0
    %2862 = vmatmul.mubr.f32.gmra.mrb[0].mxu0 %v2744
    %v2863 = vpop.f32.mrb[0].mxu0
    %v2864 = vadd.f32 0.0, %v2863
    %v2865 = vpop.f32.mrb[0].mxu0
    %2866 = vmatprep.mubr.f32.mxu0 0.0
    %2867 = vmatmul.mubr.f32.gmra.mrb[0].mxu0 %v2747
    %v2868 = vpop.f32.mrb[0].mxu0
    %v2869 = vadd.f32 0.0, %v2868
    %v2870 = vpop.f32.mrb[0].mxu0
    %2871 = vmatprep.mubr.f32.mxu0 0.0
    %2872 = vmatmul.mubr.f32.gmra.mrb[0].mxu0 %v2750
    %v2873 = vpop.f32.mrb[0].mxu0
    %v2874 = vadd.f32 0.0, %v2873
    %v2875 = vpop.f32.mrb[0].mxu0
    %2876 = vmatprep.mubr.f32.mxu0 0.0
    %2877 = vmatmul.mubr.f32.gmra.mrb[0].mxu0 %v2753
    %v2878 = vpop.f32.mrb[0].mxu0
    %v2879 = vadd.f32 0.0, %v2878
    %v2880 = vpop.f32.mrb[0].mxu0
    %2881 = vmatprep.mubr.f32.mxu0 0.0
    %2882 = vmatmul.mubr.f32.gmra.mrb[0].mxu0 %v2756
    %v2883 = vpop.f32.mrb[0].mxu0
    %v2884 = vadd.f32 0.0, %v2883
    %v2885 = vpop.f32.mrb[0].mxu0
    %2886 = vmatprep.mubr.f32.mxu0 0.0
    %2887 = vmatmul.mubr.f32.gmra.mrb[0].mxu0 %v2759
    %v2888 = vpop.f32.mrb[0].mxu0
    %v2889 = vadd.f32 0.0, %v2888
    %v2890 = vpop.f32.mrb[0].mxu0
    %2891 = vmatprep.mubr.f32.mxu0 0.0
    %2892 = vmatmul.mubr.f32.gmra.mrb[0].mxu0 %v2762
    %v2893 = vpop.f32.mrb[0].mxu0
    %v2894 = vadd.f32 0.0, %v2893
    %v2895 = vpop.f32.mrb[0].mxu0
    %2896 = vmatprep.mubr.f32.mxu0 0.0
    %2897 = vmatmul.mubr.f32.gmra.mrb[0].mxu0 %v2765
    %v2898 = vpop.f32.mrb[0].mxu0
    %v2899 = vadd.f32 0.0, %v2898
    %v2900 = vpop.f32.mrb[0].mxu0
    %2901 = vmatprep.mubr.f32.mxu0 0.0
    %2902 = vmatmul.mubr.f32.gmra.mrb[0].mxu0 %v2768
    %v2903 = vpop.f32.mrb[0].mxu0
    %v2904 = vadd.f32 0.0, %v2903
    %v2905 = vpop.f32.mrb[0].mxu0
    %2906 = vmatprep.mubr.f32.mxu0 0.0
    %2907 = vmatmul.mubr.f32.gmra.mrb[0].mxu0 %v2771
    %v2908 = vpop.f32.mrb[0].mxu0
    %v2909 = vadd.f32 0.0, %v2908
    %v2910 = vpop.f32.mrb[0].mxu0
    %2911 = vmatprep.mubr.f32.mxu0 0.0
    %2912 = vmatmul.mubr.f32.gmra.mrb[0].mxu0 %v2774
    %v2913 = vpop.f32.mrb[0].mxu0
    %v2914 = vadd.f32 0.0, %v2913
    %v2915 = vpop.f32.mrb[0].mxu0
    %2916 = vmatprep.mubr.f32.mxu0 0.0
    %2917 = vmatmul.mubr.f32.gmra.mrb[0].mxu0 %v2777
    %v2918 = vpop.f32.mrb[0].mxu0
    %v2919 = vadd.f32 0.0, %v2918
    %v2920 = vpop.f32.mrb[0].mxu0
    %2921 = vmatprep.mubr.f32.mxu0 0.0
    %2922 = vmatmul.mubr.f32.gmra.mrb[0].mxu0 %v2780
    %v2923 = vpop.f32.mrb[0].mxu0
    %v2924 = vadd.f32 0.0, %v2923
    %v2925 = vpop.f32.mrb[0].mxu0
    %2926 = vdwg.mxu0
    %v2927 = vadd.f32 %v2637, %v2849
    %v2928 = vadd.f32 %v2642, %v2854
    %v2929 = vadd.f32 %v2647, %v2859
    %v2930 = vadd.f32 %v2652, %v2864
    %v2931 = vadd.f32 %v2657, %v2869
    %v2932 = vadd.f32 %v2662, %v2874
    %v2933 = vadd.f32 %v2667, %v2879
    %v2934 = vadd.f32 %v2672, %v2884
    %v2935 = vadd.f32 %v2677, %v2889
    %v2936 = vadd.f32 %v2682, %v2894
    %v2937 = vadd.f32 %v2687, %v2899
    %v2938 = vadd.f32 %v2692, %v2904
    %v2939 = vadd.f32 %v2697, %v2909
    %v2940 = vadd.f32 %v2702, %v2914
    %v2941 = vadd.f32 %v2707, %v2919
    %v2942 = vadd.f32 %v2712, %v2924
    %v2943 = vld [vmem:[%s2275 + $0x7] sm:$0xff]
    %v2944 = vld [vmem:[%s2275 + $0x1f] sm:$0xff]
    %v2945 = vld [vmem:[%s2275 + $0x37] sm:$0xff]
    %v2946 = vld [vmem:[%s2275 + $0x4f] sm:$0xff]
    %v2947 = vld [vmem:[%s2275 + $0x67] sm:$0xff]
    %v2948 = vld [vmem:[%s2275 + $0x7f] sm:$0xff]
    %v2949 = vld [vmem:[%s2275 + $0x97] sm:$0xff]
    %v2950 = vld [vmem:[%s2275 + $0xaf] sm:$0xff]
    %v2951 = vld [vmem:[%s2275 + $0xf7] sm:$0xff]
    %v2952 = vld [vmem:[%s2275 + $0x10f] sm:$0xff]
    %v2953 = vld [vmem:[%s2275 + $0x127] sm:$0xff]
    %v2954 = vld [vmem:[%s2275 + $0x13f] sm:$0xff]
    %v2955 = vld [vmem:[%s2275 + $0x157] sm:$0xff]
    %v2956 = vld [vmem:[%s2275 + $0x16f] sm:$0xff]
    %v2957 = vld [vmem:[%s2275 + $0x187] sm:$0xff]
    %v2958 = vld [vmem:[%s2275 + $0x19f] sm:$0xff]
    %s2959 = scalar_lea.vmem %s3, 48
    %v2960 = vld [vmem:[%s2959] sm:$0xff]
    %v2961 = vld [vmem:[%s2959 + $0x8] sm:$0xff]
    %v2963 = vsel %vm102, %v2943, 0
    %v2966 = vsel %vm102, %v2944, 0
    %v2969 = vsel %vm102, %v2945, 0
    %v2972 = vsel %vm102, %v2946, 0
    %v2975 = vsel %vm102, %v2947, 0
    %v2978 = vsel %vm102, %v2948, 0
    %v2981 = vsel %vm102, %v2949, 0
    %v2984 = vsel %vm102, %v2950, 0
    %v2987 = vsel %vm102, %v2951, 0
    %v2990 = vsel %vm102, %v2952, 0
    %v2993 = vsel %vm102, %v2953, 0
    %v2996 = vsel %vm102, %v2954, 0
    %v2999 = vsel %vm102, %v2955, 0
    %v3002 = vsel %vm102, %v2956, 0
    %v3005 = vsel %vm102, %v2957, 0
    %v3008 = vsel %vm102, %v2958, 0
    %3010 = vmatprep.subr.mxu0 0.0
    %3011 = vmatpush1.msra.mxu0 %v2960
    %3012 = vmatprep.subr.mxu0 0.0
    %3013 = vmatpush1.msra.mxu0 %v2961
    %3014 = vmatprep.subr.mxu0 0.0
    %3015 = vmatpush1.msra.mxu0 0.0
    %3016 = vmatprep.subr.mxu0 0.0
    %3017 = vmatpush1.msra.mxu0 0.0
    %3018 = vmatprep.subr.mxu0 0.0
    %3019 = vmatpush1.msra.mxu0 0.0
    %3020 = vmatprep.subr.mxu0 0.0
    %3021 = vmatpush1.msra.mxu0 0.0
    %3022 = vmatprep.subr.mxu0 0.0
    %3023 = vmatpush1.msra.mxu0 0.0
    %3024 = vmatprep.subr.mxu0 0.0
    %3025 = vmatpush1.msra.mxu0 0.0
    %3026 = vmatprep.subr.mxu0 0.0
    %3027 = vmatpush1.msra.mxu0 0.0
    %3028 = vmatprep.subr.mxu0 0.0
    %3029 = vmatpush1.msra.mxu0 0.0
    %3030 = vmatprep.subr.mxu0 0.0
    %3031 = vmatpush1.msra.mxu0 0.0
    %3032 = vmatprep.subr.mxu0 0.0
    %3033 = vmatpush1.msra.mxu0 0.0
    %3034 = vmatprep.subr.mxu0 0.0
    %3035 = vmatpush1.msra.mxu0 0.0
    %3036 = vmatprep.subr.mxu0 0.0
    %3037 = vmatpush1.msra.mxu0 0.0
    %3038 = vmatprep.subr.mxu0 0.0
    %3039 = vmatpush1.msra.mxu0 0.0
    %3040 = vmatprep.subr.mxu0 0.0
    %3041 = vmatpush1.msra.mxu0 0.0
    %3042 = vmatprep.subr.mxu0 0.0
    %3043 = vmatpush1.msra.mxu0 0.0
    %3044 = vmatprep.subr.mxu0 0.0
    %3045 = vmatpush1.msra.mxu0 0.0
    %3046 = vmatprep.subr.mxu0 0.0
    %3047 = vmatpush1.msra.mxu0 0.0
    %3048 = vmatprep.subr.mxu0 0.0
    %3049 = vmatpush1.msra.mxu0 0.0
    %3050 = vmatprep.subr.mxu0 0.0
    %3051 = vmatpush1.msra.mxu0 0.0
    %3052 = vmatprep.subr.mxu0 0.0
    %3053 = vmatpush1.msra.mxu0 0.0
    %3054 = vmatprep.subr.mxu0 0.0
    %3055 = vmatpush1.msra.mxu0 0.0
    %3056 = vmatprep.subr.mxu0 0.0
    %3057 = vmatpush1.msra.mxu0 0.0
    %3058 = vmatprep.subr.mxu0 0.0
    %3059 = vmatpush1.msra.mxu0 0.0
    %3060 = vmatprep.subr.mxu0 0.0
    %3061 = vmatpush1.msra.mxu0 0.0
    %3062 = vmatprep.subr.mxu0 0.0
    %3063 = vmatpush1.msra.mxu0 0.0
    %3064 = vmatprep.subr.mxu0 0.0
    %3065 = vmatpush1.msra.mxu0 0.0
    %3066 = vmatprep.subr.mxu0 0.0
    %3067 = vmatpush1.msra.mxu0 0.0
    %3068 = vmatprep.subr.mxu0 0.0
    %3069 = vmatpush1.msra.mxu0 0.0
    %3070 = vmatprep.subr.mxu0 0.0
    %3071 = vmatpush1.msra.mxu0 0.0
    %3072 = vmatprep.subr.mxu0 0.0
    %3073 = vmatpush1.msra.mxu0 0.0
    %3074 = vmatprep.mubr.f32.mxu0 0.0
    %3075 = vmatmul.mubr.f32.gmra.mrb[0].mxu0 %v2963
    %v3076 = vpop.f32.mrb[0].mxu0
    %v3077 = vadd.f32 0.0, %v3076
    %v3078 = vpop.f32.mrb[0].mxu0
    %3079 = vmatprep.mubr.f32.mxu0 0.0
    %3080 = vmatmul.mubr.f32.gmra.mrb[0].mxu0 %v2966
    %v3081 = vpop.f32.mrb[0].mxu0
    %v3082 = vadd.f32 0.0, %v3081
    %v3083 = vpop.f32.mrb[0].mxu0
    %3084 = vmatprep.mubr.f32.mxu0 0.0
    %3085 = vmatmul.mubr.f32.gmra.mrb[0].mxu0 %v2969
    %v3086 = vpop.f32.mrb[0].mxu0
    %v3087 = vadd.f32 0.0, %v3086
    %v3088 = vpop.f32.mrb[0].mxu0
    %3089 = vmatprep.mubr.f32.mxu0 0.0
    %3090 = vmatmul.mubr.f32.gmra.mrb[0].mxu0 %v2972
    %v3091 = vpop.f32.mrb[0].mxu0
    %v3092 = vadd.f32 0.0, %v3091
    %v3093 = vpop.f32.mrb[0].mxu0
    %3094 = vmatprep.mubr.f32.mxu0 0.0
    %3095 = vmatmul.mubr.f32.gmra.mrb[0].mxu0 %v2975
    %v3096 = vpop.f32.mrb[0].mxu0
    %v3097 = vadd.f32 0.0, %v3096
    %v3098 = vpop.f32.mrb[0].mxu0
    %3099 = vmatprep.mubr.f32.mxu0 0.0
    %3100 = vmatmul.mubr.f32.gmra.mrb[0].mxu0 %v2978
    %v3101 = vpop.f32.mrb[0].mxu0
    %v3102 = vadd.f32 0.0, %v3101
    %v3103 = vpop.f32.mrb[0].mxu0
    %3104 = vmatprep.mubr.f32.mxu0 0.0
    %3105 = vmatmul.mubr.f32.gmra.mrb[0].mxu0 %v2981
    %v3106 = vpop.f32.mrb[0].mxu0
    %v3107 = vadd.f32 0.0, %v3106
    %v3108 = vpop.f32.mrb[0].mxu0
    %3109 = vmatprep.mubr.f32.mxu0 0.0
    %3110 = vmatmul.mubr.f32.gmra.mrb[0].mxu0 %v2984
    %v3111 = vpop.f32.mrb[0].mxu0
    %v3112 = vadd.f32 0.0, %v3111
    %v3113 = vpop.f32.mrb[0].mxu0
    %3114 = vmatprep.mubr.f32.mxu0 0.0
    %3115 = vmatmul.mubr.f32.gmra.mrb[0].mxu0 %v2987
    %v3116 = vpop.f32.mrb[0].mxu0
    %v3117 = vadd.f32 0.0, %v3116
    %v3118 = vpop.f32.mrb[0].mxu0
    %3119 = vmatprep.mubr.f32.mxu0 0.0
    %3120 = vmatmul.mubr.f32.gmra.mrb[0].mxu0 %v2990
    %v3121 = vpop.f32.mrb[0].mxu0
    %v3122 = vadd.f32 0.0, %v3121
    %v3123 = vpop.f32.mrb[0].mxu0
    %3124 = vmatprep.mubr.f32.mxu0 0.0
    %3125 = vmatmul.mubr.f32.gmra.mrb[0].mxu0 %v2993
    %v3126 = vpop.f32.mrb[0].mxu0
    %v3127 = vadd.f32 0.0, %v3126
    %v3128 = vpop.f32.mrb[0].mxu0
    %3129 = vmatprep.mubr.f32.mxu0 0.0
    %3130 = vmatmul.mubr.f32.gmra.mrb[0].mxu0 %v2996
    %v3131 = vpop.f32.mrb[0].mxu0
    %v3132 = vadd.f32 0.0, %v3131
    %v3133 = vpop.f32.mrb[0].mxu0
    %3134 = vmatprep.mubr.f32.mxu0 0.0
    %3135 = vmatmul.mubr.f32.gmra.mrb[0].mxu0 %v2999
    %v3136 = vpop.f32.mrb[0].mxu0
    %v3137 = vadd.f32 0.0, %v3136
    %v3138 = vpop.f32.mrb[0].mxu0
    %3139 = vmatprep.mubr.f32.mxu0 0.0
    %3140 = vmatmul.mubr.f32.gmra.mrb[0].mxu0 %v3002
    %v3141 = vpop.f32.mrb[0].mxu0
    %v3142 = vadd.f32 0.0, %v3141
    %v3143 = vpop.f32.mrb[0].mxu0
    %3144 = vmatprep.mubr.f32.mxu0 0.0
    %3145 = vmatmul.mubr.f32.gmra.mrb[0].mxu0 %v3005
    %v3146 = vpop.f32.mrb[0].mxu0
    %v3147 = vadd.f32 0.0, %v3146
    %v3148 = vpop.f32.mrb[0].mxu0
    %3149 = vmatprep.mubr.f32.mxu0 0.0
    %3150 = vmatmul.mubr.f32.gmra.mrb[0].mxu0 %v3008
    %v3151 = vpop.f32.mrb[0].mxu0
    %v3152 = vadd.f32 0.0, %v3151
    %v3153 = vpop.f32.mrb[0].mxu0
    %3154 = vdwg.mxu0
    %v3155 = vadd.f32 %v2927, %v3077
    %v3156 = vadd.f32 %v2928, %v3082
    %v3157 = vadd.f32 %v2929, %v3087
    %v3158 = vadd.f32 %v2930, %v3092
    %v3159 = vadd.f32 %v2931, %v3097
    %v3160 = vadd.f32 %v2932, %v3102
    %v3161 = vadd.f32 %v2933, %v3107
    %v3162 = vadd.f32 %v2934, %v3112
    %v3163 = vadd.f32 %v2935, %v3117
    %v3164 = vadd.f32 %v2936, %v3122
    %v3165 = vadd.f32 %v2937, %v3127
    %v3166 = vadd.f32 %v2938, %v3132
    %v3167 = vadd.f32 %v2939, %v3137
    %v3168 = vadd.f32 %v2940, %v3142
    %v3169 = vadd.f32 %v2941, %v3147
    %v3170 = vadd.f32 %v2942, %v3152
    %v3171 = vld [vmem:[%s2275 + $0x8] sm:$0xff]
    %v3172 = vld [vmem:[%s2275 + $0x20] sm:$0xff]
    %v3173 = vld [vmem:[%s2275 + $0x38] sm:$0xff]
    %v3174 = vld [vmem:[%s2275 + $0x50] sm:$0xff]
    %v3175 = vld [vmem:[%s2275 + $0x68] sm:$0xff]
    %v3176 = vld [vmem:[%s2275 + $0x80] sm:$0xff]
    %v3177 = vld [vmem:[%s2275 + $0x98] sm:$0xff]
    %v3178 = vld [vmem:[%s2275 + $0xb0] sm:$0xff]
    %v3179 = vld [vmem:[%s2275 + $0xf8] sm:$0xff]
    %v3180 = vld [vmem:[%s2275 + $0x110] sm:$0xff]
    %v3181 = vld [vmem:[%s2275 + $0x128] sm:$0xff]
    %v3182 = vld [vmem:[%s2275 + $0x140] sm:$0xff]
    %v3183 = vld [vmem:[%s2275 + $0x158] sm:$0xff]
    %v3184 = vld [vmem:[%s2275 + $0x170] sm:$0xff]
    %v3185 = vld [vmem:[%s2275 + $0x188] sm:$0xff]
    %v3186 = vld [vmem:[%s2275 + $0x1a0] sm:$0xff]
    %s3187 = scalar_lea.vmem %s3, 64
    %v3188 = vld [vmem:[%s3187] sm:$0xff]
    %v3189 = vld [vmem:[%s3187 + $0x8] sm:$0xff]
    %v3191 = vsel %vm102, %v3171, 0
    %v3194 = vsel %vm102, %v3172, 0
    %v3197 = vsel %vm102, %v3173, 0
    %v3200 = vsel %vm102, %v3174, 0
    %v3203 = vsel %vm102, %v3175, 0
    %v3206 = vsel %vm102, %v3176, 0
    %v3209 = vsel %vm102, %v3177, 0
    %v3212 = vsel %vm102, %v3178, 0
    %v3215 = vsel %vm102, %v3179, 0
    %v3218 = vsel %vm102, %v3180, 0
    %v3221 = vsel %vm102, %v3181, 0
    %v3224 = vsel %vm102, %v3182, 0
    %v3227 = vsel %vm102, %v3183, 0
    %v3230 = vsel %vm102, %v3184, 0
    %v3233 = vsel %vm102, %v3185, 0
    %v3236 = vsel %vm102, %v3186, 0
    %3238 = vmatprep.subr.mxu0 0.0
    %3239 = vmatpush1.msra.mxu0 %v3188
    %3240 = vmatprep.subr.mxu0 0.0
    %3241 = vmatpush1.msra.mxu0 %v3189
    %3242 = vmatprep.subr.mxu0 0.0
    %3243 = vmatpush1.msra.mxu0 0.0
    %3244 = vmatprep.subr.mxu0 0.0
    %3245 = vmatpush1.msra.mxu0 0.0
    %3246 = vmatprep.subr.mxu0 0.0
    %3247 = vmatpush1.msra.mxu0 0.0
    %3248 = vmatprep.subr.mxu0 0.0
    %3249 = vmatpush1.msra.mxu0 0.0
    %3250 = vmatprep.subr.mxu0 0.0
    %3251 = vmatpush1.msra.mxu0 0.0
    %3252 = vmatprep.subr.mxu0 0.0
    %3253 = vmatpush1.msra.mxu0 0.0
    %3254 = vmatprep.subr.mxu0 0.0
    %3255 = vmatpush1.msra.mxu0 0.0
    %3256 = vmatprep.subr.mxu0 0.0
    %3257 = vmatpush1.msra.mxu0 0.0
    %3258 = vmatprep.subr.mxu0 0.0
    %3259 = vmatpush1.msra.mxu0 0.0
    %3260 = vmatprep.subr.mxu0 0.0
    %3261 = vmatpush1.msra.mxu0 0.0
    %3262 = vmatprep.subr.mxu0 0.0
    %3263 = vmatpush1.msra.mxu0 0.0
    %3264 = vmatprep.subr.mxu0 0.0
    %3265 = vmatpush1.msra.mxu0 0.0
    %3266 = vmatprep.subr.mxu0 0.0
    %3267 = vmatpush1.msra.mxu0 0.0
    %3268 = vmatprep.subr.mxu0 0.0
    %3269 = vmatpush1.msra.mxu0 0.0
    %3270 = vmatprep.subr.mxu0 0.0
    %3271 = vmatpush1.msra.mxu0 0.0
    %3272 = vmatprep.subr.mxu0 0.0
    %3273 = vmatpush1.msra.mxu0 0.0
    %3274 = vmatprep.subr.mxu0 0.0
    %3275 = vmatpush1.msra.mxu0 0.0
    %3276 = vmatprep.subr.mxu0 0.0
    %3277 = vmatpush1.msra.mxu0 0.0
    %3278 = vmatprep.subr.mxu0 0.0
    %3279 = vmatpush1.msra.mxu0 0.0
    %3280 = vmatprep.subr.mxu0 0.0
    %3281 = vmatpush1.msra.mxu0 0.0
    %3282 = vmatprep.subr.mxu0 0.0
    %3283 = vmatpush1.msra.mxu0 0.0
    %3284 = vmatprep.subr.mxu0 0.0
    %3285 = vmatpush1.msra.mxu0 0.0
    %3286 = vmatprep.subr.mxu0 0.0
    %3287 = vmatpush1.msra.mxu0 0.0
    %3288 = vmatprep.subr.mxu0 0.0
    %3289 = vmatpush1.msra.mxu0 0.0
    %3290 = vmatprep.subr.mxu0 0.0
    %3291 = vmatpush1.msra.mxu0 0.0
    %3292 = vmatprep.subr.mxu0 0.0
    %3293 = vmatpush1.msra.mxu0 0.0
    %3294 = vmatprep.subr.mxu0 0.0
    %3295 = vmatpush1.msra.mxu0 0.0
    %3296 = vmatprep.subr.mxu0 0.0
    %3297 = vmatpush1.msra.mxu0 0.0
    %3298 = vmatprep.subr.mxu0 0.0
    %3299 = vmatpush1.msra.mxu0 0.0
    %3300 = vmatprep.subr.mxu0 0.0
    %3301 = vmatpush1.msra.mxu0 0.0
    %3302 = vmatprep.mubr.f32.mxu0 0.0
    %3303 = vmatmul.mubr.f32.gmra.mrb[0].mxu0 %v3191
    %v3304 = vpop.f32.mrb[0].mxu0
    %v3305 = vadd.f32 0.0, %v3304
    %v3306 = vpop.f32.mrb[0].mxu0
    %3307 = vmatprep.mubr.f32.mxu0 0.0
    %3308 = vmatmul.mubr.f32.gmra.mrb[0].mxu0 %v3194
    %v3309 = vpop.f32.mrb[0].mxu0
    %v3310 = vadd.f32 0.0, %v3309
    %v3311 = vpop.f32.mrb[0].mxu0
    %3312 = vmatprep.mubr.f32.mxu0 0.0
    %3313 = vmatmul.mubr.f32.gmra.mrb[0].mxu0 %v3197
    %v3314 = vpop.f32.mrb[0].mxu0
    %v3315 = vadd.f32 0.0, %v3314
    %v3316 = vpop.f32.mrb[0].mxu0
    %3317 = vmatprep.mubr.f32.mxu0 0.0
    %3318 = vmatmul.mubr.f32.gmra.mrb[0].mxu0 %v3200
    %v3319 = vpop.f32.mrb[0].mxu0
    %v3320 = vadd.f32 0.0, %v3319
    %v3321 = vpop.f32.mrb[0].mxu0
    %3322 = vmatprep.mubr.f32.mxu0 0.0
    %3323 = vmatmul.mubr.f32.gmra.mrb[0].mxu0 %v3203
    %v3324 = vpop.f32.mrb[0].mxu0
    %v3325 = vadd.f32 0.0, %v3324
    %v3326 = vpop.f32.mrb[0].mxu0
    %3327 = vmatprep.mubr.f32.mxu0 0.0
    %3328 = vmatmul.mubr.f32.gmra.mrb[0].mxu0 %v3206
    %v3329 = vpop.f32.mrb[0].mxu0
    %v3330 = vadd.f32 0.0, %v3329
    %v3331 = vpop.f32.mrb[0].mxu0
    %3332 = vmatprep.mubr.f32.mxu0 0.0
    %3333 = vmatmul.mubr.f32.gmra.mrb[0].mxu0 %v3209
    %v3334 = vpop.f32.mrb[0].mxu0
    %v3335 = vadd.f32 0.0, %v3334
    %v3336 = vpop.f32.mrb[0].mxu0
    %3337 = vmatprep.mubr.f32.mxu0 0.0
    %3338 = vmatmul.mubr.f32.gmra.mrb[0].mxu0 %v3212
    %v3339 = vpop.f32.mrb[0].mxu0
    %v3340 = vadd.f32 0.0, %v3339
    %v3341 = vpop.f32.mrb[0].mxu0
    %3342 = vmatprep.mubr.f32.mxu0 0.0
    %3343 = vmatmul.mubr.f32.gmra.mrb[0].mxu0 %v3215
    %v3344 = vpop.f32.mrb[0].mxu0
    %v3345 = vadd.f32 0.0, %v3344
    %v3346 = vpop.f32.mrb[0].mxu0
    %3347 = vmatprep.mubr.f32.mxu0 0.0
    %3348 = vmatmul.mubr.f32.gmra.mrb[0].mxu0 %v3218
    %v3349 = vpop.f32.mrb[0].mxu0
    %v3350 = vadd.f32 0.0, %v3349
    %v3351 = vpop.f32.mrb[0].mxu0
    %3352 = vmatprep.mubr.f32.mxu0 0.0
    %3353 = vmatmul.mubr.f32.gmra.mrb[0].mxu0 %v3221
    %v3354 = vpop.f32.mrb[0].mxu0
    %v3355 = vadd.f32 0.0, %v3354
    %v3356 = vpop.f32.mrb[0].mxu0
    %3357 = vmatprep.mubr.f32.mxu0 0.0
    %3358 = vmatmul.mubr.f32.gmra.mrb[0].mxu0 %v3224
    %v3359 = vpop.f32.mrb[0].mxu0
    %v3360 = vadd.f32 0.0, %v3359
    %v3361 = vpop.f32.mrb[0].mxu0
    %3362 = vmatprep.mubr.f32.mxu0 0.0
    %3363 = vmatmul.mubr.f32.gmra.mrb[0].mxu0 %v3227
    %v3364 = vpop.f32.mrb[0].mxu0
    %v3365 = vadd.f32 0.0, %v3364
    %v3366 = vpop.f32.mrb[0].mxu0
    %3367 = vmatprep.mubr.f32.mxu0 0.0
    %3368 = vmatmul.mubr.f32.gmra.mrb[0].mxu0 %v3230
    %v3369 = vpop.f32.mrb[0].mxu0
    %v3370 = vadd.f32 0.0, %v3369
    %v3371 = vpop.f32.mrb[0].mxu0
    %3372 = vmatprep.mubr.f32.mxu0 0.0
    %3373 = vmatmul.mubr.f32.gmra.mrb[0].mxu0 %v3233
    %v3374 = vpop.f32.mrb[0].mxu0
    %v3375 = vadd.f32 0.0, %v3374
    %v3376 = vpop.f32.mrb[0].mxu0
    %3377 = vmatprep.mubr.f32.mxu0 0.0
    %3378 = vmatmul.mubr.f32.gmra.mrb[0].mxu0 %v3236
    %v3379 = vpop.f32.mrb[0].mxu0
    %v3380 = vadd.f32 0.0, %v3379
    %v3381 = vpop.f32.mrb[0].mxu0
    %3382 = vdwg.mxu0
    %v3383 = vadd.f32 %v3155, %v3305
    %v3384 = vadd.f32 %v3156, %v3310
    %v3385 = vadd.f32 %v3157, %v3315
    %v3386 = vadd.f32 %v3158, %v3320
    %v3387 = vadd.f32 %v3159, %v3325
    %v3388 = vadd.f32 %v3160, %v3330
    %v3389 = vadd.f32 %v3161, %v3335
    %v3390 = vadd.f32 %v3162, %v3340
    %v3391 = vadd.f32 %v3163, %v3345
    %v3392 = vadd.f32 %v3164, %v3350
    %v3393 = vadd.f32 %v3165, %v3355
    %v3394 = vadd.f32 %v3166, %v3360
    %v3395 = vadd.f32 %v3167, %v3365
    %v3396 = vadd.f32 %v3168, %v3370
    %v3397 = vadd.f32 %v3169, %v3375
    %v3398 = vadd.f32 %v3170, %v3380
    %v3399 = vld [vmem:[%s2275 + $0x9] sm:$0xff]
    %v3400 = vld [vmem:[%s2275 + $0x21] sm:$0xff]
    %v3401 = vld [vmem:[%s2275 + $0x39] sm:$0xff]
    %v3402 = vld [vmem:[%s2275 + $0x51] sm:$0xff]
    %v3403 = vld [vmem:[%s2275 + $0x69] sm:$0xff]
    %v3404 = vld [vmem:[%s2275 + $0x81] sm:$0xff]
    %v3405 = vld [vmem:[%s2275 + $0x99] sm:$0xff]
    %v3406 = vld [vmem:[%s2275 + $0xb1] sm:$0xff]
    %v3407 = vld [vmem:[%s2275 + $0xf9] sm:$0xff]
    %v3408 = vld [vmem:[%s2275 + $0x111] sm:$0xff]
    %v3409 = vld [vmem:[%s2275 + $0x129] sm:$0xff]
    %v3410 = vld [vmem:[%s2275 + $0x141] sm:$0xff]
    %v3411 = vld [vmem:[%s2275 + $0x159] sm:$0xff]
    %v3412 = vld [vmem:[%s2275 + $0x171] sm:$0xff]
    %v3413 = vld [vmem:[%s2275 + $0x189] sm:$0xff]
    %v3414 = vld [vmem:[%s2275 + $0x1a1] sm:$0xff]
    %s3415 = scalar_lea.vmem %s3, 80
    %v3416 = vld [vmem:[%s3415] sm:$0xff]
    %v3417 = vld [vmem:[%s3415 + $0x8] sm:$0xff]
    %v3419 = vsel %vm102, %v3399, 0
    %v3422 = vsel %vm102, %v3400, 0
    %v3425 = vsel %vm102, %v3401, 0
    %v3428 = vsel %vm102, %v3402, 0
    %v3431 = vsel %vm102, %v3403, 0
    %v3434 = vsel %vm102, %v3404, 0
    %v3437 = vsel %vm102, %v3405, 0
    %v3440 = vsel %vm102, %v3406, 0
    %v3443 = vsel %vm102, %v3407, 0
    %v3446 = vsel %vm102, %v3408, 0
    %v3449 = vsel %vm102, %v3409, 0
    %v3452 = vsel %vm102, %v3410, 0
    %v3455 = vsel %vm102, %v3411, 0
    %v3458 = vsel %vm102, %v3412, 0
    %v3461 = vsel %vm102, %v3413, 0
    %v3464 = vsel %vm102, %v3414, 0
    %3466 = vmatprep.subr.mxu0 0.0
    %3467 = vmatpush1.msra.mxu0 %v3416
    %3468 = vmatprep.subr.mxu0 0.0
    %3469 = vmatpush1.msra.mxu0 %v3417
    %3470 = vmatprep.subr.mxu0 0.0
    %3471 = vmatpush1.msra.mxu0 0.0
    %3472 = vmatprep.subr.mxu0 0.0
    %3473 = vmatpush1.msra.mxu0 0.0
    %3474 = vmatprep.subr.mxu0 0.0
    %3475 = vmatpush1.msra.mxu0 0.0
    %3476 = vmatprep.subr.mxu0 0.0
    %3477 = vmatpush1.msra.mxu0 0.0
    %3478 = vmatprep.subr.mxu0 0.0
    %3479 = vmatpush1.msra.mxu0 0.0
    %3480 = vmatprep.subr.mxu0 0.0
    %3481 = vmatpush1.msra.mxu0 0.0
    %3482 = vmatprep.subr.mxu0 0.0
    %3483 = vmatpush1.msra.mxu0 0.0
    %3484 = vmatprep.subr.mxu0 0.0
    %3485 = vmatpush1.msra.mxu0 0.0
    %3486 = vmatprep.subr.mxu0 0.0
    %3487 = vmatpush1.msra.mxu0 0.0
    %3488 = vmatprep.subr.mxu0 0.0
    %3489 = vmatpush1.msra.mxu0 0.0
    %3490 = vmatprep.subr.mxu0 0.0
    %3491 = vmatpush1.msra.mxu0 0.0
    %3492 = vmatprep.subr.mxu0 0.0
    %3493 = vmatpush1.msra.mxu0 0.0
    %3494 = vmatprep.subr.mxu0 0.0
    %3495 = vmatpush1.msra.mxu0 0.0
    %3496 = vmatprep.subr.mxu0 0.0
    %3497 = vmatpush1.msra.mxu0 0.0
    %3498 = vmatprep.subr.mxu0 0.0
    %3499 = vmatpush1.msra.mxu0 0.0
    %3500 = vmatprep.subr.mxu0 0.0
    %3501 = vmatpush1.msra.mxu0 0.0
    %3502 = vmatprep.subr.mxu0 0.0
    %3503 = vmatpush1.msra.mxu0 0.0
    %3504 = vmatprep.subr.mxu0 0.0
    %3505 = vmatpush1.msra.mxu0 0.0
    %3506 = vmatprep.subr.mxu0 0.0
    %3507 = vmatpush1.msra.mxu0 0.0
    %3508 = vmatprep.subr.mxu0 0.0
    %3509 = vmatpush1.msra.mxu0 0.0
    %3510 = vmatprep.subr.mxu0 0.0
    %3511 = vmatpush1.msra.mxu0 0.0
    %3512 = vmatprep.subr.mxu0 0.0
    %3513 = vmatpush1.msra.mxu0 0.0
    %3514 = vmatprep.subr.mxu0 0.0
    %3515 = vmatpush1.msra.mxu0 0.0
    %3516 = vmatprep.subr.mxu0 0.0
    %3517 = vmatpush1.msra.mxu0 0.0
    %3518 = vmatprep.subr.mxu0 0.0
    %3519 = vmatpush1.msra.mxu0 0.0
    %3520 = vmatprep.subr.mxu0 0.0
    %3521 = vmatpush1.msra.mxu0 0.0
    %3522 = vmatprep.subr.mxu0 0.0
    %3523 = vmatpush1.msra.mxu0 0.0
    %3524 = vmatprep.subr.mxu0 0.0
    %3525 = vmatpush1.msra.mxu0 0.0
    %3526 = vmatprep.subr.mxu0 0.0
    %3527 = vmatpush1.msra.mxu0 0.0
    %3528 = vmatprep.subr.mxu0 0.0
    %3529 = vmatpush1.msra.mxu0 0.0
    %3530 = vmatprep.mubr.f32.mxu0 0.0
    %3531 = vmatmul.mubr.f32.gmra.mrb[0].mxu0 %v3419
    %v3532 = vpop.f32.mrb[0].mxu0
    %v3533 = vadd.f32 0.0, %v3532
    %v3534 = vpop.f32.mrb[0].mxu0
    %3535 = vmatprep.mubr.f32.mxu0 0.0
    %3536 = vmatmul.mubr.f32.gmra.mrb[0].mxu0 %v3422
    %v3537 = vpop.f32.mrb[0].mxu0
    %v3538 = vadd.f32 0.0, %v3537
    %v3539 = vpop.f32.mrb[0].mxu0
    %3540 = vmatprep.mubr.f32.mxu0 0.0
    %3541 = vmatmul.mubr.f32.gmra.mrb[0].mxu0 %v3425
    %v3542 = vpop.f32.mrb[0].mxu0
    %v3543 = vadd.f32 0.0, %v3542
    %v3544 = vpop.f32.mrb[0].mxu0
    %3545 = vmatprep.mubr.f32.mxu0 0.0
    %3546 = vmatmul.mubr.f32.gmra.mrb[0].mxu0 %v3428
    %v3547 = vpop.f32.mrb[0].mxu0
    %v3548 = vadd.f32 0.0, %v3547
    %v3549 = vpop.f32.mrb[0].mxu0
    %3550 = vmatprep.mubr.f32.mxu0 0.0
    %3551 = vmatmul.mubr.f32.gmra.mrb[0].mxu0 %v3431
    %v3552 = vpop.f32.mrb[0].mxu0
    %v3553 = vadd.f32 0.0, %v3552
    %v3554 = vpop.f32.mrb[0].mxu0
    %3555 = vmatprep.mubr.f32.mxu0 0.0
    %3556 = vmatmul.mubr.f32.gmra.mrb[0].mxu0 %v3434
    %v3557 = vpop.f32.mrb[0].mxu0
    %v3558 = vadd.f32 0.0, %v3557
    %v3559 = vpop.f32.mrb[0].mxu0
    %3560 = vmatprep.mubr.f32.mxu0 0.0
    %3561 = vmatmul.mubr.f32.gmra.mrb[0].mxu0 %v3437
    %v3562 = vpop.f32.mrb[0].mxu0
    %v3563 = vadd.f32 0.0, %v3562
    %v3564 = vpop.f32.mrb[0].mxu0
    %3565 = vmatprep.mubr.f32.mxu0 0.0
    %3566 = vmatmul.mubr.f32.gmra.mrb[0].mxu0 %v3440
    %v3567 = vpop.f32.mrb[0].mxu0
    %v3568 = vadd.f32 0.0, %v3567
    %v3569 = vpop.f32.mrb[0].mxu0
    %3570 = vmatprep.mubr.f32.mxu0 0.0
    %3571 = vmatmul.mubr.f32.gmra.mrb[0].mxu0 %v3443
    %v3572 = vpop.f32.mrb[0].mxu0
    %v3573 = vadd.f32 0.0, %v3572
    %v3574 = vpop.f32.mrb[0].mxu0
    %3575 = vmatprep.mubr.f32.mxu0 0.0
    %3576 = vmatmul.mubr.f32.gmra.mrb[0].mxu0 %v3446
    %v3577 = vpop.f32.mrb[0].mxu0
    %v3578 = vadd.f32 0.0, %v3577
    %v3579 = vpop.f32.mrb[0].mxu0
    %3580 = vmatprep.mubr.f32.mxu0 0.0
    %3581 = vmatmul.mubr.f32.gmra.mrb[0].mxu0 %v3449
    %v3582 = vpop.f32.mrb[0].mxu0
    %v3583 = vadd.f32 0.0, %v3582
    %v3584 = vpop.f32.mrb[0].mxu0
    %3585 = vmatprep.mubr.f32.mxu0 0.0
    %3586 = vmatmul.mubr.f32.gmra.mrb[0].mxu0 %v3452
    %v3587 = vpop.f32.mrb[0].mxu0
    %v3588 = vadd.f32 0.0, %v3587
    %v3589 = vpop.f32.mrb[0].mxu0
    %3590 = vmatprep.mubr.f32.mxu0 0.0
    %3591 = vmatmul.mubr.f32.gmra.mrb[0].mxu0 %v3455
    %v3592 = vpop.f32.mrb[0].mxu0
    %v3593 = vadd.f32 0.0, %v3592
    %v3594 = vpop.f32.mrb[0].mxu0
    %3595 = vmatprep.mubr.f32.mxu0 0.0
    %3596 = vmatmul.mubr.f32.gmra.mrb[0].mxu0 %v3458
    %v3597 = vpop.f32.mrb[0].mxu0
    %v3598 = vadd.f32 0.0, %v3597
    %v3599 = vpop.f32.mrb[0].mxu0
    %3600 = vmatprep.mubr.f32.mxu0 0.0
    %3601 = vmatmul.mubr.f32.gmra.mrb[0].mxu0 %v3461
    %v3602 = vpop.f32.mrb[0].mxu0
    %v3603 = vadd.f32 0.0, %v3602
    %v3604 = vpop.f32.mrb[0].mxu0
    %3605 = vmatprep.mubr.f32.mxu0 0.0
    %3606 = vmatmul.mubr.f32.gmra.mrb[0].mxu0 %v3464
    %v3607 = vpop.f32.mrb[0].mxu0
    %v3608 = vadd.f32 0.0, %v3607
    %v3609 = vpop.f32.mrb[0].mxu0
    %3610 = vdwg.mxu0
    %v3611 = vadd.f32 %v3383, %v3533
    %v3612 = vadd.f32 %v3384, %v3538
    %v3613 = vadd.f32 %v3385, %v3543
    %v3614 = vadd.f32 %v3386, %v3548
    %v3615 = vadd.f32 %v3387, %v3553
    %v3616 = vadd.f32 %v3388, %v3558
    %v3617 = vadd.f32 %v3389, %v3563
    %v3618 = vadd.f32 %v3390, %v3568
    %v3619 = vadd.f32 %v3391, %v3573
    %v3620 = vadd.f32 %v3392, %v3578
    %v3621 = vadd.f32 %v3393, %v3583
    %v3622 = vadd.f32 %v3394, %v3588
    %v3623 = vadd.f32 %v3395, %v3593
    %v3624 = vadd.f32 %v3396, %v3598
    %v3625 = vadd.f32 %v3397, %v3603
    %v3626 = vadd.f32 %v3398, %v3608
    %s3627 = scalar_lea.vmem [#allocation3], 48
    %v3628 = vld [vmem:[%s3627 + $0x7] sm:$0xff]
    %v3629 = vld [vmem:[%s3627 + $0x1f] sm:$0xff]
    %v3630 = vld [vmem:[%s3627 + $0x37] sm:$0xff]
    %v3631 = vld [vmem:[%s3627 + $0x4f] sm:$0xff]
    %v3632 = vld [vmem:[%s3627 + $0x67] sm:$0xff]
    %v3633 = vld [vmem:[%s3627 + $0x7f] sm:$0xff]
    %v3634 = vld [vmem:[%s3627 + $0x97] sm:$0xff]
    %v3635 = vld [vmem:[%s3627 + $0xaf] sm:$0xff]
    %v3636 = vld [vmem:[%s3627 + $0xf7] sm:$0xff]
    %v3637 = vld [vmem:[%s3627 + $0x10f] sm:$0xff]
    %v3638 = vld [vmem:[%s3627 + $0x127] sm:$0xff]
    %v3639 = vld [vmem:[%s3627 + $0x13f] sm:$0xff]
    %v3640 = vld [vmem:[%s3627 + $0x157] sm:$0xff]
    %v3641 = vld [vmem:[%s3627 + $0x16f] sm:$0xff]
    %v3642 = vld [vmem:[%s3627 + $0x187] sm:$0xff]
    %v3643 = vld [vmem:[%s3627 + $0x19f] sm:$0xff]
    %s3644 = scalar_lea.vmem %s3, 96
    %v3645 = vld [vmem:[%s3644] sm:$0xff]
    %v3646 = vld [vmem:[%s3644 + $0x8] sm:$0xff]
    %v3648 = vsel %vm102, %v3628, 0
    %v3651 = vsel %vm102, %v3629, 0
    %v3654 = vsel %vm102, %v3630, 0
    %v3657 = vsel %vm102, %v3631, 0
    %v3660 = vsel %vm102, %v3632, 0
    %v3663 = vsel %vm102, %v3633, 0
    %v3666 = vsel %vm102, %v3634, 0
    %v3669 = vsel %vm102, %v3635, 0
    %v3672 = vsel %vm102, %v3636, 0
    %v3675 = vsel %vm102, %v3637, 0
    %v3678 = vsel %vm102, %v3638, 0
    %v3681 = vsel %vm102, %v3639, 0
    %v3684 = vsel %vm102, %v3640, 0
    %v3687 = vsel %vm102, %v3641, 0
    %v3690 = vsel %vm102, %v3642, 0
    %v3693 = vsel %vm102, %v3643, 0
    %3695 = vmatprep.subr.mxu0 0.0
    %3696 = vmatpush1.msra.mxu0 %v3645
    %3697 = vmatprep.subr.mxu0 0.0
    %3698 = vmatpush1.msra.mxu0 %v3646
    %3699 = vmatprep.subr.mxu0 0.0
    %3700 = vmatpush1.msra.mxu0 0.0
    %3701 = vmatprep.subr.mxu0 0.0
    %3702 = vmatpush1.msra.mxu0 0.0
    %3703 = vmatprep.subr.mxu0 0.0
    %3704 = vmatpush1.msra.mxu0 0.0
    %3705 = vmatprep.subr.mxu0 0.0
    %3706 = vmatpush1.msra.mxu0 0.0
    %3707 = vmatprep.subr.mxu0 0.0
    %3708 = vmatpush1.msra.mxu0 0.0
    %3709 = vmatprep.subr.mxu0 0.0
    %3710 = vmatpush1.msra.mxu0 0.0
    %3711 = vmatprep.subr.mxu0 0.0
    %3712 = vmatpush1.msra.mxu0 0.0
    %3713 = vmatprep.subr.mxu0 0.0
    %3714 = vmatpush1.msra.mxu0 0.0
    %3715 = vmatprep.subr.mxu0 0.0
    %3716 = vmatpush1.msra.mxu0 0.0
    %3717 = vmatprep.subr.mxu0 0.0
    %3718 = vmatpush1.msra.mxu0 0.0
    %3719 = vmatprep.subr.mxu0 0.0
    %3720 = vmatpush1.msra.mxu0 0.0
    %3721 = vmatprep.subr.mxu0 0.0
    %3722 = vmatpush1.msra.mxu0 0.0
    %3723 = vmatprep.subr.mxu0 0.0
    %3724 = vmatpush1.msra.mxu0 0.0
    %3725 = vmatprep.subr.mxu0 0.0
    %3726 = vmatpush1.msra.mxu0 0.0
    %3727 = vmatprep.subr.mxu0 0.0
    %3728 = vmatpush1.msra.mxu0 0.0
    %3729 = vmatprep.subr.mxu0 0.0
    %3730 = vmatpush1.msra.mxu0 0.0
    %3731 = vmatprep.subr.mxu0 0.0
    %3732 = vmatpush1.msra.mxu0 0.0
    %3733 = vmatprep.subr.mxu0 0.0
    %3734 = vmatpush1.msra.mxu0 0.0
    %3735 = vmatprep.subr.mxu0 0.0
    %3736 = vmatpush1.msra.mxu0 0.0
    %3737 = vmatprep.subr.mxu0 0.0
    %3738 = vmatpush1.msra.mxu0 0.0
    %3739 = vmatprep.subr.mxu0 0.0
    %3740 = vmatpush1.msra.mxu0 0.0
    %3741 = vmatprep.subr.mxu0 0.0
    %3742 = vmatpush1.msra.mxu0 0.0
    %3743 = vmatprep.subr.mxu0 0.0
    %3744 = vmatpush1.msra.mxu0 0.0
    %3745 = vmatprep.subr.mxu0 0.0
    %3746 = vmatpush1.msra.mxu0 0.0
    %3747 = vmatprep.subr.mxu0 0.0
    %3748 = vmatpush1.msra.mxu0 0.0
    %3749 = vmatprep.subr.mxu0 0.0
    %3750 = vmatpush1.msra.mxu0 0.0
    %3751 = vmatprep.subr.mxu0 0.0
    %3752 = vmatpush1.msra.mxu0 0.0
    %3753 = vmatprep.subr.mxu0 0.0
    %3754 = vmatpush1.msra.mxu0 0.0
    %3755 = vmatprep.subr.mxu0 0.0
    %3756 = vmatpush1.msra.mxu0 0.0
    %3757 = vmatprep.subr.mxu0 0.0
    %3758 = vmatpush1.msra.mxu0 0.0
    %3759 = vmatprep.mubr.f32.mxu0 0.0
    %3760 = vmatmul.mubr.f32.gmra.mrb[0].mxu0 %v3648
    %v3761 = vpop.f32.mrb[0].mxu0
    %v3762 = vadd.f32 0.0, %v3761
    %v3763 = vpop.f32.mrb[0].mxu0
    %3764 = vmatprep.mubr.f32.mxu0 0.0
    %3765 = vmatmul.mubr.f32.gmra.mrb[0].mxu0 %v3651
    %v3766 = vpop.f32.mrb[0].mxu0
    %v3767 = vadd.f32 0.0, %v3766
    %v3768 = vpop.f32.mrb[0].mxu0
    %3769 = vmatprep.mubr.f32.mxu0 0.0
    %3770 = vmatmul.mubr.f32.gmra.mrb[0].mxu0 %v3654
    %v3771 = vpop.f32.mrb[0].mxu0
    %v3772 = vadd.f32 0.0, %v3771
    %v3773 = vpop.f32.mrb[0].mxu0
    %3774 = vmatprep.mubr.f32.mxu0 0.0
    %3775 = vmatmul.mubr.f32.gmra.mrb[0].mxu0 %v3657
    %v3776 = vpop.f32.mrb[0].mxu0
    %v3777 = vadd.f32 0.0, %v3776
    %v3778 = vpop.f32.mrb[0].mxu0
    %3779 = vmatprep.mubr.f32.mxu0 0.0
    %3780 = vmatmul.mubr.f32.gmra.mrb[0].mxu0 %v3660
    %v3781 = vpop.f32.mrb[0].mxu0
    %v3782 = vadd.f32 0.0, %v3781
    %v3783 = vpop.f32.mrb[0].mxu0
    %3784 = vmatprep.mubr.f32.mxu0 0.0
    %3785 = vmatmul.mubr.f32.gmra.mrb[0].mxu0 %v3663
    %v3786 = vpop.f32.mrb[0].mxu0
    %v3787 = vadd.f32 0.0, %v3786
    %v3788 = vpop.f32.mrb[0].mxu0
    %3789 = vmatprep.mubr.f32.mxu0 0.0
    %3790 = vmatmul.mubr.f32.gmra.mrb[0].mxu0 %v3666
    %v3791 = vpop.f32.mrb[0].mxu0
    %v3792 = vadd.f32 0.0, %v3791
    %v3793 = vpop.f32.mrb[0].mxu0
    %3794 = vmatprep.mubr.f32.mxu0 0.0
    %3795 = vmatmul.mubr.f32.gmra.mrb[0].mxu0 %v3669
    %v3796 = vpop.f32.mrb[0].mxu0
    %v3797 = vadd.f32 0.0, %v3796
    %v3798 = vpop.f32.mrb[0].mxu0
    %3799 = vmatprep.mubr.f32.mxu0 0.0
    %3800 = vmatmul.mubr.f32.gmra.mrb[0].mxu0 %v3672
    %v3801 = vpop.f32.mrb[0].mxu0
    %v3802 = vadd.f32 0.0, %v3801
    %v3803 = vpop.f32.mrb[0].mxu0
    %3804 = vmatprep.mubr.f32.mxu0 0.0
    %3805 = vmatmul.mubr.f32.gmra.mrb[0].mxu0 %v3675
    %v3806 = vpop.f32.mrb[0].mxu0
    %v3807 = vadd.f32 0.0, %v3806
    %v3808 = vpop.f32.mrb[0].mxu0
    %3809 = vmatprep.mubr.f32.mxu0 0.0
    %3810 = vmatmul.mubr.f32.gmra.mrb[0].mxu0 %v3678
    %v3811 = vpop.f32.mrb[0].mxu0
    %v3812 = vadd.f32 0.0, %v3811
    %v3813 = vpop.f32.mrb[0].mxu0
    %3814 = vmatprep.mubr.f32.mxu0 0.0
    %3815 = vmatmul.mubr.f32.gmra.mrb[0].mxu0 %v3681
    %v3816 = vpop.f32.mrb[0].mxu0
    %v3817 = vadd.f32 0.0, %v3816
    %v3818 = vpop.f32.mrb[0].mxu0
    %3819 = vmatprep.mubr.f32.mxu0 0.0
    %3820 = vmatmul.mubr.f32.gmra.mrb[0].mxu0 %v3684
    %v3821 = vpop.f32.mrb[0].mxu0
    %v3822 = vadd.f32 0.0, %v3821
    %v3823 = vpop.f32.mrb[0].mxu0
    %3824 = vmatprep.mubr.f32.mxu0 0.0
    %3825 = vmatmul.mubr.f32.gmra.mrb[0].mxu0 %v3687
    %v3826 = vpop.f32.mrb[0].mxu0
    %v3827 = vadd.f32 0.0, %v3826
    %v3828 = vpop.f32.mrb[0].mxu0
    %3829 = vmatprep.mubr.f32.mxu0 0.0
    %3830 = vmatmul.mubr.f32.gmra.mrb[0].mxu0 %v3690
    %v3831 = vpop.f32.mrb[0].mxu0
    %v3832 = vadd.f32 0.0, %v3831
    %v3833 = vpop.f32.mrb[0].mxu0
    %3834 = vmatprep.mubr.f32.mxu0 0.0
    %3835 = vmatmul.mubr.f32.gmra.mrb[0].mxu0 %v3693
    %v3836 = vpop.f32.mrb[0].mxu0
    %v3837 = vadd.f32 0.0, %v3836
    %v3838 = vpop.f32.mrb[0].mxu0
    %3839 = vdwg.mxu0
    %v3840 = vadd.f32 %v3611, %v3762
    %v3841 = vadd.f32 %v3612, %v3767
    %v3842 = vadd.f32 %v3613, %v3772
    %v3843 = vadd.f32 %v3614, %v3777
    %v3844 = vadd.f32 %v3615, %v3782
    %v3845 = vadd.f32 %v3616, %v3787
    %v3846 = vadd.f32 %v3617, %v3792
    %v3847 = vadd.f32 %v3618, %v3797
    %v3848 = vadd.f32 %v3619, %v3802
    %v3849 = vadd.f32 %v3620, %v3807
    %v3850 = vadd.f32 %v3621, %v3812
    %v3851 = vadd.f32 %v3622, %v3817
    %v3852 = vadd.f32 %v3623, %v3822
    %v3853 = vadd.f32 %v3624, %v3827
    %v3854 = vadd.f32 %v3625, %v3832
    %v3855 = vadd.f32 %v3626, %v3837
    %v3856 = vld [vmem:[%s3627 + $0x8] sm:$0xff]
    %v3857 = vld [vmem:[%s3627 + $0x20] sm:$0xff]
    %v3858 = vld [vmem:[%s3627 + $0x38] sm:$0xff]
    %v3859 = vld [vmem:[%s3627 + $0x50] sm:$0xff]
    %v3860 = vld [vmem:[%s3627 + $0x68] sm:$0xff]
    %v3861 = vld [vmem:[%s3627 + $0x80] sm:$0xff]
    %v3862 = vld [vmem:[%s3627 + $0x98] sm:$0xff]
    %v3863 = vld [vmem:[%s3627 + $0xb0] sm:$0xff]
    %v3864 = vld [vmem:[%s3627 + $0xf8] sm:$0xff]
    %v3865 = vld [vmem:[%s3627 + $0x110] sm:$0xff]
    %v3866 = vld [vmem:[%s3627 + $0x128] sm:$0xff]
    %v3867 = vld [vmem:[%s3627 + $0x140] sm:$0xff]
    %v3868 = vld [vmem:[%s3627 + $0x158] sm:$0xff]
    %v3869 = vld [vmem:[%s3627 + $0x170] sm:$0xff]
    %v3870 = vld [vmem:[%s3627 + $0x188] sm:$0xff]
    %v3871 = vld [vmem:[%s3627 + $0x1a0] sm:$0xff]
    %s3872 = scalar_lea.vmem %s3, 112
    %v3873 = vld [vmem:[%s3872] sm:$0xff]
    %v3874 = vld [vmem:[%s3872 + $0x8] sm:$0xff]
    %v3876 = vsel %vm102, %v3856, 0
    %v3879 = vsel %vm102, %v3857, 0
    %v3882 = vsel %vm102, %v3858, 0
    %v3885 = vsel %vm102, %v3859, 0
    %v3888 = vsel %vm102, %v3860, 0
    %v3891 = vsel %vm102, %v3861, 0
    %v3894 = vsel %vm102, %v3862, 0
    %v3897 = vsel %vm102, %v3863, 0
    %v3900 = vsel %vm102, %v3864, 0
    %v3903 = vsel %vm102, %v3865, 0
    %v3906 = vsel %vm102, %v3866, 0
    %v3909 = vsel %vm102, %v3867, 0
    %v3912 = vsel %vm102, %v3868, 0
    %v3915 = vsel %vm102, %v3869, 0
    %v3918 = vsel %vm102, %v3870, 0
    %v3921 = vsel %vm102, %v3871, 0
    %3923 = vmatprep.subr.mxu0 0.0
    %3924 = vmatpush1.msra.mxu0 %v3873
    %3925 = vmatprep.subr.mxu0 0.0
    %3926 = vmatpush1.msra.mxu0 %v3874
    %3927 = vmatprep.subr.mxu0 0.0
    %3928 = vmatpush1.msra.mxu0 0.0
    %3929 = vmatprep.subr.mxu0 0.0
    %3930 = vmatpush1.msra.mxu0 0.0
    %3931 = vmatprep.subr.mxu0 0.0
    %3932 = vmatpush1.msra.mxu0 0.0
    %3933 = vmatprep.subr.mxu0 0.0
    %3934 = vmatpush1.msra.mxu0 0.0
    %3935 = vmatprep.subr.mxu0 0.0
    %3936 = vmatpush1.msra.mxu0 0.0
    %3937 = vmatprep.subr.mxu0 0.0
    %3938 = vmatpush1.msra.mxu0 0.0
    %3939 = vmatprep.subr.mxu0 0.0
    %3940 = vmatpush1.msra.mxu0 0.0
    %3941 = vmatprep.subr.mxu0 0.0
    %3942 = vmatpush1.msra.mxu0 0.0
    %3943 = vmatprep.subr.mxu0 0.0
    %3944 = vmatpush1.msra.mxu0 0.0
    %3945 = vmatprep.subr.mxu0 0.0
    %3946 = vmatpush1.msra.mxu0 0.0
    %3947 = vmatprep.subr.mxu0 0.0
    %3948 = vmatpush1.msra.mxu0 0.0
    %3949 = vmatprep.subr.mxu0 0.0
    %3950 = vmatpush1.msra.mxu0 0.0
    %3951 = vmatprep.subr.mxu0 0.0
    %3952 = vmatpush1.msra.mxu0 0.0
    %3953 = vmatprep.subr.mxu0 0.0
    %3954 = vmatpush1.msra.mxu0 0.0
    %3955 = vmatprep.subr.mxu0 0.0
    %3956 = vmatpush1.msra.mxu0 0.0
    %3957 = vmatprep.subr.mxu0 0.0
    %3958 = vmatpush1.msra.mxu0 0.0
    %3959 = vmatprep.subr.mxu0 0.0
    %3960 = vmatpush1.msra.mxu0 0.0
    %3961 = vmatprep.subr.mxu0 0.0
    %3962 = vmatpush1.msra.mxu0 0.0
    %3963 = vmatprep.subr.mxu0 0.0
    %3964 = vmatpush1.msra.mxu0 0.0
    %3965 = vmatprep.subr.mxu0 0.0
    %3966 = vmatpush1.msra.mxu0 0.0
    %3967 = vmatprep.subr.mxu0 0.0
    %3968 = vmatpush1.msra.mxu0 0.0
    %3969 = vmatprep.subr.mxu0 0.0
    %3970 = vmatpush1.msra.mxu0 0.0
    %3971 = vmatprep.subr.mxu0 0.0
    %3972 = vmatpush1.msra.mxu0 0.0
    %3973 = vmatprep.subr.mxu0 0.0
    %3974 = vmatpush1.msra.mxu0 0.0
    %3975 = vmatprep.subr.mxu0 0.0
    %3976 = vmatpush1.msra.mxu0 0.0
    %3977 = vmatprep.subr.mxu0 0.0
    %3978 = vmatpush1.msra.mxu0 0.0
    %3979 = vmatprep.subr.mxu0 0.0
    %3980 = vmatpush1.msra.mxu0 0.0
    %3981 = vmatprep.subr.mxu0 0.0
    %3982 = vmatpush1.msra.mxu0 0.0
    %3983 = vmatprep.subr.mxu0 0.0
    %3984 = vmatpush1.msra.mxu0 0.0
    %3985 = vmatprep.subr.mxu0 0.0
    %3986 = vmatpush1.msra.mxu0 0.0
    %3987 = vmatprep.mubr.f32.mxu0 0.0
    %3988 = vmatmul.mubr.f32.gmra.mrb[0].mxu0 %v3876
    %v3989 = vpop.f32.mrb[0].mxu0
    %v3990 = vadd.f32 0.0, %v3989
    %v3991 = vpop.f32.mrb[0].mxu0
    %3992 = vmatprep.mubr.f32.mxu0 0.0
    %3993 = vmatmul.mubr.f32.gmra.mrb[0].mxu0 %v3879
    %v3994 = vpop.f32.mrb[0].mxu0
    %v3995 = vadd.f32 0.0, %v3994
    %v3996 = vpop.f32.mrb[0].mxu0
    %3997 = vmatprep.mubr.f32.mxu0 0.0
    %3998 = vmatmul.mubr.f32.gmra.mrb[0].mxu0 %v3882
    %v3999 = vpop.f32.mrb[0].mxu0
    %v4000 = vadd.f32 0.0, %v3999
    %v4001 = vpop.f32.mrb[0].mxu0
    %4002 = vmatprep.mubr.f32.mxu0 0.0
    %4003 = vmatmul.mubr.f32.gmra.mrb[0].mxu0 %v3885
    %v4004 = vpop.f32.mrb[0].mxu0
    %v4005 = vadd.f32 0.0, %v4004
    %v4006 = vpop.f32.mrb[0].mxu0
    %4007 = vmatprep.mubr.f32.mxu0 0.0
    %4008 = vmatmul.mubr.f32.gmra.mrb[0].mxu0 %v3888
    %v4009 = vpop.f32.mrb[0].mxu0
    %v4010 = vadd.f32 0.0, %v4009
    %v4011 = vpop.f32.mrb[0].mxu0
    %4012 = vmatprep.mubr.f32.mxu0 0.0
    %4013 = vmatmul.mubr.f32.gmra.mrb[0].mxu0 %v3891
    %v4014 = vpop.f32.mrb[0].mxu0
    %v4015 = vadd.f32 0.0, %v4014
    %v4016 = vpop.f32.mrb[0].mxu0
    %4017 = vmatprep.mubr.f32.mxu0 0.0
    %4018 = vmatmul.mubr.f32.gmra.mrb[0].mxu0 %v3894
    %v4019 = vpop.f32.mrb[0].mxu0
    %v4020 = vadd.f32 0.0, %v4019
    %v4021 = vpop.f32.mrb[0].mxu0
    %4022 = vmatprep.mubr.f32.mxu0 0.0
    %4023 = vmatmul.mubr.f32.gmra.mrb[0].mxu0 %v3897
    %v4024 = vpop.f32.mrb[0].mxu0
    %v4025 = vadd.f32 0.0, %v4024
    %v4026 = vpop.f32.mrb[0].mxu0
    %4027 = vmatprep.mubr.f32.mxu0 0.0
    %4028 = vmatmul.mubr.f32.gmra.mrb[0].mxu0 %v3900
    %v4029 = vpop.f32.mrb[0].mxu0
    %v4030 = vadd.f32 0.0, %v4029
    %v4031 = vpop.f32.mrb[0].mxu0
    %4032 = vmatprep.mubr.f32.mxu0 0.0
    %4033 = vmatmul.mubr.f32.gmra.mrb[0].mxu0 %v3903
    %v4034 = vpop.f32.mrb[0].mxu0
    %v4035 = vadd.f32 0.0, %v4034
    %v4036 = vpop.f32.mrb[0].mxu0
    %4037 = vmatprep.mubr.f32.mxu0 0.0
    %4038 = vmatmul.mubr.f32.gmra.mrb[0].mxu0 %v3906
    %v4039 = vpop.f32.mrb[0].mxu0
    %v4040 = vadd.f32 0.0, %v4039
    %v4041 = vpop.f32.mrb[0].mxu0
    %4042 = vmatprep.mubr.f32.mxu0 0.0
    %4043 = vmatmul.mubr.f32.gmra.mrb[0].mxu0 %v3909
    %v4044 = vpop.f32.mrb[0].mxu0
    %v4045 = vadd.f32 0.0, %v4044
    %v4046 = vpop.f32.mrb[0].mxu0
    %4047 = vmatprep.mubr.f32.mxu0 0.0
    %4048 = vmatmul.mubr.f32.gmra.mrb[0].mxu0 %v3912
    %v4049 = vpop.f32.mrb[0].mxu0
    %v4050 = vadd.f32 0.0, %v4049
    %v4051 = vpop.f32.mrb[0].mxu0
    %4052 = vmatprep.mubr.f32.mxu0 0.0
    %4053 = vmatmul.mubr.f32.gmra.mrb[0].mxu0 %v3915
    %v4054 = vpop.f32.mrb[0].mxu0
    %v4055 = vadd.f32 0.0, %v4054
    %v4056 = vpop.f32.mrb[0].mxu0
    %4057 = vmatprep.mubr.f32.mxu0 0.0
    %4058 = vmatmul.mubr.f32.gmra.mrb[0].mxu0 %v3918
    %v4059 = vpop.f32.mrb[0].mxu0
    %v4060 = vadd.f32 0.0, %v4059
    %v4061 = vpop.f32.mrb[0].mxu0
    %4062 = vmatprep.mubr.f32.mxu0 0.0
    %4063 = vmatmul.mubr.f32.gmra.mrb[0].mxu0 %v3921
    %v4064 = vpop.f32.mrb[0].mxu0
    %v4065 = vadd.f32 0.0, %v4064
    %v4066 = vpop.f32.mrb[0].mxu0
    %4067 = vdwg.mxu0
    %v4068 = vadd.f32 %v3840, %v3990
    %v4069 = vadd.f32 %v3841, %v3995
    %v4070 = vadd.f32 %v3842, %v4000
    %v4071 = vadd.f32 %v3843, %v4005
    %v4072 = vadd.f32 %v3844, %v4010
    %v4073 = vadd.f32 %v3845, %v4015
    %v4074 = vadd.f32 %v3846, %v4020
    %v4075 = vadd.f32 %v3847, %v4025
    %v4076 = vadd.f32 %v3848, %v4030
    %v4077 = vadd.f32 %v3849, %v4035
    %v4078 = vadd.f32 %v3850, %v4040
    %v4079 = vadd.f32 %v3851, %v4045
    %v4080 = vadd.f32 %v3852, %v4050
    %v4081 = vadd.f32 %v3853, %v4055
    %v4082 = vadd.f32 %v3854, %v4060
    %v4083 = vadd.f32 %v3855, %v4065
    %v4084 = vld [vmem:[%s3627 + $0x9] sm:$0xff]
    %v4085 = vld [vmem:[%s3627 + $0x21] sm:$0xff]
    %v4086 = vld [vmem:[%s3627 + $0x39] sm:$0xff]
    %v4087 = vld [vmem:[%s3627 + $0x51] sm:$0xff]
    %v4088 = vld [vmem:[%s3627 + $0x69] sm:$0xff]
    %v4089 = vld [vmem:[%s3627 + $0x81] sm:$0xff]
    %v4090 = vld [vmem:[%s3627 + $0x99] sm:$0xff]
    %v4091 = vld [vmem:[%s3627 + $0xb1] sm:$0xff]
    %v4092 = vld [vmem:[%s3627 + $0xf9] sm:$0xff]
    %v4093 = vld [vmem:[%s3627 + $0x111] sm:$0xff]
    %v4094 = vld [vmem:[%s3627 + $0x129] sm:$0xff]
    %v4095 = vld [vmem:[%s3627 + $0x141] sm:$0xff]
    %v4096 = vld [vmem:[%s3627 + $0x159] sm:$0xff]
    %v4097 = vld [vmem:[%s3627 + $0x171] sm:$0xff]
    %v4098 = vld [vmem:[%s3627 + $0x189] sm:$0xff]
    %v4099 = vld [vmem:[%s3627 + $0x1a1] sm:$0xff]
    %s4100 = scalar_lea.vmem %s3, 128
    %v4101 = vld [vmem:[%s4100] sm:$0xff]
    %v4102 = vld [vmem:[%s4100 + $0x8] sm:$0xff]
    %v4104 = vsel %vm102, %v4084, 0
    %v4107 = vsel %vm102, %v4085, 0
    %v4110 = vsel %vm102, %v4086, 0
    %v4113 = vsel %vm102, %v4087, 0
    %v4116 = vsel %vm102, %v4088, 0
    %v4119 = vsel %vm102, %v4089, 0
    %v4122 = vsel %vm102, %v4090, 0
    %v4125 = vsel %vm102, %v4091, 0
    %v4128 = vsel %vm102, %v4092, 0
    %v4131 = vsel %vm102, %v4093, 0
    %v4134 = vsel %vm102, %v4094, 0
    %v4137 = vsel %vm102, %v4095, 0
    %v4140 = vsel %vm102, %v4096, 0
    %v4143 = vsel %vm102, %v4097, 0
    %v4146 = vsel %vm102, %v4098, 0
    %v4149 = vsel %vm102, %v4099, 0
    %4151 = vmatprep.subr.mxu0 0.0
    %4152 = vmatpush1.msra.mxu0 %v4101
    %4153 = vmatprep.subr.mxu0 0.0
    %4154 = vmatpush1.msra.mxu0 %v4102
    %4155 = vmatprep.subr.mxu0 0.0
    %4156 = vmatpush1.msra.mxu0 0.0
    %4157 = vmatprep.subr.mxu0 0.0
    %4158 = vmatpush1.msra.mxu0 0.0
    %4159 = vmatprep.subr.mxu0 0.0
    %4160 = vmatpush1.msra.mxu0 0.0
    %4161 = vmatprep.subr.mxu0 0.0
    %4162 = vmatpush1.msra.mxu0 0.0
    %4163 = vmatprep.subr.mxu0 0.0
    %4164 = vmatpush1.msra.mxu0 0.0
    %4165 = vmatprep.subr.mxu0 0.0
    %4166 = vmatpush1.msra.mxu0 0.0
    %4167 = vmatprep.subr.mxu0 0.0
    %4168 = vmatpush1.msra.mxu0 0.0
    %4169 = vmatprep.subr.mxu0 0.0
    %4170 = vmatpush1.msra.mxu0 0.0
    %4171 = vmatprep.subr.mxu0 0.0
    %4172 = vmatpush1.msra.mxu0 0.0
    %4173 = vmatprep.subr.mxu0 0.0
    %4174 = vmatpush1.msra.mxu0 0.0
    %4175 = vmatprep.subr.mxu0 0.0
    %4176 = vmatpush1.msra.mxu0 0.0
    %4177 = vmatprep.subr.mxu0 0.0
    %4178 = vmatpush1.msra.mxu0 0.0
    %4179 = vmatprep.subr.mxu0 0.0
    %4180 = vmatpush1.msra.mxu0 0.0
    %4181 = vmatprep.subr.mxu0 0.0
    %4182 = vmatpush1.msra.mxu0 0.0
    %4183 = vmatprep.subr.mxu0 0.0
    %4184 = vmatpush1.msra.mxu0 0.0
    %4185 = vmatprep.subr.mxu0 0.0
    %4186 = vmatpush1.msra.mxu0 0.0
    %4187 = vmatprep.subr.mxu0 0.0
    %4188 = vmatpush1.msra.mxu0 0.0
    %4189 = vmatprep.subr.mxu0 0.0
    %4190 = vmatpush1.msra.mxu0 0.0
    %4191 = vmatprep.subr.mxu0 0.0
    %4192 = vmatpush1.msra.mxu0 0.0
    %4193 = vmatprep.subr.mxu0 0.0
    %4194 = vmatpush1.msra.mxu0 0.0
    %4195 = vmatprep.subr.mxu0 0.0
    %4196 = vmatpush1.msra.mxu0 0.0
    %4197 = vmatprep.subr.mxu0 0.0
    %4198 = vmatpush1.msra.mxu0 0.0
    %4199 = vmatprep.subr.mxu0 0.0
    %4200 = vmatpush1.msra.mxu0 0.0
    %4201 = vmatprep.subr.mxu0 0.0
    %4202 = vmatpush1.msra.mxu0 0.0
    %4203 = vmatprep.subr.mxu0 0.0
    %4204 = vmatpush1.msra.mxu0 0.0
    %4205 = vmatprep.subr.mxu0 0.0
    %4206 = vmatpush1.msra.mxu0 0.0
    %4207 = vmatprep.subr.mxu0 0.0
    %4208 = vmatpush1.msra.mxu0 0.0
    %4209 = vmatprep.subr.mxu0 0.0
    %4210 = vmatpush1.msra.mxu0 0.0
    %4211 = vmatprep.subr.mxu0 0.0
    %4212 = vmatpush1.msra.mxu0 0.0
    %4213 = vmatprep.subr.mxu0 0.0
    %4214 = vmatpush1.msra.mxu0 0.0
    %4215 = vmatprep.mubr.f32.mxu0 0.0
    %4216 = vmatmul.mubr.f32.gmra.mrb[0].mxu0 %v4104
    %v4217 = vpop.f32.mrb[0].mxu0
    %v4218 = vadd.f32 0.0, %v4217
    %v4219 = vpop.f32.mrb[0].mxu0
    %4220 = vmatprep.mubr.f32.mxu0 0.0
    %4221 = vmatmul.mubr.f32.gmra.mrb[0].mxu0 %v4107
    %v4222 = vpop.f32.mrb[0].mxu0
    %v4223 = vadd.f32 0.0, %v4222
    %v4224 = vpop.f32.mrb[0].mxu0
    %4225 = vmatprep.mubr.f32.mxu0 0.0
    %4226 = vmatmul.mubr.f32.gmra.mrb[0].mxu0 %v4110
    %v4227 = vpop.f32.mrb[0].mxu0
    %v4228 = vadd.f32 0.0, %v4227
    %v4229 = vpop.f32.mrb[0].mxu0
    %4230 = vmatprep.mubr.f32.mxu0 0.0
    %4231 = vmatmul.mubr.f32.gmra.mrb[0].mxu0 %v4113
    %v4232 = vpop.f32.mrb[0].mxu0
    %v4233 = vadd.f32 0.0, %v4232
    %v4234 = vpop.f32.mrb[0].mxu0
    %4235 = vmatprep.mubr.f32.mxu0 0.0
    %4236 = vmatmul.mubr.f32.gmra.mrb[0].mxu0 %v4116
    %v4237 = vpop.f32.mrb[0].mxu0
    %v4238 = vadd.f32 0.0, %v4237
    %v4239 = vpop.f32.mrb[0].mxu0
    %4240 = vmatprep.mubr.f32.mxu0 0.0
    %4241 = vmatmul.mubr.f32.gmra.mrb[0].mxu0 %v4119
    %v4242 = vpop.f32.mrb[0].mxu0
    %v4243 = vadd.f32 0.0, %v4242
    %v4244 = vpop.f32.mrb[0].mxu0
    %4245 = vmatprep.mubr.f32.mxu0 0.0
    %4246 = vmatmul.mubr.f32.gmra.mrb[0].mxu0 %v4122
    %v4247 = vpop.f32.mrb[0].mxu0
    %v4248 = vadd.f32 0.0, %v4247
    %v4249 = vpop.f32.mrb[0].mxu0
    %4250 = vmatprep.mubr.f32.mxu0 0.0
    %4251 = vmatmul.mubr.f32.gmra.mrb[0].mxu0 %v4125
    %v4252 = vpop.f32.mrb[0].mxu0
    %v4253 = vadd.f32 0.0, %v4252
    %v4254 = vpop.f32.mrb[0].mxu0
    %4255 = vmatprep.mubr.f32.mxu0 0.0
    %4256 = vmatmul.mubr.f32.gmra.mrb[0].mxu0 %v4128
    %v4257 = vpop.f32.mrb[0].mxu0
    %v4258 = vadd.f32 0.0, %v4257
    %v4259 = vpop.f32.mrb[0].mxu0
    %4260 = vmatprep.mubr.f32.mxu0 0.0
    %4261 = vmatmul.mubr.f32.gmra.mrb[0].mxu0 %v4131
    %v4262 = vpop.f32.mrb[0].mxu0
    %v4263 = vadd.f32 0.0, %v4262
    %v4264 = vpop.f32.mrb[0].mxu0
    %4265 = vmatprep.mubr.f32.mxu0 0.0
    %4266 = vmatmul.mubr.f32.gmra.mrb[0].mxu0 %v4134
    %v4267 = vpop.f32.mrb[0].mxu0
    %v4268 = vadd.f32 0.0, %v4267
    %v4269 = vpop.f32.mrb[0].mxu0
    %4270 = vmatprep.mubr.f32.mxu0 0.0
    %4271 = vmatmul.mubr.f32.gmra.mrb[0].mxu0 %v4137
    %v4272 = vpop.f32.mrb[0].mxu0
    %v4273 = vadd.f32 0.0, %v4272
    %v4274 = vpop.f32.mrb[0].mxu0
    %4275 = vmatprep.mubr.f32.mxu0 0.0
    %4276 = vmatmul.mubr.f32.gmra.mrb[0].mxu0 %v4140
    %v4277 = vpop.f32.mrb[0].mxu0
    %v4278 = vadd.f32 0.0, %v4277
    %v4279 = vpop.f32.mrb[0].mxu0
    %4280 = vmatprep.mubr.f32.mxu0 0.0
    %4281 = vmatmul.mubr.f32.gmra.mrb[0].mxu0 %v4143
    %v4282 = vpop.f32.mrb[0].mxu0
    %v4283 = vadd.f32 0.0, %v4282
    %v4284 = vpop.f32.mrb[0].mxu0
    %4285 = vmatprep.mubr.f32.mxu0 0.0
    %4286 = vmatmul.mubr.f32.gmra.mrb[0].mxu0 %v4146
    %v4287 = vpop.f32.mrb[0].mxu0
    %v4288 = vadd.f32 0.0, %v4287
    %v4289 = vpop.f32.mrb[0].mxu0
    %4290 = vmatprep.mubr.f32.mxu0 0.0
    %4291 = vmatmul.mubr.f32.gmra.mrb[0].mxu0 %v4149
    %v4292 = vpop.f32.mrb[0].mxu0
    %v4293 = vadd.f32 0.0, %v4292
    %v4294 = vpop.f32.mrb[0].mxu0
    %4295 = vdwg.mxu0
    %v4296 = vadd.f32 %v4068, %v4218
    %v4297 = vadd.f32 %v4069, %v4223
    %v4298 = vadd.f32 %v4070, %v4228
    %v4299 = vadd.f32 %v4071, %v4233
    %v4300 = vadd.f32 %v4072, %v4238
    %v4301 = vadd.f32 %v4073, %v4243
    %v4302 = vadd.f32 %v4074, %v4248
    %v4303 = vadd.f32 %v4075, %v4253
    %v4304 = vadd.f32 %v4076, %v4258
    %v4305 = vadd.f32 %v4077, %v4263
    %v4306 = vadd.f32 %v4078, %v4268
    %v4307 = vadd.f32 %v4079, %v4273
    %v4308 = vadd.f32 %v4080, %v4278
    %v4309 = vadd.f32 %v4081, %v4283
    %v4310 = vadd.f32 %v4082, %v4288
    %v4311 = vadd.f32 %v4083, %v4293
    %v4312 = vld [vmem:[%s4] sm:$0x1]
    %v4314 = vlaneseq
    %v4315 = vshrl.u32 %v4314, 7
    %v4316 = vsub.s32 0, %v4315
    %v4317 = vrot.slane %v4312, %v4316
    %v4319 = vadd.f32 %v4296, %v4317
    %v4320 = vadd.f32 %v4297, %v4317
    %v4321 = vadd.f32 %v4298, %v4317
    %v4322 = vadd.f32 %v4299, %v4317
    %v4323 = vadd.f32 %v4300, %v4317
    %v4324 = vadd.f32 %v4301, %v4317
    %v4325 = vadd.f32 %v4302, %v4317
    %v4326 = vadd.f32 %v4303, %v4317
    %v4327 = vadd.f32 %v4304, %v4317
    %v4328 = vadd.f32 %v4305, %v4317
    %v4329 = vadd.f32 %v4306, %v4317
    %v4330 = vadd.f32 %v4307, %v4317
    %v4331 = vadd.f32 %v4308, %v4317
    %v4332 = vadd.f32 %v4309, %v4317
    %v4333 = vadd.f32 %v4310, %v4317
    %v4334 = vadd.f32 %v4311, %v4317
    %v4335 = vmax.f32 %v4319, 0.0
    %v4336 = vmax.f32 %v4320, 0.0
    %v4337 = vmax.f32 %v4321, 0.0
    %v4338 = vmax.f32 %v4322, 0.0
    %v4339 = vmax.f32 %v4323, 0.0
    %v4340 = vmax.f32 %v4324, 0.0
    %v4341 = vmax.f32 %v4325, 0.0
    %v4342 = vmax.f32 %v4326, 0.0
    %v4343 = vmax.f32 %v4327, 0.0
    %v4344 = vmax.f32 %v4328, 0.0
    %v4345 = vmax.f32 %v4329, 0.0
    %v4346 = vmax.f32 %v4330, 0.0
    %v4347 = vmax.f32 %v4331, 0.0
    %v4348 = vmax.f32 %v4332, 0.0
    %v4349 = vmax.f32 %v4333, 0.0
    %v4350 = vmax.f32 %v4334, 0.0
    %4351 = vst.msk [vmem:[%s2275 + $0x8] sm:$0xff] %vm102, %v4335
    %4352 = vst.msk [vmem:[%s2275 + $0x20] sm:$0xff] %vm102, %v4336
    %4353 = vst.msk [vmem:[%s2275 + $0x38] sm:$0xff] %vm102, %v4337
    %4354 = vst.msk [vmem:[%s2275 + $0x50] sm:$0xff] %vm102, %v4338
    %4355 = vst.msk [vmem:[%s2275 + $0x68] sm:$0xff] %vm102, %v4339
    %4356 = vst.msk [vmem:[%s2275 + $0x80] sm:$0xff] %vm102, %v4340
    %4357 = vst.msk [vmem:[%s2275 + $0x98] sm:$0xff] %vm102, %v4341
    %4358 = vst.msk [vmem:[%s2275 + $0xb0] sm:$0xff] %vm102, %v4342
    %4359 = vst.msk [vmem:[%s2275 + $0xf8] sm:$0xff] %vm102, %v4343
    %4360 = vst.msk [vmem:[%s2275 + $0x110] sm:$0xff] %vm102, %v4344
    %4361 = vst.msk [vmem:[%s2275 + $0x128] sm:$0xff] %vm102, %v4345
    %4362 = vst.msk [vmem:[%s2275 + $0x140] sm:$0xff] %vm102, %v4346
    %4363 = vst.msk [vmem:[%s2275 + $0x158] sm:$0xff] %vm102, %v4347
    %4364 = vst.msk [vmem:[%s2275 + $0x170] sm:$0xff] %vm102, %v4348
    %4365 = vst.msk [vmem:[%s2275 + $0x188] sm:$0xff] %vm102, %v4349
    %4366 = vst.msk [vmem:[%s2275 + $0x1a0] sm:$0xff] %vm102, %v4350
    %v4367 = vld [vmem:[#allocation3 + $0x7] sm:$0xff]
    %v4368 = vld [vmem:[#allocation3 + $0x1f] sm:$0xff]
    %v4369 = vld [vmem:[#allocation3 + $0x37] sm:$0xff]
    %v4370 = vld [vmem:[#allocation3 + $0x4f] sm:$0xff]
    %v4371 = vld [vmem:[#allocation3 + $0x67] sm:$0xff]
    %v4372 = vld [vmem:[#allocation3 + $0x7f] sm:$0xff]
    %v4373 = vld [vmem:[#allocation3 + $0x97] sm:$0xff]
    %v4374 = vld [vmem:[#allocation3 + $0xaf] sm:$0xff]
    %v4375 = vld [vmem:[#allocation3 + $0xf7] sm:$0xff]
    %v4376 = vld [vmem:[#allocation3 + $0x10f] sm:$0xff]
    %v4377 = vld [vmem:[#allocation3 + $0x127] sm:$0xff]
    %v4378 = vld [vmem:[#allocation3 + $0x13f] sm:$0xff]
    %v4379 = vld [vmem:[#allocation3 + $0x157] sm:$0xff]
    %v4380 = vld [vmem:[#allocation3 + $0x16f] sm:$0xff]
    %v4381 = vld [vmem:[#allocation3 + $0x187] sm:$0xff]
    %v4382 = vld [vmem:[#allocation3 + $0x19f] sm:$0xff]
    %v4383 = vld [vmem:[#allocation4] sm:$0xff]
    %v4384 = vld [vmem:[#allocation4 + $0x8] sm:$0xff]
    %v4385 = vld [vmem:[#allocation3 + $0x8] sm:$0xff]
    %v4386 = vld [vmem:[#allocation3 + $0x20] sm:$0xff]
    %v4387 = vld [vmem:[#allocation3 + $0x38] sm:$0xff]
    %v4388 = vld [vmem:[#allocation3 + $0x50] sm:$0xff]
    %v4389 = vld [vmem:[#allocation3 + $0x68] sm:$0xff]
    %v4390 = vld [vmem:[#allocation3 + $0x80] sm:$0xff]
    %v4391 = vld [vmem:[#allocation3 + $0x98] sm:$0xff]
    %v4392 = vld [vmem:[#allocation3 + $0xb0] sm:$0xff]
    %v4393 = vld [vmem:[#allocation3 + $0xf8] sm:$0xff]
    %v4394 = vld [vmem:[#allocation3 + $0x110] sm:$0xff]
    %v4395 = vld [vmem:[#allocation3 + $0x128] sm:$0xff]
    %v4396 = vld [vmem:[#allocation3 + $0x140] sm:$0xff]
    %v4397 = vld [vmem:[#allocation3 + $0x158] sm:$0xff]
    %v4398 = vld [vmem:[#allocation3 + $0x170] sm:$0xff]
    %v4399 = vld [vmem:[#allocation3 + $0x188] sm:$0xff]
    %v4400 = vld [vmem:[#allocation3 + $0x1a0] sm:$0xff]
    %s4401 = scalar_lea.vmem [#allocation4], 16
    %v4402 = vld [vmem:[%s4401] sm:$0xff]
    %v4403 = vld [vmem:[%s4401 + $0x8] sm:$0xff]
    %v4405 = vsel %vm102, %v4385, 0
    %v4408 = vsel %vm102, %v4386, 0
    %v4411 = vsel %vm102, %v4387, 0
    %v4414 = vsel %vm102, %v4388, 0
    %v4417 = vsel %vm102, %v4389, 0
    %v4420 = vsel %vm102, %v4390, 0
    %v4423 = vsel %vm102, %v4391, 0
    %v4426 = vsel %vm102, %v4392, 0
    %v4429 = vsel %vm102, %v4393, 0
    %v4432 = vsel %vm102, %v4394, 0
    %v4435 = vsel %vm102, %v4395, 0
    %v4438 = vsel %vm102, %v4396, 0
    %v4441 = vsel %vm102, %v4397, 0
    %v4444 = vsel %vm102, %v4398, 0
    %v4447 = vsel %vm102, %v4399, 0
    %v4450 = vsel %vm102, %v4400, 0
    %4452 = vmatprep.subr.mxu0 0.0
    %4453 = vmatpush1.msra.mxu0 %v4402
    %4454 = vmatprep.subr.mxu0 0.0
    %4455 = vmatpush1.msra.mxu0 %v4403
    %4456 = vmatprep.subr.mxu0 0.0
    %4457 = vmatpush1.msra.mxu0 0.0
    %4458 = vmatprep.subr.mxu0 0.0
    %4459 = vmatpush1.msra.mxu0 0.0
    %4460 = vmatprep.subr.mxu0 0.0
    %4461 = vmatpush1.msra.mxu0 0.0
    %4462 = vmatprep.subr.mxu0 0.0
    %4463 = vmatpush1.msra.mxu0 0.0
    %4464 = vmatprep.subr.mxu0 0.0
    %4465 = vmatpush1.msra.mxu0 0.0
    %4466 = vmatprep.subr.mxu0 0.0
    %4467 = vmatpush1.msra.mxu0 0.0
    %4468 = vmatprep.subr.mxu0 0.0
    %4469 = vmatpush1.msra.mxu0 0.0
    %4470 = vmatprep.subr.mxu0 0.0
    %4471 = vmatpush1.msra.mxu0 0.0
    %4472 = vmatprep.subr.mxu0 0.0
    %4473 = vmatpush1.msra.mxu0 0.0
    %4474 = vmatprep.subr.mxu0 0.0
    %4475 = vmatpush1.msra.mxu0 0.0
    %4476 = vmatprep.subr.mxu0 0.0
    %4477 = vmatpush1.msra.mxu0 0.0
    %4478 = vmatprep.subr.mxu0 0.0
    %4479 = vmatpush1.msra.mxu0 0.0
    %4480 = vmatprep.subr.mxu0 0.0
    %4481 = vmatpush1.msra.mxu0 0.0
    %4482 = vmatprep.subr.mxu0 0.0
    %4483 = vmatpush1.msra.mxu0 0.0
    %4484 = vmatprep.subr.mxu0 0.0
    %4485 = vmatpush1.msra.mxu0 0.0
    %4486 = vmatprep.subr.mxu0 0.0
    %4487 = vmatpush1.msra.mxu0 0.0
    %4488 = vmatprep.subr.mxu0 0.0
    %4489 = vmatpush1.msra.mxu0 0.0
    %4490 = vmatprep.subr.mxu0 0.0
    %4491 = vmatpush1.msra.mxu0 0.0
    %4492 = vmatprep.subr.mxu0 0.0
    %4493 = vmatpush1.msra.mxu0 0.0
    %4494 = vmatprep.subr.mxu0 0.0
    %4495 = vmatpush1.msra.mxu0 0.0
    %4496 = vmatprep.subr.mxu0 0.0
    %4497 = vmatpush1.msra.mxu0 0.0
    %4498 = vmatprep.subr.mxu0 0.0
    %4499 = vmatpush1.msra.mxu0 0.0
    %4500 = vmatprep.subr.mxu0 0.0
    %4501 = vmatpush1.msra.mxu0 0.0
    %4502 = vmatprep.subr.mxu0 0.0
    %4503 = vmatpush1.msra.mxu0 0.0
    %4504 = vmatprep.subr.mxu0 0.0
    %4505 = vmatpush1.msra.mxu0 0.0
    %4506 = vmatprep.subr.mxu0 0.0
    %4507 = vmatpush1.msra.mxu0 0.0
    %4508 = vmatprep.subr.mxu0 0.0
    %4509 = vmatpush1.msra.mxu0 0.0
    %4510 = vmatprep.subr.mxu0 0.0
    %4511 = vmatpush1.msra.mxu0 0.0
    %4512 = vmatprep.subr.mxu0 0.0
    %4513 = vmatpush1.msra.mxu0 0.0
    %4514 = vmatprep.subr.mxu0 0.0
    %4515 = vmatpush1.msra.mxu0 0.0
    %4516 = vmatprep.mubr.f32.mxu0 0.0
    %4517 = vmatmul.mubr.f32.gmra.mrb[0].mxu0 %v4405
    %v4518 = vpop.f32.mrb[0].mxu0
    %v4519 = vadd.f32 0.0, %v4518
    %v4520 = vpop.f32.mrb[0].mxu0
    %4521 = vmatprep.mubr.f32.mxu0 0.0
    %4522 = vmatmul.mubr.f32.gmra.mrb[0].mxu0 %v4408
    %v4523 = vpop.f32.mrb[0].mxu0
    %v4524 = vadd.f32 0.0, %v4523
    %v4525 = vpop.f32.mrb[0].mxu0
    %4526 = vmatprep.mubr.f32.mxu0 0.0
    %4527 = vmatmul.mubr.f32.gmra.mrb[0].mxu0 %v4411
    %v4528 = vpop.f32.mrb[0].mxu0
    %v4529 = vadd.f32 0.0, %v4528
    %v4530 = vpop.f32.mrb[0].mxu0
    %4531 = vmatprep.mubr.f32.mxu0 0.0
    %4532 = vmatmul.mubr.f32.gmra.mrb[0].mxu0 %v4414
    %v4533 = vpop.f32.mrb[0].mxu0
    %v4534 = vadd.f32 0.0, %v4533
    %v4535 = vpop.f32.mrb[0].mxu0
    %4536 = vmatprep.mubr.f32.mxu0 0.0
    %4537 = vmatmul.mubr.f32.gmra.mrb[0].mxu0 %v4417
    %v4538 = vpop.f32.mrb[0].mxu0
    %v4539 = vadd.f32 0.0, %v4538
    %v4540 = vpop.f32.mrb[0].mxu0
    %4541 = vmatprep.mubr.f32.mxu0 0.0
    %4542 = vmatmul.mubr.f32.gmra.mrb[0].mxu0 %v4420
    %v4543 = vpop.f32.mrb[0].mxu0
    %v4544 = vadd.f32 0.0, %v4543
    %v4545 = vpop.f32.mrb[0].mxu0
    %4546 = vmatprep.mubr.f32.mxu0 0.0
    %4547 = vmatmul.mubr.f32.gmra.mrb[0].mxu0 %v4423
    %v4548 = vpop.f32.mrb[0].mxu0
    %v4549 = vadd.f32 0.0, %v4548
    %v4550 = vpop.f32.mrb[0].mxu0
    %4551 = vmatprep.mubr.f32.mxu0 0.0
    %4552 = vmatmul.mubr.f32.gmra.mrb[0].mxu0 %v4426
    %v4553 = vpop.f32.mrb[0].mxu0
    %v4554 = vadd.f32 0.0, %v4553
    %v4555 = vpop.f32.mrb[0].mxu0
    %4556 = vmatprep.mubr.f32.mxu0 0.0
    %4557 = vmatmul.mubr.f32.gmra.mrb[0].mxu0 %v4429
    %v4558 = vpop.f32.mrb[0].mxu0
    %v4559 = vadd.f32 0.0, %v4558
    %v4560 = vpop.f32.mrb[0].mxu0
    %4561 = vmatprep.mubr.f32.mxu0 0.0
    %4562 = vmatmul.mubr.f32.gmra.mrb[0].mxu0 %v4432
    %v4563 = vpop.f32.mrb[0].mxu0
    %v4564 = vadd.f32 0.0, %v4563
    %v4565 = vpop.f32.mrb[0].mxu0
    %4566 = vmatprep.mubr.f32.mxu0 0.0
    %4567 = vmatmul.mubr.f32.gmra.mrb[0].mxu0 %v4435
    %v4568 = vpop.f32.mrb[0].mxu0
    %v4569 = vadd.f32 0.0, %v4568
    %v4570 = vpop.f32.mrb[0].mxu0
    %4571 = vmatprep.mubr.f32.mxu0 0.0
    %4572 = vmatmul.mubr.f32.gmra.mrb[0].mxu0 %v4438
    %v4573 = vpop.f32.mrb[0].mxu0
    %v4574 = vadd.f32 0.0, %v4573
    %v4575 = vpop.f32.mrb[0].mxu0
    %4576 = vmatprep.mubr.f32.mxu0 0.0
    %4577 = vmatmul.mubr.f32.gmra.mrb[0].mxu0 %v4441
    %v4578 = vpop.f32.mrb[0].mxu0
    %v4579 = vadd.f32 0.0, %v4578
    %v4580 = vpop.f32.mrb[0].mxu0
    %4581 = vmatprep.mubr.f32.mxu0 0.0
    %4582 = vmatmul.mubr.f32.gmra.mrb[0].mxu0 %v4444
    %v4583 = vpop.f32.mrb[0].mxu0
    %v4584 = vadd.f32 0.0, %v4583
    %v4585 = vpop.f32.mrb[0].mxu0
    %4586 = vmatprep.mubr.f32.mxu0 0.0
    %4587 = vmatmul.mubr.f32.gmra.mrb[0].mxu0 %v4447
    %v4588 = vpop.f32.mrb[0].mxu0
    %v4589 = vadd.f32 0.0, %v4588
    %v4590 = vpop.f32.mrb[0].mxu0
    %4591 = vmatprep.mubr.f32.mxu0 0.0
    %4592 = vmatmul.mubr.f32.gmra.mrb[0].mxu0 %v4450
    %v4593 = vpop.f32.mrb[0].mxu0
    %v4594 = vadd.f32 0.0, %v4593
    %v4595 = vpop.f32.mrb[0].mxu0
    %4596 = vdwg.mxu0
    %v4598 = vsel %vm102, %v4367, 0
    %v4601 = vsel %vm102, %v4368, 0
    %v4604 = vsel %vm102, %v4369, 0
    %v4607 = vsel %vm102, %v4370, 0
    %v4610 = vsel %vm102, %v4371, 0
    %v4613 = vsel %vm102, %v4372, 0
    %v4616 = vsel %vm102, %v4373, 0
    %v4619 = vsel %vm102, %v4374, 0
    %v4622 = vsel %vm102, %v4375, 0
    %v4625 = vsel %vm102, %v4376, 0
    %v4628 = vsel %vm102, %v4377, 0
    %v4631 = vsel %vm102, %v4378, 0
    %v4634 = vsel %vm102, %v4379, 0
    %v4637 = vsel %vm102, %v4380, 0
    %v4640 = vsel %vm102, %v4381, 0
    %v4643 = vsel %vm102, %v4382, 0
    %4645 = vmatprep.subr.mxu0 0.0
    %4646 = vmatpush1.msra.mxu0 %v4383
    %4647 = vmatprep.subr.mxu0 0.0
    %4648 = vmatpush1.msra.mxu0 %v4384
    %4649 = vmatprep.subr.mxu0 0.0
    %4650 = vmatpush1.msra.mxu0 0.0
    %4651 = vmatprep.subr.mxu0 0.0
    %4652 = vmatpush1.msra.mxu0 0.0
    %4653 = vmatprep.subr.mxu0 0.0
    %4654 = vmatpush1.msra.mxu0 0.0
    %4655 = vmatprep.subr.mxu0 0.0
    %4656 = vmatpush1.msra.mxu0 0.0
    %4657 = vmatprep.subr.mxu0 0.0
    %4658 = vmatpush1.msra.mxu0 0.0
    %4659 = vmatprep.subr.mxu0 0.0
    %4660 = vmatpush1.msra.mxu0 0.0
    %4661 = vmatprep.subr.mxu0 0.0
    %4662 = vmatpush1.msra.mxu0 0.0
    %4663 = vmatprep.subr.mxu0 0.0
    %4664 = vmatpush1.msra.mxu0 0.0
    %4665 = vmatprep.subr.mxu0 0.0
    %4666 = vmatpush1.msra.mxu0 0.0
    %4667 = vmatprep.subr.mxu0 0.0
    %4668 = vmatpush1.msra.mxu0 0.0
    %4669 = vmatprep.subr.mxu0 0.0
    %4670 = vmatpush1.msra.mxu0 0.0
    %4671 = vmatprep.subr.mxu0 0.0
    %4672 = vmatpush1.msra.mxu0 0.0
    %4673 = vmatprep.subr.mxu0 0.0
    %4674 = vmatpush1.msra.mxu0 0.0
    %4675 = vmatprep.subr.mxu0 0.0
    %4676 = vmatpush1.msra.mxu0 0.0
    %4677 = vmatprep.subr.mxu0 0.0
    %4678 = vmatpush1.msra.mxu0 0.0
    %4679 = vmatprep.subr.mxu0 0.0
    %4680 = vmatpush1.msra.mxu0 0.0
    %4681 = vmatprep.subr.mxu0 0.0
    %4682 = vmatpush1.msra.mxu0 0.0
    %4683 = vmatprep.subr.mxu0 0.0
    %4684 = vmatpush1.msra.mxu0 0.0
    %4685 = vmatprep.subr.mxu0 0.0
    %4686 = vmatpush1.msra.mxu0 0.0
    %4687 = vmatprep.subr.mxu0 0.0
    %4688 = vmatpush1.msra.mxu0 0.0
    %4689 = vmatprep.subr.mxu0 0.0
    %4690 = vmatpush1.msra.mxu0 0.0
    %4691 = vmatprep.subr.mxu0 0.0
    %4692 = vmatpush1.msra.mxu0 0.0
    %4693 = vmatprep.subr.mxu0 0.0
    %4694 = vmatpush1.msra.mxu0 0.0
    %4695 = vmatprep.subr.mxu0 0.0
    %4696 = vmatpush1.msra.mxu0 0.0
    %4697 = vmatprep.subr.mxu0 0.0
    %4698 = vmatpush1.msra.mxu0 0.0
    %4699 = vmatprep.subr.mxu0 0.0
    %4700 = vmatpush1.msra.mxu0 0.0
    %4701 = vmatprep.subr.mxu0 0.0
    %4702 = vmatpush1.msra.mxu0 0.0
    %4703 = vmatprep.subr.mxu0 0.0
    %4704 = vmatpush1.msra.mxu0 0.0
    %4705 = vmatprep.subr.mxu0 0.0
    %4706 = vmatpush1.msra.mxu0 0.0
    %4707 = vmatprep.subr.mxu0 0.0
    %4708 = vmatpush1.msra.mxu0 0.0
    %4709 = vmatprep.mubr.f32.mxu0 0.0
    %4710 = vmatmul.mubr.f32.gmra.mrb[0].mxu0 %v4598
    %v4711 = vpop.f32.mrb[0].mxu0
    %v4712 = vadd.f32 %v4519, %v4711
    %v4713 = vpop.f32.mrb[0].mxu0
    %4714 = vmatprep.mubr.f32.mxu0 0.0
    %4715 = vmatmul.mubr.f32.gmra.mrb[0].mxu0 %v4601
    %v4716 = vpop.f32.mrb[0].mxu0
    %v4717 = vadd.f32 %v4524, %v4716
    %v4718 = vpop.f32.mrb[0].mxu0
    %4719 = vmatprep.mubr.f32.mxu0 0.0
    %4720 = vmatmul.mubr.f32.gmra.mrb[0].mxu0 %v4604
    %v4721 = vpop.f32.mrb[0].mxu0
    %v4722 = vadd.f32 %v4529, %v4721
    %v4723 = vpop.f32.mrb[0].mxu0
    %4724 = vmatprep.mubr.f32.mxu0 0.0
    %4725 = vmatmul.mubr.f32.gmra.mrb[0].mxu0 %v4607
    %v4726 = vpop.f32.mrb[0].mxu0
    %v4727 = vadd.f32 %v4534, %v4726
    %v4728 = vpop.f32.mrb[0].mxu0
    %4729 = vmatprep.mubr.f32.mxu0 0.0
    %4730 = vmatmul.mubr.f32.gmra.mrb[0].mxu0 %v4610
    %v4731 = vpop.f32.mrb[0].mxu0
    %v4732 = vadd.f32 %v4539, %v4731
    %v4733 = vpop.f32.mrb[0].mxu0
    %4734 = vmatprep.mubr.f32.mxu0 0.0
    %4735 = vmatmul.mubr.f32.gmra.mrb[0].mxu0 %v4613
    %v4736 = vpop.f32.mrb[0].mxu0
    %v4737 = vadd.f32 %v4544, %v4736
    %v4738 = vpop.f32.mrb[0].mxu0
    %4739 = vmatprep.mubr.f32.mxu0 0.0
    %4740 = vmatmul.mubr.f32.gmra.mrb[0].mxu0 %v4616
    %v4741 = vpop.f32.mrb[0].mxu0
    %v4742 = vadd.f32 %v4549, %v4741
    %v4743 = vpop.f32.mrb[0].mxu0
    %4744 = vmatprep.mubr.f32.mxu0 0.0
    %4745 = vmatmul.mubr.f32.gmra.mrb[0].mxu0 %v4619
    %v4746 = vpop.f32.mrb[0].mxu0
    %v4747 = vadd.f32 %v4554, %v4746
    %v4748 = vpop.f32.mrb[0].mxu0
    %4749 = vmatprep.mubr.f32.mxu0 0.0
    %4750 = vmatmul.mubr.f32.gmra.mrb[0].mxu0 %v4622
    %v4751 = vpop.f32.mrb[0].mxu0
    %v4752 = vadd.f32 %v4559, %v4751
    %v4753 = vpop.f32.mrb[0].mxu0
    %4754 = vmatprep.mubr.f32.mxu0 0.0
    %4755 = vmatmul.mubr.f32.gmra.mrb[0].mxu0 %v4625
    %v4756 = vpop.f32.mrb[0].mxu0
    %v4757 = vadd.f32 %v4564, %v4756
    %v4758 = vpop.f32.mrb[0].mxu0
    %4759 = vmatprep.mubr.f32.mxu0 0.0
    %4760 = vmatmul.mubr.f32.gmra.mrb[0].mxu0 %v4628
    %v4761 = vpop.f32.mrb[0].mxu0
    %v4762 = vadd.f32 %v4569, %v4761
    %v4763 = vpop.f32.mrb[0].mxu0
    %4764 = vmatprep.mubr.f32.mxu0 0.0
    %4765 = vmatmul.mubr.f32.gmra.mrb[0].mxu0 %v4631
    %v4766 = vpop.f32.mrb[0].mxu0
    %v4767 = vadd.f32 %v4574, %v4766
    %v4768 = vpop.f32.mrb[0].mxu0
    %4769 = vmatprep.mubr.f32.mxu0 0.0
    %4770 = vmatmul.mubr.f32.gmra.mrb[0].mxu0 %v4634
    %v4771 = vpop.f32.mrb[0].mxu0
    %v4772 = vadd.f32 %v4579, %v4771
    %v4773 = vpop.f32.mrb[0].mxu0
    %4774 = vmatprep.mubr.f32.mxu0 0.0
    %4775 = vmatmul.mubr.f32.gmra.mrb[0].mxu0 %v4637
    %v4776 = vpop.f32.mrb[0].mxu0
    %v4777 = vadd.f32 %v4584, %v4776
    %v4778 = vpop.f32.mrb[0].mxu0
    %4779 = vmatprep.mubr.f32.mxu0 0.0
    %4780 = vmatmul.mubr.f32.gmra.mrb[0].mxu0 %v4640
    %v4781 = vpop.f32.mrb[0].mxu0
    %v4782 = vadd.f32 %v4589, %v4781
    %v4783 = vpop.f32.mrb[0].mxu0
    %4784 = vmatprep.mubr.f32.mxu0 0.0
    %4785 = vmatmul.mubr.f32.gmra.mrb[0].mxu0 %v4643
    %v4786 = vpop.f32.mrb[0].mxu0
    %v4787 = vadd.f32 %v4594, %v4786
    %v4788 = vpop.f32.mrb[0].mxu0
    %4789 = vdwg.mxu0
    %v4790 = vld [vmem:[#allocation3 + $0x9] sm:$0xff]
    %v4791 = vld [vmem:[#allocation3 + $0x21] sm:$0xff]
    %v4792 = vld [vmem:[#allocation3 + $0x39] sm:$0xff]
    %v4793 = vld [vmem:[#allocation3 + $0x51] sm:$0xff]
    %v4794 = vld [vmem:[#allocation3 + $0x69] sm:$0xff]
    %v4795 = vld [vmem:[#allocation3 + $0x81] sm:$0xff]
    %v4796 = vld [vmem:[#allocation3 + $0x99] sm:$0xff]
    %v4797 = vld [vmem:[#allocation3 + $0xb1] sm:$0xff]
    %v4798 = vld [vmem:[#allocation3 + $0xf9] sm:$0xff]
    %v4799 = vld [vmem:[#allocation3 + $0x111] sm:$0xff]
    %v4800 = vld [vmem:[#allocation3 + $0x129] sm:$0xff]
    %v4801 = vld [vmem:[#allocation3 + $0x141] sm:$0xff]
    %v4802 = vld [vmem:[#allocation3 + $0x159] sm:$0xff]
    %v4803 = vld [vmem:[#allocation3 + $0x171] sm:$0xff]
    %v4804 = vld [vmem:[#allocation3 + $0x189] sm:$0xff]
    %v4805 = vld [vmem:[#allocation3 + $0x1a1] sm:$0xff]
    %s4806 = scalar_lea.vmem [#allocation4], 32
    %v4807 = vld [vmem:[%s4806] sm:$0xff]
    %v4808 = vld [vmem:[%s4806 + $0x8] sm:$0xff]
    %v4810 = vsel %vm102, %v4790, 0
    %v4813 = vsel %vm102, %v4791, 0
    %v4816 = vsel %vm102, %v4792, 0
    %v4819 = vsel %vm102, %v4793, 0
    %v4822 = vsel %vm102, %v4794, 0
    %v4825 = vsel %vm102, %v4795, 0
    %v4828 = vsel %vm102, %v4796, 0
    %v4831 = vsel %vm102, %v4797, 0
    %v4834 = vsel %vm102, %v4798, 0
    %v4837 = vsel %vm102, %v4799, 0
    %v4840 = vsel %vm102, %v4800, 0
    %v4843 = vsel %vm102, %v4801, 0
    %v4846 = vsel %vm102, %v4802, 0
    %v4849 = vsel %vm102, %v4803, 0
    %v4852 = vsel %vm102, %v4804, 0
    %v4855 = vsel %vm102, %v4805, 0
    %4857 = vmatprep.subr.mxu0 0.0
    %4858 = vmatpush1.msra.mxu0 %v4807
    %4859 = vmatprep.subr.mxu0 0.0
    %4860 = vmatpush1.msra.mxu0 %v4808
    %4861 = vmatprep.subr.mxu0 0.0
    %4862 = vmatpush1.msra.mxu0 0.0
    %4863 = vmatprep.subr.mxu0 0.0
    %4864 = vmatpush1.msra.mxu0 0.0
    %4865 = vmatprep.subr.mxu0 0.0
    %4866 = vmatpush1.msra.mxu0 0.0
    %4867 = vmatprep.subr.mxu0 0.0
    %4868 = vmatpush1.msra.mxu0 0.0
    %4869 = vmatprep.subr.mxu0 0.0
    %4870 = vmatpush1.msra.mxu0 0.0
    %4871 = vmatprep.subr.mxu0 0.0
    %4872 = vmatpush1.msra.mxu0 0.0
    %4873 = vmatprep.subr.mxu0 0.0
    %4874 = vmatpush1.msra.mxu0 0.0
    %4875 = vmatprep.subr.mxu0 0.0
    %4876 = vmatpush1.msra.mxu0 0.0
    %4877 = vmatprep.subr.mxu0 0.0
    %4878 = vmatpush1.msra.mxu0 0.0
    %4879 = vmatprep.subr.mxu0 0.0
    %4880 = vmatpush1.msra.mxu0 0.0
    %4881 = vmatprep.subr.mxu0 0.0
    %4882 = vmatpush1.msra.mxu0 0.0
    %4883 = vmatprep.subr.mxu0 0.0
    %4884 = vmatpush1.msra.mxu0 0.0
    %4885 = vmatprep.subr.mxu0 0.0
    %4886 = vmatpush1.msra.mxu0 0.0
    %4887 = vmatprep.subr.mxu0 0.0
    %4888 = vmatpush1.msra.mxu0 0.0
    %4889 = vmatprep.subr.mxu0 0.0
    %4890 = vmatpush1.msra.mxu0 0.0
    %4891 = vmatprep.subr.mxu0 0.0
    %4892 = vmatpush1.msra.mxu0 0.0
    %4893 = vmatprep.subr.mxu0 0.0
    %4894 = vmatpush1.msra.mxu0 0.0
    %4895 = vmatprep.subr.mxu0 0.0
    %4896 = vmatpush1.msra.mxu0 0.0
    %4897 = vmatprep.subr.mxu0 0.0
    %4898 = vmatpush1.msra.mxu0 0.0
    %4899 = vmatprep.subr.mxu0 0.0
    %4900 = vmatpush1.msra.mxu0 0.0
    %4901 = vmatprep.subr.mxu0 0.0
    %4902 = vmatpush1.msra.mxu0 0.0
    %4903 = vmatprep.subr.mxu0 0.0
    %4904 = vmatpush1.msra.mxu0 0.0
    %4905 = vmatprep.subr.mxu0 0.0
    %4906 = vmatpush1.msra.mxu0 0.0
    %4907 = vmatprep.subr.mxu0 0.0
    %4908 = vmatpush1.msra.mxu0 0.0
    %4909 = vmatprep.subr.mxu0 0.0
    %4910 = vmatpush1.msra.mxu0 0.0
    %4911 = vmatprep.subr.mxu0 0.0
    %4912 = vmatpush1.msra.mxu0 0.0
    %4913 = vmatprep.subr.mxu0 0.0
    %4914 = vmatpush1.msra.mxu0 0.0
    %4915 = vmatprep.subr.mxu0 0.0
    %4916 = vmatpush1.msra.mxu0 0.0
    %4917 = vmatprep.subr.mxu0 0.0
    %4918 = vmatpush1.msra.mxu0 0.0
    %4919 = vmatprep.subr.mxu0 0.0
    %4920 = vmatpush1.msra.mxu0 0.0
    %4921 = vmatprep.mubr.f32.mxu0 0.0
    %4922 = vmatmul.mubr.f32.gmra.mrb[0].mxu0 %v4810
    %v4923 = vpop.f32.mrb[0].mxu0
    %v4924 = vadd.f32 0.0, %v4923
    %v4925 = vpop.f32.mrb[0].mxu0
    %4926 = vmatprep.mubr.f32.mxu0 0.0
    %4927 = vmatmul.mubr.f32.gmra.mrb[0].mxu0 %v4813
    %v4928 = vpop.f32.mrb[0].mxu0
    %v4929 = vadd.f32 0.0, %v4928
    %v4930 = vpop.f32.mrb[0].mxu0
    %4931 = vmatprep.mubr.f32.mxu0 0.0
    %4932 = vmatmul.mubr.f32.gmra.mrb[0].mxu0 %v4816
    %v4933 = vpop.f32.mrb[0].mxu0
    %v4934 = vadd.f32 0.0, %v4933
    %v4935 = vpop.f32.mrb[0].mxu0
    %4936 = vmatprep.mubr.f32.mxu0 0.0
    %4937 = vmatmul.mubr.f32.gmra.mrb[0].mxu0 %v4819
    %v4938 = vpop.f32.mrb[0].mxu0
    %v4939 = vadd.f32 0.0, %v4938
    %v4940 = vpop.f32.mrb[0].mxu0
    %4941 = vmatprep.mubr.f32.mxu0 0.0
    %4942 = vmatmul.mubr.f32.gmra.mrb[0].mxu0 %v4822
    %v4943 = vpop.f32.mrb[0].mxu0
    %v4944 = vadd.f32 0.0, %v4943
    %v4945 = vpop.f32.mrb[0].mxu0
    %4946 = vmatprep.mubr.f32.mxu0 0.0
    %4947 = vmatmul.mubr.f32.gmra.mrb[0].mxu0 %v4825
    %v4948 = vpop.f32.mrb[0].mxu0
    %v4949 = vadd.f32 0.0, %v4948
    %v4950 = vpop.f32.mrb[0].mxu0
    %4951 = vmatprep.mubr.f32.mxu0 0.0
    %4952 = vmatmul.mubr.f32.gmra.mrb[0].mxu0 %v4828
    %v4953 = vpop.f32.mrb[0].mxu0
    %v4954 = vadd.f32 0.0, %v4953
    %v4955 = vpop.f32.mrb[0].mxu0
    %4956 = vmatprep.mubr.f32.mxu0 0.0
    %4957 = vmatmul.mubr.f32.gmra.mrb[0].mxu0 %v4831
    %v4958 = vpop.f32.mrb[0].mxu0
    %v4959 = vadd.f32 0.0, %v4958
    %v4960 = vpop.f32.mrb[0].mxu0
    %4961 = vmatprep.mubr.f32.mxu0 0.0
    %4962 = vmatmul.mubr.f32.gmra.mrb[0].mxu0 %v4834
    %v4963 = vpop.f32.mrb[0].mxu0
    %v4964 = vadd.f32 0.0, %v4963
    %v4965 = vpop.f32.mrb[0].mxu0
    %4966 = vmatprep.mubr.f32.mxu0 0.0
    %4967 = vmatmul.mubr.f32.gmra.mrb[0].mxu0 %v4837
    %v4968 = vpop.f32.mrb[0].mxu0
    %v4969 = vadd.f32 0.0, %v4968
    %v4970 = vpop.f32.mrb[0].mxu0
    %4971 = vmatprep.mubr.f32.mxu0 0.0
    %4972 = vmatmul.mubr.f32.gmra.mrb[0].mxu0 %v4840
    %v4973 = vpop.f32.mrb[0].mxu0
    %v4974 = vadd.f32 0.0, %v4973
    %v4975 = vpop.f32.mrb[0].mxu0
    %4976 = vmatprep.mubr.f32.mxu0 0.0
    %4977 = vmatmul.mubr.f32.gmra.mrb[0].mxu0 %v4843
    %v4978 = vpop.f32.mrb[0].mxu0
    %v4979 = vadd.f32 0.0, %v4978
    %v4980 = vpop.f32.mrb[0].mxu0
    %4981 = vmatprep.mubr.f32.mxu0 0.0
    %4982 = vmatmul.mubr.f32.gmra.mrb[0].mxu0 %v4846
    %v4983 = vpop.f32.mrb[0].mxu0
    %v4984 = vadd.f32 0.0, %v4983
    %v4985 = vpop.f32.mrb[0].mxu0
    %4986 = vmatprep.mubr.f32.mxu0 0.0
    %4987 = vmatmul.mubr.f32.gmra.mrb[0].mxu0 %v4849
    %v4988 = vpop.f32.mrb[0].mxu0
    %v4989 = vadd.f32 0.0, %v4988
    %v4990 = vpop.f32.mrb[0].mxu0
    %4991 = vmatprep.mubr.f32.mxu0 0.0
    %4992 = vmatmul.mubr.f32.gmra.mrb[0].mxu0 %v4852
    %v4993 = vpop.f32.mrb[0].mxu0
    %v4994 = vadd.f32 0.0, %v4993
    %v4995 = vpop.f32.mrb[0].mxu0
    %4996 = vmatprep.mubr.f32.mxu0 0.0
    %4997 = vmatmul.mubr.f32.gmra.mrb[0].mxu0 %v4855
    %v4998 = vpop.f32.mrb[0].mxu0
    %v4999 = vadd.f32 0.0, %v4998
    %v5000 = vpop.f32.mrb[0].mxu0
    %5001 = vdwg.mxu0
    %v5002 = vadd.f32 %v4712, %v4924
    %v5003 = vadd.f32 %v4717, %v4929
    %v5004 = vadd.f32 %v4722, %v4934
    %v5005 = vadd.f32 %v4727, %v4939
    %v5006 = vadd.f32 %v4732, %v4944
    %v5007 = vadd.f32 %v4737, %v4949
    %v5008 = vadd.f32 %v4742, %v4954
    %v5009 = vadd.f32 %v4747, %v4959
    %v5010 = vadd.f32 %v4752, %v4964
    %v5011 = vadd.f32 %v4757, %v4969
    %v5012 = vadd.f32 %v4762, %v4974
    %v5013 = vadd.f32 %v4767, %v4979
    %v5014 = vadd.f32 %v4772, %v4984
    %v5015 = vadd.f32 %v4777, %v4989
    %v5016 = vadd.f32 %v4782, %v4994
    %v5017 = vadd.f32 %v4787, %v4999
    %v5018 = vld [vmem:[%s2275 + $0x7] sm:$0xff]
    %v5019 = vld [vmem:[%s2275 + $0x1f] sm:$0xff]
    %v5020 = vld [vmem:[%s2275 + $0x37] sm:$0xff]
    %v5021 = vld [vmem:[%s2275 + $0x4f] sm:$0xff]
    %v5022 = vld [vmem:[%s2275 + $0x67] sm:$0xff]
    %v5023 = vld [vmem:[%s2275 + $0x7f] sm:$0xff]
    %v5024 = vld [vmem:[%s2275 + $0x97] sm:$0xff]
    %v5025 = vld [vmem:[%s2275 + $0xaf] sm:$0xff]
    %v5026 = vld [vmem:[%s2275 + $0xf7] sm:$0xff]
    %v5027 = vld [vmem:[%s2275 + $0x10f] sm:$0xff]
    %v5028 = vld [vmem:[%s2275 + $0x127] sm:$0xff]
    %v5029 = vld [vmem:[%s2275 + $0x13f] sm:$0xff]
    %v5030 = vld [vmem:[%s2275 + $0x157] sm:$0xff]
    %v5031 = vld [vmem:[%s2275 + $0x16f] sm:$0xff]
    %v5032 = vld [vmem:[%s2275 + $0x187] sm:$0xff]
    %v5033 = vld [vmem:[%s2275 + $0x19f] sm:$0xff]
    %s5034 = scalar_lea.vmem [#allocation4], 48
    %v5035 = vld [vmem:[%s5034] sm:$0xff]
    %v5036 = vld [vmem:[%s5034 + $0x8] sm:$0xff]
    %v5038 = vsel %vm102, %v5018, 0
    %v5041 = vsel %vm102, %v5019, 0
    %v5044 = vsel %vm102, %v5020, 0
    %v5047 = vsel %vm102, %v5021, 0
    %v5050 = vsel %vm102, %v5022, 0
    %v5053 = vsel %vm102, %v5023, 0
    %v5056 = vsel %vm102, %v5024, 0
    %v5059 = vsel %vm102, %v5025, 0
    %v5062 = vsel %vm102, %v5026, 0
    %v5065 = vsel %vm102, %v5027, 0
    %v5068 = vsel %vm102, %v5028, 0
    %v5071 = vsel %vm102, %v5029, 0
    %v5074 = vsel %vm102, %v5030, 0
    %v5077 = vsel %vm102, %v5031, 0
    %v5080 = vsel %vm102, %v5032, 0
    %v5083 = vsel %vm102, %v5033, 0
    %5085 = vmatprep.subr.mxu0 0.0
    %5086 = vmatpush1.msra.mxu0 %v5035
    %5087 = vmatprep.subr.mxu0 0.0
    %5088 = vmatpush1.msra.mxu0 %v5036
    %5089 = vmatprep.subr.mxu0 0.0
    %5090 = vmatpush1.msra.mxu0 0.0
    %5091 = vmatprep.subr.mxu0 0.0
    %5092 = vmatpush1.msra.mxu0 0.0
    %5093 = vmatprep.subr.mxu0 0.0
    %5094 = vmatpush1.msra.mxu0 0.0
    %5095 = vmatprep.subr.mxu0 0.0
    %5096 = vmatpush1.msra.mxu0 0.0
    %5097 = vmatprep.subr.mxu0 0.0
    %5098 = vmatpush1.msra.mxu0 0.0
    %5099 = vmatprep.subr.mxu0 0.0
    %5100 = vmatpush1.msra.mxu0 0.0
    %5101 = vmatprep.subr.mxu0 0.0
    %5102 = vmatpush1.msra.mxu0 0.0
    %5103 = vmatprep.subr.mxu0 0.0
    %5104 = vmatpush1.msra.mxu0 0.0
    %5105 = vmatprep.subr.mxu0 0.0
    %5106 = vmatpush1.msra.mxu0 0.0
    %5107 = vmatprep.subr.mxu0 0.0
    %5108 = vmatpush1.msra.mxu0 0.0
    %5109 = vmatprep.subr.mxu0 0.0
    %5110 = vmatpush1.msra.mxu0 0.0
    %5111 = vmatprep.subr.mxu0 0.0
    %5112 = vmatpush1.msra.mxu0 0.0
    %5113 = vmatprep.subr.mxu0 0.0
    %5114 = vmatpush1.msra.mxu0 0.0
    %5115 = vmatprep.subr.mxu0 0.0
    %5116 = vmatpush1.msra.mxu0 0.0
    %5117 = vmatprep.subr.mxu0 0.0
    %5118 = vmatpush1.msra.mxu0 0.0
    %5119 = vmatprep.subr.mxu0 0.0
    %5120 = vmatpush1.msra.mxu0 0.0
    %5121 = vmatprep.subr.mxu0 0.0
    %5122 = vmatpush1.msra.mxu0 0.0
    %5123 = vmatprep.subr.mxu0 0.0
    %5124 = vmatpush1.msra.mxu0 0.0
    %5125 = vmatprep.subr.mxu0 0.0
    %5126 = vmatpush1.msra.mxu0 0.0
    %5127 = vmatprep.subr.mxu0 0.0
    %5128 = vmatpush1.msra.mxu0 0.0
    %5129 = vmatprep.subr.mxu0 0.0
    %5130 = vmatpush1.msra.mxu0 0.0
    %5131 = vmatprep.subr.mxu0 0.0
    %5132 = vmatpush1.msra.mxu0 0.0
    %5133 = vmatprep.subr.mxu0 0.0
    %5134 = vmatpush1.msra.mxu0 0.0
    %5135 = vmatprep.subr.mxu0 0.0
    %5136 = vmatpush1.msra.mxu0 0.0
    %5137 = vmatprep.subr.mxu0 0.0
    %5138 = vmatpush1.msra.mxu0 0.0
    %5139 = vmatprep.subr.mxu0 0.0
    %5140 = vmatpush1.msra.mxu0 0.0
    %5141 = vmatprep.subr.mxu0 0.0
    %5142 = vmatpush1.msra.mxu0 0.0
    %5143 = vmatprep.subr.mxu0 0.0
    %5144 = vmatpush1.msra.mxu0 0.0
    %5145 = vmatprep.subr.mxu0 0.0
    %5146 = vmatpush1.msra.mxu0 0.0
    %5147 = vmatprep.subr.mxu0 0.0
    %5148 = vmatpush1.msra.mxu0 0.0
    %5149 = vmatprep.mubr.f32.mxu0 0.0
    %5150 = vmatmul.mubr.f32.gmra.mrb[0].mxu0 %v5038
    %v5151 = vpop.f32.mrb[0].mxu0
    %v5152 = vadd.f32 0.0, %v5151
    %v5153 = vpop.f32.mrb[0].mxu0
    %5154 = vmatprep.mubr.f32.mxu0 0.0
    %5155 = vmatmul.mubr.f32.gmra.mrb[0].mxu0 %v5041
    %v5156 = vpop.f32.mrb[0].mxu0
    %v5157 = vadd.f32 0.0, %v5156
    %v5158 = vpop.f32.mrb[0].mxu0
    %5159 = vmatprep.mubr.f32.mxu0 0.0
    %5160 = vmatmul.mubr.f32.gmra.mrb[0].mxu0 %v5044
    %v5161 = vpop.f32.mrb[0].mxu0
    %v5162 = vadd.f32 0.0, %v5161
    %v5163 = vpop.f32.mrb[0].mxu0
    %5164 = vmatprep.mubr.f32.mxu0 0.0
    %5165 = vmatmul.mubr.f32.gmra.mrb[0].mxu0 %v5047
    %v5166 = vpop.f32.mrb[0].mxu0
    %v5167 = vadd.f32 0.0, %v5166
    %v5168 = vpop.f32.mrb[0].mxu0
    %5169 = vmatprep.mubr.f32.mxu0 0.0
    %5170 = vmatmul.mubr.f32.gmra.mrb[0].mxu0 %v5050
    %v5171 = vpop.f32.mrb[0].mxu0
    %v5172 = vadd.f32 0.0, %v5171
    %v5173 = vpop.f32.mrb[0].mxu0
    %5174 = vmatprep.mubr.f32.mxu0 0.0
    %5175 = vmatmul.mubr.f32.gmra.mrb[0].mxu0 %v5053
    %v5176 = vpop.f32.mrb[0].mxu0
    %v5177 = vadd.f32 0.0, %v5176
    %v5178 = vpop.f32.mrb[0].mxu0
    %5179 = vmatprep.mubr.f32.mxu0 0.0
    %5180 = vmatmul.mubr.f32.gmra.mrb[0].mxu0 %v5056
    %v5181 = vpop.f32.mrb[0].mxu0
    %v5182 = vadd.f32 0.0, %v5181
    %v5183 = vpop.f32.mrb[0].mxu0
    %5184 = vmatprep.mubr.f32.mxu0 0.0
    %5185 = vmatmul.mubr.f32.gmra.mrb[0].mxu0 %v5059
    %v5186 = vpop.f32.mrb[0].mxu0
    %v5187 = vadd.f32 0.0, %v5186
    %v5188 = vpop.f32.mrb[0].mxu0
    %5189 = vmatprep.mubr.f32.mxu0 0.0
    %5190 = vmatmul.mubr.f32.gmra.mrb[0].mxu0 %v5062
    %v5191 = vpop.f32.mrb[0].mxu0
    %v5192 = vadd.f32 0.0, %v5191
    %v5193 = vpop.f32.mrb[0].mxu0
    %5194 = vmatprep.mubr.f32.mxu0 0.0
    %5195 = vmatmul.mubr.f32.gmra.mrb[0].mxu0 %v5065
    %v5196 = vpop.f32.mrb[0].mxu0
    %v5197 = vadd.f32 0.0, %v5196
    %v5198 = vpop.f32.mrb[0].mxu0
    %5199 = vmatprep.mubr.f32.mxu0 0.0
    %5200 = vmatmul.mubr.f32.gmra.mrb[0].mxu0 %v5068
    %v5201 = vpop.f32.mrb[0].mxu0
    %v5202 = vadd.f32 0.0, %v5201
    %v5203 = vpop.f32.mrb[0].mxu0
    %5204 = vmatprep.mubr.f32.mxu0 0.0
    %5205 = vmatmul.mubr.f32.gmra.mrb[0].mxu0 %v5071
    %v5206 = vpop.f32.mrb[0].mxu0
    %v5207 = vadd.f32 0.0, %v5206
    %v5208 = vpop.f32.mrb[0].mxu0
    %5209 = vmatprep.mubr.f32.mxu0 0.0
    %5210 = vmatmul.mubr.f32.gmra.mrb[0].mxu0 %v5074
    %v5211 = vpop.f32.mrb[0].mxu0
    %v5212 = vadd.f32 0.0, %v5211
    %v5213 = vpop.f32.mrb[0].mxu0
    %5214 = vmatprep.mubr.f32.mxu0 0.0
    %5215 = vmatmul.mubr.f32.gmra.mrb[0].mxu0 %v5077
    %v5216 = vpop.f32.mrb[0].mxu0
    %v5217 = vadd.f32 0.0, %v5216
    %v5218 = vpop.f32.mrb[0].mxu0
    %5219 = vmatprep.mubr.f32.mxu0 0.0
    %5220 = vmatmul.mubr.f32.gmra.mrb[0].mxu0 %v5080
    %v5221 = vpop.f32.mrb[0].mxu0
    %v5222 = vadd.f32 0.0, %v5221
    %v5223 = vpop.f32.mrb[0].mxu0
    %5224 = vmatprep.mubr.f32.mxu0 0.0
    %5225 = vmatmul.mubr.f32.gmra.mrb[0].mxu0 %v5083
    %v5226 = vpop.f32.mrb[0].mxu0
    %v5227 = vadd.f32 0.0, %v5226
    %v5228 = vpop.f32.mrb[0].mxu0
    %5229 = vdwg.mxu0
    %v5230 = vadd.f32 %v5002, %v5152
    %v5231 = vadd.f32 %v5003, %v5157
    %v5232 = vadd.f32 %v5004, %v5162
    %v5233 = vadd.f32 %v5005, %v5167
    %v5234 = vadd.f32 %v5006, %v5172
    %v5235 = vadd.f32 %v5007, %v5177
    %v5236 = vadd.f32 %v5008, %v5182
    %v5237 = vadd.f32 %v5009, %v5187
    %v5238 = vadd.f32 %v5010, %v5192
    %v5239 = vadd.f32 %v5011, %v5197
    %v5240 = vadd.f32 %v5012, %v5202
    %v5241 = vadd.f32 %v5013, %v5207
    %v5242 = vadd.f32 %v5014, %v5212
    %v5243 = vadd.f32 %v5015, %v5217
    %v5244 = vadd.f32 %v5016, %v5222
    %v5245 = vadd.f32 %v5017, %v5227
    %v5246 = vld [vmem:[%s2275 + $0x8] sm:$0xff]
    %v5247 = vld [vmem:[%s2275 + $0x20] sm:$0xff]
    %v5248 = vld [vmem:[%s2275 + $0x38] sm:$0xff]
    %v5249 = vld [vmem:[%s2275 + $0x50] sm:$0xff]
    %v5250 = vld [vmem:[%s2275 + $0x68] sm:$0xff]
    %v5251 = vld [vmem:[%s2275 + $0x80] sm:$0xff]
    %v5252 = vld [vmem:[%s2275 + $0x98] sm:$0xff]
    %v5253 = vld [vmem:[%s2275 + $0xb0] sm:$0xff]
    %v5254 = vld [vmem:[%s2275 + $0xf8] sm:$0xff]
    %v5255 = vld [vmem:[%s2275 + $0x110] sm:$0xff]
    %v5256 = vld [vmem:[%s2275 + $0x128] sm:$0xff]
    %v5257 = vld [vmem:[%s2275 + $0x140] sm:$0xff]
    %v5258 = vld [vmem:[%s2275 + $0x158] sm:$0xff]
    %v5259 = vld [vmem:[%s2275 + $0x170] sm:$0xff]
    %v5260 = vld [vmem:[%s2275 + $0x188] sm:$0xff]
    %v5261 = vld [vmem:[%s2275 + $0x1a0] sm:$0xff]
    %s5262 = scalar_lea.vmem [#allocation4], 64
    %v5263 = vld [vmem:[%s5262] sm:$0xff]
    %v5264 = vld [vmem:[%s5262 + $0x8] sm:$0xff]
    %v5266 = vsel %vm102, %v5246, 0
    %v5269 = vsel %vm102, %v5247, 0
    %v5272 = vsel %vm102, %v5248, 0
    %v5275 = vsel %vm102, %v5249, 0
    %v5278 = vsel %vm102, %v5250, 0
    %v5281 = vsel %vm102, %v5251, 0
    %v5284 = vsel %vm102, %v5252, 0
    %v5287 = vsel %vm102, %v5253, 0
    %v5290 = vsel %vm102, %v5254, 0
    %v5293 = vsel %vm102, %v5255, 0
    %v5296 = vsel %vm102, %v5256, 0
    %v5299 = vsel %vm102, %v5257, 0
    %v5302 = vsel %vm102, %v5258, 0
    %v5305 = vsel %vm102, %v5259, 0
    %v5308 = vsel %vm102, %v5260, 0
    %v5311 = vsel %vm102, %v5261, 0
    %5313 = vmatprep.subr.mxu0 0.0
    %5314 = vmatpush1.msra.mxu0 %v5263
    %5315 = vmatprep.subr.mxu0 0.0
    %5316 = vmatpush1.msra.mxu0 %v5264
    %5317 = vmatprep.subr.mxu0 0.0
    %5318 = vmatpush1.msra.mxu0 0.0
    %5319 = vmatprep.subr.mxu0 0.0
    %5320 = vmatpush1.msra.mxu0 0.0
    %5321 = vmatprep.subr.mxu0 0.0
    %5322 = vmatpush1.msra.mxu0 0.0
    %5323 = vmatprep.subr.mxu0 0.0
    %5324 = vmatpush1.msra.mxu0 0.0
    %5325 = vmatprep.subr.mxu0 0.0
    %5326 = vmatpush1.msra.mxu0 0.0
    %5327 = vmatprep.subr.mxu0 0.0
    %5328 = vmatpush1.msra.mxu0 0.0
    %5329 = vmatprep.subr.mxu0 0.0
    %5330 = vmatpush1.msra.mxu0 0.0
    %5331 = vmatprep.subr.mxu0 0.0
    %5332 = vmatpush1.msra.mxu0 0.0
    %5333 = vmatprep.subr.mxu0 0.0
    %5334 = vmatpush1.msra.mxu0 0.0
    %5335 = vmatprep.subr.mxu0 0.0
    %5336 = vmatpush1.msra.mxu0 0.0
    %5337 = vmatprep.subr.mxu0 0.0
    %5338 = vmatpush1.msra.mxu0 0.0
    %5339 = vmatprep.subr.mxu0 0.0
    %5340 = vmatpush1.msra.mxu0 0.0
    %5341 = vmatprep.subr.mxu0 0.0
    %5342 = vmatpush1.msra.mxu0 0.0
    %5343 = vmatprep.subr.mxu0 0.0
    %5344 = vmatpush1.msra.mxu0 0.0
    %5345 = vmatprep.subr.mxu0 0.0
    %5346 = vmatpush1.msra.mxu0 0.0
    %5347 = vmatprep.subr.mxu0 0.0
    %5348 = vmatpush1.msra.mxu0 0.0
    %5349 = vmatprep.subr.mxu0 0.0
    %5350 = vmatpush1.msra.mxu0 0.0
    %5351 = vmatprep.subr.mxu0 0.0
    %5352 = vmatpush1.msra.mxu0 0.0
    %5353 = vmatprep.subr.mxu0 0.0
    %5354 = vmatpush1.msra.mxu0 0.0
    %5355 = vmatprep.subr.mxu0 0.0
    %5356 = vmatpush1.msra.mxu0 0.0
    %5357 = vmatprep.subr.mxu0 0.0
    %5358 = vmatpush1.msra.mxu0 0.0
    %5359 = vmatprep.subr.mxu0 0.0
    %5360 = vmatpush1.msra.mxu0 0.0
    %5361 = vmatprep.subr.mxu0 0.0
    %5362 = vmatpush1.msra.mxu0 0.0
    %5363 = vmatprep.subr.mxu0 0.0
    %5364 = vmatpush1.msra.mxu0 0.0
    %5365 = vmatprep.subr.mxu0 0.0
    %5366 = vmatpush1.msra.mxu0 0.0
    %5367 = vmatprep.subr.mxu0 0.0
    %5368 = vmatpush1.msra.mxu0 0.0
    %5369 = vmatprep.subr.mxu0 0.0
    %5370 = vmatpush1.msra.mxu0 0.0
    %5371 = vmatprep.subr.mxu0 0.0
    %5372 = vmatpush1.msra.mxu0 0.0
    %5373 = vmatprep.subr.mxu0 0.0
    %5374 = vmatpush1.msra.mxu0 0.0
    %5375 = vmatprep.subr.mxu0 0.0
    %5376 = vmatpush1.msra.mxu0 0.0
    %5377 = vmatprep.mubr.f32.mxu0 0.0
    %5378 = vmatmul.mubr.f32.gmra.mrb[0].mxu0 %v5266
    %v5379 = vpop.f32.mrb[0].mxu0
    %v5380 = vadd.f32 0.0, %v5379
    %v5381 = vpop.f32.mrb[0].mxu0
    %5382 = vmatprep.mubr.f32.mxu0 0.0
    %5383 = vmatmul.mubr.f32.gmra.mrb[0].mxu0 %v5269
    %v5384 = vpop.f32.mrb[0].mxu0
    %v5385 = vadd.f32 0.0, %v5384
    %v5386 = vpop.f32.mrb[0].mxu0
    %5387 = vmatprep.mubr.f32.mxu0 0.0
    %5388 = vmatmul.mubr.f32.gmra.mrb[0].mxu0 %v5272
    %v5389 = vpop.f32.mrb[0].mxu0
    %v5390 = vadd.f32 0.0, %v5389
    %v5391 = vpop.f32.mrb[0].mxu0
    %5392 = vmatprep.mubr.f32.mxu0 0.0
    %5393 = vmatmul.mubr.f32.gmra.mrb[0].mxu0 %v5275
    %v5394 = vpop.f32.mrb[0].mxu0
    %v5395 = vadd.f32 0.0, %v5394
    %v5396 = vpop.f32.mrb[0].mxu0
    %5397 = vmatprep.mubr.f32.mxu0 0.0
    %5398 = vmatmul.mubr.f32.gmra.mrb[0].mxu0 %v5278
    %v5399 = vpop.f32.mrb[0].mxu0
    %v5400 = vadd.f32 0.0, %v5399
    %v5401 = vpop.f32.mrb[0].mxu0
    %5402 = vmatprep.mubr.f32.mxu0 0.0
    %5403 = vmatmul.mubr.f32.gmra.mrb[0].mxu0 %v5281
    %v5404 = vpop.f32.mrb[0].mxu0
    %v5405 = vadd.f32 0.0, %v5404
    %v5406 = vpop.f32.mrb[0].mxu0
    %5407 = vmatprep.mubr.f32.mxu0 0.0
    %5408 = vmatmul.mubr.f32.gmra.mrb[0].mxu0 %v5284
    %v5409 = vpop.f32.mrb[0].mxu0
    %v5410 = vadd.f32 0.0, %v5409
    %v5411 = vpop.f32.mrb[0].mxu0
    %5412 = vmatprep.mubr.f32.mxu0 0.0
    %5413 = vmatmul.mubr.f32.gmra.mrb[0].mxu0 %v5287
    %v5414 = vpop.f32.mrb[0].mxu0
    %v5415 = vadd.f32 0.0, %v5414
    %v5416 = vpop.f32.mrb[0].mxu0
    %5417 = vmatprep.mubr.f32.mxu0 0.0
    %5418 = vmatmul.mubr.f32.gmra.mrb[0].mxu0 %v5290
    %v5419 = vpop.f32.mrb[0].mxu0
    %v5420 = vadd.f32 0.0, %v5419
    %v5421 = vpop.f32.mrb[0].mxu0
    %5422 = vmatprep.mubr.f32.mxu0 0.0
    %5423 = vmatmul.mubr.f32.gmra.mrb[0].mxu0 %v5293
    %v5424 = vpop.f32.mrb[0].mxu0
    %v5425 = vadd.f32 0.0, %v5424
    %v5426 = vpop.f32.mrb[0].mxu0
    %5427 = vmatprep.mubr.f32.mxu0 0.0
    %5428 = vmatmul.mubr.f32.gmra.mrb[0].mxu0 %v5296
    %v5429 = vpop.f32.mrb[0].mxu0
    %v5430 = vadd.f32 0.0, %v5429
    %v5431 = vpop.f32.mrb[0].mxu0
    %5432 = vmatprep.mubr.f32.mxu0 0.0
    %5433 = vmatmul.mubr.f32.gmra.mrb[0].mxu0 %v5299
    %v5434 = vpop.f32.mrb[0].mxu0
    %v5435 = vadd.f32 0.0, %v5434
    %v5436 = vpop.f32.mrb[0].mxu0
    %5437 = vmatprep.mubr.f32.mxu0 0.0
    %5438 = vmatmul.mubr.f32.gmra.mrb[0].mxu0 %v5302
    %v5439 = vpop.f32.mrb[0].mxu0
    %v5440 = vadd.f32 0.0, %v5439
    %v5441 = vpop.f32.mrb[0].mxu0
    %5442 = vmatprep.mubr.f32.mxu0 0.0
    %5443 = vmatmul.mubr.f32.gmra.mrb[0].mxu0 %v5305
    %v5444 = vpop.f32.mrb[0].mxu0
    %v5445 = vadd.f32 0.0, %v5444
    %v5446 = vpop.f32.mrb[0].mxu0
    %5447 = vmatprep.mubr.f32.mxu0 0.0
    %5448 = vmatmul.mubr.f32.gmra.mrb[0].mxu0 %v5308
    %v5449 = vpop.f32.mrb[0].mxu0
    %v5450 = vadd.f32 0.0, %v5449
    %v5451 = vpop.f32.mrb[0].mxu0
    %5452 = vmatprep.mubr.f32.mxu0 0.0
    %5453 = vmatmul.mubr.f32.gmra.mrb[0].mxu0 %v5311
    %v5454 = vpop.f32.mrb[0].mxu0
    %v5455 = vadd.f32 0.0, %v5454
    %v5456 = vpop.f32.mrb[0].mxu0
    %5457 = vdwg.mxu0
    %v5458 = vadd.f32 %v5230, %v5380
    %v5459 = vadd.f32 %v5231, %v5385
    %v5460 = vadd.f32 %v5232, %v5390
    %v5461 = vadd.f32 %v5233, %v5395
    %v5462 = vadd.f32 %v5234, %v5400
    %v5463 = vadd.f32 %v5235, %v5405
    %v5464 = vadd.f32 %v5236, %v5410
    %v5465 = vadd.f32 %v5237, %v5415
    %v5466 = vadd.f32 %v5238, %v5420
    %v5467 = vadd.f32 %v5239, %v5425
    %v5468 = vadd.f32 %v5240, %v5430
    %v5469 = vadd.f32 %v5241, %v5435
    %v5470 = vadd.f32 %v5242, %v5440
    %v5471 = vadd.f32 %v5243, %v5445
    %v5472 = vadd.f32 %v5244, %v5450
    %v5473 = vadd.f32 %v5245, %v5455
    %v5474 = vld [vmem:[%s2275 + $0x9] sm:$0xff]
    %v5475 = vld [vmem:[%s2275 + $0x21] sm:$0xff]
    %v5476 = vld [vmem:[%s2275 + $0x39] sm:$0xff]
    %v5477 = vld [vmem:[%s2275 + $0x51] sm:$0xff]
    %v5478 = vld [vmem:[%s2275 + $0x69] sm:$0xff]
    %v5479 = vld [vmem:[%s2275 + $0x81] sm:$0xff]
    %v5480 = vld [vmem:[%s2275 + $0x99] sm:$0xff]
    %v5481 = vld [vmem:[%s2275 + $0xb1] sm:$0xff]
    %v5482 = vld [vmem:[%s2275 + $0xf9] sm:$0xff]
    %v5483 = vld [vmem:[%s2275 + $0x111] sm:$0xff]
    %v5484 = vld [vmem:[%s2275 + $0x129] sm:$0xff]
    %v5485 = vld [vmem:[%s2275 + $0x141] sm:$0xff]
    %v5486 = vld [vmem:[%s2275 + $0x159] sm:$0xff]
    %v5487 = vld [vmem:[%s2275 + $0x171] sm:$0xff]
    %v5488 = vld [vmem:[%s2275 + $0x189] sm:$0xff]
    %v5489 = vld [vmem:[%s2275 + $0x1a1] sm:$0xff]
    %s5490 = scalar_lea.vmem [#allocation4], 80
    %v5491 = vld [vmem:[%s5490] sm:$0xff]
    %v5492 = vld [vmem:[%s5490 + $0x8] sm:$0xff]
    %v5494 = vsel %vm102, %v5474, 0
    %v5497 = vsel %vm102, %v5475, 0
    %v5500 = vsel %vm102, %v5476, 0
    %v5503 = vsel %vm102, %v5477, 0
    %v5506 = vsel %vm102, %v5478, 0
    %v5509 = vsel %vm102, %v5479, 0
    %v5512 = vsel %vm102, %v5480, 0
    %v5515 = vsel %vm102, %v5481, 0
    %v5518 = vsel %vm102, %v5482, 0
    %v5521 = vsel %vm102, %v5483, 0
    %v5524 = vsel %vm102, %v5484, 0
    %v5527 = vsel %vm102, %v5485, 0
    %v5530 = vsel %vm102, %v5486, 0
    %v5533 = vsel %vm102, %v5487, 0
    %v5536 = vsel %vm102, %v5488, 0
    %v5539 = vsel %vm102, %v5489, 0
    %5541 = vmatprep.subr.mxu0 0.0
    %5542 = vmatpush1.msra.mxu0 %v5491
    %5543 = vmatprep.subr.mxu0 0.0
    %5544 = vmatpush1.msra.mxu0 %v5492
    %5545 = vmatprep.subr.mxu0 0.0
    %5546 = vmatpush1.msra.mxu0 0.0
    %5547 = vmatprep.subr.mxu0 0.0
    %5548 = vmatpush1.msra.mxu0 0.0
    %5549 = vmatprep.subr.mxu0 0.0
    %5550 = vmatpush1.msra.mxu0 0.0
    %5551 = vmatprep.subr.mxu0 0.0
    %5552 = vmatpush1.msra.mxu0 0.0
    %5553 = vmatprep.subr.mxu0 0.0
    %5554 = vmatpush1.msra.mxu0 0.0
    %5555 = vmatprep.subr.mxu0 0.0
    %5556 = vmatpush1.msra.mxu0 0.0
    %5557 = vmatprep.subr.mxu0 0.0
    %5558 = vmatpush1.msra.mxu0 0.0
    %5559 = vmatprep.subr.mxu0 0.0
    %5560 = vmatpush1.msra.mxu0 0.0
    %5561 = vmatprep.subr.mxu0 0.0
    %5562 = vmatpush1.msra.mxu0 0.0
    %5563 = vmatprep.subr.mxu0 0.0
    %5564 = vmatpush1.msra.mxu0 0.0
    %5565 = vmatprep.subr.mxu0 0.0
    %5566 = vmatpush1.msra.mxu0 0.0
    %5567 = vmatprep.subr.mxu0 0.0
    %5568 = vmatpush1.msra.mxu0 0.0
    %5569 = vmatprep.subr.mxu0 0.0
    %5570 = vmatpush1.msra.mxu0 0.0
    %5571 = vmatprep.subr.mxu0 0.0
    %5572 = vmatpush1.msra.mxu0 0.0
    %5573 = vmatprep.subr.mxu0 0.0
    %5574 = vmatpush1.msra.mxu0 0.0
    %5575 = vmatprep.subr.mxu0 0.0
    %5576 = vmatpush1.msra.mxu0 0.0
    %5577 = vmatprep.subr.mxu0 0.0
    %5578 = vmatpush1.msra.mxu0 0.0
    %5579 = vmatprep.subr.mxu0 0.0
    %5580 = vmatpush1.msra.mxu0 0.0
    %5581 = vmatprep.subr.mxu0 0.0
    %5582 = vmatpush1.msra.mxu0 0.0
    %5583 = vmatprep.subr.mxu0 0.0
    %5584 = vmatpush1.msra.mxu0 0.0
    %5585 = vmatprep.subr.mxu0 0.0
    %5586 = vmatpush1.msra.mxu0 0.0
    %5587 = vmatprep.subr.mxu0 0.0
    %5588 = vmatpush1.msra.mxu0 0.0
    %5589 = vmatprep.subr.mxu0 0.0
    %5590 = vmatpush1.msra.mxu0 0.0
    %5591 = vmatprep.subr.mxu0 0.0
    %5592 = vmatpush1.msra.mxu0 0.0
    %5593 = vmatprep.subr.mxu0 0.0
    %5594 = vmatpush1.msra.mxu0 0.0
    %5595 = vmatprep.subr.mxu0 0.0
    %5596 = vmatpush1.msra.mxu0 0.0
    %5597 = vmatprep.subr.mxu0 0.0
    %5598 = vmatpush1.msra.mxu0 0.0
    %5599 = vmatprep.subr.mxu0 0.0
    %5600 = vmatpush1.msra.mxu0 0.0
    %5601 = vmatprep.subr.mxu0 0.0
    %5602 = vmatpush1.msra.mxu0 0.0
    %5603 = vmatprep.subr.mxu0 0.0
    %5604 = vmatpush1.msra.mxu0 0.0
    %5605 = vmatprep.mubr.f32.mxu0 0.0
    %5606 = vmatmul.mubr.f32.gmra.mrb[0].mxu0 %v5494
    %v5607 = vpop.f32.mrb[0].mxu0
    %v5608 = vadd.f32 0.0, %v5607
    %v5609 = vpop.f32.mrb[0].mxu0
    %5610 = vmatprep.mubr.f32.mxu0 0.0
    %5611 = vmatmul.mubr.f32.gmra.mrb[0].mxu0 %v5497
    %v5612 = vpop.f32.mrb[0].mxu0
    %v5613 = vadd.f32 0.0, %v5612
    %v5614 = vpop.f32.mrb[0].mxu0
    %5615 = vmatprep.mubr.f32.mxu0 0.0
    %5616 = vmatmul.mubr.f32.gmra.mrb[0].mxu0 %v5500
    %v5617 = vpop.f32.mrb[0].mxu0
    %v5618 = vadd.f32 0.0, %v5617
    %v5619 = vpop.f32.mrb[0].mxu0
    %5620 = vmatprep.mubr.f32.mxu0 0.0
    %5621 = vmatmul.mubr.f32.gmra.mrb[0].mxu0 %v5503
    %v5622 = vpop.f32.mrb[0].mxu0
    %v5623 = vadd.f32 0.0, %v5622
    %v5624 = vpop.f32.mrb[0].mxu0
    %5625 = vmatprep.mubr.f32.mxu0 0.0
    %5626 = vmatmul.mubr.f32.gmra.mrb[0].mxu0 %v5506
    %v5627 = vpop.f32.mrb[0].mxu0
    %v5628 = vadd.f32 0.0, %v5627
    %v5629 = vpop.f32.mrb[0].mxu0
    %5630 = vmatprep.mubr.f32.mxu0 0.0
    %5631 = vmatmul.mubr.f32.gmra.mrb[0].mxu0 %v5509
    %v5632 = vpop.f32.mrb[0].mxu0
    %v5633 = vadd.f32 0.0, %v5632
    %v5634 = vpop.f32.mrb[0].mxu0
    %5635 = vmatprep.mubr.f32.mxu0 0.0
    %5636 = vmatmul.mubr.f32.gmra.mrb[0].mxu0 %v5512
    %v5637 = vpop.f32.mrb[0].mxu0
    %v5638 = vadd.f32 0.0, %v5637
    %v5639 = vpop.f32.mrb[0].mxu0
    %5640 = vmatprep.mubr.f32.mxu0 0.0
    %5641 = vmatmul.mubr.f32.gmra.mrb[0].mxu0 %v5515
    %v5642 = vpop.f32.mrb[0].mxu0
    %v5643 = vadd.f32 0.0, %v5642
    %v5644 = vpop.f32.mrb[0].mxu0
    %5645 = vmatprep.mubr.f32.mxu0 0.0
    %5646 = vmatmul.mubr.f32.gmra.mrb[0].mxu0 %v5518
    %v5647 = vpop.f32.mrb[0].mxu0
    %v5648 = vadd.f32 0.0, %v5647
    %v5649 = vpop.f32.mrb[0].mxu0
    %5650 = vmatprep.mubr.f32.mxu0 0.0
    %5651 = vmatmul.mubr.f32.gmra.mrb[0].mxu0 %v5521
    %v5652 = vpop.f32.mrb[0].mxu0
    %v5653 = vadd.f32 0.0, %v5652
    %v5654 = vpop.f32.mrb[0].mxu0
    %5655 = vmatprep.mubr.f32.mxu0 0.0
    %5656 = vmatmul.mubr.f32.gmra.mrb[0].mxu0 %v5524
    %v5657 = vpop.f32.mrb[0].mxu0
    %v5658 = vadd.f32 0.0, %v5657
    %v5659 = vpop.f32.mrb[0].mxu0
    %5660 = vmatprep.mubr.f32.mxu0 0.0
    %5661 = vmatmul.mubr.f32.gmra.mrb[0].mxu0 %v5527
    %v5662 = vpop.f32.mrb[0].mxu0
    %v5663 = vadd.f32 0.0, %v5662
    %v5664 = vpop.f32.mrb[0].mxu0
    %5665 = vmatprep.mubr.f32.mxu0 0.0
    %5666 = vmatmul.mubr.f32.gmra.mrb[0].mxu0 %v5530
    %v5667 = vpop.f32.mrb[0].mxu0
    %v5668 = vadd.f32 0.0, %v5667
    %v5669 = vpop.f32.mrb[0].mxu0
    %5670 = vmatprep.mubr.f32.mxu0 0.0
    %5671 = vmatmul.mubr.f32.gmra.mrb[0].mxu0 %v5533
    %v5672 = vpop.f32.mrb[0].mxu0
    %v5673 = vadd.f32 0.0, %v5672
    %v5674 = vpop.f32.mrb[0].mxu0
    %5675 = vmatprep.mubr.f32.mxu0 0.0
    %5676 = vmatmul.mubr.f32.gmra.mrb[0].mxu0 %v5536
    %v5677 = vpop.f32.mrb[0].mxu0
    %v5678 = vadd.f32 0.0, %v5677
    %v5679 = vpop.f32.mrb[0].mxu0
    %5680 = vmatprep.mubr.f32.mxu0 0.0
    %5681 = vmatmul.mubr.f32.gmra.mrb[0].mxu0 %v5539
    %v5682 = vpop.f32.mrb[0].mxu0
    %v5683 = vadd.f32 0.0, %v5682
    %v5684 = vpop.f32.mrb[0].mxu0
    %5685 = vdwg.mxu0
    %v5686 = vadd.f32 %v5458, %v5608
    %v5687 = vadd.f32 %v5459, %v5613
    %v5688 = vadd.f32 %v5460, %v5618
    %v5689 = vadd.f32 %v5461, %v5623
    %v5690 = vadd.f32 %v5462, %v5628
    %v5691 = vadd.f32 %v5463, %v5633
    %v5692 = vadd.f32 %v5464, %v5638
    %v5693 = vadd.f32 %v5465, %v5643
    %v5694 = vadd.f32 %v5466, %v5648
    %v5695 = vadd.f32 %v5467, %v5653
    %v5696 = vadd.f32 %v5468, %v5658
    %v5697 = vadd.f32 %v5469, %v5663
    %v5698 = vadd.f32 %v5470, %v5668
    %v5699 = vadd.f32 %v5471, %v5673
    %v5700 = vadd.f32 %v5472, %v5678
    %v5701 = vadd.f32 %v5473, %v5683
    %v5702 = vld [vmem:[%s3627 + $0x7] sm:$0xff]
    %v5703 = vld [vmem:[%s3627 + $0x1f] sm:$0xff]
    %v5704 = vld [vmem:[%s3627 + $0x37] sm:$0xff]
    %v5705 = vld [vmem:[%s3627 + $0x4f] sm:$0xff]
    %v5706 = vld [vmem:[%s3627 + $0x67] sm:$0xff]
    %v5707 = vld [vmem:[%s3627 + $0x7f] sm:$0xff]
    %v5708 = vld [vmem:[%s3627 + $0x97] sm:$0xff]
    %v5709 = vld [vmem:[%s3627 + $0xaf] sm:$0xff]
    %v5710 = vld [vmem:[%s3627 + $0xf7] sm:$0xff]
    %v5711 = vld [vmem:[%s3627 + $0x10f] sm:$0xff]
    %v5712 = vld [vmem:[%s3627 + $0x127] sm:$0xff]
    %v5713 = vld [vmem:[%s3627 + $0x13f] sm:$0xff]
    %v5714 = vld [vmem:[%s3627 + $0x157] sm:$0xff]
    %v5715 = vld [vmem:[%s3627 + $0x16f] sm:$0xff]
    %v5716 = vld [vmem:[%s3627 + $0x187] sm:$0xff]
    %v5717 = vld [vmem:[%s3627 + $0x19f] sm:$0xff]
    %s5718 = scalar_lea.vmem [#allocation4], 96
    %v5719 = vld [vmem:[%s5718] sm:$0xff]
    %v5720 = vld [vmem:[%s5718 + $0x8] sm:$0xff]
    %v5722 = vsel %vm102, %v5702, 0
    %v5725 = vsel %vm102, %v5703, 0
    %v5728 = vsel %vm102, %v5704, 0
    %v5731 = vsel %vm102, %v5705, 0
    %v5734 = vsel %vm102, %v5706, 0
    %v5737 = vsel %vm102, %v5707, 0
    %v5740 = vsel %vm102, %v5708, 0
    %v5743 = vsel %vm102, %v5709, 0
    %v5746 = vsel %vm102, %v5710, 0
    %v5749 = vsel %vm102, %v5711, 0
    %v5752 = vsel %vm102, %v5712, 0
    %v5755 = vsel %vm102, %v5713, 0
    %v5758 = vsel %vm102, %v5714, 0
    %v5761 = vsel %vm102, %v5715, 0
    %v5764 = vsel %vm102, %v5716, 0
    %v5767 = vsel %vm102, %v5717, 0
    %5769 = vmatprep.subr.mxu0 0.0
    %5770 = vmatpush1.msra.mxu0 %v5719
    %5771 = vmatprep.subr.mxu0 0.0
    %5772 = vmatpush1.msra.mxu0 %v5720
    %5773 = vmatprep.subr.mxu0 0.0
    %5774 = vmatpush1.msra.mxu0 0.0
    %5775 = vmatprep.subr.mxu0 0.0
    %5776 = vmatpush1.msra.mxu0 0.0
    %5777 = vmatprep.subr.mxu0 0.0
    %5778 = vmatpush1.msra.mxu0 0.0
    %5779 = vmatprep.subr.mxu0 0.0
    %5780 = vmatpush1.msra.mxu0 0.0
    %5781 = vmatprep.subr.mxu0 0.0
    %5782 = vmatpush1.msra.mxu0 0.0
    %5783 = vmatprep.subr.mxu0 0.0
    %5784 = vmatpush1.msra.mxu0 0.0
    %5785 = vmatprep.subr.mxu0 0.0
    %5786 = vmatpush1.msra.mxu0 0.0
    %5787 = vmatprep.subr.mxu0 0.0
    %5788 = vmatpush1.msra.mxu0 0.0
    %5789 = vmatprep.subr.mxu0 0.0
    %5790 = vmatpush1.msra.mxu0 0.0
    %5791 = vmatprep.subr.mxu0 0.0
    %5792 = vmatpush1.msra.mxu0 0.0
    %5793 = vmatprep.subr.mxu0 0.0
    %5794 = vmatpush1.msra.mxu0 0.0
    %5795 = vmatprep.subr.mxu0 0.0
    %5796 = vmatpush1.msra.mxu0 0.0
    %5797 = vmatprep.subr.mxu0 0.0
    %5798 = vmatpush1.msra.mxu0 0.0
    %5799 = vmatprep.subr.mxu0 0.0
    %5800 = vmatpush1.msra.mxu0 0.0
    %5801 = vmatprep.subr.mxu0 0.0
    %5802 = vmatpush1.msra.mxu0 0.0
    %5803 = vmatprep.subr.mxu0 0.0
    %5804 = vmatpush1.msra.mxu0 0.0
    %5805 = vmatprep.subr.mxu0 0.0
    %5806 = vmatpush1.msra.mxu0 0.0
    %5807 = vmatprep.subr.mxu0 0.0
    %5808 = vmatpush1.msra.mxu0 0.0
    %5809 = vmatprep.subr.mxu0 0.0
    %5810 = vmatpush1.msra.mxu0 0.0
    %5811 = vmatprep.subr.mxu0 0.0
    %5812 = vmatpush1.msra.mxu0 0.0
    %5813 = vmatprep.subr.mxu0 0.0
    %5814 = vmatpush1.msra.mxu0 0.0
    %5815 = vmatprep.subr.mxu0 0.0
    %5816 = vmatpush1.msra.mxu0 0.0
    %5817 = vmatprep.subr.mxu0 0.0
    %5818 = vmatpush1.msra.mxu0 0.0
    %5819 = vmatprep.subr.mxu0 0.0
    %5820 = vmatpush1.msra.mxu0 0.0
    %5821 = vmatprep.subr.mxu0 0.0
    %5822 = vmatpush1.msra.mxu0 0.0
    %5823 = vmatprep.subr.mxu0 0.0
    %5824 = vmatpush1.msra.mxu0 0.0
    %5825 = vmatprep.subr.mxu0 0.0
    %5826 = vmatpush1.msra.mxu0 0.0
    %5827 = vmatprep.subr.mxu0 0.0
    %5828 = vmatpush1.msra.mxu0 0.0
    %5829 = vmatprep.subr.mxu0 0.0
    %5830 = vmatpush1.msra.mxu0 0.0
    %5831 = vmatprep.subr.mxu0 0.0
    %5832 = vmatpush1.msra.mxu0 0.0
    %5833 = vmatprep.mubr.f32.mxu0 0.0
    %5834 = vmatmul.mubr.f32.gmra.mrb[0].mxu0 %v5722
    %v5835 = vpop.f32.mrb[0].mxu0
    %v5836 = vadd.f32 0.0, %v5835
    %v5837 = vpop.f32.mrb[0].mxu0
    %5838 = vmatprep.mubr.f32.mxu0 0.0
    %5839 = vmatmul.mubr.f32.gmra.mrb[0].mxu0 %v5725
    %v5840 = vpop.f32.mrb[0].mxu0
    %v5841 = vadd.f32 0.0, %v5840
    %v5842 = vpop.f32.mrb[0].mxu0
    %5843 = vmatprep.mubr.f32.mxu0 0.0
    %5844 = vmatmul.mubr.f32.gmra.mrb[0].mxu0 %v5728
    %v5845 = vpop.f32.mrb[0].mxu0
    %v5846 = vadd.f32 0.0, %v5845
    %v5847 = vpop.f32.mrb[0].mxu0
    %5848 = vmatprep.mubr.f32.mxu0 0.0
    %5849 = vmatmul.mubr.f32.gmra.mrb[0].mxu0 %v5731
    %v5850 = vpop.f32.mrb[0].mxu0
    %v5851 = vadd.f32 0.0, %v5850
    %v5852 = vpop.f32.mrb[0].mxu0
    %5853 = vmatprep.mubr.f32.mxu0 0.0
    %5854 = vmatmul.mubr.f32.gmra.mrb[0].mxu0 %v5734
    %v5855 = vpop.f32.mrb[0].mxu0
    %v5856 = vadd.f32 0.0, %v5855
    %v5857 = vpop.f32.mrb[0].mxu0
    %5858 = vmatprep.mubr.f32.mxu0 0.0
    %5859 = vmatmul.mubr.f32.gmra.mrb[0].mxu0 %v5737
    %v5860 = vpop.f32.mrb[0].mxu0
    %v5861 = vadd.f32 0.0, %v5860
    %v5862 = vpop.f32.mrb[0].mxu0
    %5863 = vmatprep.mubr.f32.mxu0 0.0
    %5864 = vmatmul.mubr.f32.gmra.mrb[0].mxu0 %v5740
    %v5865 = vpop.f32.mrb[0].mxu0
    %v5866 = vadd.f32 0.0, %v5865
    %v5867 = vpop.f32.mrb[0].mxu0
    %5868 = vmatprep.mubr.f32.mxu0 0.0
    %5869 = vmatmul.mubr.f32.gmra.mrb[0].mxu0 %v5743
    %v5870 = vpop.f32.mrb[0].mxu0
    %v5871 = vadd.f32 0.0, %v5870
    %v5872 = vpop.f32.mrb[0].mxu0
    %5873 = vmatprep.mubr.f32.mxu0 0.0
    %5874 = vmatmul.mubr.f32.gmra.mrb[0].mxu0 %v5746
    %v5875 = vpop.f32.mrb[0].mxu0
    %v5876 = vadd.f32 0.0, %v5875
    %v5877 = vpop.f32.mrb[0].mxu0
    %5878 = vmatprep.mubr.f32.mxu0 0.0
    %5879 = vmatmul.mubr.f32.gmra.mrb[0].mxu0 %v5749
    %v5880 = vpop.f32.mrb[0].mxu0
    %v5881 = vadd.f32 0.0, %v5880
    %v5882 = vpop.f32.mrb[0].mxu0
    %5883 = vmatprep.mubr.f32.mxu0 0.0
    %5884 = vmatmul.mubr.f32.gmra.mrb[0].mxu0 %v5752
    %v5885 = vpop.f32.mrb[0].mxu0
    %v5886 = vadd.f32 0.0, %v5885
    %v5887 = vpop.f32.mrb[0].mxu0
    %5888 = vmatprep.mubr.f32.mxu0 0.0
    %5889 = vmatmul.mubr.f32.gmra.mrb[0].mxu0 %v5755
    %v5890 = vpop.f32.mrb[0].mxu0
    %v5891 = vadd.f32 0.0, %v5890
    %v5892 = vpop.f32.mrb[0].mxu0
    %5893 = vmatprep.mubr.f32.mxu0 0.0
    %5894 = vmatmul.mubr.f32.gmra.mrb[0].mxu0 %v5758
    %v5895 = vpop.f32.mrb[0].mxu0
    %v5896 = vadd.f32 0.0, %v5895
    %v5897 = vpop.f32.mrb[0].mxu0
    %5898 = vmatprep.mubr.f32.mxu0 0.0
    %5899 = vmatmul.mubr.f32.gmra.mrb[0].mxu0 %v5761
    %v5900 = vpop.f32.mrb[0].mxu0
    %v5901 = vadd.f32 0.0, %v5900
    %v5902 = vpop.f32.mrb[0].mxu0
    %5903 = vmatprep.mubr.f32.mxu0 0.0
    %5904 = vmatmul.mubr.f32.gmra.mrb[0].mxu0 %v5764
    %v5905 = vpop.f32.mrb[0].mxu0
    %v5906 = vadd.f32 0.0, %v5905
    %v5907 = vpop.f32.mrb[0].mxu0
    %5908 = vmatprep.mubr.f32.mxu0 0.0
    %5909 = vmatmul.mubr.f32.gmra.mrb[0].mxu0 %v5767
    %v5910 = vpop.f32.mrb[0].mxu0
    %v5911 = vadd.f32 0.0, %v5910
    %v5912 = vpop.f32.mrb[0].mxu0
    %5913 = vdwg.mxu0
    %v5914 = vadd.f32 %v5686, %v5836
    %v5915 = vadd.f32 %v5687, %v5841
    %v5916 = vadd.f32 %v5688, %v5846
    %v5917 = vadd.f32 %v5689, %v5851
    %v5918 = vadd.f32 %v5690, %v5856
    %v5919 = vadd.f32 %v5691, %v5861
    %v5920 = vadd.f32 %v5692, %v5866
    %v5921 = vadd.f32 %v5693, %v5871
    %v5922 = vadd.f32 %v5694, %v5876
    %v5923 = vadd.f32 %v5695, %v5881
    %v5924 = vadd.f32 %v5696, %v5886
    %v5925 = vadd.f32 %v5697, %v5891
    %v5926 = vadd.f32 %v5698, %v5896
    %v5927 = vadd.f32 %v5699, %v5901
    %v5928 = vadd.f32 %v5700, %v5906
    %v5929 = vadd.f32 %v5701, %v5911
    %v5930 = vld [vmem:[%s3627 + $0x8] sm:$0xff]
    %v5931 = vld [vmem:[%s3627 + $0x20] sm:$0xff]
    %v5932 = vld [vmem:[%s3627 + $0x38] sm:$0xff]
    %v5933 = vld [vmem:[%s3627 + $0x50] sm:$0xff]
    %v5934 = vld [vmem:[%s3627 + $0x68] sm:$0xff]
    %v5935 = vld [vmem:[%s3627 + $0x80] sm:$0xff]
    %v5936 = vld [vmem:[%s3627 + $0x98] sm:$0xff]
    %v5937 = vld [vmem:[%s3627 + $0xb0] sm:$0xff]
    %v5938 = vld [vmem:[%s3627 + $0xf8] sm:$0xff]
    %v5939 = vld [vmem:[%s3627 + $0x110] sm:$0xff]
    %v5940 = vld [vmem:[%s3627 + $0x128] sm:$0xff]
    %v5941 = vld [vmem:[%s3627 + $0x140] sm:$0xff]
    %v5942 = vld [vmem:[%s3627 + $0x158] sm:$0xff]
    %v5943 = vld [vmem:[%s3627 + $0x170] sm:$0xff]
    %v5944 = vld [vmem:[%s3627 + $0x188] sm:$0xff]
    %v5945 = vld [vmem:[%s3627 + $0x1a0] sm:$0xff]
    %s5946 = scalar_lea.vmem [#allocation4], 112
    %v5947 = vld [vmem:[%s5946] sm:$0xff]
    %v5948 = vld [vmem:[%s5946 + $0x8] sm:$0xff]
    %v5950 = vsel %vm102, %v5930, 0
    %v5953 = vsel %vm102, %v5931, 0
    %v5956 = vsel %vm102, %v5932, 0
    %v5959 = vsel %vm102, %v5933, 0
    %v5962 = vsel %vm102, %v5934, 0
    %v5965 = vsel %vm102, %v5935, 0
    %v5968 = vsel %vm102, %v5936, 0
    %v5971 = vsel %vm102, %v5937, 0
    %v5974 = vsel %vm102, %v5938, 0
    %v5977 = vsel %vm102, %v5939, 0
    %v5980 = vsel %vm102, %v5940, 0
    %v5983 = vsel %vm102, %v5941, 0
    %v5986 = vsel %vm102, %v5942, 0
    %v5989 = vsel %vm102, %v5943, 0
    %v5992 = vsel %vm102, %v5944, 0
    %v5995 = vsel %vm102, %v5945, 0
    %5997 = vmatprep.subr.mxu0 0.0
    %5998 = vmatpush1.msra.mxu0 %v5947
    %5999 = vmatprep.subr.mxu0 0.0
    %6000 = vmatpush1.msra.mxu0 %v5948
    %6001 = vmatprep.subr.mxu0 0.0
    %6002 = vmatpush1.msra.mxu0 0.0
    %6003 = vmatprep.subr.mxu0 0.0
    %6004 = vmatpush1.msra.mxu0 0.0
    %6005 = vmatprep.subr.mxu0 0.0
    %6006 = vmatpush1.msra.mxu0 0.0
    %6007 = vmatprep.subr.mxu0 0.0
    %6008 = vmatpush1.msra.mxu0 0.0
    %6009 = vmatprep.subr.mxu0 0.0
    %6010 = vmatpush1.msra.mxu0 0.0
    %6011 = vmatprep.subr.mxu0 0.0
    %6012 = vmatpush1.msra.mxu0 0.0
    %6013 = vmatprep.subr.mxu0 0.0
    %6014 = vmatpush1.msra.mxu0 0.0
    %6015 = vmatprep.subr.mxu0 0.0
    %6016 = vmatpush1.msra.mxu0 0.0
    %6017 = vmatprep.subr.mxu0 0.0
    %6018 = vmatpush1.msra.mxu0 0.0
    %6019 = vmatprep.subr.mxu0 0.0
    %6020 = vmatpush1.msra.mxu0 0.0
    %6021 = vmatprep.subr.mxu0 0.0
    %6022 = vmatpush1.msra.mxu0 0.0
    %6023 = vmatprep.subr.mxu0 0.0
    %6024 = vmatpush1.msra.mxu0 0.0
    %6025 = vmatprep.subr.mxu0 0.0
    %6026 = vmatpush1.msra.mxu0 0.0
    %6027 = vmatprep.subr.mxu0 0.0
    %6028 = vmatpush1.msra.mxu0 0.0
    %6029 = vmatprep.subr.mxu0 0.0
    %6030 = vmatpush1.msra.mxu0 0.0
    %6031 = vmatprep.subr.mxu0 0.0
    %6032 = vmatpush1.msra.mxu0 0.0
    %6033 = vmatprep.subr.mxu0 0.0
    %6034 = vmatpush1.msra.mxu0 0.0
    %6035 = vmatprep.subr.mxu0 0.0
    %6036 = vmatpush1.msra.mxu0 0.0
    %6037 = vmatprep.subr.mxu0 0.0
    %6038 = vmatpush1.msra.mxu0 0.0
    %6039 = vmatprep.subr.mxu0 0.0
    %6040 = vmatpush1.msra.mxu0 0.0
    %6041 = vmatprep.subr.mxu0 0.0
    %6042 = vmatpush1.msra.mxu0 0.0
    %6043 = vmatprep.subr.mxu0 0.0
    %6044 = vmatpush1.msra.mxu0 0.0
    %6045 = vmatprep.subr.mxu0 0.0
    %6046 = vmatpush1.msra.mxu0 0.0
    %6047 = vmatprep.subr.mxu0 0.0
    %6048 = vmatpush1.msra.mxu0 0.0
    %6049 = vmatprep.subr.mxu0 0.0
    %6050 = vmatpush1.msra.mxu0 0.0
    %6051 = vmatprep.subr.mxu0 0.0
    %6052 = vmatpush1.msra.mxu0 0.0
    %6053 = vmatprep.subr.mxu0 0.0
    %6054 = vmatpush1.msra.mxu0 0.0
    %6055 = vmatprep.subr.mxu0 0.0
    %6056 = vmatpush1.msra.mxu0 0.0
    %6057 = vmatprep.subr.mxu0 0.0
    %6058 = vmatpush1.msra.mxu0 0.0
    %6059 = vmatprep.subr.mxu0 0.0
    %6060 = vmatpush1.msra.mxu0 0.0
    %6061 = vmatprep.mubr.f32.mxu0 0.0
    %6062 = vmatmul.mubr.f32.gmra.mrb[0].mxu0 %v5950
    %v6063 = vpop.f32.mrb[0].mxu0
    %v6064 = vadd.f32 0.0, %v6063
    %v6065 = vpop.f32.mrb[0].mxu0
    %6066 = vmatprep.mubr.f32.mxu0 0.0
    %6067 = vmatmul.mubr.f32.gmra.mrb[0].mxu0 %v5953
    %v6068 = vpop.f32.mrb[0].mxu0
    %v6069 = vadd.f32 0.0, %v6068
    %v6070 = vpop.f32.mrb[0].mxu0
    %6071 = vmatprep.mubr.f32.mxu0 0.0
    %6072 = vmatmul.mubr.f32.gmra.mrb[0].mxu0 %v5956
    %v6073 = vpop.f32.mrb[0].mxu0
    %v6074 = vadd.f32 0.0, %v6073
    %v6075 = vpop.f32.mrb[0].mxu0
    %6076 = vmatprep.mubr.f32.mxu0 0.0
    %6077 = vmatmul.mubr.f32.gmra.mrb[0].mxu0 %v5959
    %v6078 = vpop.f32.mrb[0].mxu0
    %v6079 = vadd.f32 0.0, %v6078
    %v6080 = vpop.f32.mrb[0].mxu0
    %6081 = vmatprep.mubr.f32.mxu0 0.0
    %6082 = vmatmul.mubr.f32.gmra.mrb[0].mxu0 %v5962
    %v6083 = vpop.f32.mrb[0].mxu0
    %v6084 = vadd.f32 0.0, %v6083
    %v6085 = vpop.f32.mrb[0].mxu0
    %6086 = vmatprep.mubr.f32.mxu0 0.0
    %6087 = vmatmul.mubr.f32.gmra.mrb[0].mxu0 %v5965
    %v6088 = vpop.f32.mrb[0].mxu0
    %v6089 = vadd.f32 0.0, %v6088
    %v6090 = vpop.f32.mrb[0].mxu0
    %6091 = vmatprep.mubr.f32.mxu0 0.0
    %6092 = vmatmul.mubr.f32.gmra.mrb[0].mxu0 %v5968
    %v6093 = vpop.f32.mrb[0].mxu0
    %v6094 = vadd.f32 0.0, %v6093
    %v6095 = vpop.f32.mrb[0].mxu0
    %6096 = vmatprep.mubr.f32.mxu0 0.0
    %6097 = vmatmul.mubr.f32.gmra.mrb[0].mxu0 %v5971
    %v6098 = vpop.f32.mrb[0].mxu0
    %v6099 = vadd.f32 0.0, %v6098
    %v6100 = vpop.f32.mrb[0].mxu0
    %6101 = vmatprep.mubr.f32.mxu0 0.0
    %6102 = vmatmul.mubr.f32.gmra.mrb[0].mxu0 %v5974
    %v6103 = vpop.f32.mrb[0].mxu0
    %v6104 = vadd.f32 0.0, %v6103
    %v6105 = vpop.f32.mrb[0].mxu0
    %6106 = vmatprep.mubr.f32.mxu0 0.0
    %6107 = vmatmul.mubr.f32.gmra.mrb[0].mxu0 %v5977
    %v6108 = vpop.f32.mrb[0].mxu0
    %v6109 = vadd.f32 0.0, %v6108
    %v6110 = vpop.f32.mrb[0].mxu0
    %6111 = vmatprep.mubr.f32.mxu0 0.0
    %6112 = vmatmul.mubr.f32.gmra.mrb[0].mxu0 %v5980
    %v6113 = vpop.f32.mrb[0].mxu0
    %v6114 = vadd.f32 0.0, %v6113
    %v6115 = vpop.f32.mrb[0].mxu0
    %6116 = vmatprep.mubr.f32.mxu0 0.0
    %6117 = vmatmul.mubr.f32.gmra.mrb[0].mxu0 %v5983
    %v6118 = vpop.f32.mrb[0].mxu0
    %v6119 = vadd.f32 0.0, %v6118
    %v6120 = vpop.f32.mrb[0].mxu0
    %6121 = vmatprep.mubr.f32.mxu0 0.0
    %6122 = vmatmul.mubr.f32.gmra.mrb[0].mxu0 %v5986
    %v6123 = vpop.f32.mrb[0].mxu0
    %v6124 = vadd.f32 0.0, %v6123
    %v6125 = vpop.f32.mrb[0].mxu0
    %6126 = vmatprep.mubr.f32.mxu0 0.0
    %6127 = vmatmul.mubr.f32.gmra.mrb[0].mxu0 %v5989
    %v6128 = vpop.f32.mrb[0].mxu0
    %v6129 = vadd.f32 0.0, %v6128
    %v6130 = vpop.f32.mrb[0].mxu0
    %6131 = vmatprep.mubr.f32.mxu0 0.0
    %6132 = vmatmul.mubr.f32.gmra.mrb[0].mxu0 %v5992
    %v6133 = vpop.f32.mrb[0].mxu0
    %v6134 = vadd.f32 0.0, %v6133
    %v6135 = vpop.f32.mrb[0].mxu0
    %6136 = vmatprep.mubr.f32.mxu0 0.0
    %6137 = vmatmul.mubr.f32.gmra.mrb[0].mxu0 %v5995
    %v6138 = vpop.f32.mrb[0].mxu0
    %v6139 = vadd.f32 0.0, %v6138
    %v6140 = vpop.f32.mrb[0].mxu0
    %6141 = vdwg.mxu0
    %v6142 = vadd.f32 %v5914, %v6064
    %v6143 = vadd.f32 %v5915, %v6069
    %v6144 = vadd.f32 %v5916, %v6074
    %v6145 = vadd.f32 %v5917, %v6079
    %v6146 = vadd.f32 %v5918, %v6084
    %v6147 = vadd.f32 %v5919, %v6089
    %v6148 = vadd.f32 %v5920, %v6094
    %v6149 = vadd.f32 %v5921, %v6099
    %v6150 = vadd.f32 %v5922, %v6104
    %v6151 = vadd.f32 %v5923, %v6109
    %v6152 = vadd.f32 %v5924, %v6114
    %v6153 = vadd.f32 %v5925, %v6119
    %v6154 = vadd.f32 %v5926, %v6124
    %v6155 = vadd.f32 %v5927, %v6129
    %v6156 = vadd.f32 %v5928, %v6134
    %v6157 = vadd.f32 %v5929, %v6139
    %v6158 = vld [vmem:[%s3627 + $0x9] sm:$0xff]
    %v6159 = vld [vmem:[%s3627 + $0x21] sm:$0xff]
    %v6160 = vld [vmem:[%s3627 + $0x39] sm:$0xff]
    %v6161 = vld [vmem:[%s3627 + $0x51] sm:$0xff]
    %v6162 = vld [vmem:[%s3627 + $0x69] sm:$0xff]
    %v6163 = vld [vmem:[%s3627 + $0x81] sm:$0xff]
    %v6164 = vld [vmem:[%s3627 + $0x99] sm:$0xff]
    %v6165 = vld [vmem:[%s3627 + $0xb1] sm:$0xff]
    %v6166 = vld [vmem:[%s3627 + $0xf9] sm:$0xff]
    %v6167 = vld [vmem:[%s3627 + $0x111] sm:$0xff]
    %v6168 = vld [vmem:[%s3627 + $0x129] sm:$0xff]
    %v6169 = vld [vmem:[%s3627 + $0x141] sm:$0xff]
    %v6170 = vld [vmem:[%s3627 + $0x159] sm:$0xff]
    %v6171 = vld [vmem:[%s3627 + $0x171] sm:$0xff]
    %v6172 = vld [vmem:[%s3627 + $0x189] sm:$0xff]
    %v6173 = vld [vmem:[%s3627 + $0x1a1] sm:$0xff]
    %s6174 = scalar_lea.vmem [#allocation4], 128
    %v6175 = vld [vmem:[%s6174] sm:$0xff]
    %v6176 = vld [vmem:[%s6174 + $0x8] sm:$0xff]
    %v6178 = vsel %vm102, %v6158, 0
    %v6181 = vsel %vm102, %v6159, 0
    %v6184 = vsel %vm102, %v6160, 0
    %v6187 = vsel %vm102, %v6161, 0
    %v6190 = vsel %vm102, %v6162, 0
    %v6193 = vsel %vm102, %v6163, 0
    %v6196 = vsel %vm102, %v6164, 0
    %v6199 = vsel %vm102, %v6165, 0
    %v6202 = vsel %vm102, %v6166, 0
    %v6205 = vsel %vm102, %v6167, 0
    %v6208 = vsel %vm102, %v6168, 0
    %v6211 = vsel %vm102, %v6169, 0
    %v6214 = vsel %vm102, %v6170, 0
    %v6217 = vsel %vm102, %v6171, 0
    %v6220 = vsel %vm102, %v6172, 0
    %v6223 = vsel %vm102, %v6173, 0
    %6225 = vmatprep.subr.mxu0 0.0
    %6226 = vmatpush1.msra.mxu0 %v6175
    %6227 = vmatprep.subr.mxu0 0.0
    %6228 = vmatpush1.msra.mxu0 %v6176
    %6229 = vmatprep.subr.mxu0 0.0
    %6230 = vmatpush1.msra.mxu0 0.0
    %6231 = vmatprep.subr.mxu0 0.0
    %6232 = vmatpush1.msra.mxu0 0.0
    %6233 = vmatprep.subr.mxu0 0.0
    %6234 = vmatpush1.msra.mxu0 0.0
    %6235 = vmatprep.subr.mxu0 0.0
    %6236 = vmatpush1.msra.mxu0 0.0
    %6237 = vmatprep.subr.mxu0 0.0
    %6238 = vmatpush1.msra.mxu0 0.0
    %6239 = vmatprep.subr.mxu0 0.0
    %6240 = vmatpush1.msra.mxu0 0.0
    %6241 = vmatprep.subr.mxu0 0.0
    %6242 = vmatpush1.msra.mxu0 0.0
    %6243 = vmatprep.subr.mxu0 0.0
    %6244 = vmatpush1.msra.mxu0 0.0
    %6245 = vmatprep.subr.mxu0 0.0
    %6246 = vmatpush1.msra.mxu0 0.0
    %6247 = vmatprep.subr.mxu0 0.0
    %6248 = vmatpush1.msra.mxu0 0.0
    %6249 = vmatprep.subr.mxu0 0.0
    %6250 = vmatpush1.msra.mxu0 0.0
    %6251 = vmatprep.subr.mxu0 0.0
    %6252 = vmatpush1.msra.mxu0 0.0
    %6253 = vmatprep.subr.mxu0 0.0
    %6254 = vmatpush1.msra.mxu0 0.0
    %6255 = vmatprep.subr.mxu0 0.0
    %6256 = vmatpush1.msra.mxu0 0.0
    %6257 = vmatprep.subr.mxu0 0.0
    %6258 = vmatpush1.msra.mxu0 0.0
    %6259 = vmatprep.subr.mxu0 0.0
    %6260 = vmatpush1.msra.mxu0 0.0
    %6261 = vmatprep.subr.mxu0 0.0
    %6262 = vmatpush1.msra.mxu0 0.0
    %6263 = vmatprep.subr.mxu0 0.0
    %6264 = vmatpush1.msra.mxu0 0.0
    %6265 = vmatprep.subr.mxu0 0.0
    %6266 = vmatpush1.msra.mxu0 0.0
    %6267 = vmatprep.subr.mxu0 0.0
    %6268 = vmatpush1.msra.mxu0 0.0
    %6269 = vmatprep.subr.mxu0 0.0
    %6270 = vmatpush1.msra.mxu0 0.0
    %6271 = vmatprep.subr.mxu0 0.0
    %6272 = vmatpush1.msra.mxu0 0.0
    %6273 = vmatprep.subr.mxu0 0.0
    %6274 = vmatpush1.msra.mxu0 0.0
    %6275 = vmatprep.subr.mxu0 0.0
    %6276 = vmatpush1.msra.mxu0 0.0
    %6277 = vmatprep.subr.mxu0 0.0
    %6278 = vmatpush1.msra.mxu0 0.0
    %6279 = vmatprep.subr.mxu0 0.0
    %6280 = vmatpush1.msra.mxu0 0.0
    %6281 = vmatprep.subr.mxu0 0.0
    %6282 = vmatpush1.msra.mxu0 0.0
    %6283 = vmatprep.subr.mxu0 0.0
    %6284 = vmatpush1.msra.mxu0 0.0
    %6285 = vmatprep.subr.mxu0 0.0
    %6286 = vmatpush1.msra.mxu0 0.0
    %6287 = vmatprep.subr.mxu0 0.0
    %6288 = vmatpush1.msra.mxu0 0.0
    %6289 = vmatprep.mubr.f32.mxu0 0.0
    %6290 = vmatmul.mubr.f32.gmra.mrb[0].mxu0 %v6178
    %v6291 = vpop.f32.mrb[0].mxu0
    %v6292 = vadd.f32 0.0, %v6291
    %v6293 = vpop.f32.mrb[0].mxu0
    %6294 = vmatprep.mubr.f32.mxu0 0.0
    %6295 = vmatmul.mubr.f32.gmra.mrb[0].mxu0 %v6181
    %v6296 = vpop.f32.mrb[0].mxu0
    %v6297 = vadd.f32 0.0, %v6296
    %v6298 = vpop.f32.mrb[0].mxu0
    %6299 = vmatprep.mubr.f32.mxu0 0.0
    %6300 = vmatmul.mubr.f32.gmra.mrb[0].mxu0 %v6184
    %v6301 = vpop.f32.mrb[0].mxu0
    %v6302 = vadd.f32 0.0, %v6301
    %v6303 = vpop.f32.mrb[0].mxu0
    %6304 = vmatprep.mubr.f32.mxu0 0.0
    %6305 = vmatmul.mubr.f32.gmra.mrb[0].mxu0 %v6187
    %v6306 = vpop.f32.mrb[0].mxu0
    %v6307 = vadd.f32 0.0, %v6306
    %v6308 = vpop.f32.mrb[0].mxu0
    %6309 = vmatprep.mubr.f32.mxu0 0.0
    %6310 = vmatmul.mubr.f32.gmra.mrb[0].mxu0 %v6190
    %v6311 = vpop.f32.mrb[0].mxu0
    %v6312 = vadd.f32 0.0, %v6311
    %v6313 = vpop.f32.mrb[0].mxu0
    %6314 = vmatprep.mubr.f32.mxu0 0.0
    %6315 = vmatmul.mubr.f32.gmra.mrb[0].mxu0 %v6193
    %v6316 = vpop.f32.mrb[0].mxu0
    %v6317 = vadd.f32 0.0, %v6316
    %v6318 = vpop.f32.mrb[0].mxu0
    %6319 = vmatprep.mubr.f32.mxu0 0.0
    %6320 = vmatmul.mubr.f32.gmra.mrb[0].mxu0 %v6196
    %v6321 = vpop.f32.mrb[0].mxu0
    %v6322 = vadd.f32 0.0, %v6321
    %v6323 = vpop.f32.mrb[0].mxu0
    %6324 = vmatprep.mubr.f32.mxu0 0.0
    %6325 = vmatmul.mubr.f32.gmra.mrb[0].mxu0 %v6199
    %v6326 = vpop.f32.mrb[0].mxu0
    %v6327 = vadd.f32 0.0, %v6326
    %v6328 = vpop.f32.mrb[0].mxu0
    %6329 = vmatprep.mubr.f32.mxu0 0.0
    %6330 = vmatmul.mubr.f32.gmra.mrb[0].mxu0 %v6202
    %v6331 = vpop.f32.mrb[0].mxu0
    %v6332 = vadd.f32 0.0, %v6331
    %v6333 = vpop.f32.mrb[0].mxu0
    %6334 = vmatprep.mubr.f32.mxu0 0.0
    %6335 = vmatmul.mubr.f32.gmra.mrb[0].mxu0 %v6205
    %v6336 = vpop.f32.mrb[0].mxu0
    %v6337 = vadd.f32 0.0, %v6336
    %v6338 = vpop.f32.mrb[0].mxu0
    %6339 = vmatprep.mubr.f32.mxu0 0.0
    %6340 = vmatmul.mubr.f32.gmra.mrb[0].mxu0 %v6208
    %v6341 = vpop.f32.mrb[0].mxu0
    %v6342 = vadd.f32 0.0, %v6341
    %v6343 = vpop.f32.mrb[0].mxu0
    %6344 = vmatprep.mubr.f32.mxu0 0.0
    %6345 = vmatmul.mubr.f32.gmra.mrb[0].mxu0 %v6211
    %v6346 = vpop.f32.mrb[0].mxu0
    %v6347 = vadd.f32 0.0, %v6346
    %v6348 = vpop.f32.mrb[0].mxu0
    %6349 = vmatprep.mubr.f32.mxu0 0.0
    %6350 = vmatmul.mubr.f32.gmra.mrb[0].mxu0 %v6214
    %v6351 = vpop.f32.mrb[0].mxu0
    %v6352 = vadd.f32 0.0, %v6351
    %v6353 = vpop.f32.mrb[0].mxu0
    %6354 = vmatprep.mubr.f32.mxu0 0.0
    %6355 = vmatmul.mubr.f32.gmra.mrb[0].mxu0 %v6217
    %v6356 = vpop.f32.mrb[0].mxu0
    %v6357 = vadd.f32 0.0, %v6356
    %v6358 = vpop.f32.mrb[0].mxu0
    %6359 = vmatprep.mubr.f32.mxu0 0.0
    %6360 = vmatmul.mubr.f32.gmra.mrb[0].mxu0 %v6220
    %v6361 = vpop.f32.mrb[0].mxu0
    %v6362 = vadd.f32 0.0, %v6361
    %v6363 = vpop.f32.mrb[0].mxu0
    %6364 = vmatprep.mubr.f32.mxu0 0.0
    %6365 = vmatmul.mubr.f32.gmra.mrb[0].mxu0 %v6223
    %v6366 = vpop.f32.mrb[0].mxu0
    %v6367 = vadd.f32 0.0, %v6366
    %v6368 = vpop.f32.mrb[0].mxu0
    %6369 = vdwg.mxu0
    %v6370 = vadd.f32 %v6142, %v6292
    %v6371 = vadd.f32 %v6143, %v6297
    %v6372 = vadd.f32 %v6144, %v6302
    %v6373 = vadd.f32 %v6145, %v6307
    %v6374 = vadd.f32 %v6146, %v6312
    %v6375 = vadd.f32 %v6147, %v6317
    %v6376 = vadd.f32 %v6148, %v6322
    %v6377 = vadd.f32 %v6149, %v6327
    %v6378 = vadd.f32 %v6150, %v6332
    %v6379 = vadd.f32 %v6151, %v6337
    %v6380 = vadd.f32 %v6152, %v6342
    %v6381 = vadd.f32 %v6153, %v6347
    %v6382 = vadd.f32 %v6154, %v6352
    %v6383 = vadd.f32 %v6155, %v6357
    %v6384 = vadd.f32 %v6156, %v6362
    %v6385 = vadd.f32 %v6157, %v6367
    %v6386 = vld [vmem:[%s6] sm:$0x1]
    %v6388 = vlaneseq
    %v6389 = vshrl.u32 %v6388, 7
    %v6390 = vsub.s32 0, %v6389
    %v6391 = vrot.slane %v6386, %v6390
    %v6393 = vadd.f32 %v6370, %v6391
    %v6394 = vadd.f32 %v6371, %v6391
    %v6395 = vadd.f32 %v6372, %v6391
    %v6396 = vadd.f32 %v6373, %v6391
    %v6397 = vadd.f32 %v6374, %v6391
    %v6398 = vadd.f32 %v6375, %v6391
    %v6399 = vadd.f32 %v6376, %v6391
    %v6400 = vadd.f32 %v6377, %v6391
    %v6401 = vadd.f32 %v6378, %v6391
    %v6402 = vadd.f32 %v6379, %v6391
    %v6403 = vadd.f32 %v6380, %v6391
    %v6404 = vadd.f32 %v6381, %v6391
    %v6405 = vadd.f32 %v6382, %v6391
    %v6406 = vadd.f32 %v6383, %v6391
    %v6407 = vadd.f32 %v6384, %v6391
    %v6408 = vadd.f32 %v6385, %v6391
    %v6409 = vmax.f32 %v6393, 0.0
    %v6410 = vmax.f32 %v6394, 0.0
    %v6411 = vmax.f32 %v6395, 0.0
    %v6412 = vmax.f32 %v6396, 0.0
    %v6413 = vmax.f32 %v6397, 0.0
    %v6414 = vmax.f32 %v6398, 0.0
    %v6415 = vmax.f32 %v6399, 0.0
    %v6416 = vmax.f32 %v6400, 0.0
    %v6417 = vmax.f32 %v6401, 0.0
    %v6418 = vmax.f32 %v6402, 0.0
    %v6419 = vmax.f32 %v6403, 0.0
    %v6420 = vmax.f32 %v6404, 0.0
    %v6421 = vmax.f32 %v6405, 0.0
    %v6422 = vmax.f32 %v6406, 0.0
    %v6423 = vmax.f32 %v6407, 0.0
    %v6424 = vmax.f32 %v6408, 0.0
    %vm6425 = vcmask 261120
    %6426 = vst.msk [vmem:[%s7] sm:$0xff] %vm6425, %v6409
    %6427 = vst.msk [vmem:[%s7 + $0x8] sm:$0xff] %vm6425, %v6410
    %6428 = vst.msk [vmem:[%s7 + $0x10] sm:$0xff] %vm6425, %v6411
    %6429 = vst.msk [vmem:[%s7 + $0x18] sm:$0xff] %vm6425, %v6412
    %6430 = vst.msk [vmem:[%s7 + $0x20] sm:$0xff] %vm6425, %v6413
    %6431 = vst.msk [vmem:[%s7 + $0x28] sm:$0xff] %vm6425, %v6414
    %6432 = vst.msk [vmem:[%s7 + $0x30] sm:$0xff] %vm6425, %v6415
    %6433 = vst.msk [vmem:[%s7 + $0x38] sm:$0xff] %vm6425, %v6416
    %6434 = vst.msk [vmem:[%s7 + $0x40] sm:$0xff] %vm6425, %v6417
    %6435 = vst.msk [vmem:[%s7 + $0x48] sm:$0xff] %vm6425, %v6418
    %6436 = vst.msk [vmem:[%s7 + $0x50] sm:$0xff] %vm6425, %v6419
    %6437 = vst.msk [vmem:[%s7 + $0x58] sm:$0xff] %vm6425, %v6420
    %6438 = vst.msk [vmem:[%s7 + $0x60] sm:$0xff] %vm6425, %v6421
    %6439 = vst.msk [vmem:[%s7 + $0x68] sm:$0xff] %vm6425, %v6422
    %6440 = vst.msk [vmem:[%s7 + $0x70] sm:$0xff] %vm6425, %v6423
    %6441 = vst.msk [vmem:[%s7 + $0x78] sm:$0xff] %vm6425, %v6424
    // Predicated region
    $region34: #{forward.2} parent=1 // pred_check
      _
    $region35: #{forward.2} parent=1 // pred_check_branch
      %6443 = sbr.rel (0) target = $region37
    $region36: #{forward.2} parent=1 // pred_region
      _
    $region37: #{forward.2} parent=1 // pred_fallthru
      _
    // Predicated region
    $region38: #{forward.2} parent=1 // pred_check
      _
    $region39: #{forward.2} parent=1 // pred_check_branch
      %6445 = sbr.rel (0) target = $region41
    $region40: #{forward.2} parent=1 // pred_region
      _
    $region41: #{forward.2} parent=1 // pred_fallthru
      _
    %6446 = vsyncpa [#allocation5], 1

</llo_original>
